<compile_context>
chip_gen: v6e
topology: v6e:2x2x1
jax: 0.10.0
libtpu: 0.0.40
codegen_flags: <defaults>
</compile_context>

<pallas_src>
import numpy as np

import jax
import jax.numpy as jnp
from jax.experimental import pallas as pl
from jax.experimental.pallas import tpu as pltpu


# ----------------------------------------------------------------------------
# The fused kernel
# ----------------------------------------------------------------------------
def _autoencoder_kernel(xp_ref, w1_ref, b1_ref, w2_ref, b2_ref,
                        wf1_ref, bf1_ref, wf2_ref, bf2_ref,
                        wf3_ref, bf3_ref, wf4_ref, bf4_ref,
                        wt1_ref, bt1_ref, wt2_ref, bt2_ref,
                        out_ref, h1s, d1s, y1s):
    """Whole Autoencoder forward for a (small) batch, fully inside VMEM.

    Activation layouts (lanes = width x channels of one image row):
      xp_ref : (4, B, 8, 32)   padded 28x28 input, row-phase (mod 4) split
      h1s    : (2, B, 8, 224)  conv1 output row-phases (14x14x16), zero-padded
      d1s    : (B, 9, 224)     dec-fc2 output rows (7x7x32), zero-padded rows
      y1s    : (2, B, 9, 224)  deconv1 output row-phases (14x14x16), zero-pad
      out_ref: (B, 4, 7, 28)   final 28x28 image, output-row-phase (mod 4) major
    """
    B = out_ref.shape[0]
    bf16 = jnp.bfloat16

    def mm(lhs, rhs):
        return jnp.dot(lhs, rhs, preferred_element_type=jnp.float32)

    def accsum(terms):
        acc = terms[0]
        for t in terms[1:]:
            acc = acc + t
        return acc

    # Padding rows of the scratch activations must be exactly zero.
    h1s[...] = jnp.zeros(h1s.shape, h1s.dtype)
    d1s[...] = jnp.zeros(d1s.shape, d1s.dtype)
    y1s[...] = jnp.zeros(y1s.shape, y1s.dtype)

    # conv2: vertical tap kh -> (conv1-output row-phase, window start)
    conv2_src = ((1, 0), (0, 0), (1, 1), (0, 1))
    # deconv2: output row-phase r = 2p + a2 -> 2 terms of (y1 phase, window, kh)
    dc2_terms = (((0, 1, 1), (1, 0, 3)),    # (p=0, a2=0)
                 ((0, 1, 2), (1, 1, 0)),    # (p=0, a2=1)
                 ((1, 1, 1), (0, 1, 3)),    # (p=1, a2=0)
                 ((1, 1, 2), (0, 2, 0)))    # (p=1, a2=1)

    for b in range(B):
        # ---- encoder Conv2d(1, 16, k4, s2, p1) + ReLU ----------------------
        # Output row-phase e (rows 2u+e); vertical tap kh reads padded input
        # row 4u + (2e + kh) -> input phase (2e+kh) % 4, window start (2e+kh)//4
        for e in range(2):
            terms = []
            for kh in range(4):
                s = 2 * e + kh
                x_win = xp_ref[s % 4, b, pl.ds(s // 4, 7), :]          # (7, 32)
                terms.append(mm(x_win, w1_ref[kh, :, :]))              # (7, 224)
            h = jnp.maximum(accsum(terms) + b1_ref[0:7, :], 0.0)
            # phase 0 -> rows 0..6, phase 1 -> rows 1..7 (rows 7 / 0 stay zero)
            h1s[e, b, pl.ds(e, 7), :] = h.astype(bf16)

        # ---- encoder Conv2d(16, 32, k4, s2, p1) + ReLU ---------------------
        terms = [mm(h1s[ph, b, pl.ds(w0, 7), :], w2_ref[kh, :, :])
                 for kh, (ph, w0) in enumerate(conv2_src)]
        c2 = jnp.maximum(accsum(terms) + b2_ref[0:7, :], 0.0).astype(bf16)

        # ---- Linear(1568,H)+ReLU ; Linear(H,L) ; Linear(L,H)+ReLU ;
        #      Linear(H,1568)+ReLU  (all fused, per batch element) -----------
        terms = [mm(c2[r:r + 1, :], wf1_ref[r, :, :]) for r in range(7)]
        hvec = jnp.maximum(accsum(terms) + bf1_ref[0:1, :], 0.0).astype(bf16)
        z = (mm(hvec, wf2_ref[...]) + bf2_ref[0:1, :]).astype(bf16)     # latent
        g = jnp.maximum(mm(z, wf3_ref[...]) + bf3_ref[0:1, :], 0.0).astype(bf16)
        for r in range(7):
            row = jnp.maximum(mm(g, wf4_ref[r, :, :]) + bf4_ref[r:r + 1, :], 0.0)
            d1s[b, pl.ds(r + 1, 1), :] = row.astype(bf16)               # rows 1..7

        # ---- decoder ConvTranspose2d(32, 16, k4, s2, p1) + ReLU ------------
        # sub-pixel: output row-phase a=0 uses kh={3,1}, a=1 uses kh={2,0}
        for a in range(2):
            acc = (mm(d1s[b, pl.ds(a, 7), :], wt1_ref[a, 0, :, :]) +
                   mm(d1s[b, pl.ds(a + 1, 7), :], wt1_ref[a, 1, :, :]))
            y = jnp.maximum(acc + bt1_ref[0:7, :], 0.0)
            y1s[a, b, pl.ds(1, 7), :] = y.astype(bf16)                  # rows 1..7

        # ---- decoder ConvTranspose2d(16, 1, k4, s2, p1) (no final act.) ----
        for r_out, spec in enumerate(dc2_terms):
            terms = [mm(y1s[ph, b, pl.ds(w0, 7), :], wt2_ref[kh, :, :])
                     for (ph, w0, kh) in spec]
            out_ref[b, r_out, :, :] = (accsum(terms) +
                                       bt2_ref[0:7, :]).astype(out_ref.dtype)


# ----------------------------------------------------------------------------
# Forward pass (jitted): tiny input prep + one pallas_call + tiny output glue
# ----------------------------------------------------------------------------
def autoencoder_forward(params, x):
    """x: (B, 1, 28, 28) float32 (PyTorch NCHW) -> (B, 1, 28, 28) float32."""
    B = x.shape[0]
    assert x.shape[1:] == (1, 28, 28)

    # Input prep (~3 XLA ops on 6 KB): zero-pad to 32x32 and row-phase split.
    xpad = jnp.pad(x.reshape(B, 28, 28), ((0, 0), (1, 3), (1, 3)))
    xp = jnp.transpose(xpad.reshape(B, 8, 4, 32), (2, 0, 1, 3)).astype(jnp.bfloat16)

    order = ("w1", "b1", "w2", "b2", "wf1", "bf1", "wf2", "bf2",
             "wf3", "bf3", "wf4", "bf4", "wt1", "bt1", "wt2", "bt2")
    args = (xp,) + tuple(params[k] for k in order)

    out4 = pl.pallas_call(
        _autoencoder_kernel,
        out_shape=jax.ShapeDtypeStruct((B, 4, 7, 28), jnp.float32),
        in_specs=[pl.BlockSpec(memory_space=pltpu.MemorySpace.VMEM)
                  for _ in args],
        out_specs=pl.BlockSpec(memory_space=pltpu.MemorySpace.VMEM),
        scratch_shapes=[
            pltpu.VMEM((2, B, 8, 224), jnp.bfloat16),   # conv1 out row-phases
            pltpu.VMEM((B, 9, 224), jnp.bfloat16),      # dec-fc2 out (+zero rows)
            pltpu.VMEM((2, B, 9, 224), jnp.bfloat16),   # deconv1 out row-phases
        ],
    )(*args)

    # Output row o = 4q + r : (B, 4, 7, 28) -> (B, 28, 28) -> NCHW (6 KB glue).
    return jnp.transpose(out4, (0, 2, 1, 3)).reshape(B, 1, 28, 28)


# ----------------------------------------------------------------------------
# Parameters: raw PyTorch-layout init + one-time kernel-ready preparation
# ----------------------------------------------------------------------------
def init_raw_params(key, hidden_dim_size, latent_dim_size):
    """Parameters in the original PyTorch layouts (deterministic He-ish init)."""
    H, L = hidden_dim_size, latent_dim_size
    ks = jax.random.split(key, 16)

    def w(k, shape, fan_in):
        return jax.random.normal(k, shape, jnp.float32) * np.sqrt(2.0 / fan_in)

    def b(k, shape):
        return 0.05 * jax.random.normal(k, shape, jnp.float32)

    return {
        "e_c1_w": w(ks[0], (16, 1, 4, 4), 16),     "e_c1_b": b(ks[1], (16,)),
        "e_c2_w": w(ks[2], (32, 16, 4, 4), 256),   "e_c2_b": b(ks[3], (32,)),
        "e_l1_w": w(ks[4], (H, 1568), 1568),       "e_l1_b": b(ks[5], (H,)),
        "e_l2_w": w(ks[6], (L, H), H),             "e_l2_b": b(ks[7], (L,)),
        "d_l1_w": w(ks[8], (H, L), L),             "d_l1_b": b(ks[9], (H,)),
        "d_l2_w": w(ks[10], (1568, H), H),         "d_l2_b": b(ks[11], (1568,)),
        "d_ct1_w": w(ks[12], (32, 16, 4, 4), 512), "d_ct1_b": b(ks[13], (16,)),
        "d_ct2_w": w(ks[14], (16, 1, 4, 4), 256),  "d_ct2_b": b(ks[15], (1,)),
    }


def prepare_params(raw, hidden_dim_size, latent_dim_size):
    """One-time host-side weight prep (hoisted out of the jitted forward).

    Horizontal conv structure (taps, stride=2, padding=1) is folded into
    block-structured per-vertical-tap weight matrices acting on whole image
    rows (lanes = width x channels).  Vertical structure is handled in-kernel
    with row-phase windows.  No padded lanes exist in any weight."""
    H, L = hidden_dim_size, latent_dim_size
    f32 = np.float32
    r = {k: np.asarray(v, f32) for k, v in raw.items()}
    p = {}

    # encoder Conv2d(1, 16): (4 vertical taps, 32 padded-cols, 14*16 out-lanes)
    w = r["e_c1_w"]                                       # (16, 1, 4, 4)
    w1 = np.zeros((4, 32, 224), f32)
    for kh in range(4):
        for ow in range(14):
            for kw in range(4):
                w1[kh, 2 * ow + kw, ow * 16:(ow + 1) * 16] += w[:, 0, kh, kw]
    p["w1"] = w1
    p["b1"] = np.broadcast_to(np.tile(r["e_c1_b"], 14), (8, 224)).copy()

    # encoder Conv2d(16, 32): (4, 14*16, 7*32)
    w = r["e_c2_w"]                                       # (32, 16, 4, 4)
    w2 = np.zeros((4, 224, 224), f32)
    for kh in range(4):
        for ow in range(7):
            for kw in range(4):
                ic = 2 * ow + kw - 1
                if 0 <= ic <= 13:
                    w2[kh, ic * 16:(ic + 1) * 16,
                       ow * 32:(ow + 1) * 32] += w[:, :, kh, kw].T
    p["w2"] = w2
    p["b2"] = np.broadcast_to(np.tile(r["e_c2_b"], 7), (8, 224)).copy()

    # encoder Linear(32*7*7, H): torch flatten order (c, h, w) -> per-row (7, 224, H)
    w = r["e_l1_w"]                                       # (H, 1568)
    wf1 = np.zeros((7, 224, H), f32)
    for h_ in range(7):
        for w_ in range(7):
            for c in range(32):
                wf1[h_, w_ * 32 + c, :] = w[:, c * 49 + h_ * 7 + w_]
    p["wf1"] = wf1
    p["bf1"] = np.broadcast_to(r["e_l1_b"], (8, H)).copy()

    # encoder Linear(H, L) / decoder Linear(L, H)
    p["wf2"] = r["e_l2_w"].T.copy()
    p["bf2"] = np.broadcast_to(r["e_l2_b"], (8, L)).copy()
    p["wf3"] = r["d_l1_w"].T.copy()
    p["bf3"] = np.broadcast_to(r["d_l1_b"], (8, H)).copy()

    # decoder Linear(H, 32*7*7): torch unflatten order (c, h, w) -> per-row (7, H, 224)
    w, bv = r["d_l2_w"], r["d_l2_b"]                      # (1568, H), (1568,)
    wf4 = np.zeros((7, H, 224), f32)
    bf4 = np.zeros((8, 224), f32)
    for h_ in range(7):
        for w_ in range(7):
            for c in range(32):
                j = c * 49 + h_ * 7 + w_
                wf4[h_, :, w_ * 32 + c] = w[j, :]
                bf4[h_, w_ * 32 + c] = bv[j]
    p["wf4"] = wf4
    p["bf4"] = bf4

    # decoder ConvTranspose2d(32, 16): sub-pixel terms (2 output row-phases x 2 taps)
    w = r["d_ct1_w"]                                      # (Cin=32, Cout=16, 4, 4)
    kh_of = {(0, 0): 3, (0, 1): 1, (1, 0): 2, (1, 1): 0}
    wt1 = np.zeros((2, 2, 224, 224), f32)
    for (a, t), kh in kh_of.items():
        for ic in range(7):
            for kw in range(4):
                oc = 2 * ic + kw - 1
                if 0 <= oc <= 13:
                    wt1[a, t, ic * 32:(ic + 1) * 32,
                        oc * 16:(oc + 1) * 16] += w[:, :, kh, kw]
    p["wt1"] = wt1
    p["bt1"] = np.broadcast_to(np.tile(r["d_ct1_b"], 14), (8, 224)).copy()

    # decoder ConvTranspose2d(16, 1): (4 vertical taps, 14*16, 28 out cols)
    w = r["d_ct2_w"]                                      # (16, 1, 4, 4)
    wt2 = np.zeros((4, 224, 28), f32)
    for kh in range(4):
        for ic in range(14):
            for kw in range(4):
                ox = 2 * ic + kw - 1
                if 0 <= ox <= 27:
                    wt2[kh, ic * 16:(ic + 1) * 16, ox] += w[:, 0, kh, kw]
    p["wt2"] = wt2
    p["bt2"] = np.full((8, 28), float(r["d_ct2_b"][0]), f32)

    return {k: jnp.asarray(v, jnp.bfloat16 if k[0] == "w" else jnp.float32)
            for k, v in p.items()}


# ----------------------------------------------------------------------------
# Pure-JAX f32 reference (exact PyTorch forward semantics)
# ----------------------------------------------------------------------------
def autoencoder_reference(raw, x):
    B = x.shape[0]

    def conv(h, w, b, stride):
        y = jax.lax.conv_general_dilated(
            h, w, window_strides=(stride, stride), padding=((1, 1), (1, 1)),
            dimension_numbers=("NCHW", "OIHW", "NCHW"))
        return y + b.reshape(1, -1, 1, 1)

    def deconv(h, w, b):   # ConvTranspose2d(k=4, s=2, p=1); w: (Cin, Cout, kh, kw)
        w_ = jnp.transpose(jnp.flip(w, (2, 3)), (1, 0, 2, 3))
        y = jax.lax.conv_general_dilated(
            h, w_, window_strides=(1, 1), padding=((2, 2), (2, 2)),
            lhs_dilation=(2, 2), dimension_numbers=("NCHW", "OIHW", "NCHW"))
        return y + b.reshape(1, -1, 1, 1)

    h = jax.nn.relu(conv(x, raw["e_c1_w"], raw["e_c1_b"], 2))
    h = jax.nn.relu(conv(h, raw["e_c2_w"], raw["e_c2_b"], 2))
    h = h.reshape(B, 32 * 7 * 7)
    h = jax.nn.relu(h @ raw["e_l1_w"].T + raw["e_l1_b"])
    z = h @ raw["e_l2_w"].T + raw["e_l2_b"]
    d = jax.nn.relu(z @ raw["d_l1_w"].T + raw["d_l1_b"])
    d = jax.nn.relu(d @ raw["d_l2_w"].T + raw["d_l2_b"])
    d = d.reshape(B, 32, 7, 7)
    d = jax.nn.relu(deconv(d, raw["d_ct1_w"], raw["d_ct1_b"]))
    return deconv(d, raw["d_ct2_w"], raw["d_ct2_b"])


if __name__ == "__main__":
    latent_dim_size = 8
    hidden_dim_size = 32
    batch = 2

    key = jax.random.PRNGKey(0)
    k_x, k_p = jax.random.split(key)
    x = jax.random.normal(k_x, (batch, 1, 28, 28), jnp.float32)

    raw = init_raw_params(k_p, hidden_dim_size, latent_dim_size)
    params = prepare_params(raw, hidden_dim_size, latent_dim_size)  # one-time prep

    fwd = jax.jit(autoencoder_forward)
    out = jax.block_until_ready(fwd(params, x))

    assert out.shape == (batch, 1, 28, 28), out.shape
    assert out.dtype == jnp.float32
    assert bool(jnp.all(jnp.isfinite(out)))

    # Tolerance check vs a pure-JAX f32 reference (kernel uses bf16 MXU inputs
    # with f32 accumulation; a layout bug would produce O(1) errors).
    ref = autoencoder_reference(raw, x)
    max_err = float(jnp.max(jnp.abs(out - ref)))
    assert max_err < 0.15, f"kernel deviates from reference: max abs err {max_err}"

    print("KERNEL_OK")
</pallas_src>

<mosaic_0001>
module attributes {stable_mosaic.version = 11 : i64} {
  func.func @_autoencoder_kernel(%arg0: memref<4x2x8x32xbf16, #tpu.memory_space<vmem>>, %arg1: memref<4x32x224xbf16, #tpu.memory_space<vmem>>, %arg2: memref<8x224xf32, #tpu.memory_space<vmem>>, %arg3: memref<4x224x224xbf16, #tpu.memory_space<vmem>>, %arg4: memref<8x224xf32, #tpu.memory_space<vmem>>, %arg5: memref<7x224x32xbf16, #tpu.memory_space<vmem>>, %arg6: memref<8x32xf32, #tpu.memory_space<vmem>>, %arg7: memref<32x8xbf16, #tpu.memory_space<vmem>>, %arg8: memref<8x8xf32, #tpu.memory_space<vmem>>, %arg9: memref<8x32xbf16, #tpu.memory_space<vmem>>, %arg10: memref<8x32xf32, #tpu.memory_space<vmem>>, %arg11: memref<7x32x224xbf16, #tpu.memory_space<vmem>>, %arg12: memref<8x224xf32, #tpu.memory_space<vmem>>, %arg13: memref<2x2x224x224xbf16, #tpu.memory_space<vmem>>, %arg14: memref<8x224xf32, #tpu.memory_space<vmem>>, %arg15: memref<4x224x28xbf16, #tpu.memory_space<vmem>>, %arg16: memref<8x28xf32, #tpu.memory_space<vmem>>, %arg17: memref<2x4x7x28xf32, #tpu.memory_space<vmem>>, %arg18: memref<2x2x8x224xbf16, #tpu.memory_space<vmem>>, %arg19: memref<2x9x224xbf16, #tpu.memory_space<vmem>>, %arg20: memref<2x2x9x224xbf16, #tpu.memory_space<vmem>>) attributes {dimension_semantics = [], scalar_prefetch = 0 : i64, scratch_operands = 3 : i64, tpu.core_type = #tpu.core_type<tc>} {
    %cst = arith.constant 0.000000e+00 : bf16
    %0 = vector.broadcast %cst : bf16 to vector<2x2x8x224xbf16>
    %c0 = arith.constant 0 : index
    %c0_0 = arith.constant 0 : index
    %c0_1 = arith.constant 0 : index
    %c0_2 = arith.constant 0 : index
    %1 = vector.load %arg18[%c0, %c0_0, %c0_1, %c0_2] : memref<2x2x8x224xbf16, #tpu.memory_space<vmem>>, vector<2x2x8x224xbf16>
    tpu.vector_store %arg18[%c0, %c0_0, %c0_1, %c0_2], %0 {strides = array<i32>} : memref<2x2x8x224xbf16, #tpu.memory_space<vmem>>, vector<2x2x8x224xbf16>,
    %cst_3 = arith.constant 0.000000e+00 : bf16
    %2 = vector.broadcast %cst_3 : bf16 to vector<2x9x224xbf16>
    %c0_4 = arith.constant 0 : index
    %c0_5 = arith.constant 0 : index
    %c0_6 = arith.constant 0 : index
    %3 = vector.load %arg19[%c0_4, %c0_5, %c0_6] : memref<2x9x224xbf16, #tpu.memory_space<vmem>>, vector<2x9x224xbf16>
    tpu.vector_store %arg19[%c0_4, %c0_5, %c0_6], %2 {strides = array<i32>} : memref<2x9x224xbf16, #tpu.memory_space<vmem>>, vector<2x9x224xbf16>,
    %cst_7 = arith.constant 0.000000e+00 : bf16
    %4 = vector.broadcast %cst_7 : bf16 to vector<2x2x9x224xbf16>
    %c0_8 = arith.constant 0 : index
    %c0_9 = arith.constant 0 : index
    %c0_10 = arith.constant 0 : index
    %c0_11 = arith.constant 0 : index
    %5 = vector.load %arg20[%c0_8, %c0_9, %c0_10, %c0_11] : memref<2x2x9x224xbf16, #tpu.memory_space<vmem>>, vector<2x2x9x224xbf16>
    tpu.vector_store %arg20[%c0_8, %c0_9, %c0_10, %c0_11], %4 {strides = array<i32>} : memref<2x2x9x224xbf16, #tpu.memory_space<vmem>>, vector<2x2x9x224xbf16>,
    %c0_12 = arith.constant 0 : index
    %c0_13 = arith.constant 0 : index
    %c0_14 = arith.constant 0 : index
    %c0_15 = arith.constant 0 : index
    %6 = vector.load %arg0[%c0_12, %c0_13, %c0_14, %c0_15] : memref<4x2x8x32xbf16, #tpu.memory_space<vmem>>, vector<1x1x7x32xbf16>
    %7 = vector.shape_cast %6 : vector<1x1x7x32xbf16> to vector<7x32xbf16>
    %c0_16 = arith.constant 0 : index
    %c0_17 = arith.constant 0 : index
    %c0_18 = arith.constant 0 : index
    %8 = vector.load %arg1[%c0_16, %c0_17, %c0_18] : memref<4x32x224xbf16, #tpu.memory_space<vmem>>, vector<1x32x224xbf16>
    %9 = vector.shape_cast %8 : vector<1x32x224xbf16> to vector<32x224xbf16>
    %cst_19 = arith.constant dense<0.000000e+00> : vector<7x224xf32>
    %10 = tpu.matmul %7, %9, %cst_19 {dimension_numbers = #tpu.dot_dimension_numbers<[1], [0], [0], [1], [0, 0, 1, 1], [], []>} : vector<7x32xbf16>, vector<32x224xbf16>, vector<7x224xf32> -> vector<7x224xf32>
    %c1 = arith.constant 1 : index
    %c0_20 = arith.constant 0 : index
    %c0_21 = arith.constant 0 : index
    %c0_22 = arith.constant 0 : index
    %11 = vector.load %arg0[%c1, %c0_20, %c0_21, %c0_22] : memref<4x2x8x32xbf16, #tpu.memory_space<vmem>>, vector<1x1x7x32xbf16>
    %12 = vector.shape_cast %11 : vector<1x1x7x32xbf16> to vector<7x32xbf16>
    %c1_23 = arith.constant 1 : index
    %c0_24 = arith.constant 0 : index
    %c0_25 = arith.constant 0 : index
    %13 = vector.load %arg1[%c1_23, %c0_24, %c0_25] : memref<4x32x224xbf16, #tpu.memory_space<vmem>>, vector<1x32x224xbf16>
    %14 = vector.shape_cast %13 : vector<1x32x224xbf16> to vector<32x224xbf16>
    %cst_26 = arith.constant dense<0.000000e+00> : vector<7x224xf32>
    %15 = tpu.matmul %12, %14, %cst_26 {dimension_numbers = #tpu.dot_dimension_numbers<[1], [0], [0], [1], [0, 0, 1, 1], [], []>} : vector<7x32xbf16>, vector<32x224xbf16>, vector<7x224xf32> -> vector<7x224xf32>
    %c2 = arith.constant 2 : index
    %c0_27 = arith.constant 0 : index
    %c0_28 = arith.constant 0 : index
    %c0_29 = arith.constant 0 : index
    %16 = vector.load %arg0[%c2, %c0_27, %c0_28, %c0_29] : memref<4x2x8x32xbf16, #tpu.memory_space<vmem>>, vector<1x1x7x32xbf16>
    %17 = vector.shape_cast %16 : vector<1x1x7x32xbf16> to vector<7x32xbf16>
    %c2_30 = arith.constant 2 : index
    %c0_31 = arith.constant 0 : index
    %c0_32 = arith.constant 0 : index
    %18 = vector.load %arg1[%c2_30, %c0_31, %c0_32] : memref<4x32x224xbf16, #tpu.memory_space<vmem>>, vector<1x32x224xbf16>
    %19 = vector.shape_cast %18 : vector<1x32x224xbf16> to vector<32x224xbf16>
    %cst_33 = arith.constant dense<0.000000e+00> : vector<7x224xf32>
    %20 = tpu.matmul %17, %19, %cst_33 {dimension_numbers = #tpu.dot_dimension_numbers<[1], [0], [0], [1], [0, 0, 1, 1], [], []>} : vector<7x32xbf16>, vector<32x224xbf16>, vector<7x224xf32> -> vector<7x224xf32>
    %c3 = arith.constant 3 : index
    %c0_34 = arith.constant 0 : index
    %c0_35 = arith.constant 0 : index
    %c0_36 = arith.constant 0 : index
    %21 = vector.load %arg0[%c3, %c0_34, %c0_35, %c0_36] : memref<4x2x8x32xbf16, #tpu.memory_space<vmem>>, vector<1x1x7x32xbf16>
    %22 = vector.shape_cast %21 : vector<1x1x7x32xbf16> to vector<7x32xbf16>
    %c3_37 = arith.constant 3 : index
    %c0_38 = arith.constant 0 : index
    %c0_39 = arith.constant 0 : index
    %23 = vector.load %arg1[%c3_37, %c0_38, %c0_39] : memref<4x32x224xbf16, #tpu.memory_space<vmem>>, vector<1x32x224xbf16>
    %24 = vector.shape_cast %23 : vector<1x32x224xbf16> to vector<32x224xbf16>
    %cst_40 = arith.constant dense<0.000000e+00> : vector<7x224xf32>
    %25 = tpu.matmul %22, %24, %cst_40 {dimension_numbers = #tpu.dot_dimension_numbers<[1], [0], [0], [1], [0, 0, 1, 1], [], []>} : vector<7x32xbf16>, vector<32x224xbf16>, vector<7x224xf32> -> vector<7x224xf32>
    %26 = arith.addf %10, %15 : vector<7x224xf32>
    %27 = arith.addf %26, %20 : vector<7x224xf32>
    %28 = arith.addf %27, %25 : vector<7x224xf32>
    %c0_41 = arith.constant 0 : index
    %c0_42 = arith.constant 0 : index
    %29 = vector.load %arg2[%c0_41, %c0_42] : memref<8x224xf32, #tpu.memory_space<vmem>>, vector<7x224xf32>
    %30 = arith.addf %28, %29 : vector<7x224xf32>
    %cst_43 = arith.constant 0.000000e+00 : f32
    %31 = vector.broadcast %cst_43 : f32 to vector<7x224xf32>
    %32 = arith.maximumf %30, %31 : vector<7x224xf32>
    %33 = arith.truncf %32 : vector<7x224xf32> to vector<7x224xbf16>
    %c0_44 = arith.constant 0 : index
    %c0_45 = arith.constant 0 : index
    %c0_46 = arith.constant 0 : index
    %c0_47 = arith.constant 0 : index
    %34 = vector.load %arg18[%c0_44, %c0_45, %c0_46, %c0_47] : memref<2x2x8x224xbf16, #tpu.memory_space<vmem>>, vector<1x1x7x224xbf16>
    %35 = vector.shape_cast %34 : vector<1x1x7x224xbf16> to vector<7x224xbf16>
    %36 = vector.shape_cast %33 : vector<7x224xbf16> to vector<1x1x7x224xbf16>
    tpu.vector_store %arg18[%c0_44, %c0_45, %c0_46, %c0_47], %36 {strides = array<i32>} : memref<2x2x8x224xbf16, #tpu.memory_space<vmem>>, vector<1x1x7x224xbf16>,
    %c2_48 = arith.constant 2 : index
    %c0_49 = arith.constant 0 : index
    %c0_50 = arith.constant 0 : index
    %c0_51 = arith.constant 0 : index
    %37 = vector.load %arg0[%c2_48, %c0_49, %c0_50, %c0_51] : memref<4x2x8x32xbf16, #tpu.memory_space<vmem>>, vector<1x1x7x32xbf16>
    %38 = vector.shape_cast %37 : vector<1x1x7x32xbf16> to vector<7x32xbf16>
    %c0_52 = arith.constant 0 : index
    %c0_53 = arith.constant 0 : index
    %c0_54 = arith.constant 0 : index
    %39 = vector.load %arg1[%c0_52, %c0_53, %c0_54] : memref<4x32x224xbf16, #tpu.memory_space<vmem>>, vector<1x32x224xbf16>
    %40 = vector.shape_cast %39 : vector<1x32x224xbf16> to vector<32x224xbf16>
    %cst_55 = arith.constant dense<0.000000e+00> : vector<7x224xf32>
    %41 = tpu.matmul %38, %40, %cst_55 {dimension_numbers = #tpu.dot_dimension_numbers<[1], [0], [0], [1], [0, 0, 1, 1], [], []>} : vector<7x32xbf16>, vector<32x224xbf16>, vector<7x224xf32> -> vector<7x224xf32>
    %c3_56 = arith.constant 3 : index
    %c0_57 = arith.constant 0 : index
    %c0_58 = arith.constant 0 : index
    %c0_59 = arith.constant 0 : index
    %42 = vector.load %arg0[%c3_56, %c0_57, %c0_58, %c0_59] : memref<4x2x8x32xbf16, #tpu.memory_space<vmem>>, vector<1x1x7x32xbf16>
    %43 = vector.shape_cast %42 : vector<1x1x7x32xbf16> to vector<7x32xbf16>
    %c1_60 = arith.constant 1 : index
    %c0_61 = arith.constant 0 : index
    %c0_62 = arith.constant 0 : index
    %44 = vector.load %arg1[%c1_60, %c0_61, %c0_62] : memref<4x32x224xbf16, #tpu.memory_space<vmem>>, vector<1x32x224xbf16>
    %45 = vector.shape_cast %44 : vector<1x32x224xbf16> to vector<32x224xbf16>
    %cst_63 = arith.constant dense<0.000000e+00> : vector<7x224xf32>
    %46 = tpu.matmul %43, %45, %cst_63 {dimension_numbers = #tpu.dot_dimension_numbers<[1], [0], [0], [1], [0, 0, 1, 1], [], []>} : vector<7x32xbf16>, vector<32x224xbf16>, vector<7x224xf32> -> vector<7x224xf32>
    %c0_64 = arith.constant 0 : index
    %c0_65 = arith.constant 0 : index
    %c1_66 = arith.constant 1 : index
    %c0_67 = arith.constant 0 : index
    %47 = vector.load %arg0[%c0_64, %c0_65, %c1_66, %c0_67] : memref<4x2x8x32xbf16, #tpu.memory_space<vmem>>, vector<1x1x7x32xbf16>
    %48 = vector.shape_cast %47 : vector<1x1x7x32xbf16> to vector<7x32xbf16>
    %c2_68 = arith.constant 2 : index
    %c0_69 = arith.constant 0 : index
    %c0_70 = arith.constant 0 : index
    %49 = vector.load %arg1[%c2_68, %c0_69, %c0_70] : memref<4x32x224xbf16, #tpu.memory_space<vmem>>, vector<1x32x224xbf16>
    %50 = vector.shape_cast %49 : vector<1x32x224xbf16> to vector<32x224xbf16>
    %cst_71 = arith.constant dense<0.000000e+00> : vector<7x224xf32>
    %51 = tpu.matmul %48, %50, %cst_71 {dimension_numbers = #tpu.dot_dimension_numbers<[1], [0], [0], [1], [0, 0, 1, 1], [], []>} : vector<7x32xbf16>, vector<32x224xbf16>, vector<7x224xf32> -> vector<7x224xf32>
    %c1_72 = arith.constant 1 : index
    %c0_73 = arith.constant 0 : index
    %c1_74 = arith.constant 1 : index
    %c0_75 = arith.constant 0 : index
    %52 = vector.load %arg0[%c1_72, %c0_73, %c1_74, %c0_75] : memref<4x2x8x32xbf16, #tpu.memory_space<vmem>>, vector<1x1x7x32xbf16>
    %53 = vector.shape_cast %52 : vector<1x1x7x32xbf16> to vector<7x32xbf16>
    %c3_76 = arith.constant 3 : index
    %c0_77 = arith.constant 0 : index
    %c0_78 = arith.constant 0 : index
    %54 = vector.load %arg1[%c3_76, %c0_77, %c0_78] : memref<4x32x224xbf16, #tpu.memory_space<vmem>>, vector<1x32x224xbf16>
    %55 = vector.shape_cast %54 : vector<1x32x224xbf16> to vector<32x224xbf16>
    %cst_79 = arith.constant dense<0.000000e+00> : vector<7x224xf32>
    %56 = tpu.matmul %53, %55, %cst_79 {dimension_numbers = #tpu.dot_dimension_numbers<[1], [0], [0], [1], [0, 0, 1, 1], [], []>} : vector<7x32xbf16>, vector<32x224xbf16>, vector<7x224xf32> -> vector<7x224xf32>
    %57 = arith.addf %41, %46 : vector<7x224xf32>
    %58 = arith.addf %57, %51 : vector<7x224xf32>
    %59 = arith.addf %58, %56 : vector<7x224xf32>
    %c0_80 = arith.constant 0 : index
    %c0_81 = arith.constant 0 : index
    %60 = vector.load %arg2[%c0_80, %c0_81] : memref<8x224xf32, #tpu.memory_space<vmem>>, vector<7x224xf32>
    %61 = arith.addf %59, %60 : vector<7x224xf32>
    %cst_82 = arith.constant 0.000000e+00 : f32
    %62 = vector.broadcast %cst_82 : f32 to vector<7x224xf32>
    %63 = arith.maximumf %61, %62 : vector<7x224xf32>
    %64 = arith.truncf %63 : vector<7x224xf32> to vector<7x224xbf16>
    %c1_83 = arith.constant 1 : index
    %c0_84 = arith.constant 0 : index
    %c1_85 = arith.constant 1 : index
    %c0_86 = arith.constant 0 : index
    %65 = vector.load %arg18[%c1_83, %c0_84, %c1_85, %c0_86] : memref<2x2x8x224xbf16, #tpu.memory_space<vmem>>, vector<1x1x7x224xbf16>
    %66 = vector.shape_cast %65 : vector<1x1x7x224xbf16> to vector<7x224xbf16>
    %67 = vector.shape_cast %64 : vector<7x224xbf16> to vector<1x1x7x224xbf16>
    tpu.vector_store %arg18[%c1_83, %c0_84, %c1_85, %c0_86], %67 {strides = array<i32>} : memref<2x2x8x224xbf16, #tpu.memory_space<vmem>>, vector<1x1x7x224xbf16>,
    %c1_87 = arith.constant 1 : index
    %c0_88 = arith.constant 0 : index
    %c0_89 = arith.constant 0 : index
    %c0_90 = arith.constant 0 : index
    %68 = vector.load %arg18[%c1_87, %c0_88, %c0_89, %c0_90] : memref<2x2x8x224xbf16, #tpu.memory_space<vmem>>, vector<1x1x7x224xbf16>
    %69 = vector.shape_cast %68 : vector<1x1x7x224xbf16> to vector<7x224xbf16>
    %c0_91 = arith.constant 0 : index
    %c0_92 = arith.constant 0 : index
    %c0_93 = arith.constant 0 : index
    %70 = vector.load %arg3[%c0_91, %c0_92, %c0_93] : memref<4x224x224xbf16, #tpu.memory_space<vmem>>, vector<1x224x224xbf16>
    %71 = vector.shape_cast %70 : vector<1x224x224xbf16> to vector<224x224xbf16>
    %cst_94 = arith.constant dense<0.000000e+00> : vector<7x224xf32>
    %72 = tpu.matmul %69, %71, %cst_94 {dimension_numbers = #tpu.dot_dimension_numbers<[1], [0], [0], [1], [0, 0, 1, 1], [], []>} : vector<7x224xbf16>, vector<224x224xbf16>, vector<7x224xf32> -> vector<7x224xf32>
    %c0_95 = arith.constant 0 : index
    %c0_96 = arith.constant 0 : index
    %c0_97 = arith.constant 0 : index
    %c0_98 = arith.constant 0 : index
    %73 = vector.load %arg18[%c0_95, %c0_96, %c0_97, %c0_98] : memref<2x2x8x224xbf16, #tpu.memory_space<vmem>>, vector<1x1x7x224xbf16>
    %74 = vector.shape_cast %73 : vector<1x1x7x224xbf16> to vector<7x224xbf16>
    %c1_99 = arith.constant 1 : index
    %c0_100 = arith.constant 0 : index
    %c0_101 = arith.constant 0 : index
    %75 = vector.load %arg3[%c1_99, %c0_100, %c0_101] : memref<4x224x224xbf16, #tpu.memory_space<vmem>>, vector<1x224x224xbf16>
    %76 = vector.shape_cast %75 : vector<1x224x224xbf16> to vector<224x224xbf16>
    %cst_102 = arith.constant dense<0.000000e+00> : vector<7x224xf32>
    %77 = tpu.matmul %74, %76, %cst_102 {dimension_numbers = #tpu.dot_dimension_numbers<[1], [0], [0], [1], [0, 0, 1, 1], [], []>} : vector<7x224xbf16>, vector<224x224xbf16>, vector<7x224xf32> -> vector<7x224xf32>
    %c1_103 = arith.constant 1 : index
    %c0_104 = arith.constant 0 : index
    %c1_105 = arith.constant 1 : index
    %c0_106 = arith.constant 0 : index
    %78 = vector.load %arg18[%c1_103, %c0_104, %c1_105, %c0_106] : memref<2x2x8x224xbf16, #tpu.memory_space<vmem>>, vector<1x1x7x224xbf16>
    %79 = vector.shape_cast %78 : vector<1x1x7x224xbf16> to vector<7x224xbf16>
    %c2_107 = arith.constant 2 : index
    %c0_108 = arith.constant 0 : index
    %c0_109 = arith.constant 0 : index
    %80 = vector.load %arg3[%c2_107, %c0_108, %c0_109] : memref<4x224x224xbf16, #tpu.memory_space<vmem>>, vector<1x224x224xbf16>
    %81 = vector.shape_cast %80 : vector<1x224x224xbf16> to vector<224x224xbf16>
    %cst_110 = arith.constant dense<0.000000e+00> : vector<7x224xf32>
    %82 = tpu.matmul %79, %81, %cst_110 {dimension_numbers = #tpu.dot_dimension_numbers<[1], [0], [0], [1], [0, 0, 1, 1], [], []>} : vector<7x224xbf16>, vector<224x224xbf16>, vector<7x224xf32> -> vector<7x224xf32>
    %c0_111 = arith.constant 0 : index
    %c0_112 = arith.constant 0 : index
    %c1_113 = arith.constant 1 : index
    %c0_114 = arith.constant 0 : index
    %83 = vector.load %arg18[%c0_111, %c0_112, %c1_113, %c0_114] : memref<2x2x8x224xbf16, #tpu.memory_space<vmem>>, vector<1x1x7x224xbf16>
    %84 = vector.shape_cast %83 : vector<1x1x7x224xbf16> to vector<7x224xbf16>
    %c3_115 = arith.constant 3 : index
    %c0_116 = arith.constant 0 : index
    %c0_117 = arith.constant 0 : index
    %85 = vector.load %arg3[%c3_115, %c0_116, %c0_117] : memref<4x224x224xbf16, #tpu.memory_space<vmem>>, vector<1x224x224xbf16>
    %86 = vector.shape_cast %85 : vector<1x224x224xbf16> to vector<224x224xbf16>
    %cst_118 = arith.constant dense<0.000000e+00> : vector<7x224xf32>
    %87 = tpu.matmul %84, %86, %cst_118 {dimension_numbers = #tpu.dot_dimension_numbers<[1], [0], [0], [1], [0, 0, 1, 1], [], []>} : vector<7x224xbf16>, vector<224x224xbf16>, vector<7x224xf32> -> vector<7x224xf32>
    %88 = arith.addf %72, %77 : vector<7x224xf32>
    %89 = arith.addf %88, %82 : vector<7x224xf32>
    %90 = arith.addf %89, %87 : vector<7x224xf32>
    %c0_119 = arith.constant 0 : index
    %c0_120 = arith.constant 0 : index
    %91 = vector.load %arg4[%c0_119, %c0_120] : memref<8x224xf32, #tpu.memory_space<vmem>>, vector<7x224xf32>
    %92 = arith.addf %90, %91 : vector<7x224xf32>
    %cst_121 = arith.constant 0.000000e+00 : f32
    %93 = vector.broadcast %cst_121 : f32 to vector<7x224xf32>
    %94 = arith.maximumf %92, %93 : vector<7x224xf32>
    %95 = arith.truncf %94 : vector<7x224xf32> to vector<7x224xbf16>
    %96 = vector.extract_strided_slice %95 {offsets = [0, 0], sizes = [1, 224], strides = [1, 1]} : vector<7x224xbf16> to vector<1x224xbf16>
    %c0_122 = arith.constant 0 : index
    %c0_123 = arith.constant 0 : index
    %c0_124 = arith.constant 0 : index
    %97 = vector.load %arg5[%c0_122, %c0_123, %c0_124] : memref<7x224x32xbf16, #tpu.memory_space<vmem>>, vector<1x224x32xbf16>
    %98 = vector.shape_cast %97 : vector<1x224x32xbf16> to vector<224x32xbf16>
    %cst_125 = arith.constant dense<0.000000e+00> : vector<1x32xf32>
    %99 = tpu.matmul %96, %98, %cst_125 {dimension_numbers = #tpu.dot_dimension_numbers<[1], [0], [0], [1], [0, 0, 1, 1], [], []>} : vector<1x224xbf16>, vector<224x32xbf16>, vector<1x32xf32> -> vector<1x32xf32>
    %100 = vector.extract_strided_slice %95 {offsets = [1, 0], sizes = [1, 224], strides = [1, 1]} : vector<7x224xbf16> to vector<1x224xbf16>
    %c1_126 = arith.constant 1 : index
    %c0_127 = arith.constant 0 : index
    %c0_128 = arith.constant 0 : index
    %101 = vector.load %arg5[%c1_126, %c0_127, %c0_128] : memref<7x224x32xbf16, #tpu.memory_space<vmem>>, vector<1x224x32xbf16>
    %102 = vector.shape_cast %101 : vector<1x224x32xbf16> to vector<224x32xbf16>
    %cst_129 = arith.constant dense<0.000000e+00> : vector<1x32xf32>
    %103 = tpu.matmul %100, %102, %cst_129 {dimension_numbers = #tpu.dot_dimension_numbers<[1], [0], [0], [1], [0, 0, 1, 1], [], []>} : vector<1x224xbf16>, vector<224x32xbf16>, vector<1x32xf32> -> vector<1x32xf32>
    %104 = vector.extract_strided_slice %95 {offsets = [2, 0], sizes = [1, 224], strides = [1, 1]} : vector<7x224xbf16> to vector<1x224xbf16>
    %c2_130 = arith.constant 2 : index
    %c0_131 = arith.constant 0 : index
    %c0_132 = arith.constant 0 : index
    %105 = vector.load %arg5[%c2_130, %c0_131, %c0_132] : memref<7x224x32xbf16, #tpu.memory_space<vmem>>, vector<1x224x32xbf16>
    %106 = vector.shape_cast %105 : vector<1x224x32xbf16> to vector<224x32xbf16>
    %cst_133 = arith.constant dense<0.000000e+00> : vector<1x32xf32>
    %107 = tpu.matmul %104, %106, %cst_133 {dimension_numbers = #tpu.dot_dimension_numbers<[1], [0], [0], [1], [0, 0, 1, 1], [], []>} : vector<1x224xbf16>, vector<224x32xbf16>, vector<1x32xf32> -> vector<1x32xf32>
    %108 = vector.extract_strided_slice %95 {offsets = [3, 0], sizes = [1, 224], strides = [1, 1]} : vector<7x224xbf16> to vector<1x224xbf16>
    %c3_134 = arith.constant 3 : index
    %c0_135 = arith.constant 0 : index
    %c0_136 = arith.constant 0 : index
    %109 = vector.load %arg5[%c3_134, %c0_135, %c0_136] : memref<7x224x32xbf16, #tpu.memory_space<vmem>>, vector<1x224x32xbf16>
    %110 = vector.shape_cast %109 : vector<1x224x32xbf16> to vector<224x32xbf16>
    %cst_137 = arith.constant dense<0.000000e+00> : vector<1x32xf32>
    %111 = tpu.matmul %108, %110, %cst_137 {dimension_numbers = #tpu.dot_dimension_numbers<[1], [0], [0], [1], [0, 0, 1, 1], [], []>} : vector<1x224xbf16>, vector<224x32xbf16>, vector<1x32xf32> -> vector<1x32xf32>
    %112 = vector.extract_strided_slice %95 {offsets = [4, 0], sizes = [1, 224], strides = [1, 1]} : vector<7x224xbf16> to vector<1x224xbf16>
    %c4 = arith.constant 4 : index
    %c0_138 = arith.constant 0 : index
    %c0_139 = arith.constant 0 : index
    %113 = vector.load %arg5[%c4, %c0_138, %c0_139] : memref<7x224x32xbf16, #tpu.memory_space<vmem>>, vector<1x224x32xbf16>
    %114 = vector.shape_cast %113 : vector<1x224x32xbf16> to vector<224x32xbf16>
    %cst_140 = arith.constant dense<0.000000e+00> : vector<1x32xf32>
    %115 = tpu.matmul %112, %114, %cst_140 {dimension_numbers = #tpu.dot_dimension_numbers<[1], [0], [0], [1], [0, 0, 1, 1], [], []>} : vector<1x224xbf16>, vector<224x32xbf16>, vector<1x32xf32> -> vector<1x32xf32>
    %116 = vector.extract_strided_slice %95 {offsets = [5, 0], sizes = [1, 224], strides = [1, 1]} : vector<7x224xbf16> to vector<1x224xbf16>
    %c5 = arith.constant 5 : index
    %c0_141 = arith.constant 0 : index
    %c0_142 = arith.constant 0 : index
    %117 = vector.load %arg5[%c5, %c0_141, %c0_142] : memref<7x224x32xbf16, #tpu.memory_space<vmem>>, vector<1x224x32xbf16>
    %118 = vector.shape_cast %117 : vector<1x224x32xbf16> to vector<224x32xbf16>
    %cst_143 = arith.constant dense<0.000000e+00> : vector<1x32xf32>
    %119 = tpu.matmul %116, %118, %cst_143 {dimension_numbers = #tpu.dot_dimension_numbers<[1], [0], [0], [1], [0, 0, 1, 1], [], []>} : vector<1x224xbf16>, vector<224x32xbf16>, vector<1x32xf32> -> vector<1x32xf32>
    %120 = vector.extract_strided_slice %95 {offsets = [6, 0], sizes = [1, 224], strides = [1, 1]} : vector<7x224xbf16> to vector<1x224xbf16>
    %c6 = arith.constant 6 : index
    %c0_144 = arith.constant 0 : index
    %c0_145 = arith.constant 0 : index
    %121 = vector.load %arg5[%c6, %c0_144, %c0_145] : memref<7x224x32xbf16, #tpu.memory_space<vmem>>, vector<1x224x32xbf16>
    %122 = vector.shape_cast %121 : vector<1x224x32xbf16> to vector<224x32xbf16>
    %cst_146 = arith.constant dense<0.000000e+00> : vector<1x32xf32>
    %123 = tpu.matmul %120, %122, %cst_146 {dimension_numbers = #tpu.dot_dimension_numbers<[1], [0], [0], [1], [0, 0, 1, 1], [], []>} : vector<1x224xbf16>, vector<224x32xbf16>, vector<1x32xf32> -> vector<1x32xf32>
    %124 = arith.addf %99, %103 : vector<1x32xf32>
    %125 = arith.addf %124, %107 : vector<1x32xf32>
    %126 = arith.addf %125, %111 : vector<1x32xf32>
    %127 = arith.addf %126, %115 : vector<1x32xf32>
    %128 = arith.addf %127, %119 : vector<1x32xf32>
    %129 = arith.addf %128, %123 : vector<1x32xf32>
    %c0_147 = arith.constant 0 : index
    %c0_148 = arith.constant 0 : index
    %130 = vector.load %arg6[%c0_147, %c0_148] : memref<8x32xf32, #tpu.memory_space<vmem>>, vector<1x32xf32>
    %131 = arith.addf %129, %130 : vector<1x32xf32>
    %cst_149 = arith.constant 0.000000e+00 : f32
    %132 = vector.broadcast %cst_149 : f32 to vector<1x32xf32>
    %133 = arith.maximumf %131, %132 : vector<1x32xf32>
    %134 = arith.truncf %133 : vector<1x32xf32> to vector<1x32xbf16>
    %c0_150 = arith.constant 0 : index
    %c0_151 = arith.constant 0 : index
    %135 = vector.load %arg7[%c0_150, %c0_151] : memref<32x8xbf16, #tpu.memory_space<vmem>>, vector<32x8xbf16>
    %cst_152 = arith.constant dense<0.000000e+00> : vector<1x8xf32>
    %136 = tpu.matmul %134, %135, %cst_152 {dimension_numbers = #tpu.dot_dimension_numbers<[1], [0], [0], [1], [0, 0, 1, 1], [], []>} : vector<1x32xbf16>, vector<32x8xbf16>, vector<1x8xf32> -> vector<1x8xf32>
    %c0_153 = arith.constant 0 : index
    %c0_154 = arith.constant 0 : index
    %137 = vector.load %arg8[%c0_153, %c0_154] : memref<8x8xf32, #tpu.memory_space<vmem>>, vector<1x8xf32>
    %138 = arith.addf %136, %137 : vector<1x8xf32>
    %139 = arith.truncf %138 : vector<1x8xf32> to vector<1x8xbf16>
    %c0_155 = arith.constant 0 : index
    %c0_156 = arith.constant 0 : index
    %140 = vector.load %arg9[%c0_155, %c0_156] : memref<8x32xbf16, #tpu.memory_space<vmem>>, vector<8x32xbf16>
    %cst_157 = arith.constant dense<0.000000e+00> : vector<1x32xf32>
    %141 = tpu.matmul %139, %140, %cst_157 {dimension_numbers = #tpu.dot_dimension_numbers<[1], [0], [0], [1], [0, 0, 1, 1], [], []>} : vector<1x8xbf16>, vector<8x32xbf16>, vector<1x32xf32> -> vector<1x32xf32>
    %c0_158 = arith.constant 0 : index
    %c0_159 = arith.constant 0 : index
    %142 = vector.load %arg10[%c0_158, %c0_159] : memref<8x32xf32, #tpu.memory_space<vmem>>, vector<1x32xf32>
    %143 = arith.addf %141, %142 : vector<1x32xf32>
    %cst_160 = arith.constant 0.000000e+00 : f32
    %144 = vector.broadcast %cst_160 : f32 to vector<1x32xf32>
    %145 = arith.maximumf %143, %144 : vector<1x32xf32>
    %146 = arith.truncf %145 : vector<1x32xf32> to vector<1x32xbf16>
    %c0_161 = arith.constant 0 : index
    %c0_162 = arith.constant 0 : index
    %c0_163 = arith.constant 0 : index
    %147 = vector.load %arg11[%c0_161, %c0_162, %c0_163] : memref<7x32x224xbf16, #tpu.memory_space<vmem>>, vector<1x32x224xbf16>
    %148 = vector.shape_cast %147 : vector<1x32x224xbf16> to vector<32x224xbf16>
    %cst_164 = arith.constant dense<0.000000e+00> : vector<1x224xf32>
    %149 = tpu.matmul %146, %148, %cst_164 {dimension_numbers = #tpu.dot_dimension_numbers<[1], [0], [0], [1], [0, 0, 1, 1], [], []>} : vector<1x32xbf16>, vector<32x224xbf16>, vector<1x224xf32> -> vector<1x224xf32>
    %c0_165 = arith.constant 0 : index
    %c0_166 = arith.constant 0 : index
    %150 = vector.load %arg12[%c0_165, %c0_166] : memref<8x224xf32, #tpu.memory_space<vmem>>, vector<1x224xf32>
    %151 = arith.addf %149, %150 : vector<1x224xf32>
    %cst_167 = arith.constant 0.000000e+00 : f32
    %152 = vector.broadcast %cst_167 : f32 to vector<1x224xf32>
    %153 = arith.maximumf %151, %152 : vector<1x224xf32>
    %154 = arith.truncf %153 : vector<1x224xf32> to vector<1x224xbf16>
    %c0_168 = arith.constant 0 : index
    %c1_169 = arith.constant 1 : index
    %c0_170 = arith.constant 0 : index
    %155 = vector.load %arg19[%c0_168, %c1_169, %c0_170] : memref<2x9x224xbf16, #tpu.memory_space<vmem>>, vector<1x1x224xbf16>
    %156 = vector.shape_cast %155 : vector<1x1x224xbf16> to vector<1x224xbf16>
    %157 = vector.shape_cast %154 : vector<1x224xbf16> to vector<1x1x224xbf16>
    tpu.vector_store %arg19[%c0_168, %c1_169, %c0_170], %157 {strides = array<i32>} : memref<2x9x224xbf16, #tpu.memory_space<vmem>>, vector<1x1x224xbf16>,
    %c1_171 = arith.constant 1 : index
    %c0_172 = arith.constant 0 : index
    %c0_173 = arith.constant 0 : index
    %158 = vector.load %arg11[%c1_171, %c0_172, %c0_173] : memref<7x32x224xbf16, #tpu.memory_space<vmem>>, vector<1x32x224xbf16>
    %159 = vector.shape_cast %158 : vector<1x32x224xbf16> to vector<32x224xbf16>
    %cst_174 = arith.constant dense<0.000000e+00> : vector<1x224xf32>
    %160 = tpu.matmul %146, %159, %cst_174 {dimension_numbers = #tpu.dot_dimension_numbers<[1], [0], [0], [1], [0, 0, 1, 1], [], []>} : vector<1x32xbf16>, vector<32x224xbf16>, vector<1x224xf32> -> vector<1x224xf32>
    %c1_175 = arith.constant 1 : index
    %c0_176 = arith.constant 0 : index
    %161 = vector.load %arg12[%c1_175, %c0_176] : memref<8x224xf32, #tpu.memory_space<vmem>>, vector<1x224xf32>
    %162 = arith.addf %160, %161 : vector<1x224xf32>
    %cst_177 = arith.constant 0.000000e+00 : f32
    %163 = vector.broadcast %cst_177 : f32 to vector<1x224xf32>
    %164 = arith.maximumf %162, %163 : vector<1x224xf32>
    %165 = arith.truncf %164 : vector<1x224xf32> to vector<1x224xbf16>
    %c0_178 = arith.constant 0 : index
    %c2_179 = arith.constant 2 : index
    %c0_180 = arith.constant 0 : index
    %166 = vector.load %arg19[%c0_178, %c2_179, %c0_180] : memref<2x9x224xbf16, #tpu.memory_space<vmem>>, vector<1x1x224xbf16>
    %167 = vector.shape_cast %166 : vector<1x1x224xbf16> to vector<1x224xbf16>
    %168 = vector.shape_cast %165 : vector<1x224xbf16> to vector<1x1x224xbf16>
    tpu.vector_store %arg19[%c0_178, %c2_179, %c0_180], %168 {strides = array<i32>} : memref<2x9x224xbf16, #tpu.memory_space<vmem>>, vector<1x1x224xbf16>,
    %c2_181 = arith.constant 2 : index
    %c0_182 = arith.constant 0 : index
    %c0_183 = arith.constant 0 : index
    %169 = vector.load %arg11[%c2_181, %c0_182, %c0_183] : memref<7x32x224xbf16, #tpu.memory_space<vmem>>, vector<1x32x224xbf16>
    %170 = vector.shape_cast %169 : vector<1x32x224xbf16> to vector<32x224xbf16>
    %cst_184 = arith.constant dense<0.000000e+00> : vector<1x224xf32>
    %171 = tpu.matmul %146, %170, %cst_184 {dimension_numbers = #tpu.dot_dimension_numbers<[1], [0], [0], [1], [0, 0, 1, 1], [], []>} : vector<1x32xbf16>, vector<32x224xbf16>, vector<1x224xf32> -> vector<1x224xf32>
    %c2_185 = arith.constant 2 : index
    %c0_186 = arith.constant 0 : index
    %172 = vector.load %arg12[%c2_185, %c0_186] : memref<8x224xf32, #tpu.memory_space<vmem>>, vector<1x224xf32>
    %173 = arith.addf %171, %172 : vector<1x224xf32>
    %cst_187 = arith.constant 0.000000e+00 : f32
    %174 = vector.broadcast %cst_187 : f32 to vector<1x224xf32>
    %175 = arith.maximumf %173, %174 : vector<1x224xf32>
    %176 = arith.truncf %175 : vector<1x224xf32> to vector<1x224xbf16>
    %c0_188 = arith.constant 0 : index
    %c3_189 = arith.constant 3 : index
    %c0_190 = arith.constant 0 : index
    %177 = vector.load %arg19[%c0_188, %c3_189, %c0_190] : memref<2x9x224xbf16, #tpu.memory_space<vmem>>, vector<1x1x224xbf16>
    %178 = vector.shape_cast %177 : vector<1x1x224xbf16> to vector<1x224xbf16>
    %179 = vector.shape_cast %176 : vector<1x224xbf16> to vector<1x1x224xbf16>
    tpu.vector_store %arg19[%c0_188, %c3_189, %c0_190], %179 {strides = array<i32>} : memref<2x9x224xbf16, #tpu.memory_space<vmem>>, vector<1x1x224xbf16>,
    %c3_191 = arith.constant 3 : index
    %c0_192 = arith.constant 0 : index
    %c0_193 = arith.constant 0 : index
    %180 = vector.load %arg11[%c3_191, %c0_192, %c0_193] : memref<7x32x224xbf16, #tpu.memory_space<vmem>>, vector<1x32x224xbf16>
    %181 = vector.shape_cast %180 : vector<1x32x224xbf16> to vector<32x224xbf16>
    %cst_194 = arith.constant dense<0.000000e+00> : vector<1x224xf32>
    %182 = tpu.matmul %146, %181, %cst_194 {dimension_numbers = #tpu.dot_dimension_numbers<[1], [0], [0], [1], [0, 0, 1, 1], [], []>} : vector<1x32xbf16>, vector<32x224xbf16>, vector<1x224xf32> -> vector<1x224xf32>
    %c3_195 = arith.constant 3 : index
    %c0_196 = arith.constant 0 : index
    %183 = vector.load %arg12[%c3_195, %c0_196] : memref<8x224xf32, #tpu.memory_space<vmem>>, vector<1x224xf32>
    %184 = arith.addf %182, %183 : vector<1x224xf32>
    %cst_197 = arith.constant 0.000000e+00 : f32
    %185 = vector.broadcast %cst_197 : f32 to vector<1x224xf32>
    %186 = arith.maximumf %184, %185 : vector<1x224xf32>
    %187 = arith.truncf %186 : vector<1x224xf32> to vector<1x224xbf16>
    %c0_198 = arith.constant 0 : index
    %c4_199 = arith.constant 4 : index
    %c0_200 = arith.constant 0 : index
    %188 = vector.load %arg19[%c0_198, %c4_199, %c0_200] : memref<2x9x224xbf16, #tpu.memory_space<vmem>>, vector<1x1x224xbf16>
    %189 = vector.shape_cast %188 : vector<1x1x224xbf16> to vector<1x224xbf16>
    %190 = vector.shape_cast %187 : vector<1x224xbf16> to vector<1x1x224xbf16>
    tpu.vector_store %arg19[%c0_198, %c4_199, %c0_200], %190 {strides = array<i32>} : memref<2x9x224xbf16, #tpu.memory_space<vmem>>, vector<1x1x224xbf16>,
    %c4_201 = arith.constant 4 : index
    %c0_202 = arith.constant 0 : index
    %c0_203 = arith.constant 0 : index
    %191 = vector.load %arg11[%c4_201, %c0_202, %c0_203] : memref<7x32x224xbf16, #tpu.memory_space<vmem>>, vector<1x32x224xbf16>
    %192 = vector.shape_cast %191 : vector<1x32x224xbf16> to vector<32x224xbf16>
    %cst_204 = arith.constant dense<0.000000e+00> : vector<1x224xf32>
    %193 = tpu.matmul %146, %192, %cst_204 {dimension_numbers = #tpu.dot_dimension_numbers<[1], [0], [0], [1], [0, 0, 1, 1], [], []>} : vector<1x32xbf16>, vector<32x224xbf16>, vector<1x224xf32> -> vector<1x224xf32>
    %c4_205 = arith.constant 4 : index
    %c0_206 = arith.constant 0 : index
    %194 = vector.load %arg12[%c4_205, %c0_206] : memref<8x224xf32, #tpu.memory_space<vmem>>, vector<1x224xf32>
    %195 = arith.addf %193, %194 : vector<1x224xf32>
    %cst_207 = arith.constant 0.000000e+00 : f32
    %196 = vector.broadcast %cst_207 : f32 to vector<1x224xf32>
    %197 = arith.maximumf %195, %196 : vector<1x224xf32>
    %198 = arith.truncf %197 : vector<1x224xf32> to vector<1x224xbf16>
    %c0_208 = arith.constant 0 : index
    %c5_209 = arith.constant 5 : index
    %c0_210 = arith.constant 0 : index
    %199 = vector.load %arg19[%c0_208, %c5_209, %c0_210] : memref<2x9x224xbf16, #tpu.memory_space<vmem>>, vector<1x1x224xbf16>
    %200 = vector.shape_cast %199 : vector<1x1x224xbf16> to vector<1x224xbf16>
    %201 = vector.shape_cast %198 : vector<1x224xbf16> to vector<1x1x224xbf16>
    tpu.vector_store %arg19[%c0_208, %c5_209, %c0_210], %201 {strides = array<i32>} : memref<2x9x224xbf16, #tpu.memory_space<vmem>>, vector<1x1x224xbf16>,
    %c5_211 = arith.constant 5 : index
    %c0_212 = arith.constant 0 : index
    %c0_213 = arith.constant 0 : index
    %202 = vector.load %arg11[%c5_211, %c0_212, %c0_213] : memref<7x32x224xbf16, #tpu.memory_space<vmem>>, vector<1x32x224xbf16>
    %203 = vector.shape_cast %202 : vector<1x32x224xbf16> to vector<32x224xbf16>
    %cst_214 = arith.constant dense<0.000000e+00> : vector<1x224xf32>
    %204 = tpu.matmul %146, %203, %cst_214 {dimension_numbers = #tpu.dot_dimension_numbers<[1], [0], [0], [1], [0, 0, 1, 1], [], []>} : vector<1x32xbf16>, vector<32x224xbf16>, vector<1x224xf32> -> vector<1x224xf32>
    %c5_215 = arith.constant 5 : index
    %c0_216 = arith.constant 0 : index
    %205 = vector.load %arg12[%c5_215, %c0_216] : memref<8x224xf32, #tpu.memory_space<vmem>>, vector<1x224xf32>
    %206 = arith.addf %204, %205 : vector<1x224xf32>
    %cst_217 = arith.constant 0.000000e+00 : f32
    %207 = vector.broadcast %cst_217 : f32 to vector<1x224xf32>
    %208 = arith.maximumf %206, %207 : vector<1x224xf32>
    %209 = arith.truncf %208 : vector<1x224xf32> to vector<1x224xbf16>
    %c0_218 = arith.constant 0 : index
    %c6_219 = arith.constant 6 : index
    %c0_220 = arith.constant 0 : index
    %210 = vector.load %arg19[%c0_218, %c6_219, %c0_220] : memref<2x9x224xbf16, #tpu.memory_space<vmem>>, vector<1x1x224xbf16>
    %211 = vector.shape_cast %210 : vector<1x1x224xbf16> to vector<1x224xbf16>
    %212 = vector.shape_cast %209 : vector<1x224xbf16> to vector<1x1x224xbf16>
    tpu.vector_store %arg19[%c0_218, %c6_219, %c0_220], %212 {strides = array<i32>} : memref<2x9x224xbf16, #tpu.memory_space<vmem>>, vector<1x1x224xbf16>,
    %c6_221 = arith.constant 6 : index
    %c0_222 = arith.constant 0 : index
    %c0_223 = arith.constant 0 : index
    %213 = vector.load %arg11[%c6_221, %c0_222, %c0_223] : memref<7x32x224xbf16, #tpu.memory_space<vmem>>, vector<1x32x224xbf16>
    %214 = vector.shape_cast %213 : vector<1x32x224xbf16> to vector<32x224xbf16>
    %cst_224 = arith.constant dense<0.000000e+00> : vector<1x224xf32>
    %215 = tpu.matmul %146, %214, %cst_224 {dimension_numbers = #tpu.dot_dimension_numbers<[1], [0], [0], [1], [0, 0, 1, 1], [], []>} : vector<1x32xbf16>, vector<32x224xbf16>, vector<1x224xf32> -> vector<1x224xf32>
    %c6_225 = arith.constant 6 : index
    %c0_226 = arith.constant 0 : index
    %216 = vector.load %arg12[%c6_225, %c0_226] : memref<8x224xf32, #tpu.memory_space<vmem>>, vector<1x224xf32>
    %217 = arith.addf %215, %216 : vector<1x224xf32>
    %cst_227 = arith.constant 0.000000e+00 : f32
    %218 = vector.broadcast %cst_227 : f32 to vector<1x224xf32>
    %219 = arith.maximumf %217, %218 : vector<1x224xf32>
    %220 = arith.truncf %219 : vector<1x224xf32> to vector<1x224xbf16>
    %c0_228 = arith.constant 0 : index
    %c7 = arith.constant 7 : index
    %c0_229 = arith.constant 0 : index
    %221 = vector.load %arg19[%c0_228, %c7, %c0_229] : memref<2x9x224xbf16, #tpu.memory_space<vmem>>, vector<1x1x224xbf16>
    %222 = vector.shape_cast %221 : vector<1x1x224xbf16> to vector<1x224xbf16>
    %223 = vector.shape_cast %220 : vector<1x224xbf16> to vector<1x1x224xbf16>
    tpu.vector_store %arg19[%c0_228, %c7, %c0_229], %223 {strides = array<i32>} : memref<2x9x224xbf16, #tpu.memory_space<vmem>>, vector<1x1x224xbf16>,
    %c0_230 = arith.constant 0 : index
    %c0_231 = arith.constant 0 : index
    %c0_232 = arith.constant 0 : index
    %224 = vector.load %arg19[%c0_230, %c0_231, %c0_232] : memref<2x9x224xbf16, #tpu.memory_space<vmem>>, vector<1x7x224xbf16>
    %225 = vector.shape_cast %224 : vector<1x7x224xbf16> to vector<7x224xbf16>
    %c0_233 = arith.constant 0 : index
    %c0_234 = arith.constant 0 : index
    %c0_235 = arith.constant 0 : index
    %c0_236 = arith.constant 0 : index
    %226 = vector.load %arg13[%c0_233, %c0_234, %c0_235, %c0_236] : memref<2x2x224x224xbf16, #tpu.memory_space<vmem>>, vector<1x1x224x224xbf16>
    %227 = vector.shape_cast %226 : vector<1x1x224x224xbf16> to vector<224x224xbf16>
    %cst_237 = arith.constant dense<0.000000e+00> : vector<7x224xf32>
    %228 = tpu.matmul %225, %227, %cst_237 {dimension_numbers = #tpu.dot_dimension_numbers<[1], [0], [0], [1], [0, 0, 1, 1], [], []>} : vector<7x224xbf16>, vector<224x224xbf16>, vector<7x224xf32> -> vector<7x224xf32>
    %c0_238 = arith.constant 0 : index
    %c1_239 = arith.constant 1 : index
    %c0_240 = arith.constant 0 : index
    %229 = vector.load %arg19[%c0_238, %c1_239, %c0_240] : memref<2x9x224xbf16, #tpu.memory_space<vmem>>, vector<1x7x224xbf16>
    %230 = vector.shape_cast %229 : vector<1x7x224xbf16> to vector<7x224xbf16>
    %c0_241 = arith.constant 0 : index
    %c1_242 = arith.constant 1 : index
    %c0_243 = arith.constant 0 : index
    %c0_244 = arith.constant 0 : index
    %231 = vector.load %arg13[%c0_241, %c1_242, %c0_243, %c0_244] : memref<2x2x224x224xbf16, #tpu.memory_space<vmem>>, vector<1x1x224x224xbf16>
    %232 = vector.shape_cast %231 : vector<1x1x224x224xbf16> to vector<224x224xbf16>
    %cst_245 = arith.constant dense<0.000000e+00> : vector<7x224xf32>
    %233 = tpu.matmul %230, %232, %cst_245 {dimension_numbers = #tpu.dot_dimension_numbers<[1], [0], [0], [1], [0, 0, 1, 1], [], []>} : vector<7x224xbf16>, vector<224x224xbf16>, vector<7x224xf32> -> vector<7x224xf32>
    %234 = arith.addf %228, %233 : vector<7x224xf32>
    %c0_246 = arith.constant 0 : index
    %c0_247 = arith.constant 0 : index
    %235 = vector.load %arg14[%c0_246, %c0_247] : memref<8x224xf32, #tpu.memory_space<vmem>>, vector<7x224xf32>
    %236 = arith.addf %234, %235 : vector<7x224xf32>
    %cst_248 = arith.constant 0.000000e+00 : f32
    %237 = vector.broadcast %cst_248 : f32 to vector<7x224xf32>
    %238 = arith.maximumf %236, %237 : vector<7x224xf32>
    %239 = arith.truncf %238 : vector<7x224xf32> to vector<7x224xbf16>
    %c0_249 = arith.constant 0 : index
    %c0_250 = arith.constant 0 : index
    %c1_251 = arith.constant 1 : index
    %c0_252 = arith.constant 0 : index
    %240 = vector.load %arg20[%c0_249, %c0_250, %c1_251, %c0_252] : memref<2x2x9x224xbf16, #tpu.memory_space<vmem>>, vector<1x1x7x224xbf16>
    %241 = vector.shape_cast %240 : vector<1x1x7x224xbf16> to vector<7x224xbf16>
    %242 = vector.shape_cast %239 : vector<7x224xbf16> to vector<1x1x7x224xbf16>
    tpu.vector_store %arg20[%c0_249, %c0_250, %c1_251, %c0_252], %242 {strides = array<i32>} : memref<2x2x9x224xbf16, #tpu.memory_space<vmem>>, vector<1x1x7x224xbf16>,
    %c0_253 = arith.constant 0 : index
    %c1_254 = arith.constant 1 : index
    %c0_255 = arith.constant 0 : index
    %243 = vector.load %arg19[%c0_253, %c1_254, %c0_255] : memref<2x9x224xbf16, #tpu.memory_space<vmem>>, vector<1x7x224xbf16>
    %244 = vector.shape_cast %243 : vector<1x7x224xbf16> to vector<7x224xbf16>
    %c1_256 = arith.constant 1 : index
    %c0_257 = arith.constant 0 : index
    %c0_258 = arith.constant 0 : index
    %c0_259 = arith.constant 0 : index
    %245 = vector.load %arg13[%c1_256, %c0_257, %c0_258, %c0_259] : memref<2x2x224x224xbf16, #tpu.memory_space<vmem>>, vector<1x1x224x224xbf16>
    %246 = vector.shape_cast %245 : vector<1x1x224x224xbf16> to vector<224x224xbf16>
    %cst_260 = arith.constant dense<0.000000e+00> : vector<7x224xf32>
    %247 = tpu.matmul %244, %246, %cst_260 {dimension_numbers = #tpu.dot_dimension_numbers<[1], [0], [0], [1], [0, 0, 1, 1], [], []>} : vector<7x224xbf16>, vector<224x224xbf16>, vector<7x224xf32> -> vector<7x224xf32>
    %c0_261 = arith.constant 0 : index
    %c2_262 = arith.constant 2 : index
    %c0_263 = arith.constant 0 : index
    %248 = vector.load %arg19[%c0_261, %c2_262, %c0_263] : memref<2x9x224xbf16, #tpu.memory_space<vmem>>, vector<1x7x224xbf16>
    %249 = vector.shape_cast %248 : vector<1x7x224xbf16> to vector<7x224xbf16>
    %c1_264 = arith.constant 1 : index
    %c1_265 = arith.constant 1 : index
    %c0_266 = arith.constant 0 : index
    %c0_267 = arith.constant 0 : index
    %250 = vector.load %arg13[%c1_264, %c1_265, %c0_266, %c0_267] : memref<2x2x224x224xbf16, #tpu.memory_space<vmem>>, vector<1x1x224x224xbf16>
    %251 = vector.shape_cast %250 : vector<1x1x224x224xbf16> to vector<224x224xbf16>
    %cst_268 = arith.constant dense<0.000000e+00> : vector<7x224xf32>
    %252 = tpu.matmul %249, %251, %cst_268 {dimension_numbers = #tpu.dot_dimension_numbers<[1], [0], [0], [1], [0, 0, 1, 1], [], []>} : vector<7x224xbf16>, vector<224x224xbf16>, vector<7x224xf32> -> vector<7x224xf32>
    %253 = arith.addf %247, %252 : vector<7x224xf32>
    %c0_269 = arith.constant 0 : index
    %c0_270 = arith.constant 0 : index
    %254 = vector.load %arg14[%c0_269, %c0_270] : memref<8x224xf32, #tpu.memory_space<vmem>>, vector<7x224xf32>
    %255 = arith.addf %253, %254 : vector<7x224xf32>
    %cst_271 = arith.constant 0.000000e+00 : f32
    %256 = vector.broadcast %cst_271 : f32 to vector<7x224xf32>
    %257 = arith.maximumf %255, %256 : vector<7x224xf32>
    %258 = arith.truncf %257 : vector<7x224xf32> to vector<7x224xbf16>
    %c1_272 = arith.constant 1 : index
    %c0_273 = arith.constant 0 : index
    %c1_274 = arith.constant 1 : index
    %c0_275 = arith.constant 0 : index
    %259 = vector.load %arg20[%c1_272, %c0_273, %c1_274, %c0_275] : memref<2x2x9x224xbf16, #tpu.memory_space<vmem>>, vector<1x1x7x224xbf16>
    %260 = vector.shape_cast %259 : vector<1x1x7x224xbf16> to vector<7x224xbf16>
    %261 = vector.shape_cast %258 : vector<7x224xbf16> to vector<1x1x7x224xbf16>
    tpu.vector_store %arg20[%c1_272, %c0_273, %c1_274, %c0_275], %261 {strides = array<i32>} : memref<2x2x9x224xbf16, #tpu.memory_space<vmem>>, vector<1x1x7x224xbf16>,
    %c0_276 = arith.constant 0 : index
    %c0_277 = arith.constant 0 : index
    %c1_278 = arith.constant 1 : index
    %c0_279 = arith.constant 0 : index
    %262 = vector.load %arg20[%c0_276, %c0_277, %c1_278, %c0_279] : memref<2x2x9x224xbf16, #tpu.memory_space<vmem>>, vector<1x1x7x224xbf16>
    %263 = vector.shape_cast %262 : vector<1x1x7x224xbf16> to vector<7x224xbf16>
    %c1_280 = arith.constant 1 : index
    %c0_281 = arith.constant 0 : index
    %c0_282 = arith.constant 0 : index
    %264 = vector.load %arg15[%c1_280, %c0_281, %c0_282] : memref<4x224x28xbf16, #tpu.memory_space<vmem>>, vector<1x224x28xbf16>
    %265 = vector.shape_cast %264 : vector<1x224x28xbf16> to vector<224x28xbf16>
    %cst_283 = arith.constant dense<0.000000e+00> : vector<7x28xf32>
    %266 = tpu.matmul %263, %265, %cst_283 {dimension_numbers = #tpu.dot_dimension_numbers<[1], [0], [0], [1], [0, 0, 1, 1], [], []>} : vector<7x224xbf16>, vector<224x28xbf16>, vector<7x28xf32> -> vector<7x28xf32>
    %c1_284 = arith.constant 1 : index
    %c0_285 = arith.constant 0 : index
    %c0_286 = arith.constant 0 : index
    %c0_287 = arith.constant 0 : index
    %267 = vector.load %arg20[%c1_284, %c0_285, %c0_286, %c0_287] : memref<2x2x9x224xbf16, #tpu.memory_space<vmem>>, vector<1x1x7x224xbf16>
    %268 = vector.shape_cast %267 : vector<1x1x7x224xbf16> to vector<7x224xbf16>
    %c3_288 = arith.constant 3 : index
    %c0_289 = arith.constant 0 : index
    %c0_290 = arith.constant 0 : index
    %269 = vector.load %arg15[%c3_288, %c0_289, %c0_290] : memref<4x224x28xbf16, #tpu.memory_space<vmem>>, vector<1x224x28xbf16>
    %270 = vector.shape_cast %269 : vector<1x224x28xbf16> to vector<224x28xbf16>
    %cst_291 = arith.constant dense<0.000000e+00> : vector<7x28xf32>
    %271 = tpu.matmul %268, %270, %cst_291 {dimension_numbers = #tpu.dot_dimension_numbers<[1], [0], [0], [1], [0, 0, 1, 1], [], []>} : vector<7x224xbf16>, vector<224x28xbf16>, vector<7x28xf32> -> vector<7x28xf32>
    %272 = arith.addf %266, %271 : vector<7x28xf32>
    %c0_292 = arith.constant 0 : index
    %c0_293 = arith.constant 0 : index
    %273 = vector.load %arg16[%c0_292, %c0_293] : memref<8x28xf32, #tpu.memory_space<vmem>>, vector<7x28xf32>
    %274 = arith.addf %272, %273 : vector<7x28xf32>
    %c0_294 = arith.constant 0 : index
    %c0_295 = arith.constant 0 : index
    %c0_296 = arith.constant 0 : index
    %c0_297 = arith.constant 0 : index
    %275 = vector.load %arg17[%c0_294, %c0_295, %c0_296, %c0_297] : memref<2x4x7x28xf32, #tpu.memory_space<vmem>>, vector<1x1x7x28xf32>
    %276 = vector.shape_cast %275 : vector<1x1x7x28xf32> to vector<7x28xf32>
    %277 = vector.shape_cast %274 : vector<7x28xf32> to vector<1x1x7x28xf32>
    tpu.vector_store %arg17[%c0_294, %c0_295, %c0_296, %c0_297], %277 {strides = array<i32>} : memref<2x4x7x28xf32, #tpu.memory_space<vmem>>, vector<1x1x7x28xf32>,
    %c0_298 = arith.constant 0 : index
    %c0_299 = arith.constant 0 : index
    %c1_300 = arith.constant 1 : index
    %c0_301 = arith.constant 0 : index
    %278 = vector.load %arg20[%c0_298, %c0_299, %c1_300, %c0_301] : memref<2x2x9x224xbf16, #tpu.memory_space<vmem>>, vector<1x1x7x224xbf16>
    %279 = vector.shape_cast %278 : vector<1x1x7x224xbf16> to vector<7x224xbf16>
    %c2_302 = arith.constant 2 : index
    %c0_303 = arith.constant 0 : index
    %c0_304 = arith.constant 0 : index
    %280 = vector.load %arg15[%c2_302, %c0_303, %c0_304] : memref<4x224x28xbf16, #tpu.memory_space<vmem>>, vector<1x224x28xbf16>
    %281 = vector.shape_cast %280 : vector<1x224x28xbf16> to vector<224x28xbf16>
    %cst_305 = arith.constant dense<0.000000e+00> : vector<7x28xf32>
    %282 = tpu.matmul %279, %281, %cst_305 {dimension_numbers = #tpu.dot_dimension_numbers<[1], [0], [0], [1], [0, 0, 1, 1], [], []>} : vector<7x224xbf16>, vector<224x28xbf16>, vector<7x28xf32> -> vector<7x28xf32>
    %c1_306 = arith.constant 1 : index
    %c0_307 = arith.constant 0 : index
    %c1_308 = arith.constant 1 : index
    %c0_309 = arith.constant 0 : index
    %283 = vector.load %arg20[%c1_306, %c0_307, %c1_308, %c0_309] : memref<2x2x9x224xbf16, #tpu.memory_space<vmem>>, vector<1x1x7x224xbf16>
    %284 = vector.shape_cast %283 : vector<1x1x7x224xbf16> to vector<7x224xbf16>
    %c0_310 = arith.constant 0 : index
    %c0_311 = arith.constant 0 : index
    %c0_312 = arith.constant 0 : index
    %285 = vector.load %arg15[%c0_310, %c0_311, %c0_312] : memref<4x224x28xbf16, #tpu.memory_space<vmem>>, vector<1x224x28xbf16>
    %286 = vector.shape_cast %285 : vector<1x224x28xbf16> to vector<224x28xbf16>
    %cst_313 = arith.constant dense<0.000000e+00> : vector<7x28xf32>
    %287 = tpu.matmul %284, %286, %cst_313 {dimension_numbers = #tpu.dot_dimension_numbers<[1], [0], [0], [1], [0, 0, 1, 1], [], []>} : vector<7x224xbf16>, vector<224x28xbf16>, vector<7x28xf32> -> vector<7x28xf32>
    %288 = arith.addf %282, %287 : vector<7x28xf32>
    %c0_314 = arith.constant 0 : index
    %c0_315 = arith.constant 0 : index
    %289 = vector.load %arg16[%c0_314, %c0_315] : memref<8x28xf32, #tpu.memory_space<vmem>>, vector<7x28xf32>
    %290 = arith.addf %288, %289 : vector<7x28xf32>
    %c0_316 = arith.constant 0 : index
    %c1_317 = arith.constant 1 : index
    %c0_318 = arith.constant 0 : index
    %c0_319 = arith.constant 0 : index
    %291 = vector.load %arg17[%c0_316, %c1_317, %c0_318, %c0_319] : memref<2x4x7x28xf32, #tpu.memory_space<vmem>>, vector<1x1x7x28xf32>
    %292 = vector.shape_cast %291 : vector<1x1x7x28xf32> to vector<7x28xf32>
    %293 = vector.shape_cast %290 : vector<7x28xf32> to vector<1x1x7x28xf32>
    tpu.vector_store %arg17[%c0_316, %c1_317, %c0_318, %c0_319], %293 {strides = array<i32>} : memref<2x4x7x28xf32, #tpu.memory_space<vmem>>, vector<1x1x7x28xf32>,
    %c1_320 = arith.constant 1 : index
    %c0_321 = arith.constant 0 : index
    %c1_322 = arith.constant 1 : index
    %c0_323 = arith.constant 0 : index
    %294 = vector.load %arg20[%c1_320, %c0_321, %c1_322, %c0_323] : memref<2x2x9x224xbf16, #tpu.memory_space<vmem>>, vector<1x1x7x224xbf16>
    %295 = vector.shape_cast %294 : vector<1x1x7x224xbf16> to vector<7x224xbf16>
    %c1_324 = arith.constant 1 : index
    %c0_325 = arith.constant 0 : index
    %c0_326 = arith.constant 0 : index
    %296 = vector.load %arg15[%c1_324, %c0_325, %c0_326] : memref<4x224x28xbf16, #tpu.memory_space<vmem>>, vector<1x224x28xbf16>
    %297 = vector.shape_cast %296 : vector<1x224x28xbf16> to vector<224x28xbf16>
    %cst_327 = arith.constant dense<0.000000e+00> : vector<7x28xf32>
    %298 = tpu.matmul %295, %297, %cst_327 {dimension_numbers = #tpu.dot_dimension_numbers<[1], [0], [0], [1], [0, 0, 1, 1], [], []>} : vector<7x224xbf16>, vector<224x28xbf16>, vector<7x28xf32> -> vector<7x28xf32>
    %c0_328 = arith.constant 0 : index
    %c0_329 = arith.constant 0 : index
    %c1_330 = arith.constant 1 : index
    %c0_331 = arith.constant 0 : index
    %299 = vector.load %arg20[%c0_328, %c0_329, %c1_330, %c0_331] : memref<2x2x9x224xbf16, #tpu.memory_space<vmem>>, vector<1x1x7x224xbf16>
    %300 = vector.shape_cast %299 : vector<1x1x7x224xbf16> to vector<7x224xbf16>
    %c3_332 = arith.constant 3 : index
    %c0_333 = arith.constant 0 : index
    %c0_334 = arith.constant 0 : index
    %301 = vector.load %arg15[%c3_332, %c0_333, %c0_334] : memref<4x224x28xbf16, #tpu.memory_space<vmem>>, vector<1x224x28xbf16>
    %302 = vector.shape_cast %301 : vector<1x224x28xbf16> to vector<224x28xbf16>
    %cst_335 = arith.constant dense<0.000000e+00> : vector<7x28xf32>
    %303 = tpu.matmul %300, %302, %cst_335 {dimension_numbers = #tpu.dot_dimension_numbers<[1], [0], [0], [1], [0, 0, 1, 1], [], []>} : vector<7x224xbf16>, vector<224x28xbf16>, vector<7x28xf32> -> vector<7x28xf32>
    %304 = arith.addf %298, %303 : vector<7x28xf32>
    %c0_336 = arith.constant 0 : index
    %c0_337 = arith.constant 0 : index
    %305 = vector.load %arg16[%c0_336, %c0_337] : memref<8x28xf32, #tpu.memory_space<vmem>>, vector<7x28xf32>
    %306 = arith.addf %304, %305 : vector<7x28xf32>
    %c0_338 = arith.constant 0 : index
    %c2_339 = arith.constant 2 : index
    %c0_340 = arith.constant 0 : index
    %c0_341 = arith.constant 0 : index
    %307 = vector.load %arg17[%c0_338, %c2_339, %c0_340, %c0_341] : memref<2x4x7x28xf32, #tpu.memory_space<vmem>>, vector<1x1x7x28xf32>
    %308 = vector.shape_cast %307 : vector<1x1x7x28xf32> to vector<7x28xf32>
    %309 = vector.shape_cast %306 : vector<7x28xf32> to vector<1x1x7x28xf32>
    tpu.vector_store %arg17[%c0_338, %c2_339, %c0_340, %c0_341], %309 {strides = array<i32>} : memref<2x4x7x28xf32, #tpu.memory_space<vmem>>, vector<1x1x7x28xf32>,
    %c1_342 = arith.constant 1 : index
    %c0_343 = arith.constant 0 : index
    %c1_344 = arith.constant 1 : index
    %c0_345 = arith.constant 0 : index
    %310 = vector.load %arg20[%c1_342, %c0_343, %c1_344, %c0_345] : memref<2x2x9x224xbf16, #tpu.memory_space<vmem>>, vector<1x1x7x224xbf16>
    %311 = vector.shape_cast %310 : vector<1x1x7x224xbf16> to vector<7x224xbf16>
    %c2_346 = arith.constant 2 : index
    %c0_347 = arith.constant 0 : index
    %c0_348 = arith.constant 0 : index
    %312 = vector.load %arg15[%c2_346, %c0_347, %c0_348] : memref<4x224x28xbf16, #tpu.memory_space<vmem>>, vector<1x224x28xbf16>
    %313 = vector.shape_cast %312 : vector<1x224x28xbf16> to vector<224x28xbf16>
    %cst_349 = arith.constant dense<0.000000e+00> : vector<7x28xf32>
    %314 = tpu.matmul %311, %313, %cst_349 {dimension_numbers = #tpu.dot_dimension_numbers<[1], [0], [0], [1], [0, 0, 1, 1], [], []>} : vector<7x224xbf16>, vector<224x28xbf16>, vector<7x28xf32> -> vector<7x28xf32>
    %c0_350 = arith.constant 0 : index
    %c0_351 = arith.constant 0 : index
    %c2_352 = arith.constant 2 : index
    %c0_353 = arith.constant 0 : index
    %315 = vector.load %arg20[%c0_350, %c0_351, %c2_352, %c0_353] : memref<2x2x9x224xbf16, #tpu.memory_space<vmem>>, vector<1x1x7x224xbf16>
    %316 = vector.shape_cast %315 : vector<1x1x7x224xbf16> to vector<7x224xbf16>
    %c0_354 = arith.constant 0 : index
    %c0_355 = arith.constant 0 : index
    %c0_356 = arith.constant 0 : index
    %317 = vector.load %arg15[%c0_354, %c0_355, %c0_356] : memref<4x224x28xbf16, #tpu.memory_space<vmem>>, vector<1x224x28xbf16>
    %318 = vector.shape_cast %317 : vector<1x224x28xbf16> to vector<224x28xbf16>
    %cst_357 = arith.constant dense<0.000000e+00> : vector<7x28xf32>
    %319 = tpu.matmul %316, %318, %cst_357 {dimension_numbers = #tpu.dot_dimension_numbers<[1], [0], [0], [1], [0, 0, 1, 1], [], []>} : vector<7x224xbf16>, vector<224x28xbf16>, vector<7x28xf32> -> vector<7x28xf32>
    %320 = arith.addf %314, %319 : vector<7x28xf32>
    %c0_358 = arith.constant 0 : index
    %c0_359 = arith.constant 0 : index
    %321 = vector.load %arg16[%c0_358, %c0_359] : memref<8x28xf32, #tpu.memory_space<vmem>>, vector<7x28xf32>
    %322 = arith.addf %320, %321 : vector<7x28xf32>
    %c0_360 = arith.constant 0 : index
    %c3_361 = arith.constant 3 : index
    %c0_362 = arith.constant 0 : index
    %c0_363 = arith.constant 0 : index
    %323 = vector.load %arg17[%c0_360, %c3_361, %c0_362, %c0_363] : memref<2x4x7x28xf32, #tpu.memory_space<vmem>>, vector<1x1x7x28xf32>
    %324 = vector.shape_cast %323 : vector<1x1x7x28xf32> to vector<7x28xf32>
    %325 = vector.shape_cast %322 : vector<7x28xf32> to vector<1x1x7x28xf32>
    tpu.vector_store %arg17[%c0_360, %c3_361, %c0_362, %c0_363], %325 {strides = array<i32>} : memref<2x4x7x28xf32, #tpu.memory_space<vmem>>, vector<1x1x7x28xf32>,
    %c0_364 = arith.constant 0 : index
    %c1_365 = arith.constant 1 : index
    %c0_366 = arith.constant 0 : index
    %c0_367 = arith.constant 0 : index
    %326 = vector.load %arg0[%c0_364, %c1_365, %c0_366, %c0_367] : memref<4x2x8x32xbf16, #tpu.memory_space<vmem>>, vector<1x1x7x32xbf16>
    %327 = vector.shape_cast %326 : vector<1x1x7x32xbf16> to vector<7x32xbf16>
    %c0_368 = arith.constant 0 : index
    %c0_369 = arith.constant 0 : index
    %c0_370 = arith.constant 0 : index
    %328 = vector.load %arg1[%c0_368, %c0_369, %c0_370] : memref<4x32x224xbf16, #tpu.memory_space<vmem>>, vector<1x32x224xbf16>
    %329 = vector.shape_cast %328 : vector<1x32x224xbf16> to vector<32x224xbf16>
    %cst_371 = arith.constant dense<0.000000e+00> : vector<7x224xf32>
    %330 = tpu.matmul %327, %329, %cst_371 {dimension_numbers = #tpu.dot_dimension_numbers<[1], [0], [0], [1], [0, 0, 1, 1], [], []>} : vector<7x32xbf16>, vector<32x224xbf16>, vector<7x224xf32> -> vector<7x224xf32>
    %c1_372 = arith.constant 1 : index
    %c1_373 = arith.constant 1 : index
    %c0_374 = arith.constant 0 : index
    %c0_375 = arith.constant 0 : index
    %331 = vector.load %arg0[%c1_372, %c1_373, %c0_374, %c0_375] : memref<4x2x8x32xbf16, #tpu.memory_space<vmem>>, vector<1x1x7x32xbf16>
    %332 = vector.shape_cast %331 : vector<1x1x7x32xbf16> to vector<7x32xbf16>
    %c1_376 = arith.constant 1 : index
    %c0_377 = arith.constant 0 : index
    %c0_378 = arith.constant 0 : index
    %333 = vector.load %arg1[%c1_376, %c0_377, %c0_378] : memref<4x32x224xbf16, #tpu.memory_space<vmem>>, vector<1x32x224xbf16>
    %334 = vector.shape_cast %333 : vector<1x32x224xbf16> to vector<32x224xbf16>
    %cst_379 = arith.constant dense<0.000000e+00> : vector<7x224xf32>
    %335 = tpu.matmul %332, %334, %cst_379 {dimension_numbers = #tpu.dot_dimension_numbers<[1], [0], [0], [1], [0, 0, 1, 1], [], []>} : vector<7x32xbf16>, vector<32x224xbf16>, vector<7x224xf32> -> vector<7x224xf32>
    %c2_380 = arith.constant 2 : index
    %c1_381 = arith.constant 1 : index
    %c0_382 = arith.constant 0 : index
    %c0_383 = arith.constant 0 : index
    %336 = vector.load %arg0[%c2_380, %c1_381, %c0_382, %c0_383] : memref<4x2x8x32xbf16, #tpu.memory_space<vmem>>, vector<1x1x7x32xbf16>
    %337 = vector.shape_cast %336 : vector<1x1x7x32xbf16> to vector<7x32xbf16>
    %c2_384 = arith.constant 2 : index
    %c0_385 = arith.constant 0 : index
    %c0_386 = arith.constant 0 : index
    %338 = vector.load %arg1[%c2_384, %c0_385, %c0_386] : memref<4x32x224xbf16, #tpu.memory_space<vmem>>, vector<1x32x224xbf16>
    %339 = vector.shape_cast %338 : vector<1x32x224xbf16> to vector<32x224xbf16>
    %cst_387 = arith.constant dense<0.000000e+00> : vector<7x224xf32>
    %340 = tpu.matmul %337, %339, %cst_387 {dimension_numbers = #tpu.dot_dimension_numbers<[1], [0], [0], [1], [0, 0, 1, 1], [], []>} : vector<7x32xbf16>, vector<32x224xbf16>, vector<7x224xf32> -> vector<7x224xf32>
    %c3_388 = arith.constant 3 : index
    %c1_389 = arith.constant 1 : index
    %c0_390 = arith.constant 0 : index
    %c0_391 = arith.constant 0 : index
    %341 = vector.load %arg0[%c3_388, %c1_389, %c0_390, %c0_391] : memref<4x2x8x32xbf16, #tpu.memory_space<vmem>>, vector<1x1x7x32xbf16>
    %342 = vector.shape_cast %341 : vector<1x1x7x32xbf16> to vector<7x32xbf16>
    %c3_392 = arith.constant 3 : index
    %c0_393 = arith.constant 0 : index
    %c0_394 = arith.constant 0 : index
    %343 = vector.load %arg1[%c3_392, %c0_393, %c0_394] : memref<4x32x224xbf16, #tpu.memory_space<vmem>>, vector<1x32x224xbf16>
    %344 = vector.shape_cast %343 : vector<1x32x224xbf16> to vector<32x224xbf16>
    %cst_395 = arith.constant dense<0.000000e+00> : vector<7x224xf32>
    %345 = tpu.matmul %342, %344, %cst_395 {dimension_numbers = #tpu.dot_dimension_numbers<[1], [0], [0], [1], [0, 0, 1, 1], [], []>} : vector<7x32xbf16>, vector<32x224xbf16>, vector<7x224xf32> -> vector<7x224xf32>
    %346 = arith.addf %330, %335 : vector<7x224xf32>
    %347 = arith.addf %346, %340 : vector<7x224xf32>
    %348 = arith.addf %347, %345 : vector<7x224xf32>
    %c0_396 = arith.constant 0 : index
    %c0_397 = arith.constant 0 : index
    %349 = vector.load %arg2[%c0_396, %c0_397] : memref<8x224xf32, #tpu.memory_space<vmem>>, vector<7x224xf32>
    %350 = arith.addf %348, %349 : vector<7x224xf32>
    %cst_398 = arith.constant 0.000000e+00 : f32
    %351 = vector.broadcast %cst_398 : f32 to vector<7x224xf32>
    %352 = arith.maximumf %350, %351 : vector<7x224xf32>
    %353 = arith.truncf %352 : vector<7x224xf32> to vector<7x224xbf16>
    %c0_399 = arith.constant 0 : index
    %c1_400 = arith.constant 1 : index
    %c0_401 = arith.constant 0 : index
    %c0_402 = arith.constant 0 : index
    %354 = vector.load %arg18[%c0_399, %c1_400, %c0_401, %c0_402] : memref<2x2x8x224xbf16, #tpu.memory_space<vmem>>, vector<1x1x7x224xbf16>
    %355 = vector.shape_cast %354 : vector<1x1x7x224xbf16> to vector<7x224xbf16>
    %356 = vector.shape_cast %353 : vector<7x224xbf16> to vector<1x1x7x224xbf16>
    tpu.vector_store %arg18[%c0_399, %c1_400, %c0_401, %c0_402], %356 {strides = array<i32>} : memref<2x2x8x224xbf16, #tpu.memory_space<vmem>>, vector<1x1x7x224xbf16>,
    %c2_403 = arith.constant 2 : index
    %c1_404 = arith.constant 1 : index
    %c0_405 = arith.constant 0 : index
    %c0_406 = arith.constant 0 : index
    %357 = vector.load %arg0[%c2_403, %c1_404, %c0_405, %c0_406] : memref<4x2x8x32xbf16, #tpu.memory_space<vmem>>, vector<1x1x7x32xbf16>
    %358 = vector.shape_cast %357 : vector<1x1x7x32xbf16> to vector<7x32xbf16>
    %c0_407 = arith.constant 0 : index
    %c0_408 = arith.constant 0 : index
    %c0_409 = arith.constant 0 : index
    %359 = vector.load %arg1[%c0_407, %c0_408, %c0_409] : memref<4x32x224xbf16, #tpu.memory_space<vmem>>, vector<1x32x224xbf16>
    %360 = vector.shape_cast %359 : vector<1x32x224xbf16> to vector<32x224xbf16>
    %cst_410 = arith.constant dense<0.000000e+00> : vector<7x224xf32>
    %361 = tpu.matmul %358, %360, %cst_410 {dimension_numbers = #tpu.dot_dimension_numbers<[1], [0], [0], [1], [0, 0, 1, 1], [], []>} : vector<7x32xbf16>, vector<32x224xbf16>, vector<7x224xf32> -> vector<7x224xf32>
    %c3_411 = arith.constant 3 : index
    %c1_412 = arith.constant 1 : index
    %c0_413 = arith.constant 0 : index
    %c0_414 = arith.constant 0 : index
    %362 = vector.load %arg0[%c3_411, %c1_412, %c0_413, %c0_414] : memref<4x2x8x32xbf16, #tpu.memory_space<vmem>>, vector<1x1x7x32xbf16>
    %363 = vector.shape_cast %362 : vector<1x1x7x32xbf16> to vector<7x32xbf16>
    %c1_415 = arith.constant 1 : index
    %c0_416 = arith.constant 0 : index
    %c0_417 = arith.constant 0 : index
    %364 = vector.load %arg1[%c1_415, %c0_416, %c0_417] : memref<4x32x224xbf16, #tpu.memory_space<vmem>>, vector<1x32x224xbf16>
    %365 = vector.shape_cast %364 : vector<1x32x224xbf16> to vector<32x224xbf16>
    %cst_418 = arith.constant dense<0.000000e+00> : vector<7x224xf32>
    %366 = tpu.matmul %363, %365, %cst_418 {dimension_numbers = #tpu.dot_dimension_numbers<[1], [0], [0], [1], [0, 0, 1, 1], [], []>} : vector<7x32xbf16>, vector<32x224xbf16>, vector<7x224xf32> -> vector<7x224xf32>
    %c0_419 = arith.constant 0 : index
    %c1_420 = arith.constant 1 : index
    %c1_421 = arith.constant 1 : index
    %c0_422 = arith.constant 0 : index
    %367 = vector.load %arg0[%c0_419, %c1_420, %c1_421, %c0_422] : memref<4x2x8x32xbf16, #tpu.memory_space<vmem>>, vector<1x1x7x32xbf16>
    %368 = vector.shape_cast %367 : vector<1x1x7x32xbf16> to vector<7x32xbf16>
    %c2_423 = arith.constant 2 : index
    %c0_424 = arith.constant 0 : index
    %c0_425 = arith.constant 0 : index
    %369 = vector.load %arg1[%c2_423, %c0_424, %c0_425] : memref<4x32x224xbf16, #tpu.memory_space<vmem>>, vector<1x32x224xbf16>
    %370 = vector.shape_cast %369 : vector<1x32x224xbf16> to vector<32x224xbf16>
    %cst_426 = arith.constant dense<0.000000e+00> : vector<7x224xf32>
    %371 = tpu.matmul %368, %370, %cst_426 {dimension_numbers = #tpu.dot_dimension_numbers<[1], [0], [0], [1], [0, 0, 1, 1], [], []>} : vector<7x32xbf16>, vector<32x224xbf16>, vector<7x224xf32> -> vector<7x224xf32>
    %c1_427 = arith.constant 1 : index
    %c1_428 = arith.constant 1 : index
    %c1_429 = arith.constant 1 : index
    %c0_430 = arith.constant 0 : index
    %372 = vector.load %arg0[%c1_427, %c1_428, %c1_429, %c0_430] : memref<4x2x8x32xbf16, #tpu.memory_space<vmem>>, vector<1x1x7x32xbf16>
    %373 = vector.shape_cast %372 : vector<1x1x7x32xbf16> to vector<7x32xbf16>
    %c3_431 = arith.constant 3 : index
    %c0_432 = arith.constant 0 : index
    %c0_433 = arith.constant 0 : index
    %374 = vector.load %arg1[%c3_431, %c0_432, %c0_433] : memref<4x32x224xbf16, #tpu.memory_space<vmem>>, vector<1x32x224xbf16>
    %375 = vector.shape_cast %374 : vector<1x32x224xbf16> to vector<32x224xbf16>
    %cst_434 = arith.constant dense<0.000000e+00> : vector<7x224xf32>
    %376 = tpu.matmul %373, %375, %cst_434 {dimension_numbers = #tpu.dot_dimension_numbers<[1], [0], [0], [1], [0, 0, 1, 1], [], []>} : vector<7x32xbf16>, vector<32x224xbf16>, vector<7x224xf32> -> vector<7x224xf32>
    %377 = arith.addf %361, %366 : vector<7x224xf32>
    %378 = arith.addf %377, %371 : vector<7x224xf32>
    %379 = arith.addf %378, %376 : vector<7x224xf32>
    %c0_435 = arith.constant 0 : index
    %c0_436 = arith.constant 0 : index
    %380 = vector.load %arg2[%c0_435, %c0_436] : memref<8x224xf32, #tpu.memory_space<vmem>>, vector<7x224xf32>
    %381 = arith.addf %379, %380 : vector<7x224xf32>
    %cst_437 = arith.constant 0.000000e+00 : f32
    %382 = vector.broadcast %cst_437 : f32 to vector<7x224xf32>
    %383 = arith.maximumf %381, %382 : vector<7x224xf32>
    %384 = arith.truncf %383 : vector<7x224xf32> to vector<7x224xbf16>
    %c1_438 = arith.constant 1 : index
    %c1_439 = arith.constant 1 : index
    %c1_440 = arith.constant 1 : index
    %c0_441 = arith.constant 0 : index
    %385 = vector.load %arg18[%c1_438, %c1_439, %c1_440, %c0_441] : memref<2x2x8x224xbf16, #tpu.memory_space<vmem>>, vector<1x1x7x224xbf16>
    %386 = vector.shape_cast %385 : vector<1x1x7x224xbf16> to vector<7x224xbf16>
    %387 = vector.shape_cast %384 : vector<7x224xbf16> to vector<1x1x7x224xbf16>
    tpu.vector_store %arg18[%c1_438, %c1_439, %c1_440, %c0_441], %387 {strides = array<i32>} : memref<2x2x8x224xbf16, #tpu.memory_space<vmem>>, vector<1x1x7x224xbf16>,
    %c1_442 = arith.constant 1 : index
    %c1_443 = arith.constant 1 : index
    %c0_444 = arith.constant 0 : index
    %c0_445 = arith.constant 0 : index
    %388 = vector.load %arg18[%c1_442, %c1_443, %c0_444, %c0_445] : memref<2x2x8x224xbf16, #tpu.memory_space<vmem>>, vector<1x1x7x224xbf16>
    %389 = vector.shape_cast %388 : vector<1x1x7x224xbf16> to vector<7x224xbf16>
    %c0_446 = arith.constant 0 : index
    %c0_447 = arith.constant 0 : index
    %c0_448 = arith.constant 0 : index
    %390 = vector.load %arg3[%c0_446, %c0_447, %c0_448] : memref<4x224x224xbf16, #tpu.memory_space<vmem>>, vector<1x224x224xbf16>
    %391 = vector.shape_cast %390 : vector<1x224x224xbf16> to vector<224x224xbf16>
    %cst_449 = arith.constant dense<0.000000e+00> : vector<7x224xf32>
    %392 = tpu.matmul %389, %391, %cst_449 {dimension_numbers = #tpu.dot_dimension_numbers<[1], [0], [0], [1], [0, 0, 1, 1], [], []>} : vector<7x224xbf16>, vector<224x224xbf16>, vector<7x224xf32> -> vector<7x224xf32>
    %c0_450 = arith.constant 0 : index
    %c1_451 = arith.constant 1 : index
    %c0_452 = arith.constant 0 : index
    %c0_453 = arith.constant 0 : index
    %393 = vector.load %arg18[%c0_450, %c1_451, %c0_452, %c0_453] : memref<2x2x8x224xbf16, #tpu.memory_space<vmem>>, vector<1x1x7x224xbf16>
    %394 = vector.shape_cast %393 : vector<1x1x7x224xbf16> to vector<7x224xbf16>
    %c1_454 = arith.constant 1 : index
    %c0_455 = arith.constant 0 : index
    %c0_456 = arith.constant 0 : index
    %395 = vector.load %arg3[%c1_454, %c0_455, %c0_456] : memref<4x224x224xbf16, #tpu.memory_space<vmem>>, vector<1x224x224xbf16>
    %396 = vector.shape_cast %395 : vector<1x224x224xbf16> to vector<224x224xbf16>
    %cst_457 = arith.constant dense<0.000000e+00> : vector<7x224xf32>
    %397 = tpu.matmul %394, %396, %cst_457 {dimension_numbers = #tpu.dot_dimension_numbers<[1], [0], [0], [1], [0, 0, 1, 1], [], []>} : vector<7x224xbf16>, vector<224x224xbf16>, vector<7x224xf32> -> vector<7x224xf32>
    %c1_458 = arith.constant 1 : index
    %c1_459 = arith.constant 1 : index
    %c1_460 = arith.constant 1 : index
    %c0_461 = arith.constant 0 : index
    %398 = vector.load %arg18[%c1_458, %c1_459, %c1_460, %c0_461] : memref<2x2x8x224xbf16, #tpu.memory_space<vmem>>, vector<1x1x7x224xbf16>
    %399 = vector.shape_cast %398 : vector<1x1x7x224xbf16> to vector<7x224xbf16>
    %c2_462 = arith.constant 2 : index
    %c0_463 = arith.constant 0 : index
    %c0_464 = arith.constant 0 : index
    %400 = vector.load %arg3[%c2_462, %c0_463, %c0_464] : memref<4x224x224xbf16, #tpu.memory_space<vmem>>, vector<1x224x224xbf16>
    %401 = vector.shape_cast %400 : vector<1x224x224xbf16> to vector<224x224xbf16>
    %cst_465 = arith.constant dense<0.000000e+00> : vector<7x224xf32>
    %402 = tpu.matmul %399, %401, %cst_465 {dimension_numbers = #tpu.dot_dimension_numbers<[1], [0], [0], [1], [0, 0, 1, 1], [], []>} : vector<7x224xbf16>, vector<224x224xbf16>, vector<7x224xf32> -> vector<7x224xf32>
    %c0_466 = arith.constant 0 : index
    %c1_467 = arith.constant 1 : index
    %c1_468 = arith.constant 1 : index
    %c0_469 = arith.constant 0 : index
    %403 = vector.load %arg18[%c0_466, %c1_467, %c1_468, %c0_469] : memref<2x2x8x224xbf16, #tpu.memory_space<vmem>>, vector<1x1x7x224xbf16>
    %404 = vector.shape_cast %403 : vector<1x1x7x224xbf16> to vector<7x224xbf16>
    %c3_470 = arith.constant 3 : index
    %c0_471 = arith.constant 0 : index
    %c0_472 = arith.constant 0 : index
    %405 = vector.load %arg3[%c3_470, %c0_471, %c0_472] : memref<4x224x224xbf16, #tpu.memory_space<vmem>>, vector<1x224x224xbf16>
    %406 = vector.shape_cast %405 : vector<1x224x224xbf16> to vector<224x224xbf16>
    %cst_473 = arith.constant dense<0.000000e+00> : vector<7x224xf32>
    %407 = tpu.matmul %404, %406, %cst_473 {dimension_numbers = #tpu.dot_dimension_numbers<[1], [0], [0], [1], [0, 0, 1, 1], [], []>} : vector<7x224xbf16>, vector<224x224xbf16>, vector<7x224xf32> -> vector<7x224xf32>
    %408 = arith.addf %392, %397 : vector<7x224xf32>
    %409 = arith.addf %408, %402 : vector<7x224xf32>
    %410 = arith.addf %409, %407 : vector<7x224xf32>
    %c0_474 = arith.constant 0 : index
    %c0_475 = arith.constant 0 : index
    %411 = vector.load %arg4[%c0_474, %c0_475] : memref<8x224xf32, #tpu.memory_space<vmem>>, vector<7x224xf32>
    %412 = arith.addf %410, %411 : vector<7x224xf32>
    %cst_476 = arith.constant 0.000000e+00 : f32
    %413 = vector.broadcast %cst_476 : f32 to vector<7x224xf32>
    %414 = arith.maximumf %412, %413 : vector<7x224xf32>
    %415 = arith.truncf %414 : vector<7x224xf32> to vector<7x224xbf16>
    %416 = vector.extract_strided_slice %415 {offsets = [0, 0], sizes = [1, 224], strides = [1, 1]} : vector<7x224xbf16> to vector<1x224xbf16>
    %c0_477 = arith.constant 0 : index
    %c0_478 = arith.constant 0 : index
    %c0_479 = arith.constant 0 : index
    %417 = vector.load %arg5[%c0_477, %c0_478, %c0_479] : memref<7x224x32xbf16, #tpu.memory_space<vmem>>, vector<1x224x32xbf16>
    %418 = vector.shape_cast %417 : vector<1x224x32xbf16> to vector<224x32xbf16>
    %cst_480 = arith.constant dense<0.000000e+00> : vector<1x32xf32>
    %419 = tpu.matmul %416, %418, %cst_480 {dimension_numbers = #tpu.dot_dimension_numbers<[1], [0], [0], [1], [0, 0, 1, 1], [], []>} : vector<1x224xbf16>, vector<224x32xbf16>, vector<1x32xf32> -> vector<1x32xf32>
    %420 = vector.extract_strided_slice %415 {offsets = [1, 0], sizes = [1, 224], strides = [1, 1]} : vector<7x224xbf16> to vector<1x224xbf16>
    %c1_481 = arith.constant 1 : index
    %c0_482 = arith.constant 0 : index
    %c0_483 = arith.constant 0 : index
    %421 = vector.load %arg5[%c1_481, %c0_482, %c0_483] : memref<7x224x32xbf16, #tpu.memory_space<vmem>>, vector<1x224x32xbf16>
    %422 = vector.shape_cast %421 : vector<1x224x32xbf16> to vector<224x32xbf16>
    %cst_484 = arith.constant dense<0.000000e+00> : vector<1x32xf32>
    %423 = tpu.matmul %420, %422, %cst_484 {dimension_numbers = #tpu.dot_dimension_numbers<[1], [0], [0], [1], [0, 0, 1, 1], [], []>} : vector<1x224xbf16>, vector<224x32xbf16>, vector<1x32xf32> -> vector<1x32xf32>
    %424 = vector.extract_strided_slice %415 {offsets = [2, 0], sizes = [1, 224], strides = [1, 1]} : vector<7x224xbf16> to vector<1x224xbf16>
    %c2_485 = arith.constant 2 : index
    %c0_486 = arith.constant 0 : index
    %c0_487 = arith.constant 0 : index
    %425 = vector.load %arg5[%c2_485, %c0_486, %c0_487] : memref<7x224x32xbf16, #tpu.memory_space<vmem>>, vector<1x224x32xbf16>
    %426 = vector.shape_cast %425 : vector<1x224x32xbf16> to vector<224x32xbf16>
    %cst_488 = arith.constant dense<0.000000e+00> : vector<1x32xf32>
    %427 = tpu.matmul %424, %426, %cst_488 {dimension_numbers = #tpu.dot_dimension_numbers<[1], [0], [0], [1], [0, 0, 1, 1], [], []>} : vector<1x224xbf16>, vector<224x32xbf16>, vector<1x32xf32> -> vector<1x32xf32>
    %428 = vector.extract_strided_slice %415 {offsets = [3, 0], sizes = [1, 224], strides = [1, 1]} : vector<7x224xbf16> to vector<1x224xbf16>
    %c3_489 = arith.constant 3 : index
    %c0_490 = arith.constant 0 : index
    %c0_491 = arith.constant 0 : index
    %429 = vector.load %arg5[%c3_489, %c0_490, %c0_491] : memref<7x224x32xbf16, #tpu.memory_space<vmem>>, vector<1x224x32xbf16>
    %430 = vector.shape_cast %429 : vector<1x224x32xbf16> to vector<224x32xbf16>
    %cst_492 = arith.constant dense<0.000000e+00> : vector<1x32xf32>
    %431 = tpu.matmul %428, %430, %cst_492 {dimension_numbers = #tpu.dot_dimension_numbers<[1], [0], [0], [1], [0, 0, 1, 1], [], []>} : vector<1x224xbf16>, vector<224x32xbf16>, vector<1x32xf32> -> vector<1x32xf32>
    %432 = vector.extract_strided_slice %415 {offsets = [4, 0], sizes = [1, 224], strides = [1, 1]} : vector<7x224xbf16> to vector<1x224xbf16>
    %c4_493 = arith.constant 4 : index
    %c0_494 = arith.constant 0 : index
    %c0_495 = arith.constant 0 : index
    %433 = vector.load %arg5[%c4_493, %c0_494, %c0_495] : memref<7x224x32xbf16, #tpu.memory_space<vmem>>, vector<1x224x32xbf16>
    %434 = vector.shape_cast %433 : vector<1x224x32xbf16> to vector<224x32xbf16>
    %cst_496 = arith.constant dense<0.000000e+00> : vector<1x32xf32>
    %435 = tpu.matmul %432, %434, %cst_496 {dimension_numbers = #tpu.dot_dimension_numbers<[1], [0], [0], [1], [0, 0, 1, 1], [], []>} : vector<1x224xbf16>, vector<224x32xbf16>, vector<1x32xf32> -> vector<1x32xf32>
    %436 = vector.extract_strided_slice %415 {offsets = [5, 0], sizes = [1, 224], strides = [1, 1]} : vector<7x224xbf16> to vector<1x224xbf16>
    %c5_497 = arith.constant 5 : index
    %c0_498 = arith.constant 0 : index
    %c0_499 = arith.constant 0 : index
    %437 = vector.load %arg5[%c5_497, %c0_498, %c0_499] : memref<7x224x32xbf16, #tpu.memory_space<vmem>>, vector<1x224x32xbf16>
    %438 = vector.shape_cast %437 : vector<1x224x32xbf16> to vector<224x32xbf16>
    %cst_500 = arith.constant dense<0.000000e+00> : vector<1x32xf32>
    %439 = tpu.matmul %436, %438, %cst_500 {dimension_numbers = #tpu.dot_dimension_numbers<[1], [0], [0], [1], [0, 0, 1, 1], [], []>} : vector<1x224xbf16>, vector<224x32xbf16>, vector<1x32xf32> -> vector<1x32xf32>
    %440 = vector.extract_strided_slice %415 {offsets = [6, 0], sizes = [1, 224], strides = [1, 1]} : vector<7x224xbf16> to vector<1x224xbf16>
    %c6_501 = arith.constant 6 : index
    %c0_502 = arith.constant 0 : index
    %c0_503 = arith.constant 0 : index
    %441 = vector.load %arg5[%c6_501, %c0_502, %c0_503] : memref<7x224x32xbf16, #tpu.memory_space<vmem>>, vector<1x224x32xbf16>
    %442 = vector.shape_cast %441 : vector<1x224x32xbf16> to vector<224x32xbf16>
    %cst_504 = arith.constant dense<0.000000e+00> : vector<1x32xf32>
    %443 = tpu.matmul %440, %442, %cst_504 {dimension_numbers = #tpu.dot_dimension_numbers<[1], [0], [0], [1], [0, 0, 1, 1], [], []>} : vector<1x224xbf16>, vector<224x32xbf16>, vector<1x32xf32> -> vector<1x32xf32>
    %444 = arith.addf %419, %423 : vector<1x32xf32>
    %445 = arith.addf %444, %427 : vector<1x32xf32>
    %446 = arith.addf %445, %431 : vector<1x32xf32>
    %447 = arith.addf %446, %435 : vector<1x32xf32>
    %448 = arith.addf %447, %439 : vector<1x32xf32>
    %449 = arith.addf %448, %443 : vector<1x32xf32>
    %c0_505 = arith.constant 0 : index
    %c0_506 = arith.constant 0 : index
    %450 = vector.load %arg6[%c0_505, %c0_506] : memref<8x32xf32, #tpu.memory_space<vmem>>, vector<1x32xf32>
    %451 = arith.addf %449, %450 : vector<1x32xf32>
    %cst_507 = arith.constant 0.000000e+00 : f32
    %452 = vector.broadcast %cst_507 : f32 to vector<1x32xf32>
    %453 = arith.maximumf %451, %452 : vector<1x32xf32>
    %454 = arith.truncf %453 : vector<1x32xf32> to vector<1x32xbf16>
    %c0_508 = arith.constant 0 : index
    %c0_509 = arith.constant 0 : index
    %455 = vector.load %arg7[%c0_508, %c0_509] : memref<32x8xbf16, #tpu.memory_space<vmem>>, vector<32x8xbf16>
    %cst_510 = arith.constant dense<0.000000e+00> : vector<1x8xf32>
    %456 = tpu.matmul %454, %455, %cst_510 {dimension_numbers = #tpu.dot_dimension_numbers<[1], [0], [0], [1], [0, 0, 1, 1], [], []>} : vector<1x32xbf16>, vector<32x8xbf16>, vector<1x8xf32> -> vector<1x8xf32>
    %c0_511 = arith.constant 0 : index
    %c0_512 = arith.constant 0 : index
    %457 = vector.load %arg8[%c0_511, %c0_512] : memref<8x8xf32, #tpu.memory_space<vmem>>, vector<1x8xf32>
    %458 = arith.addf %456, %457 : vector<1x8xf32>
    %459 = arith.truncf %458 : vector<1x8xf32> to vector<1x8xbf16>
    %c0_513 = arith.constant 0 : index
    %c0_514 = arith.constant 0 : index
    %460 = vector.load %arg9[%c0_513, %c0_514] : memref<8x32xbf16, #tpu.memory_space<vmem>>, vector<8x32xbf16>
    %cst_515 = arith.constant dense<0.000000e+00> : vector<1x32xf32>
    %461 = tpu.matmul %459, %460, %cst_515 {dimension_numbers = #tpu.dot_dimension_numbers<[1], [0], [0], [1], [0, 0, 1, 1], [], []>} : vector<1x8xbf16>, vector<8x32xbf16>, vector<1x32xf32> -> vector<1x32xf32>
    %c0_516 = arith.constant 0 : index
    %c0_517 = arith.constant 0 : index
    %462 = vector.load %arg10[%c0_516, %c0_517] : memref<8x32xf32, #tpu.memory_space<vmem>>, vector<1x32xf32>
    %463 = arith.addf %461, %462 : vector<1x32xf32>
    %cst_518 = arith.constant 0.000000e+00 : f32
    %464 = vector.broadcast %cst_518 : f32 to vector<1x32xf32>
    %465 = arith.maximumf %463, %464 : vector<1x32xf32>
    %466 = arith.truncf %465 : vector<1x32xf32> to vector<1x32xbf16>
    %c0_519 = arith.constant 0 : index
    %c0_520 = arith.constant 0 : index
    %c0_521 = arith.constant 0 : index
    %467 = vector.load %arg11[%c0_519, %c0_520, %c0_521] : memref<7x32x224xbf16, #tpu.memory_space<vmem>>, vector<1x32x224xbf16>
    %468 = vector.shape_cast %467 : vector<1x32x224xbf16> to vector<32x224xbf16>
    %cst_522 = arith.constant dense<0.000000e+00> : vector<1x224xf32>
    %469 = tpu.matmul %466, %468, %cst_522 {dimension_numbers = #tpu.dot_dimension_numbers<[1], [0], [0], [1], [0, 0, 1, 1], [], []>} : vector<1x32xbf16>, vector<32x224xbf16>, vector<1x224xf32> -> vector<1x224xf32>
    %c0_523 = arith.constant 0 : index
    %c0_524 = arith.constant 0 : index
    %470 = vector.load %arg12[%c0_523, %c0_524] : memref<8x224xf32, #tpu.memory_space<vmem>>, vector<1x224xf32>
    %471 = arith.addf %469, %470 : vector<1x224xf32>
    %cst_525 = arith.constant 0.000000e+00 : f32
    %472 = vector.broadcast %cst_525 : f32 to vector<1x224xf32>
    %473 = arith.maximumf %471, %472 : vector<1x224xf32>
    %474 = arith.truncf %473 : vector<1x224xf32> to vector<1x224xbf16>
    %c1_526 = arith.constant 1 : index
    %c1_527 = arith.constant 1 : index
    %c0_528 = arith.constant 0 : index
    %475 = vector.load %arg19[%c1_526, %c1_527, %c0_528] : memref<2x9x224xbf16, #tpu.memory_space<vmem>>, vector<1x1x224xbf16>
    %476 = vector.shape_cast %475 : vector<1x1x224xbf16> to vector<1x224xbf16>
    %477 = vector.shape_cast %474 : vector<1x224xbf16> to vector<1x1x224xbf16>
    tpu.vector_store %arg19[%c1_526, %c1_527, %c0_528], %477 {strides = array<i32>} : memref<2x9x224xbf16, #tpu.memory_space<vmem>>, vector<1x1x224xbf16>,
    %c1_529 = arith.constant 1 : index
    %c0_530 = arith.constant 0 : index
    %c0_531 = arith.constant 0 : index
    %478 = vector.load %arg11[%c1_529, %c0_530, %c0_531] : memref<7x32x224xbf16, #tpu.memory_space<vmem>>, vector<1x32x224xbf16>
    %479 = vector.shape_cast %478 : vector<1x32x224xbf16> to vector<32x224xbf16>
    %cst_532 = arith.constant dense<0.000000e+00> : vector<1x224xf32>
    %480 = tpu.matmul %466, %479, %cst_532 {dimension_numbers = #tpu.dot_dimension_numbers<[1], [0], [0], [1], [0, 0, 1, 1], [], []>} : vector<1x32xbf16>, vector<32x224xbf16>, vector<1x224xf32> -> vector<1x224xf32>
    %c1_533 = arith.constant 1 : index
    %c0_534 = arith.constant 0 : index
    %481 = vector.load %arg12[%c1_533, %c0_534] : memref<8x224xf32, #tpu.memory_space<vmem>>, vector<1x224xf32>
    %482 = arith.addf %480, %481 : vector<1x224xf32>
    %cst_535 = arith.constant 0.000000e+00 : f32
    %483 = vector.broadcast %cst_535 : f32 to vector<1x224xf32>
    %484 = arith.maximumf %482, %483 : vector<1x224xf32>
    %485 = arith.truncf %484 : vector<1x224xf32> to vector<1x224xbf16>
    %c1_536 = arith.constant 1 : index
    %c2_537 = arith.constant 2 : index
    %c0_538 = arith.constant 0 : index
    %486 = vector.load %arg19[%c1_536, %c2_537, %c0_538] : memref<2x9x224xbf16, #tpu.memory_space<vmem>>, vector<1x1x224xbf16>
    %487 = vector.shape_cast %486 : vector<1x1x224xbf16> to vector<1x224xbf16>
    %488 = vector.shape_cast %485 : vector<1x224xbf16> to vector<1x1x224xbf16>
    tpu.vector_store %arg19[%c1_536, %c2_537, %c0_538], %488 {strides = array<i32>} : memref<2x9x224xbf16, #tpu.memory_space<vmem>>, vector<1x1x224xbf16>,
    %c2_539 = arith.constant 2 : index
    %c0_540 = arith.constant 0 : index
    %c0_541 = arith.constant 0 : index
    %489 = vector.load %arg11[%c2_539, %c0_540, %c0_541] : memref<7x32x224xbf16, #tpu.memory_space<vmem>>, vector<1x32x224xbf16>
    %490 = vector.shape_cast %489 : vector<1x32x224xbf16> to vector<32x224xbf16>
    %cst_542 = arith.constant dense<0.000000e+00> : vector<1x224xf32>
    %491 = tpu.matmul %466, %490, %cst_542 {dimension_numbers = #tpu.dot_dimension_numbers<[1], [0], [0], [1], [0, 0, 1, 1], [], []>} : vector<1x32xbf16>, vector<32x224xbf16>, vector<1x224xf32> -> vector<1x224xf32>
    %c2_543 = arith.constant 2 : index
    %c0_544 = arith.constant 0 : index
    %492 = vector.load %arg12[%c2_543, %c0_544] : memref<8x224xf32, #tpu.memory_space<vmem>>, vector<1x224xf32>
    %493 = arith.addf %491, %492 : vector<1x224xf32>
    %cst_545 = arith.constant 0.000000e+00 : f32
    %494 = vector.broadcast %cst_545 : f32 to vector<1x224xf32>
    %495 = arith.maximumf %493, %494 : vector<1x224xf32>
    %496 = arith.truncf %495 : vector<1x224xf32> to vector<1x224xbf16>
    %c1_546 = arith.constant 1 : index
    %c3_547 = arith.constant 3 : index
    %c0_548 = arith.constant 0 : index
    %497 = vector.load %arg19[%c1_546, %c3_547, %c0_548] : memref<2x9x224xbf16, #tpu.memory_space<vmem>>, vector<1x1x224xbf16>
    %498 = vector.shape_cast %497 : vector<1x1x224xbf16> to vector<1x224xbf16>
    %499 = vector.shape_cast %496 : vector<1x224xbf16> to vector<1x1x224xbf16>
    tpu.vector_store %arg19[%c1_546, %c3_547, %c0_548], %499 {strides = array<i32>} : memref<2x9x224xbf16, #tpu.memory_space<vmem>>, vector<1x1x224xbf16>,
    %c3_549 = arith.constant 3 : index
    %c0_550 = arith.constant 0 : index
    %c0_551 = arith.constant 0 : index
    %500 = vector.load %arg11[%c3_549, %c0_550, %c0_551] : memref<7x32x224xbf16, #tpu.memory_space<vmem>>, vector<1x32x224xbf16>
    %501 = vector.shape_cast %500 : vector<1x32x224xbf16> to vector<32x224xbf16>
    %cst_552 = arith.constant dense<0.000000e+00> : vector<1x224xf32>
    %502 = tpu.matmul %466, %501, %cst_552 {dimension_numbers = #tpu.dot_dimension_numbers<[1], [0], [0], [1], [0, 0, 1, 1], [], []>} : vector<1x32xbf16>, vector<32x224xbf16>, vector<1x224xf32> -> vector<1x224xf32>
    %c3_553 = arith.constant 3 : index
    %c0_554 = arith.constant 0 : index
    %503 = vector.load %arg12[%c3_553, %c0_554] : memref<8x224xf32, #tpu.memory_space<vmem>>, vector<1x224xf32>
    %504 = arith.addf %502, %503 : vector<1x224xf32>
    %cst_555 = arith.constant 0.000000e+00 : f32
    %505 = vector.broadcast %cst_555 : f32 to vector<1x224xf32>
    %506 = arith.maximumf %504, %505 : vector<1x224xf32>
    %507 = arith.truncf %506 : vector<1x224xf32> to vector<1x224xbf16>
    %c1_556 = arith.constant 1 : index
    %c4_557 = arith.constant 4 : index
    %c0_558 = arith.constant 0 : index
    %508 = vector.load %arg19[%c1_556, %c4_557, %c0_558] : memref<2x9x224xbf16, #tpu.memory_space<vmem>>, vector<1x1x224xbf16>
    %509 = vector.shape_cast %508 : vector<1x1x224xbf16> to vector<1x224xbf16>
    %510 = vector.shape_cast %507 : vector<1x224xbf16> to vector<1x1x224xbf16>
    tpu.vector_store %arg19[%c1_556, %c4_557, %c0_558], %510 {strides = array<i32>} : memref<2x9x224xbf16, #tpu.memory_space<vmem>>, vector<1x1x224xbf16>,
    %c4_559 = arith.constant 4 : index
    %c0_560 = arith.constant 0 : index
    %c0_561 = arith.constant 0 : index
    %511 = vector.load %arg11[%c4_559, %c0_560, %c0_561] : memref<7x32x224xbf16, #tpu.memory_space<vmem>>, vector<1x32x224xbf16>
    %512 = vector.shape_cast %511 : vector<1x32x224xbf16> to vector<32x224xbf16>
    %cst_562 = arith.constant dense<0.000000e+00> : vector<1x224xf32>
    %513 = tpu.matmul %466, %512, %cst_562 {dimension_numbers = #tpu.dot_dimension_numbers<[1], [0], [0], [1], [0, 0, 1, 1], [], []>} : vector<1x32xbf16>, vector<32x224xbf16>, vector<1x224xf32> -> vector<1x224xf32>
    %c4_563 = arith.constant 4 : index
    %c0_564 = arith.constant 0 : index
    %514 = vector.load %arg12[%c4_563, %c0_564] : memref<8x224xf32, #tpu.memory_space<vmem>>, vector<1x224xf32>
    %515 = arith.addf %513, %514 : vector<1x224xf32>
    %cst_565 = arith.constant 0.000000e+00 : f32
    %516 = vector.broadcast %cst_565 : f32 to vector<1x224xf32>
    %517 = arith.maximumf %515, %516 : vector<1x224xf32>
    %518 = arith.truncf %517 : vector<1x224xf32> to vector<1x224xbf16>
    %c1_566 = arith.constant 1 : index
    %c5_567 = arith.constant 5 : index
    %c0_568 = arith.constant 0 : index
    %519 = vector.load %arg19[%c1_566, %c5_567, %c0_568] : memref<2x9x224xbf16, #tpu.memory_space<vmem>>, vector<1x1x224xbf16>
    %520 = vector.shape_cast %519 : vector<1x1x224xbf16> to vector<1x224xbf16>
    %521 = vector.shape_cast %518 : vector<1x224xbf16> to vector<1x1x224xbf16>
    tpu.vector_store %arg19[%c1_566, %c5_567, %c0_568], %521 {strides = array<i32>} : memref<2x9x224xbf16, #tpu.memory_space<vmem>>, vector<1x1x224xbf16>,
    %c5_569 = arith.constant 5 : index
    %c0_570 = arith.constant 0 : index
    %c0_571 = arith.constant 0 : index
    %522 = vector.load %arg11[%c5_569, %c0_570, %c0_571] : memref<7x32x224xbf16, #tpu.memory_space<vmem>>, vector<1x32x224xbf16>
    %523 = vector.shape_cast %522 : vector<1x32x224xbf16> to vector<32x224xbf16>
    %cst_572 = arith.constant dense<0.000000e+00> : vector<1x224xf32>
    %524 = tpu.matmul %466, %523, %cst_572 {dimension_numbers = #tpu.dot_dimension_numbers<[1], [0], [0], [1], [0, 0, 1, 1], [], []>} : vector<1x32xbf16>, vector<32x224xbf16>, vector<1x224xf32> -> vector<1x224xf32>
    %c5_573 = arith.constant 5 : index
    %c0_574 = arith.constant 0 : index
    %525 = vector.load %arg12[%c5_573, %c0_574] : memref<8x224xf32, #tpu.memory_space<vmem>>, vector<1x224xf32>
    %526 = arith.addf %524, %525 : vector<1x224xf32>
    %cst_575 = arith.constant 0.000000e+00 : f32
    %527 = vector.broadcast %cst_575 : f32 to vector<1x224xf32>
    %528 = arith.maximumf %526, %527 : vector<1x224xf32>
    %529 = arith.truncf %528 : vector<1x224xf32> to vector<1x224xbf16>
    %c1_576 = arith.constant 1 : index
    %c6_577 = arith.constant 6 : index
    %c0_578 = arith.constant 0 : index
    %530 = vector.load %arg19[%c1_576, %c6_577, %c0_578] : memref<2x9x224xbf16, #tpu.memory_space<vmem>>, vector<1x1x224xbf16>
    %531 = vector.shape_cast %530 : vector<1x1x224xbf16> to vector<1x224xbf16>
    %532 = vector.shape_cast %529 : vector<1x224xbf16> to vector<1x1x224xbf16>
    tpu.vector_store %arg19[%c1_576, %c6_577, %c0_578], %532 {strides = array<i32>} : memref<2x9x224xbf16, #tpu.memory_space<vmem>>, vector<1x1x224xbf16>,
    %c6_579 = arith.constant 6 : index
    %c0_580 = arith.constant 0 : index
    %c0_581 = arith.constant 0 : index
    %533 = vector.load %arg11[%c6_579, %c0_580, %c0_581] : memref<7x32x224xbf16, #tpu.memory_space<vmem>>, vector<1x32x224xbf16>
    %534 = vector.shape_cast %533 : vector<1x32x224xbf16> to vector<32x224xbf16>
    %cst_582 = arith.constant dense<0.000000e+00> : vector<1x224xf32>
    %535 = tpu.matmul %466, %534, %cst_582 {dimension_numbers = #tpu.dot_dimension_numbers<[1], [0], [0], [1], [0, 0, 1, 1], [], []>} : vector<1x32xbf16>, vector<32x224xbf16>, vector<1x224xf32> -> vector<1x224xf32>
    %c6_583 = arith.constant 6 : index
    %c0_584 = arith.constant 0 : index
    %536 = vector.load %arg12[%c6_583, %c0_584] : memref<8x224xf32, #tpu.memory_space<vmem>>, vector<1x224xf32>
    %537 = arith.addf %535, %536 : vector<1x224xf32>
    %cst_585 = arith.constant 0.000000e+00 : f32
    %538 = vector.broadcast %cst_585 : f32 to vector<1x224xf32>
    %539 = arith.maximumf %537, %538 : vector<1x224xf32>
    %540 = arith.truncf %539 : vector<1x224xf32> to vector<1x224xbf16>
    %c1_586 = arith.constant 1 : index
    %c7_587 = arith.constant 7 : index
    %c0_588 = arith.constant 0 : index
    %541 = vector.load %arg19[%c1_586, %c7_587, %c0_588] : memref<2x9x224xbf16, #tpu.memory_space<vmem>>, vector<1x1x224xbf16>
    %542 = vector.shape_cast %541 : vector<1x1x224xbf16> to vector<1x224xbf16>
    %543 = vector.shape_cast %540 : vector<1x224xbf16> to vector<1x1x224xbf16>
    tpu.vector_store %arg19[%c1_586, %c7_587, %c0_588], %543 {strides = array<i32>} : memref<2x9x224xbf16, #tpu.memory_space<vmem>>, vector<1x1x224xbf16>,
    %c1_589 = arith.constant 1 : index
    %c0_590 = arith.constant 0 : index
    %c0_591 = arith.constant 0 : index
    %544 = vector.load %arg19[%c1_589, %c0_590, %c0_591] : memref<2x9x224xbf16, #tpu.memory_space<vmem>>, vector<1x7x224xbf16>
    %545 = vector.shape_cast %544 : vector<1x7x224xbf16> to vector<7x224xbf16>
    %c0_592 = arith.constant 0 : index
    %c0_593 = arith.constant 0 : index
    %c0_594 = arith.constant 0 : index
    %c0_595 = arith.constant 0 : index
    %546 = vector.load %arg13[%c0_592, %c0_593, %c0_594, %c0_595] : memref<2x2x224x224xbf16, #tpu.memory_space<vmem>>, vector<1x1x224x224xbf16>
    %547 = vector.shape_cast %546 : vector<1x1x224x224xbf16> to vector<224x224xbf16>
    %cst_596 = arith.constant dense<0.000000e+00> : vector<7x224xf32>
    %548 = tpu.matmul %545, %547, %cst_596 {dimension_numbers = #tpu.dot_dimension_numbers<[1], [0], [0], [1], [0, 0, 1, 1], [], []>} : vector<7x224xbf16>, vector<224x224xbf16>, vector<7x224xf32> -> vector<7x224xf32>
    %c1_597 = arith.constant 1 : index
    %c1_598 = arith.constant 1 : index
    %c0_599 = arith.constant 0 : index
    %549 = vector.load %arg19[%c1_597, %c1_598, %c0_599] : memref<2x9x224xbf16, #tpu.memory_space<vmem>>, vector<1x7x224xbf16>
    %550 = vector.shape_cast %549 : vector<1x7x224xbf16> to vector<7x224xbf16>
    %c0_600 = arith.constant 0 : index
    %c1_601 = arith.constant 1 : index
    %c0_602 = arith.constant 0 : index
    %c0_603 = arith.constant 0 : index
    %551 = vector.load %arg13[%c0_600, %c1_601, %c0_602, %c0_603] : memref<2x2x224x224xbf16, #tpu.memory_space<vmem>>, vector<1x1x224x224xbf16>
    %552 = vector.shape_cast %551 : vector<1x1x224x224xbf16> to vector<224x224xbf16>
    %cst_604 = arith.constant dense<0.000000e+00> : vector<7x224xf32>
    %553 = tpu.matmul %550, %552, %cst_604 {dimension_numbers = #tpu.dot_dimension_numbers<[1], [0], [0], [1], [0, 0, 1, 1], [], []>} : vector<7x224xbf16>, vector<224x224xbf16>, vector<7x224xf32> -> vector<7x224xf32>
    %554 = arith.addf %548, %553 : vector<7x224xf32>
    %c0_605 = arith.constant 0 : index
    %c0_606 = arith.constant 0 : index
    %555 = vector.load %arg14[%c0_605, %c0_606] : memref<8x224xf32, #tpu.memory_space<vmem>>, vector<7x224xf32>
    %556 = arith.addf %554, %555 : vector<7x224xf32>
    %cst_607 = arith.constant 0.000000e+00 : f32
    %557 = vector.broadcast %cst_607 : f32 to vector<7x224xf32>
    %558 = arith.maximumf %556, %557 : vector<7x224xf32>
    %559 = arith.truncf %558 : vector<7x224xf32> to vector<7x224xbf16>
    %c0_608 = arith.constant 0 : index
    %c1_609 = arith.constant 1 : index
    %c1_610 = arith.constant 1 : index
    %c0_611 = arith.constant 0 : index
    %560 = vector.load %arg20[%c0_608, %c1_609, %c1_610, %c0_611] : memref<2x2x9x224xbf16, #tpu.memory_space<vmem>>, vector<1x1x7x224xbf16>
    %561 = vector.shape_cast %560 : vector<1x1x7x224xbf16> to vector<7x224xbf16>
    %562 = vector.shape_cast %559 : vector<7x224xbf16> to vector<1x1x7x224xbf16>
    tpu.vector_store %arg20[%c0_608, %c1_609, %c1_610, %c0_611], %562 {strides = array<i32>} : memref<2x2x9x224xbf16, #tpu.memory_space<vmem>>, vector<1x1x7x224xbf16>,
    %c1_612 = arith.constant 1 : index
    %c1_613 = arith.constant 1 : index
    %c0_614 = arith.constant 0 : index
    %563 = vector.load %arg19[%c1_612, %c1_613, %c0_614] : memref<2x9x224xbf16, #tpu.memory_space<vmem>>, vector<1x7x224xbf16>
    %564 = vector.shape_cast %563 : vector<1x7x224xbf16> to vector<7x224xbf16>
    %c1_615 = arith.constant 1 : index
    %c0_616 = arith.constant 0 : index
    %c0_617 = arith.constant 0 : index
    %c0_618 = arith.constant 0 : index
    %565 = vector.load %arg13[%c1_615, %c0_616, %c0_617, %c0_618] : memref<2x2x224x224xbf16, #tpu.memory_space<vmem>>, vector<1x1x224x224xbf16>
    %566 = vector.shape_cast %565 : vector<1x1x224x224xbf16> to vector<224x224xbf16>
    %cst_619 = arith.constant dense<0.000000e+00> : vector<7x224xf32>
    %567 = tpu.matmul %564, %566, %cst_619 {dimension_numbers = #tpu.dot_dimension_numbers<[1], [0], [0], [1], [0, 0, 1, 1], [], []>} : vector<7x224xbf16>, vector<224x224xbf16>, vector<7x224xf32> -> vector<7x224xf32>
    %c1_620 = arith.constant 1 : index
    %c2_621 = arith.constant 2 : index
    %c0_622 = arith.constant 0 : index
    %568 = vector.load %arg19[%c1_620, %c2_621, %c0_622] : memref<2x9x224xbf16, #tpu.memory_space<vmem>>, vector<1x7x224xbf16>
    %569 = vector.shape_cast %568 : vector<1x7x224xbf16> to vector<7x224xbf16>
    %c1_623 = arith.constant 1 : index
    %c1_624 = arith.constant 1 : index
    %c0_625 = arith.constant 0 : index
    %c0_626 = arith.constant 0 : index
    %570 = vector.load %arg13[%c1_623, %c1_624, %c0_625, %c0_626] : memref<2x2x224x224xbf16, #tpu.memory_space<vmem>>, vector<1x1x224x224xbf16>
    %571 = vector.shape_cast %570 : vector<1x1x224x224xbf16> to vector<224x224xbf16>
    %cst_627 = arith.constant dense<0.000000e+00> : vector<7x224xf32>
    %572 = tpu.matmul %569, %571, %cst_627 {dimension_numbers = #tpu.dot_dimension_numbers<[1], [0], [0], [1], [0, 0, 1, 1], [], []>} : vector<7x224xbf16>, vector<224x224xbf16>, vector<7x224xf32> -> vector<7x224xf32>
    %573 = arith.addf %567, %572 : vector<7x224xf32>
    %c0_628 = arith.constant 0 : index
    %c0_629 = arith.constant 0 : index
    %574 = vector.load %arg14[%c0_628, %c0_629] : memref<8x224xf32, #tpu.memory_space<vmem>>, vector<7x224xf32>
    %575 = arith.addf %573, %574 : vector<7x224xf32>
    %cst_630 = arith.constant 0.000000e+00 : f32
    %576 = vector.broadcast %cst_630 : f32 to vector<7x224xf32>
    %577 = arith.maximumf %575, %576 : vector<7x224xf32>
    %578 = arith.truncf %577 : vector<7x224xf32> to vector<7x224xbf16>
    %c1_631 = arith.constant 1 : index
    %c1_632 = arith.constant 1 : index
    %c1_633 = arith.constant 1 : index
    %c0_634 = arith.constant 0 : index
    %579 = vector.load %arg20[%c1_631, %c1_632, %c1_633, %c0_634] : memref<2x2x9x224xbf16, #tpu.memory_space<vmem>>, vector<1x1x7x224xbf16>
    %580 = vector.shape_cast %579 : vector<1x1x7x224xbf16> to vector<7x224xbf16>
    %581 = vector.shape_cast %578 : vector<7x224xbf16> to vector<1x1x7x224xbf16>
    tpu.vector_store %arg20[%c1_631, %c1_632, %c1_633, %c0_634], %581 {strides = array<i32>} : memref<2x2x9x224xbf16, #tpu.memory_space<vmem>>, vector<1x1x7x224xbf16>,
    %c0_635 = arith.constant 0 : index
    %c1_636 = arith.constant 1 : index
    %c1_637 = arith.constant 1 : index
    %c0_638 = arith.constant 0 : index
    %582 = vector.load %arg20[%c0_635, %c1_636, %c1_637, %c0_638] : memref<2x2x9x224xbf16, #tpu.memory_space<vmem>>, vector<1x1x7x224xbf16>
    %583 = vector.shape_cast %582 : vector<1x1x7x224xbf16> to vector<7x224xbf16>
    %c1_639 = arith.constant 1 : index
    %c0_640 = arith.constant 0 : index
    %c0_641 = arith.constant 0 : index
    %584 = vector.load %arg15[%c1_639, %c0_640, %c0_641] : memref<4x224x28xbf16, #tpu.memory_space<vmem>>, vector<1x224x28xbf16>
    %585 = vector.shape_cast %584 : vector<1x224x28xbf16> to vector<224x28xbf16>
    %cst_642 = arith.constant dense<0.000000e+00> : vector<7x28xf32>
    %586 = tpu.matmul %583, %585, %cst_642 {dimension_numbers = #tpu.dot_dimension_numbers<[1], [0], [0], [1], [0, 0, 1, 1], [], []>} : vector<7x224xbf16>, vector<224x28xbf16>, vector<7x28xf32> -> vector<7x28xf32>
    %c1_643 = arith.constant 1 : index
    %c1_644 = arith.constant 1 : index
    %c0_645 = arith.constant 0 : index
    %c0_646 = arith.constant 0 : index
    %587 = vector.load %arg20[%c1_643, %c1_644, %c0_645, %c0_646] : memref<2x2x9x224xbf16, #tpu.memory_space<vmem>>, vector<1x1x7x224xbf16>
    %588 = vector.shape_cast %587 : vector<1x1x7x224xbf16> to vector<7x224xbf16>
    %c3_647 = arith.constant 3 : index
    %c0_648 = arith.constant 0 : index
    %c0_649 = arith.constant 0 : index
    %589 = vector.load %arg15[%c3_647, %c0_648, %c0_649] : memref<4x224x28xbf16, #tpu.memory_space<vmem>>, vector<1x224x28xbf16>
    %590 = vector.shape_cast %589 : vector<1x224x28xbf16> to vector<224x28xbf16>
    %cst_650 = arith.constant dense<0.000000e+00> : vector<7x28xf32>
    %591 = tpu.matmul %588, %590, %cst_650 {dimension_numbers = #tpu.dot_dimension_numbers<[1], [0], [0], [1], [0, 0, 1, 1], [], []>} : vector<7x224xbf16>, vector<224x28xbf16>, vector<7x28xf32> -> vector<7x28xf32>
    %592 = arith.addf %586, %591 : vector<7x28xf32>
    %c0_651 = arith.constant 0 : index
    %c0_652 = arith.constant 0 : index
    %593 = vector.load %arg16[%c0_651, %c0_652] : memref<8x28xf32, #tpu.memory_space<vmem>>, vector<7x28xf32>
    %594 = arith.addf %592, %593 : vector<7x28xf32>
    %c1_653 = arith.constant 1 : index
    %c0_654 = arith.constant 0 : index
    %c0_655 = arith.constant 0 : index
    %c0_656 = arith.constant 0 : index
    %595 = vector.load %arg17[%c1_653, %c0_654, %c0_655, %c0_656] : memref<2x4x7x28xf32, #tpu.memory_space<vmem>>, vector<1x1x7x28xf32>
    %596 = vector.shape_cast %595 : vector<1x1x7x28xf32> to vector<7x28xf32>
    %597 = vector.shape_cast %594 : vector<7x28xf32> to vector<1x1x7x28xf32>
    tpu.vector_store %arg17[%c1_653, %c0_654, %c0_655, %c0_656], %597 {strides = array<i32>} : memref<2x4x7x28xf32, #tpu.memory_space<vmem>>, vector<1x1x7x28xf32>,
    %c0_657 = arith.constant 0 : index
    %c1_658 = arith.constant 1 : index
    %c1_659 = arith.constant 1 : index
    %c0_660 = arith.constant 0 : index
    %598 = vector.load %arg20[%c0_657, %c1_658, %c1_659, %c0_660] : memref<2x2x9x224xbf16, #tpu.memory_space<vmem>>, vector<1x1x7x224xbf16>
    %599 = vector.shape_cast %598 : vector<1x1x7x224xbf16> to vector<7x224xbf16>
    %c2_661 = arith.constant 2 : index
    %c0_662 = arith.constant 0 : index
    %c0_663 = arith.constant 0 : index
    %600 = vector.load %arg15[%c2_661, %c0_662, %c0_663] : memref<4x224x28xbf16, #tpu.memory_space<vmem>>, vector<1x224x28xbf16>
    %601 = vector.shape_cast %600 : vector<1x224x28xbf16> to vector<224x28xbf16>
    %cst_664 = arith.constant dense<0.000000e+00> : vector<7x28xf32>
    %602 = tpu.matmul %599, %601, %cst_664 {dimension_numbers = #tpu.dot_dimension_numbers<[1], [0], [0], [1], [0, 0, 1, 1], [], []>} : vector<7x224xbf16>, vector<224x28xbf16>, vector<7x28xf32> -> vector<7x28xf32>
    %c1_665 = arith.constant 1 : index
    %c1_666 = arith.constant 1 : index
    %c1_667 = arith.constant 1 : index
    %c0_668 = arith.constant 0 : index
    %603 = vector.load %arg20[%c1_665, %c1_666, %c1_667, %c0_668] : memref<2x2x9x224xbf16, #tpu.memory_space<vmem>>, vector<1x1x7x224xbf16>
    %604 = vector.shape_cast %603 : vector<1x1x7x224xbf16> to vector<7x224xbf16>
    %c0_669 = arith.constant 0 : index
    %c0_670 = arith.constant 0 : index
    %c0_671 = arith.constant 0 : index
    %605 = vector.load %arg15[%c0_669, %c0_670, %c0_671] : memref<4x224x28xbf16, #tpu.memory_space<vmem>>, vector<1x224x28xbf16>
    %606 = vector.shape_cast %605 : vector<1x224x28xbf16> to vector<224x28xbf16>
    %cst_672 = arith.constant dense<0.000000e+00> : vector<7x28xf32>
    %607 = tpu.matmul %604, %606, %cst_672 {dimension_numbers = #tpu.dot_dimension_numbers<[1], [0], [0], [1], [0, 0, 1, 1], [], []>} : vector<7x224xbf16>, vector<224x28xbf16>, vector<7x28xf32> -> vector<7x28xf32>
    %608 = arith.addf %602, %607 : vector<7x28xf32>
    %c0_673 = arith.constant 0 : index
    %c0_674 = arith.constant 0 : index
    %609 = vector.load %arg16[%c0_673, %c0_674] : memref<8x28xf32, #tpu.memory_space<vmem>>, vector<7x28xf32>
    %610 = arith.addf %608, %609 : vector<7x28xf32>
    %c1_675 = arith.constant 1 : index
    %c1_676 = arith.constant 1 : index
    %c0_677 = arith.constant 0 : index
    %c0_678 = arith.constant 0 : index
    %611 = vector.load %arg17[%c1_675, %c1_676, %c0_677, %c0_678] : memref<2x4x7x28xf32, #tpu.memory_space<vmem>>, vector<1x1x7x28xf32>
    %612 = vector.shape_cast %611 : vector<1x1x7x28xf32> to vector<7x28xf32>
    %613 = vector.shape_cast %610 : vector<7x28xf32> to vector<1x1x7x28xf32>
    tpu.vector_store %arg17[%c1_675, %c1_676, %c0_677, %c0_678], %613 {strides = array<i32>} : memref<2x4x7x28xf32, #tpu.memory_space<vmem>>, vector<1x1x7x28xf32>,
    %c1_679 = arith.constant 1 : index
    %c1_680 = arith.constant 1 : index
    %c1_681 = arith.constant 1 : index
    %c0_682 = arith.constant 0 : index
    %614 = vector.load %arg20[%c1_679, %c1_680, %c1_681, %c0_682] : memref<2x2x9x224xbf16, #tpu.memory_space<vmem>>, vector<1x1x7x224xbf16>
    %615 = vector.shape_cast %614 : vector<1x1x7x224xbf16> to vector<7x224xbf16>
    %c1_683 = arith.constant 1 : index
    %c0_684 = arith.constant 0 : index
    %c0_685 = arith.constant 0 : index
    %616 = vector.load %arg15[%c1_683, %c0_684, %c0_685] : memref<4x224x28xbf16, #tpu.memory_space<vmem>>, vector<1x224x28xbf16>
    %617 = vector.shape_cast %616 : vector<1x224x28xbf16> to vector<224x28xbf16>
    %cst_686 = arith.constant dense<0.000000e+00> : vector<7x28xf32>
    %618 = tpu.matmul %615, %617, %cst_686 {dimension_numbers = #tpu.dot_dimension_numbers<[1], [0], [0], [1], [0, 0, 1, 1], [], []>} : vector<7x224xbf16>, vector<224x28xbf16>, vector<7x28xf32> -> vector<7x28xf32>
    %c0_687 = arith.constant 0 : index
    %c1_688 = arith.constant 1 : index
    %c1_689 = arith.constant 1 : index
    %c0_690 = arith.constant 0 : index
    %619 = vector.load %arg20[%c0_687, %c1_688, %c1_689, %c0_690] : memref<2x2x9x224xbf16, #tpu.memory_space<vmem>>, vector<1x1x7x224xbf16>
    %620 = vector.shape_cast %619 : vector<1x1x7x224xbf16> to vector<7x224xbf16>
    %c3_691 = arith.constant 3 : index
    %c0_692 = arith.constant 0 : index
    %c0_693 = arith.constant 0 : index
    %621 = vector.load %arg15[%c3_691, %c0_692, %c0_693] : memref<4x224x28xbf16, #tpu.memory_space<vmem>>, vector<1x224x28xbf16>
    %622 = vector.shape_cast %621 : vector<1x224x28xbf16> to vector<224x28xbf16>
    %cst_694 = arith.constant dense<0.000000e+00> : vector<7x28xf32>
    %623 = tpu.matmul %620, %622, %cst_694 {dimension_numbers = #tpu.dot_dimension_numbers<[1], [0], [0], [1], [0, 0, 1, 1], [], []>} : vector<7x224xbf16>, vector<224x28xbf16>, vector<7x28xf32> -> vector<7x28xf32>
    %624 = arith.addf %618, %623 : vector<7x28xf32>
    %c0_695 = arith.constant 0 : index
    %c0_696 = arith.constant 0 : index
    %625 = vector.load %arg16[%c0_695, %c0_696] : memref<8x28xf32, #tpu.memory_space<vmem>>, vector<7x28xf32>
    %626 = arith.addf %624, %625 : vector<7x28xf32>
    %c1_697 = arith.constant 1 : index
    %c2_698 = arith.constant 2 : index
    %c0_699 = arith.constant 0 : index
    %c0_700 = arith.constant 0 : index
    %627 = vector.load %arg17[%c1_697, %c2_698, %c0_699, %c0_700] : memref<2x4x7x28xf32, #tpu.memory_space<vmem>>, vector<1x1x7x28xf32>
    %628 = vector.shape_cast %627 : vector<1x1x7x28xf32> to vector<7x28xf32>
    %629 = vector.shape_cast %626 : vector<7x28xf32> to vector<1x1x7x28xf32>
    tpu.vector_store %arg17[%c1_697, %c2_698, %c0_699, %c0_700], %629 {strides = array<i32>} : memref<2x4x7x28xf32, #tpu.memory_space<vmem>>, vector<1x1x7x28xf32>,
    %c1_701 = arith.constant 1 : index
    %c1_702 = arith.constant 1 : index
    %c1_703 = arith.constant 1 : index
    %c0_704 = arith.constant 0 : index
    %630 = vector.load %arg20[%c1_701, %c1_702, %c1_703, %c0_704] : memref<2x2x9x224xbf16, #tpu.memory_space<vmem>>, vector<1x1x7x224xbf16>
    %631 = vector.shape_cast %630 : vector<1x1x7x224xbf16> to vector<7x224xbf16>
    %c2_705 = arith.constant 2 : index
    %c0_706 = arith.constant 0 : index
    %c0_707 = arith.constant 0 : index
    %632 = vector.load %arg15[%c2_705, %c0_706, %c0_707] : memref<4x224x28xbf16, #tpu.memory_space<vmem>>, vector<1x224x28xbf16>
    %633 = vector.shape_cast %632 : vector<1x224x28xbf16> to vector<224x28xbf16>
    %cst_708 = arith.constant dense<0.000000e+00> : vector<7x28xf32>
    %634 = tpu.matmul %631, %633, %cst_708 {dimension_numbers = #tpu.dot_dimension_numbers<[1], [0], [0], [1], [0, 0, 1, 1], [], []>} : vector<7x224xbf16>, vector<224x28xbf16>, vector<7x28xf32> -> vector<7x28xf32>
    %c0_709 = arith.constant 0 : index
    %c1_710 = arith.constant 1 : index
    %c2_711 = arith.constant 2 : index
    %c0_712 = arith.constant 0 : index
    %635 = vector.load %arg20[%c0_709, %c1_710, %c2_711, %c0_712] : memref<2x2x9x224xbf16, #tpu.memory_space<vmem>>, vector<1x1x7x224xbf16>
    %636 = vector.shape_cast %635 : vector<1x1x7x224xbf16> to vector<7x224xbf16>
    %c0_713 = arith.constant 0 : index
    %c0_714 = arith.constant 0 : index
    %c0_715 = arith.constant 0 : index
    %637 = vector.load %arg15[%c0_713, %c0_714, %c0_715] : memref<4x224x28xbf16, #tpu.memory_space<vmem>>, vector<1x224x28xbf16>
    %638 = vector.shape_cast %637 : vector<1x224x28xbf16> to vector<224x28xbf16>
    %cst_716 = arith.constant dense<0.000000e+00> : vector<7x28xf32>
    %639 = tpu.matmul %636, %638, %cst_716 {dimension_numbers = #tpu.dot_dimension_numbers<[1], [0], [0], [1], [0, 0, 1, 1], [], []>} : vector<7x224xbf16>, vector<224x28xbf16>, vector<7x28xf32> -> vector<7x28xf32>
    %640 = arith.addf %634, %639 : vector<7x28xf32>
    %c0_717 = arith.constant 0 : index
    %c0_718 = arith.constant 0 : index
    %641 = vector.load %arg16[%c0_717, %c0_718] : memref<8x28xf32, #tpu.memory_space<vmem>>, vector<7x28xf32>
    %642 = arith.addf %640, %641 : vector<7x28xf32>
    %c1_719 = arith.constant 1 : index
    %c3_720 = arith.constant 3 : index
    %c0_721 = arith.constant 0 : index
    %c0_722 = arith.constant 0 : index
    %643 = vector.load %arg17[%c1_719, %c3_720, %c0_721, %c0_722] : memref<2x4x7x28xf32, #tpu.memory_space<vmem>>, vector<1x1x7x28xf32>
    %644 = vector.shape_cast %643 : vector<1x1x7x28xf32> to vector<7x28xf32>
    %645 = vector.shape_cast %642 : vector<7x28xf32> to vector<1x1x7x28xf32>
    tpu.vector_store %arg17[%c1_719, %c3_720, %c0_721, %c0_722], %645 {strides = array<i32>} : memref<2x4x7x28xf32, #tpu.memory_space<vmem>>, vector<1x1x7x28xf32>,
    return
  }
}

</mosaic_0001>

<llo_original>
// kernel: autoencoder_forward.1
$region0: #{autoencoder_forward.1}
  #allocation0 [shape = 'u32[]', space=smem, size = 0x4, offset = 0x4, fixed_abs, tag = 'smem constant byte address 0x4 - core index']
  #allocation1 [shape = 'u32[144,128]{1,0:T(1,128)}', space=vmem, size = 0x12000, scoped, tag = 'internal scratch']
  #allocation2 [shape = 'bf16[2,2,8,224]{3,2,1,0:T(8,128)(2,1)}', space=vmem, size = 0x4000, scoped, tag = 'scratch operand']
  #allocation3 [shape = 'bf16[2,9,224]{2,1,0:T(8,128)(2,1)}', space=vmem, size = 0x4000, scoped, tag = 'scratch operand']
  #allocation4 [shape = 'bf16[2,2,9,224]{3,2,1,0:T(8,128)(2,1)}', space=vmem, size = 0x8000, scoped, tag = 'scratch operand']
  %s0 = inlined_call_operand.vmem [shape: bf16[4,2,8,32], index: 0, kind: input, shape index: {}]
  %s1 = inlined_call_operand.hbm [shape: bf16[4,32,224], index: 1, kind: input, shape index: {}]
  %s2 = inlined_call_operand.hbm [shape: f32[8,224], index: 2, kind: input, shape index: {}]
  %s3 = inlined_call_operand.vmem [shape: bf16[4,224,224], index: 3, kind: input, shape index: {}]
  %s4 = inlined_call_operand.hbm [shape: f32[8,224], index: 4, kind: input, shape index: {}]
  %s5 = inlined_call_operand.vmem [shape: bf16[7,224,32], index: 5, kind: input, shape index: {}]
  %s6 = inlined_call_operand.hbm [shape: f32[8,32], index: 6, kind: input, shape index: {}]
  %s7 = inlined_call_operand.vmem [shape: bf16[32,8], index: 7, kind: input, shape index: {}]
  %s8 = inlined_call_operand.hbm [shape: f32[8,8], index: 8, kind: input, shape index: {}]
  %s9 = inlined_call_operand.vmem [shape: bf16[8,32], index: 9, kind: input, shape index: {}]
  %s10 = inlined_call_operand.hbm [shape: f32[8,32], index: 10, kind: input, shape index: {}]
  %s11 = inlined_call_operand.hbm [shape: bf16[7,32,224], index: 11, kind: input, shape index: {}]
  %s12 = inlined_call_operand.hbm [shape: f32[8,224], index: 12, kind: input, shape index: {}]
  %s13 = inlined_call_operand.vmem [shape: bf16[2,2,224,224], index: 13, kind: input, shape index: {}]
  %s14 = inlined_call_operand.hbm [shape: f32[8,224], index: 14, kind: input, shape index: {}]
  %s15 = inlined_call_operand.vmem [shape: bf16[4,224,28], index: 15, kind: input, shape index: {}]
  %s16 = inlined_call_operand.hbm [shape: f32[8,28], index: 16, kind: input, shape index: {}]
  %s17 = inlined_call_operand.vmem [shape: f32[2,4,7,28], index: 17, kind: output, shape index: {}]
  %s18 = sld [smem:[#allocation0]]
  $region118: #{autoencoder_forward.1} parent=0
    _
  %s20 = ssub.s32 1, %s18
  %s21 = scalar_select 0, %s20, %s18
  $region1: #{autoencoder_forward.1} parent=0
    #allocation5 [shape = 'u8[65536]{0}', space=vmem, size = 0x10000, scoped, tag = 'input window, operand 1, single buffered']
    #allocation6 [shape = 's32[1]{0}', space=sflag, size = 0x4, scoped, tag = 'scoped memory for autoencoder_forward.1']
    #allocation7 [shape = 'u8[8192]{0}', space=vmem, size = 0x2000, scoped, tag = 'input window, operand 2, single buffered']
    #allocation8 [shape = 's32[1]{0}', space=sflag, size = 0x4, scoped, tag = 'scoped memory for autoencoder_forward.1']
    #allocation9 [shape = 'u8[8192]{0}', space=vmem, size = 0x2000, scoped, tag = 'input window, operand 4, single buffered']
    #allocation10 [shape = 'u8[4096]{0}', space=vmem, size = 0x1000, scoped, tag = 'input window, operand 6, single buffered']
    #allocation11 [shape = 's32[1]{0}', space=sflag, size = 0x4, scoped, tag = 'scoped memory for autoencoder_forward.1']
    #allocation12 [shape = 'u8[4096]{0}', space=vmem, size = 0x1000, scoped, tag = 'input window, operand 8, single buffered']
    #allocation13 [shape = 'u8[4096]{0}', space=vmem, size = 0x1000, scoped, tag = 'input window, operand 10, single buffered']
    #allocation14 [shape = 's32[1]{0}', space=sflag, size = 0x4, scoped, tag = 'scoped memory for autoencoder_forward.1']
    #allocation15 [shape = 'u8[114688]{0}', space=vmem, size = 0x1c000, scoped, tag = 'input window, operand 11, single buffered']
    #allocation16 [shape = 'u8[8192]{0}', space=vmem, size = 0x2000, scoped, tag = 'input window, operand 12, single buffered']
    #allocation17 [shape = 's32[1]{0}', space=sflag, size = 0x4, scoped, tag = 'scoped memory for autoencoder_forward.1']
    #allocation18 [shape = 'u8[8192]{0}', space=vmem, size = 0x2000, scoped, tag = 'input window, operand 14, single buffered']
    #allocation19 [shape = 'u8[4096]{0}', space=vmem, size = 0x1000, scoped, tag = 'input window, operand 16, single buffered']
    #allocation20 [shape = 's32[1]{0}', space=sflag, size = 0x4, scoped, tag = 'scoped memory for autoencoder_forward.1']
    %22 = vsyncpa [#allocation6], 0
    %23 = vsyncpa [#allocation8], 0
    %24 = vsyncpa [#allocation11], 0
    %25 = vsyncpa [#allocation14], 0
    %26 = vsyncpa [#allocation17], 0
    %27 = vsyncpa [#allocation20], 0
    // Predicated region
    $region2: #{autoencoder_forward.1} parent=1 // pred_check
      _
    $region3: #{autoencoder_forward.1} parent=1 // pred_check_branch
      %29 = sbr.rel (0) target = $region5
    $region4: #{autoencoder_forward.1} parent=1 // pred_region
      _
    $region5: #{autoencoder_forward.1} parent=1 // pred_fallthru
      _
    // Predicated region
    $region6: #{autoencoder_forward.1} parent=1 // pred_check
      _
    $region7: #{autoencoder_forward.1} parent=1 // pred_check_branch
      %31 = sbr.rel (0) target = $region9
    $region8: #{autoencoder_forward.1} parent=1 // pred_region
      %s33 = ssub.s32 2048, 2048
      %34 = vsyncadd [#allocation6], %s33
      %s35 = sshll.u32 [#allocation5], 4
      %s36 = int_to_ptr.vmem [resolvable:$true] %s35
      %41 = dma.hbm_to_vmem [thread:$0]  %s1, 2048, %s36, [#allocation6], 128, 128, 8
    $region9: #{autoencoder_forward.1} parent=1 // pred_fallthru
      _
    // Predicated region
    $region10: #{autoencoder_forward.1} parent=1 // pred_check
      _
    $region11: #{autoencoder_forward.1} parent=1 // pred_check_branch
      %43 = sbr.rel (0) target = $region13
    $region12: #{autoencoder_forward.1} parent=1 // pred_region
      %s45 = ssub.s32 256, 256
      %46 = vsyncadd [#allocation8], %s45
      %s48 = sshll.u32 [#allocation7], 4
      %s49 = int_to_ptr.vmem [resolvable:$true] %s48
      %51 = dma.hbm_to_vmem [thread:$0]  %s2, 256, %s49, [#allocation8]
    $region13: #{autoencoder_forward.1} parent=1 // pred_fallthru
      _
    // Predicated region
    $region14: #{autoencoder_forward.1} parent=1 // pred_check
      _
    $region15: #{autoencoder_forward.1} parent=1 // pred_check_branch
      %53 = sbr.rel (0) target = $region17
    $region16: #{autoencoder_forward.1} parent=1 // pred_region
      _
    $region17: #{autoencoder_forward.1} parent=1 // pred_fallthru
      _
    // Predicated region
    $region18: #{autoencoder_forward.1} parent=1 // pred_check
      _
    $region19: #{autoencoder_forward.1} parent=1 // pred_check_branch
      %55 = sbr.rel (0) target = $region21
    $region20: #{autoencoder_forward.1} parent=1 // pred_region
      %s57 = ssub.s32 256, 256
      %58 = vsyncadd [#allocation8], %s57
      %s60 = sshll.u32 [#allocation9], 4
      %s61 = int_to_ptr.vmem [resolvable:$true] %s60
      %63 = dma.hbm_to_vmem [thread:$0]  %s4, 256, %s61, [#allocation8]
    $region21: #{autoencoder_forward.1} parent=1 // pred_fallthru
      _
    // Predicated region
    $region22: #{autoencoder_forward.1} parent=1 // pred_check
      _
    $region23: #{autoencoder_forward.1} parent=1 // pred_check_branch
      %65 = sbr.rel (0) target = $region25
    $region24: #{autoencoder_forward.1} parent=1 // pred_region
      _
    $region25: #{autoencoder_forward.1} parent=1 // pred_fallthru
      _
    // Predicated region
    $region26: #{autoencoder_forward.1} parent=1 // pred_check
      _
    $region27: #{autoencoder_forward.1} parent=1 // pred_check_branch
      %67 = sbr.rel (0) target = $region29
    $region28: #{autoencoder_forward.1} parent=1 // pred_region
      %s69 = ssub.s32 128, 128
      %70 = vsyncadd [#allocation11], %s69
      %s72 = sshll.u32 [#allocation10], 4
      %s73 = int_to_ptr.vmem [resolvable:$true] %s72
      %75 = dma.hbm_to_vmem [thread:$0]  %s6, 128, %s73, [#allocation11]
    $region29: #{autoencoder_forward.1} parent=1 // pred_fallthru
      _
    // Predicated region
    $region30: #{autoencoder_forward.1} parent=1 // pred_check
      _
    $region31: #{autoencoder_forward.1} parent=1 // pred_check_branch
      %77 = sbr.rel (0) target = $region33
    $region32: #{autoencoder_forward.1} parent=1 // pred_region
      _
    $region33: #{autoencoder_forward.1} parent=1 // pred_fallthru
      _
    // Predicated region
    $region34: #{autoencoder_forward.1} parent=1 // pred_check
      _
    $region35: #{autoencoder_forward.1} parent=1 // pred_check_branch
      %79 = sbr.rel (0) target = $region37
    $region36: #{autoencoder_forward.1} parent=1 // pred_region
      %s81 = ssub.s32 128, 128
      %82 = vsyncadd [#allocation11], %s81
      %s84 = sshll.u32 [#allocation12], 4
      %s85 = int_to_ptr.vmem [resolvable:$true] %s84
      %87 = dma.hbm_to_vmem [thread:$0]  %s8, 128, %s85, [#allocation11]
    $region37: #{autoencoder_forward.1} parent=1 // pred_fallthru
      _
    // Predicated region
    $region38: #{autoencoder_forward.1} parent=1 // pred_check
      _
    $region39: #{autoencoder_forward.1} parent=1 // pred_check_branch
      %89 = sbr.rel (0) target = $region41
    $region40: #{autoencoder_forward.1} parent=1 // pred_region
      _
    $region41: #{autoencoder_forward.1} parent=1 // pred_fallthru
      _
    // Predicated region
    $region42: #{autoencoder_forward.1} parent=1 // pred_check
      _
    $region43: #{autoencoder_forward.1} parent=1 // pred_check_branch
      %91 = sbr.rel (0) target = $region45
    $region44: #{autoencoder_forward.1} parent=1 // pred_region
      %s93 = ssub.s32 128, 128
      %94 = vsyncadd [#allocation14], %s93
      %s96 = sshll.u32 [#allocation13], 4
      %s97 = int_to_ptr.vmem [resolvable:$true] %s96
      %99 = dma.hbm_to_vmem [thread:$0]  %s10, 128, %s97, [#allocation14]
    $region45: #{autoencoder_forward.1} parent=1 // pred_fallthru
      _
    // Predicated region
    $region46: #{autoencoder_forward.1} parent=1 // pred_check
      _
    $region47: #{autoencoder_forward.1} parent=1 // pred_check_branch
      %101 = sbr.rel (0) target = $region49
    $region48: #{autoencoder_forward.1} parent=1 // pred_region
      %s103 = ssub.s32 3584, 3584
      %104 = vsyncadd [#allocation14], %s103
      %s105 = sshll.u32 [#allocation15], 4
      %s106 = int_to_ptr.vmem [resolvable:$true] %s105
      %111 = dma.hbm_to_vmem [thread:$0]  %s11, 3584, %s106, [#allocation14], 128, 128, 8
    $region49: #{autoencoder_forward.1} parent=1 // pred_fallthru
      _
    // Predicated region
    $region50: #{autoencoder_forward.1} parent=1 // pred_check
      _
    $region51: #{autoencoder_forward.1} parent=1 // pred_check_branch
      %113 = sbr.rel (0) target = $region53
    $region52: #{autoencoder_forward.1} parent=1 // pred_region
      %s115 = ssub.s32 256, 256
      %116 = vsyncadd [#allocation17], %s115
      %s118 = sshll.u32 [#allocation16], 4
      %s119 = int_to_ptr.vmem [resolvable:$true] %s118
      %121 = dma.hbm_to_vmem [thread:$0]  %s12, 256, %s119, [#allocation17]
    $region53: #{autoencoder_forward.1} parent=1 // pred_fallthru
      _
    // Predicated region
    $region54: #{autoencoder_forward.1} parent=1 // pred_check
      _
    $region55: #{autoencoder_forward.1} parent=1 // pred_check_branch
      %123 = sbr.rel (0) target = $region57
    $region56: #{autoencoder_forward.1} parent=1 // pred_region
      _
    $region57: #{autoencoder_forward.1} parent=1 // pred_fallthru
      _
    // Predicated region
    $region58: #{autoencoder_forward.1} parent=1 // pred_check
      _
    $region59: #{autoencoder_forward.1} parent=1 // pred_check_branch
      %125 = sbr.rel (0) target = $region61
    $region60: #{autoencoder_forward.1} parent=1 // pred_region
      %s127 = ssub.s32 256, 256
      %128 = vsyncadd [#allocation17], %s127
      %s130 = sshll.u32 [#allocation18], 4
      %s131 = int_to_ptr.vmem [resolvable:$true] %s130
      %133 = dma.hbm_to_vmem [thread:$0]  %s14, 256, %s131, [#allocation17]
    $region61: #{autoencoder_forward.1} parent=1 // pred_fallthru
      _
    // Predicated region
    $region62: #{autoencoder_forward.1} parent=1 // pred_check
      _
    $region63: #{autoencoder_forward.1} parent=1 // pred_check_branch
      %135 = sbr.rel (0) target = $region65
    $region64: #{autoencoder_forward.1} parent=1 // pred_region
      _
    $region65: #{autoencoder_forward.1} parent=1 // pred_fallthru
      _
    // Predicated region
    $region66: #{autoencoder_forward.1} parent=1 // pred_check
      _
    $region67: #{autoencoder_forward.1} parent=1 // pred_check_branch
      %137 = sbr.rel (0) target = $region69
    $region68: #{autoencoder_forward.1} parent=1 // pred_region
      %s139 = ssub.s32 128, 128
      %140 = vsyncadd [#allocation20], %s139
      %s142 = sshll.u32 [#allocation19], 4
      %s143 = int_to_ptr.vmem [resolvable:$true] %s142
      %145 = dma.hbm_to_vmem [thread:$0]  %s16, 128, %s143, [#allocation20]
    $region69: #{autoencoder_forward.1} parent=1 // pred_fallthru
      _
    // Predicated region
    $region70: #{autoencoder_forward.1} parent=1 // pred_check
      _
    $region71: #{autoencoder_forward.1} parent=1 // pred_check_branch
      %147 = sbr.rel (0) target = $region73
    $region72: #{autoencoder_forward.1} parent=1 // pred_region
      %148 = dma.done [#allocation6], 2048
    $region73: #{autoencoder_forward.1} parent=1 // pred_fallthru
      _
    // Predicated region
    $region74: #{autoencoder_forward.1} parent=1 // pred_check
      _
    $region75: #{autoencoder_forward.1} parent=1 // pred_check_branch
      %150 = sbr.rel (0) target = $region77
    $region76: #{autoencoder_forward.1} parent=1 // pred_region
      %151 = dma.done [#allocation8], 256
    $region77: #{autoencoder_forward.1} parent=1 // pred_fallthru
      _
    // Predicated region
    $region78: #{autoencoder_forward.1} parent=1 // pred_check
      _
    $region79: #{autoencoder_forward.1} parent=1 // pred_check_branch
      %153 = sbr.rel (0) target = $region81
    $region80: #{autoencoder_forward.1} parent=1 // pred_region
      %154 = dma.done [#allocation8], 256
    $region81: #{autoencoder_forward.1} parent=1 // pred_fallthru
      _
    // Predicated region
    $region82: #{autoencoder_forward.1} parent=1 // pred_check
      _
    $region83: #{autoencoder_forward.1} parent=1 // pred_check_branch
      %156 = sbr.rel (0) target = $region85
    $region84: #{autoencoder_forward.1} parent=1 // pred_region
      %157 = dma.done [#allocation11], 128
    $region85: #{autoencoder_forward.1} parent=1 // pred_fallthru
      _
    // Predicated region
    $region86: #{autoencoder_forward.1} parent=1 // pred_check
      _
    $region87: #{autoencoder_forward.1} parent=1 // pred_check_branch
      %159 = sbr.rel (0) target = $region89
    $region88: #{autoencoder_forward.1} parent=1 // pred_region
      %160 = dma.done [#allocation11], 128
    $region89: #{autoencoder_forward.1} parent=1 // pred_fallthru
      _
    // Predicated region
    $region90: #{autoencoder_forward.1} parent=1 // pred_check
      _
    $region91: #{autoencoder_forward.1} parent=1 // pred_check_branch
      %162 = sbr.rel (0) target = $region93
    $region92: #{autoencoder_forward.1} parent=1 // pred_region
      %163 = dma.done [#allocation14], 128
    $region93: #{autoencoder_forward.1} parent=1 // pred_fallthru
      _
    // Predicated region
    $region94: #{autoencoder_forward.1} parent=1 // pred_check
      _
    $region95: #{autoencoder_forward.1} parent=1 // pred_check_branch
      %165 = sbr.rel (0) target = $region97
    $region96: #{autoencoder_forward.1} parent=1 // pred_region
      %166 = dma.done [#allocation14], 3584
    $region97: #{autoencoder_forward.1} parent=1 // pred_fallthru
      _
    // Predicated region
    $region98: #{autoencoder_forward.1} parent=1 // pred_check
      _
    $region99: #{autoencoder_forward.1} parent=1 // pred_check_branch
      %168 = sbr.rel (0) target = $region101
    $region100: #{autoencoder_forward.1} parent=1 // pred_region
      %169 = dma.done [#allocation17], 256
    $region101: #{autoencoder_forward.1} parent=1 // pred_fallthru
      _
    // Predicated region
    $region102: #{autoencoder_forward.1} parent=1 // pred_check
      _
    $region103: #{autoencoder_forward.1} parent=1 // pred_check_branch
      %171 = sbr.rel (0) target = $region105
    $region104: #{autoencoder_forward.1} parent=1 // pred_region
      %172 = dma.done [#allocation17], 256
    $region105: #{autoencoder_forward.1} parent=1 // pred_fallthru
      _
    // Predicated region
    $region106: #{autoencoder_forward.1} parent=1 // pred_check
      _
    $region107: #{autoencoder_forward.1} parent=1 // pred_check_branch
      %174 = sbr.rel (0) target = $region109
    $region108: #{autoencoder_forward.1} parent=1 // pred_region
      %175 = dma.done [#allocation20], 128
    $region109: #{autoencoder_forward.1} parent=1 // pred_fallthru
      _
    %vm177 = vcmask 1043456
    %vm178 = vcmask 785412
    %vm179 = vmor %vm178, %vm177
    %180 = vst.msk [vmem:[#allocation2] sm:$0xff] %vm179, 0
    %181 = vst.msk [vmem:[#allocation2 + $0x8] sm:$0xff] %vm179, 0
    %182 = vst.msk [vmem:[#allocation2 + $0x10] sm:$0xff] %vm179, 0
    %183 = vst.msk [vmem:[#allocation2 + $0x18] sm:$0xff] %vm179, 0
    %184 = vst.msk [vmem:[#allocation3] sm:$0xff] %vm179, 0
    %vm185 = vcmask 1040384
    %vm186 = vsmask.f32 256
    %vm187 = vmand %vm185, %vm186
    %vm188 = vcmask 782340
    %vm189 = vsmask.f32 4352
    %vm190 = vmand %vm188, %vm189
    %vm191 = vmor %vm190, %vm187
    %v192 = vld [vmem:[#allocation3 + $0x8] sm:$0x11]
    %v193 = vsel %vm191, 0, %v192
    %194 = vst [vmem:[#allocation3 + $0x8] sm:$0x11] %v193
    %195 = vst.msk [vmem:[#allocation3 + $0x10] sm:$0xff] %vm179, 0
    %v196 = vld [vmem:[#allocation3 + $0x18] sm:$0x11]
    %v197 = vsel %vm191, 0, %v196
    %198 = vst [vmem:[#allocation3 + $0x18] sm:$0x11] %v197
    %199 = vst.msk [vmem:[#allocation4] sm:$0xff] %vm179, 0
    %v200 = vld [vmem:[#allocation4 + $0x8] sm:$0x11]
    %v201 = vsel %vm191, 0, %v200
    %202 = vst [vmem:[#allocation4 + $0x8] sm:$0x11] %v201
    %203 = vst.msk [vmem:[#allocation4 + $0x10] sm:$0xff] %vm179, 0
    %v204 = vld [vmem:[#allocation4 + $0x18] sm:$0x11]
    %v205 = vsel %vm191, 0, %v204
    %206 = vst [vmem:[#allocation4 + $0x18] sm:$0x11] %v205
    %207 = vst.msk [vmem:[#allocation4 + $0x20] sm:$0xff] %vm179, 0
    %v208 = vld [vmem:[#allocation4 + $0x28] sm:$0x11]
    %v209 = vsel %vm191, 0, %v208
    %210 = vst [vmem:[#allocation4 + $0x28] sm:$0x11] %v209
    %211 = vst.msk [vmem:[#allocation4 + $0x30] sm:$0xff] %vm179, 0
    %v212 = vld [vmem:[#allocation4 + $0x38] sm:$0x11]
    %v213 = vsel %vm191, 0, %v212
    %214 = vst [vmem:[#allocation4 + $0x38] sm:$0x11] %v213
    %v215 = vld [vmem:[%s0] sm:$0xf]
    %v216 = vld [vmem:[#allocation5] sm:$0xff]
    %v217 = vld [vmem:[#allocation5 + $0x8] sm:$0xff]
    %v218 = vld [vmem:[#allocation5 + $0x10] sm:$0xff]
    %v219 = vld [vmem:[#allocation5 + $0x18] sm:$0xff]
    %s220 = scalar_lea.vmem %s0, 8
    %v221 = vld [vmem:[%s220] sm:$0xf]
    %s222 = scalar_lea.vmem [#allocation5], 32
    %v223 = vld [vmem:[%s222] sm:$0xff]
    %v224 = vld [vmem:[%s222 + $0x8] sm:$0xff]
    %v225 = vld [vmem:[%s222 + $0x10] sm:$0xff]
    %v226 = vld [vmem:[%s222 + $0x18] sm:$0xff]
    %v231 = vunpack.c.l.b16 %v223
    %v232 = vunpack.c.h.b16 %v223
    %v233 = vunpack.c.l.b16 %v224
    %v234 = vunpack.c.h.b16 %v224
    %v235 = vunpack.c.l.b16 %v225
    %v236 = vunpack.c.h.b16 %v225
    %v237 = vunpack.c.l.b16 %v226
    %v238 = vunpack.c.h.b16 %v226
    %v239 = vpack.c.b16 %v233, %v231
    %v240 = vpack.c.b16 %v234, %v232
    %v241 = vpack.c.b16 %v237, %v235
    %v242 = vpack.c.b16 %v238, %v236
    %vm247 = vcmask 261120
    %v249 = vsel %vm247, %v221, 0
    %251 = vmatprep.subr.bf16.mxu0 0
    %252 = vmatpush1.bf16.msra.mxu0 0
    %253 = vmatprep.subr.bf16.mxu0 0
    %254 = vmatpush1.bf16.msra.mxu0 0
    %255 = vmatprep.subr.bf16.mxu0 0
    %256 = vmatpush1.bf16.msra.mxu0 0
    %257 = vmatprep.subr.bf16.mxu0 0
    %258 = vmatpush1.bf16.msra.mxu0 0
    %259 = vmatprep.subr.bf16.mxu0 0
    %260 = vmatpush1.bf16.msra.mxu0 0
    %261 = vmatprep.subr.bf16.mxu0 0
    %262 = vmatpush1.bf16.msra.mxu0 0
    %263 = vmatprep.subr.bf16.mxu0 %v242
    %264 = vmatpush1.bf16.msra.mxu0 %v241
    %265 = vmatprep.subr.bf16.mxu0 %v240
    %266 = vmatpush1.bf16.msra.mxu0 %v239
    %267 = vmatprep.subr.bf16.mxu0 0
    %268 = vmatpush2.bf16.msra.mxu0 0
    %269 = vmatprep.subr.bf16.mxu0 0
    %270 = vmatpush2.bf16.msra.mxu0 0
    %271 = vmatprep.subr.bf16.mxu0 0
    %272 = vmatpush2.bf16.msra.mxu0 0
    %273 = vmatprep.subr.bf16.mxu0 0
    %274 = vmatpush2.bf16.msra.mxu0 0
    %275 = vmatprep.subr.bf16.mxu0 0
    %276 = vmatpush2.bf16.msra.mxu0 0
    %277 = vmatprep.subr.bf16.mxu0 0
    %278 = vmatpush2.bf16.msra.mxu0 0
    %279 = vmatprep.subr.bf16.mxu0 0
    %280 = vmatpush2.bf16.msra.mxu0 0
    %281 = vmatprep.subr.bf16.mxu0 0
    %282 = vmatpush2.bf16.msra.mxu0 0
    %283 = vmatprep.mubr.bf16.mxu0 0
    %284 = vmatmul.mubr.bf16.gmra.mxu0 %v249
    %v285 = vpop.f32.mrf.mxu0
    %v286 = vadd.f32 0.0, %v285
    %v287 = vpop.f32.mrf.mxu0
    %v288 = vadd.f32 0.0, %v287
    %v289 = vpop.f32.mrf.mxu0
    %v290 = vpop.f32.mrf.mxu0
    %291 = vdwg.mxu0
    %s292 = scalar_lea.vmem %s0, 16
    %v293 = vld [vmem:[%s292] sm:$0xf]
    %s294 = scalar_lea.vmem [#allocation5], 64
    %v295 = vld [vmem:[%s294] sm:$0xff]
    %v296 = vld [vmem:[%s294 + $0x8] sm:$0xff]
    %v297 = vld [vmem:[%s294 + $0x10] sm:$0xff]
    %v298 = vld [vmem:[%s294 + $0x18] sm:$0xff]
    %v303 = vunpack.c.l.b16 %v295
    %v304 = vunpack.c.h.b16 %v295
    %v305 = vunpack.c.l.b16 %v296
    %v306 = vunpack.c.h.b16 %v296
    %v307 = vunpack.c.l.b16 %v297
    %v308 = vunpack.c.h.b16 %v297
    %v309 = vunpack.c.l.b16 %v298
    %v310 = vunpack.c.h.b16 %v298
    %v311 = vpack.c.b16 %v305, %v303
    %v312 = vpack.c.b16 %v306, %v304
    %v313 = vpack.c.b16 %v309, %v307
    %v314 = vpack.c.b16 %v310, %v308
    %v320 = vsel %vm247, %v293, 0
    %322 = vmatprep.subr.bf16.mxu0 0
    %323 = vmatpush1.bf16.msra.mxu0 0
    %324 = vmatprep.subr.bf16.mxu0 0
    %325 = vmatpush1.bf16.msra.mxu0 0
    %326 = vmatprep.subr.bf16.mxu0 0
    %327 = vmatpush1.bf16.msra.mxu0 0
    %328 = vmatprep.subr.bf16.mxu0 0
    %329 = vmatpush1.bf16.msra.mxu0 0
    %330 = vmatprep.subr.bf16.mxu0 0
    %331 = vmatpush1.bf16.msra.mxu0 0
    %332 = vmatprep.subr.bf16.mxu0 0
    %333 = vmatpush1.bf16.msra.mxu0 0
    %334 = vmatprep.subr.bf16.mxu0 %v314
    %335 = vmatpush1.bf16.msra.mxu0 %v313
    %336 = vmatprep.subr.bf16.mxu0 %v312
    %337 = vmatpush1.bf16.msra.mxu0 %v311
    %338 = vmatprep.subr.bf16.mxu0 0
    %339 = vmatpush2.bf16.msra.mxu0 0
    %340 = vmatprep.subr.bf16.mxu0 0
    %341 = vmatpush2.bf16.msra.mxu0 0
    %342 = vmatprep.subr.bf16.mxu0 0
    %343 = vmatpush2.bf16.msra.mxu0 0
    %344 = vmatprep.subr.bf16.mxu0 0
    %345 = vmatpush2.bf16.msra.mxu0 0
    %346 = vmatprep.subr.bf16.mxu0 0
    %347 = vmatpush2.bf16.msra.mxu0 0
    %348 = vmatprep.subr.bf16.mxu0 0
    %349 = vmatpush2.bf16.msra.mxu0 0
    %350 = vmatprep.subr.bf16.mxu0 0
    %351 = vmatpush2.bf16.msra.mxu0 0
    %352 = vmatprep.subr.bf16.mxu0 0
    %353 = vmatpush2.bf16.msra.mxu0 0
    %354 = vmatprep.mubr.bf16.mxu0 0
    %355 = vmatmul.mubr.bf16.gmra.mxu0 %v320
    %v356 = vpop.f32.mrf.mxu0
    %v357 = vadd.f32 0.0, %v356
    %v358 = vpop.f32.mrf.mxu0
    %v359 = vadd.f32 0.0, %v358
    %v360 = vpop.f32.mrf.mxu0
    %v361 = vpop.f32.mrf.mxu0
    %362 = vdwg.mxu0
    %s363 = scalar_lea.vmem %s0, 24
    %v364 = vld [vmem:[%s363] sm:$0xf]
    %s365 = scalar_lea.vmem [#allocation5], 96
    %v366 = vld [vmem:[%s365] sm:$0xff]
    %v367 = vld [vmem:[%s365 + $0x8] sm:$0xff]
    %v368 = vld [vmem:[%s365 + $0x10] sm:$0xff]
    %v369 = vld [vmem:[%s365 + $0x18] sm:$0xff]
    %v374 = vunpack.c.l.b16 %v366
    %v375 = vunpack.c.h.b16 %v366
    %v376 = vunpack.c.l.b16 %v367
    %v377 = vunpack.c.h.b16 %v367
    %v378 = vunpack.c.l.b16 %v368
    %v379 = vunpack.c.h.b16 %v368
    %v380 = vunpack.c.l.b16 %v369
    %v381 = vunpack.c.h.b16 %v369
    %v382 = vpack.c.b16 %v376, %v374
    %v383 = vpack.c.b16 %v377, %v375
    %v384 = vpack.c.b16 %v380, %v378
    %v385 = vpack.c.b16 %v381, %v379
    %v391 = vsel %vm247, %v364, 0
    %393 = vmatprep.subr.bf16.mxu0 0
    %394 = vmatpush1.bf16.msra.mxu0 0
    %395 = vmatprep.subr.bf16.mxu0 0
    %396 = vmatpush1.bf16.msra.mxu0 0
    %397 = vmatprep.subr.bf16.mxu0 0
    %398 = vmatpush1.bf16.msra.mxu0 0
    %399 = vmatprep.subr.bf16.mxu0 0
    %400 = vmatpush1.bf16.msra.mxu0 0
    %401 = vmatprep.subr.bf16.mxu0 0
    %402 = vmatpush1.bf16.msra.mxu0 0
    %403 = vmatprep.subr.bf16.mxu0 0
    %404 = vmatpush1.bf16.msra.mxu0 0
    %405 = vmatprep.subr.bf16.mxu0 %v385
    %406 = vmatpush1.bf16.msra.mxu0 %v384
    %407 = vmatprep.subr.bf16.mxu0 %v383
    %408 = vmatpush1.bf16.msra.mxu0 %v382
    %409 = vmatprep.subr.bf16.mxu0 0
    %410 = vmatpush2.bf16.msra.mxu0 0
    %411 = vmatprep.subr.bf16.mxu0 0
    %412 = vmatpush2.bf16.msra.mxu0 0
    %413 = vmatprep.subr.bf16.mxu0 0
    %414 = vmatpush2.bf16.msra.mxu0 0
    %415 = vmatprep.subr.bf16.mxu0 0
    %416 = vmatpush2.bf16.msra.mxu0 0
    %417 = vmatprep.subr.bf16.mxu0 0
    %418 = vmatpush2.bf16.msra.mxu0 0
    %419 = vmatprep.subr.bf16.mxu0 0
    %420 = vmatpush2.bf16.msra.mxu0 0
    %421 = vmatprep.subr.bf16.mxu0 0
    %422 = vmatpush2.bf16.msra.mxu0 0
    %423 = vmatprep.subr.bf16.mxu0 0
    %424 = vmatpush2.bf16.msra.mxu0 0
    %425 = vmatprep.mubr.bf16.mxu0 0
    %426 = vmatmul.mubr.bf16.gmra.mxu0 %v391
    %v427 = vpop.f32.mrf.mxu0
    %v428 = vadd.f32 0.0, %v427
    %v429 = vpop.f32.mrf.mxu0
    %v430 = vadd.f32 0.0, %v429
    %v431 = vpop.f32.mrf.mxu0
    %v432 = vpop.f32.mrf.mxu0
    %433 = vdwg.mxu0
    %v438 = vunpack.c.l.b16 %v216
    %v439 = vunpack.c.h.b16 %v216
    %v440 = vunpack.c.l.b16 %v217
    %v441 = vunpack.c.h.b16 %v217
    %v442 = vunpack.c.l.b16 %v218
    %v443 = vunpack.c.h.b16 %v218
    %v444 = vunpack.c.l.b16 %v219
    %v445 = vunpack.c.h.b16 %v219
    %v446 = vpack.c.b16 %v440, %v438
    %v447 = vpack.c.b16 %v441, %v439
    %v448 = vpack.c.b16 %v444, %v442
    %v449 = vpack.c.b16 %v445, %v443
    %v455 = vsel %vm247, %v215, 0
    %457 = vmatprep.subr.bf16.mxu0 0
    %458 = vmatpush1.bf16.msra.mxu0 0
    %459 = vmatprep.subr.bf16.mxu0 0
    %460 = vmatpush1.bf16.msra.mxu0 0
    %461 = vmatprep.subr.bf16.mxu0 0
    %462 = vmatpush1.bf16.msra.mxu0 0
    %463 = vmatprep.subr.bf16.mxu0 0
    %464 = vmatpush1.bf16.msra.mxu0 0
    %465 = vmatprep.subr.bf16.mxu0 0
    %466 = vmatpush1.bf16.msra.mxu0 0
    %467 = vmatprep.subr.bf16.mxu0 0
    %468 = vmatpush1.bf16.msra.mxu0 0
    %469 = vmatprep.subr.bf16.mxu0 %v449
    %470 = vmatpush1.bf16.msra.mxu0 %v448
    %471 = vmatprep.subr.bf16.mxu0 %v447
    %472 = vmatpush1.bf16.msra.mxu0 %v446
    %473 = vmatprep.subr.bf16.mxu0 0
    %474 = vmatpush2.bf16.msra.mxu0 0
    %475 = vmatprep.subr.bf16.mxu0 0
    %476 = vmatpush2.bf16.msra.mxu0 0
    %477 = vmatprep.subr.bf16.mxu0 0
    %478 = vmatpush2.bf16.msra.mxu0 0
    %479 = vmatprep.subr.bf16.mxu0 0
    %480 = vmatpush2.bf16.msra.mxu0 0
    %481 = vmatprep.subr.bf16.mxu0 0
    %482 = vmatpush2.bf16.msra.mxu0 0
    %483 = vmatprep.subr.bf16.mxu0 0
    %484 = vmatpush2.bf16.msra.mxu0 0
    %485 = vmatprep.subr.bf16.mxu0 0
    %486 = vmatpush2.bf16.msra.mxu0 0
    %487 = vmatprep.subr.bf16.mxu0 0
    %488 = vmatpush2.bf16.msra.mxu0 0
    %489 = vmatprep.mubr.bf16.mxu0 0
    %490 = vmatmul.mubr.bf16.gmra.mxu0 %v455
    %v491 = vpop.f32.mrf.mxu0
    %v492 = vadd.f32 %v286, %v491
    %v493 = vpop.f32.mrf.mxu0
    %v494 = vadd.f32 %v288, %v493
    %v495 = vpop.f32.mrf.mxu0
    %v496 = vpop.f32.mrf.mxu0
    %497 = vdwg.mxu0
    %v498 = vadd.f32 %v492, %v357
    %v499 = vadd.f32 %v494, %v359
    %v500 = vadd.f32 %v498, %v428
    %v501 = vadd.f32 %v499, %v430
    %v502 = vld [vmem:[#allocation7] sm:$0x7f]
    %v503 = vld [vmem:[#allocation7 + $0x8] sm:$0x7f]
    %v504 = vadd.f32 %v500, %v502
    %v505 = vadd.f32 %v501, %v503
    %v506 = vmax.f32 %v504, 0.0
    %v507 = vmax.f32 %v505, 0.0
    %v508 = vpack.c.bf16 %v506, %v506
    %v509 = vpack.c.bf16 %v507, %v507
    %v512 = vunpack.c.l.b16 %v508
    %v513 = vunpack.c.l.b16 %v509
    %v514 = vpack.c.b16 %v513, %v512
    %vm516 = vcmask 1043456
    %vm517 = vsmask.f32 3328
    %vm518 = vmand %vm516, %vm517
    %vm519 = vcmask 785412
    %vm520 = vsmask.f32 7424
    %vm521 = vmand %vm519, %vm520
    %vm522 = vmor %vm521, %vm518
    %v523 = vld [vmem:[#allocation2] sm:$0xff]
    %v524 = vsel %vm522, %v514, %v523
    %525 = vst [vmem:[#allocation2] sm:$0xff] %v524
    %v526 = vld [vmem:[%s292] sm:$0xf]
    %v527 = vld [vmem:[#allocation5] sm:$0xff]
    %v528 = vld [vmem:[#allocation5 + $0x8] sm:$0xff]
    %v529 = vld [vmem:[#allocation5 + $0x10] sm:$0xff]
    %v530 = vld [vmem:[#allocation5 + $0x18] sm:$0xff]
    %v531 = vld [vmem:[%s363] sm:$0xf]
    %v532 = vld [vmem:[%s222] sm:$0xff]
    %v533 = vld [vmem:[%s222 + $0x8] sm:$0xff]
    %v534 = vld [vmem:[%s222 + $0x10] sm:$0xff]
    %v535 = vld [vmem:[%s222 + $0x18] sm:$0xff]
    %v540 = vunpack.c.l.b16 %v532
    %v541 = vunpack.c.h.b16 %v532
    %v542 = vunpack.c.l.b16 %v533
    %v543 = vunpack.c.h.b16 %v533
    %v544 = vunpack.c.l.b16 %v534
    %v545 = vunpack.c.h.b16 %v534
    %v546 = vunpack.c.l.b16 %v535
    %v547 = vunpack.c.h.b16 %v535
    %v548 = vpack.c.b16 %v542, %v540
    %v549 = vpack.c.b16 %v543, %v541
    %v550 = vpack.c.b16 %v546, %v544
    %v551 = vpack.c.b16 %v547, %v545
    %v557 = vsel %vm247, %v531, 0
    %559 = vmatprep.subr.bf16.mxu0 0
    %560 = vmatpush1.bf16.msra.mxu0 0
    %561 = vmatprep.subr.bf16.mxu0 0
    %562 = vmatpush1.bf16.msra.mxu0 0
    %563 = vmatprep.subr.bf16.mxu0 0
    %564 = vmatpush1.bf16.msra.mxu0 0
    %565 = vmatprep.subr.bf16.mxu0 0
    %566 = vmatpush1.bf16.msra.mxu0 0
    %567 = vmatprep.subr.bf16.mxu0 0
    %568 = vmatpush1.bf16.msra.mxu0 0
    %569 = vmatprep.subr.bf16.mxu0 0
    %570 = vmatpush1.bf16.msra.mxu0 0
    %571 = vmatprep.subr.bf16.mxu0 %v551
    %572 = vmatpush1.bf16.msra.mxu0 %v550
    %573 = vmatprep.subr.bf16.mxu0 %v549
    %574 = vmatpush1.bf16.msra.mxu0 %v548
    %575 = vmatprep.subr.bf16.mxu0 0
    %576 = vmatpush2.bf16.msra.mxu0 0
    %577 = vmatprep.subr.bf16.mxu0 0
    %578 = vmatpush2.bf16.msra.mxu0 0
    %579 = vmatprep.subr.bf16.mxu0 0
    %580 = vmatpush2.bf16.msra.mxu0 0
    %581 = vmatprep.subr.bf16.mxu0 0
    %582 = vmatpush2.bf16.msra.mxu0 0
    %583 = vmatprep.subr.bf16.mxu0 0
    %584 = vmatpush2.bf16.msra.mxu0 0
    %585 = vmatprep.subr.bf16.mxu0 0
    %586 = vmatpush2.bf16.msra.mxu0 0
    %587 = vmatprep.subr.bf16.mxu0 0
    %588 = vmatpush2.bf16.msra.mxu0 0
    %589 = vmatprep.subr.bf16.mxu0 0
    %590 = vmatpush2.bf16.msra.mxu0 0
    %591 = vmatprep.mubr.bf16.mxu0 0
    %592 = vmatmul.mubr.bf16.gmra.mxu0 %v557
    %v593 = vpop.f32.mrf.mxu0
    %v594 = vadd.f32 0.0, %v593
    %v595 = vpop.f32.mrf.mxu0
    %v596 = vadd.f32 0.0, %v595
    %v597 = vpop.f32.mrf.mxu0
    %v598 = vpop.f32.mrf.mxu0
    %599 = vdwg.mxu0
    %v600 = vld [vmem:[%s0] sm:$0xf]
    %v601 = vld [vmem:[%s294] sm:$0xff]
    %v602 = vld [vmem:[%s294 + $0x8] sm:$0xff]
    %v603 = vld [vmem:[%s294 + $0x10] sm:$0xff]
    %v604 = vld [vmem:[%s294 + $0x18] sm:$0xff]
    %v606 = vunpack.c.l.b16 %v600
    %v607 = vpack.c.b16 %v606, %v606
    %v609 = vshrl.u32 %v607, 16
    %v611 = vshll.u32 %v607, 16
    %v613 = vrot.slane %v611, 1
    %v614 = vor.u32 %v609, %v613
    %v619 = vunpack.c.l.b16 %v601
    %v620 = vunpack.c.h.b16 %v601
    %v621 = vunpack.c.l.b16 %v602
    %v622 = vunpack.c.h.b16 %v602
    %v623 = vunpack.c.l.b16 %v603
    %v624 = vunpack.c.h.b16 %v603
    %v625 = vunpack.c.l.b16 %v604
    %v626 = vunpack.c.h.b16 %v604
    %v627 = vpack.c.b16 %v621, %v619
    %v628 = vpack.c.b16 %v622, %v620
    %v629 = vpack.c.b16 %v625, %v623
    %v630 = vpack.c.b16 %v626, %v624
    %v636 = vsel %vm247, %v614, 0
    %638 = vmatprep.subr.bf16.mxu0 0
    %639 = vmatpush1.bf16.msra.mxu0 0
    %640 = vmatprep.subr.bf16.mxu0 0
    %641 = vmatpush1.bf16.msra.mxu0 0
    %642 = vmatprep.subr.bf16.mxu0 0
    %643 = vmatpush1.bf16.msra.mxu0 0
    %644 = vmatprep.subr.bf16.mxu0 0
    %645 = vmatpush1.bf16.msra.mxu0 0
    %646 = vmatprep.subr.bf16.mxu0 0
    %647 = vmatpush1.bf16.msra.mxu0 0
    %648 = vmatprep.subr.bf16.mxu0 0
    %649 = vmatpush1.bf16.msra.mxu0 0
    %650 = vmatprep.subr.bf16.mxu0 %v630
    %651 = vmatpush1.bf16.msra.mxu0 %v629
    %652 = vmatprep.subr.bf16.mxu0 %v628
    %653 = vmatpush1.bf16.msra.mxu0 %v627
    %654 = vmatprep.subr.bf16.mxu0 0
    %655 = vmatpush2.bf16.msra.mxu0 0
    %656 = vmatprep.subr.bf16.mxu0 0
    %657 = vmatpush2.bf16.msra.mxu0 0
    %658 = vmatprep.subr.bf16.mxu0 0
    %659 = vmatpush2.bf16.msra.mxu0 0
    %660 = vmatprep.subr.bf16.mxu0 0
    %661 = vmatpush2.bf16.msra.mxu0 0
    %662 = vmatprep.subr.bf16.mxu0 0
    %663 = vmatpush2.bf16.msra.mxu0 0
    %664 = vmatprep.subr.bf16.mxu0 0
    %665 = vmatpush2.bf16.msra.mxu0 0
    %666 = vmatprep.subr.bf16.mxu0 0
    %667 = vmatpush2.bf16.msra.mxu0 0
    %668 = vmatprep.subr.bf16.mxu0 0
    %669 = vmatpush2.bf16.msra.mxu0 0
    %670 = vmatprep.mubr.bf16.mxu0 0
    %671 = vmatmul.mubr.bf16.gmra.mxu0 %v636
    %v672 = vpop.f32.mrf.mxu0
    %v673 = vadd.f32 0.0, %v672
    %v674 = vpop.f32.mrf.mxu0
    %v675 = vadd.f32 0.0, %v674
    %v676 = vpop.f32.mrf.mxu0
    %v677 = vpop.f32.mrf.mxu0
    %678 = vdwg.mxu0
    %v679 = vld [vmem:[%s220] sm:$0xf]
    %v680 = vld [vmem:[%s365] sm:$0xff]
    %v681 = vld [vmem:[%s365 + $0x8] sm:$0xff]
    %v682 = vld [vmem:[%s365 + $0x10] sm:$0xff]
    %v683 = vld [vmem:[%s365 + $0x18] sm:$0xff]
    %v685 = vunpack.c.l.b16 %v679
    %v686 = vpack.c.b16 %v685, %v685
    %v688 = vshrl.u32 %v686, 16
    %v690 = vshll.u32 %v686, 16
    %v692 = vrot.slane %v690, 1
    %v693 = vor.u32 %v688, %v692
    %v698 = vunpack.c.l.b16 %v680
    %v699 = vunpack.c.h.b16 %v680
    %v700 = vunpack.c.l.b16 %v681
    %v701 = vunpack.c.h.b16 %v681
    %v702 = vunpack.c.l.b16 %v682
    %v703 = vunpack.c.h.b16 %v682
    %v704 = vunpack.c.l.b16 %v683
    %v705 = vunpack.c.h.b16 %v683
    %v706 = vpack.c.b16 %v700, %v698
    %v707 = vpack.c.b16 %v701, %v699
    %v708 = vpack.c.b16 %v704, %v702
    %v709 = vpack.c.b16 %v705, %v703
    %v715 = vsel %vm247, %v693, 0
    %717 = vmatprep.subr.bf16.mxu0 0
    %718 = vmatpush1.bf16.msra.mxu0 0
    %719 = vmatprep.subr.bf16.mxu0 0
    %720 = vmatpush1.bf16.msra.mxu0 0
    %721 = vmatprep.subr.bf16.mxu0 0
    %722 = vmatpush1.bf16.msra.mxu0 0
    %723 = vmatprep.subr.bf16.mxu0 0
    %724 = vmatpush1.bf16.msra.mxu0 0
    %725 = vmatprep.subr.bf16.mxu0 0
    %726 = vmatpush1.bf16.msra.mxu0 0
    %727 = vmatprep.subr.bf16.mxu0 0
    %728 = vmatpush1.bf16.msra.mxu0 0
    %729 = vmatprep.subr.bf16.mxu0 %v709
    %730 = vmatpush1.bf16.msra.mxu0 %v708
    %731 = vmatprep.subr.bf16.mxu0 %v707
    %732 = vmatpush1.bf16.msra.mxu0 %v706
    %733 = vmatprep.subr.bf16.mxu0 0
    %734 = vmatpush2.bf16.msra.mxu0 0
    %735 = vmatprep.subr.bf16.mxu0 0
    %736 = vmatpush2.bf16.msra.mxu0 0
    %737 = vmatprep.subr.bf16.mxu0 0
    %738 = vmatpush2.bf16.msra.mxu0 0
    %739 = vmatprep.subr.bf16.mxu0 0
    %740 = vmatpush2.bf16.msra.mxu0 0
    %741 = vmatprep.subr.bf16.mxu0 0
    %742 = vmatpush2.bf16.msra.mxu0 0
    %743 = vmatprep.subr.bf16.mxu0 0
    %744 = vmatpush2.bf16.msra.mxu0 0
    %745 = vmatprep.subr.bf16.mxu0 0
    %746 = vmatpush2.bf16.msra.mxu0 0
    %747 = vmatprep.subr.bf16.mxu0 0
    %748 = vmatpush2.bf16.msra.mxu0 0
    %749 = vmatprep.mubr.bf16.mxu0 0
    %750 = vmatmul.mubr.bf16.gmra.mxu0 %v715
    %v751 = vpop.f32.mrf.mxu0
    %v752 = vadd.f32 0.0, %v751
    %v753 = vpop.f32.mrf.mxu0
    %v754 = vadd.f32 0.0, %v753
    %v755 = vpop.f32.mrf.mxu0
    %v756 = vpop.f32.mrf.mxu0
    %757 = vdwg.mxu0
    %v762 = vunpack.c.l.b16 %v527
    %v763 = vunpack.c.h.b16 %v527
    %v764 = vunpack.c.l.b16 %v528
    %v765 = vunpack.c.h.b16 %v528
    %v766 = vunpack.c.l.b16 %v529
    %v767 = vunpack.c.h.b16 %v529
    %v768 = vunpack.c.l.b16 %v530
    %v769 = vunpack.c.h.b16 %v530
    %v770 = vpack.c.b16 %v764, %v762
    %v771 = vpack.c.b16 %v765, %v763
    %v772 = vpack.c.b16 %v768, %v766
    %v773 = vpack.c.b16 %v769, %v767
    %v779 = vsel %vm247, %v526, 0
    %781 = vmatprep.subr.bf16.mxu0 0
    %782 = vmatpush1.bf16.msra.mxu0 0
    %783 = vmatprep.subr.bf16.mxu0 0
    %784 = vmatpush1.bf16.msra.mxu0 0
    %785 = vmatprep.subr.bf16.mxu0 0
    %786 = vmatpush1.bf16.msra.mxu0 0
    %787 = vmatprep.subr.bf16.mxu0 0
    %788 = vmatpush1.bf16.msra.mxu0 0
    %789 = vmatprep.subr.bf16.mxu0 0
    %790 = vmatpush1.bf16.msra.mxu0 0
    %791 = vmatprep.subr.bf16.mxu0 0
    %792 = vmatpush1.bf16.msra.mxu0 0
    %793 = vmatprep.subr.bf16.mxu0 %v773
    %794 = vmatpush1.bf16.msra.mxu0 %v772
    %795 = vmatprep.subr.bf16.mxu0 %v771
    %796 = vmatpush1.bf16.msra.mxu0 %v770
    %797 = vmatprep.subr.bf16.mxu0 0
    %798 = vmatpush2.bf16.msra.mxu0 0
    %799 = vmatprep.subr.bf16.mxu0 0
    %800 = vmatpush2.bf16.msra.mxu0 0
    %801 = vmatprep.subr.bf16.mxu0 0
    %802 = vmatpush2.bf16.msra.mxu0 0
    %803 = vmatprep.subr.bf16.mxu0 0
    %804 = vmatpush2.bf16.msra.mxu0 0
    %805 = vmatprep.subr.bf16.mxu0 0
    %806 = vmatpush2.bf16.msra.mxu0 0
    %807 = vmatprep.subr.bf16.mxu0 0
    %808 = vmatpush2.bf16.msra.mxu0 0
    %809 = vmatprep.subr.bf16.mxu0 0
    %810 = vmatpush2.bf16.msra.mxu0 0
    %811 = vmatprep.subr.bf16.mxu0 0
    %812 = vmatpush2.bf16.msra.mxu0 0
    %813 = vmatprep.mubr.bf16.mxu0 0
    %814 = vmatmul.mubr.bf16.gmra.mxu0 %v779
    %v815 = vpop.f32.mrf.mxu0
    %v816 = vadd.f32 %v594, %v815
    %v817 = vpop.f32.mrf.mxu0
    %v818 = vadd.f32 %v596, %v817
    %v819 = vpop.f32.mrf.mxu0
    %v820 = vpop.f32.mrf.mxu0
    %821 = vdwg.mxu0
    %v822 = vadd.f32 %v816, %v673
    %v823 = vadd.f32 %v818, %v675
    %v824 = vadd.f32 %v822, %v752
    %v825 = vadd.f32 %v823, %v754
    %v826 = vld [vmem:[#allocation7] sm:$0x7f]
    %v827 = vld [vmem:[#allocation7 + $0x8] sm:$0x7f]
    %v828 = vadd.f32 %v824, %v826
    %v829 = vadd.f32 %v825, %v827
    %v830 = vmax.f32 %v828, 0.0
    %v831 = vmax.f32 %v829, 0.0
    %v832 = vpack.c.bf16 %v830, %v830
    %v833 = vpack.c.bf16 %v831, %v831
    %v836 = vunpack.c.l.b16 %v832
    %v837 = vunpack.c.l.b16 %v833
    %v838 = vpack.c.b16 %v837, %v836
    %v840 = vshrl.u32 %v838, 16
    %v842 = vrot.slane %v840, 7
    %v843 = vshll.u32 %v838, 16
    %v845 = vor.u32 %v842, %v843
    %s847 = scalar_lea.vmem [#allocation2], 16
    %vm848 = vsmask.f32 7938
    %vm849 = vmand %vm516, %vm848
    %vm850 = vsmask.f32 7954
    %vm851 = vmand %vm519, %vm850
    %vm852 = vmor %vm851, %vm849
    %v853 = vld [vmem:[%s847] sm:$0xff]
    %v854 = vsel %vm852, %v845, %v853
    %855 = vst [vmem:[%s847] sm:$0xff] %v854
    %v856 = vld [vmem:[%s847] sm:$0xff]
    %v857 = vld [vmem:[%s3] sm:$0xff]
    %v858 = vld [vmem:[%s3 + $0x8] sm:$0xff]
    %v859 = vld [vmem:[%s3 + $0x10] sm:$0xff]
    %v860 = vld [vmem:[%s3 + $0x18] sm:$0xff]
    %v861 = vld [vmem:[%s3 + $0x20] sm:$0xff]
    %v862 = vld [vmem:[%s3 + $0x28] sm:$0xff]
    %v863 = vld [vmem:[%s3 + $0x30] sm:$0xff]
    %v864 = vld [vmem:[%s3 + $0x38] sm:$0xff]
    %v865 = vld [vmem:[%s3 + $0x40] sm:$0xff]
    %v866 = vld [vmem:[%s3 + $0x48] sm:$0xff]
    %v867 = vld [vmem:[%s3 + $0x50] sm:$0xff]
    %v868 = vld [vmem:[%s3 + $0x58] sm:$0xff]
    %v869 = vld [vmem:[%s3 + $0x60] sm:$0xff]
    %v870 = vld [vmem:[%s3 + $0x68] sm:$0xff]
    %v871 = vld [vmem:[%s3 + $0x70] sm:$0xff]
    %v872 = vld [vmem:[%s3 + $0x78] sm:$0xff]
    %v873 = vld [vmem:[%s3 + $0x80] sm:$0xff]
    %v874 = vld [vmem:[%s3 + $0x88] sm:$0xff]
    %v875 = vld [vmem:[%s3 + $0x90] sm:$0xff]
    %v876 = vld [vmem:[%s3 + $0x98] sm:$0xff]
    %v877 = vld [vmem:[%s3 + $0xa0] sm:$0xff]
    %v878 = vld [vmem:[%s3 + $0xa8] sm:$0xff]
    %v879 = vld [vmem:[%s3 + $0xb0] sm:$0xff]
    %v880 = vld [vmem:[%s3 + $0xb8] sm:$0xff]
    %v881 = vld [vmem:[%s3 + $0xc0] sm:$0xff]
    %v882 = vld [vmem:[%s3 + $0xc8] sm:$0xff]
    %v883 = vld [vmem:[%s3 + $0xd0] sm:$0xff]
    %v884 = vld [vmem:[%s3 + $0xd8] sm:$0xff]
    %v885 = vld [vmem:[#allocation2] sm:$0xff]
    %s886 = scalar_lea.vmem %s3, 224
    %v887 = vld [vmem:[%s886] sm:$0xff]
    %v888 = vld [vmem:[%s886 + $0x8] sm:$0xff]
    %v889 = vld [vmem:[%s886 + $0x10] sm:$0xff]
    %v890 = vld [vmem:[%s886 + $0x18] sm:$0xff]
    %v891 = vld [vmem:[%s886 + $0x20] sm:$0xff]
    %v892 = vld [vmem:[%s886 + $0x28] sm:$0xff]
    %v893 = vld [vmem:[%s886 + $0x30] sm:$0xff]
    %v894 = vld [vmem:[%s886 + $0x38] sm:$0xff]
    %v895 = vld [vmem:[%s886 + $0x40] sm:$0xff]
    %v896 = vld [vmem:[%s886 + $0x48] sm:$0xff]
    %v897 = vld [vmem:[%s886 + $0x50] sm:$0xff]
    %v898 = vld [vmem:[%s886 + $0x58] sm:$0xff]
    %v899 = vld [vmem:[%s886 + $0x60] sm:$0xff]
    %v900 = vld [vmem:[%s886 + $0x68] sm:$0xff]
    %v901 = vld [vmem:[%s886 + $0x70] sm:$0xff]
    %v902 = vld [vmem:[%s886 + $0x78] sm:$0xff]
    %v903 = vld [vmem:[%s886 + $0x80] sm:$0xff]
    %v904 = vld [vmem:[%s886 + $0x88] sm:$0xff]
    %v905 = vld [vmem:[%s886 + $0x90] sm:$0xff]
    %v906 = vld [vmem:[%s886 + $0x98] sm:$0xff]
    %v907 = vld [vmem:[%s886 + $0xa0] sm:$0xff]
    %v908 = vld [vmem:[%s886 + $0xa8] sm:$0xff]
    %v909 = vld [vmem:[%s886 + $0xb0] sm:$0xff]
    %v910 = vld [vmem:[%s886 + $0xb8] sm:$0xff]
    %v911 = vld [vmem:[%s886 + $0xc0] sm:$0xff]
    %v912 = vld [vmem:[%s886 + $0xc8] sm:$0xff]
    %v913 = vld [vmem:[%s886 + $0xd0] sm:$0xff]
    %v914 = vld [vmem:[%s886 + $0xd8] sm:$0xff]
    %v916 = vunpack.c.l.b16 %v885
    %v917 = vunpack.c.h.b16 %v885
    %v918 = vpack.c.b16 %v916, %v916
    %v919 = vpack.c.b16 %v917, %v917
    %v949 = vunpack.c.l.b16 %v887
    %v950 = vunpack.c.h.b16 %v887
    %v951 = vunpack.c.l.b16 %v888
    %v952 = vunpack.c.h.b16 %v888
    %v953 = vunpack.c.l.b16 %v889
    %v954 = vunpack.c.h.b16 %v889
    %v955 = vunpack.c.l.b16 %v890
    %v956 = vunpack.c.h.b16 %v890
    %v957 = vunpack.c.l.b16 %v891
    %v958 = vunpack.c.h.b16 %v891
    %v959 = vunpack.c.l.b16 %v892
    %v960 = vunpack.c.h.b16 %v892
    %v961 = vunpack.c.l.b16 %v893
    %v962 = vunpack.c.h.b16 %v893
    %v963 = vunpack.c.l.b16 %v894
    %v964 = vunpack.c.h.b16 %v894
    %v965 = vunpack.c.l.b16 %v895
    %v966 = vunpack.c.h.b16 %v895
    %v967 = vunpack.c.l.b16 %v896
    %v968 = vunpack.c.h.b16 %v896
    %v969 = vunpack.c.l.b16 %v897
    %v970 = vunpack.c.h.b16 %v897
    %v971 = vunpack.c.l.b16 %v898
    %v972 = vunpack.c.h.b16 %v898
    %v973 = vunpack.c.l.b16 %v899
    %v974 = vunpack.c.h.b16 %v899
    %v975 = vunpack.c.l.b16 %v900
    %v976 = vunpack.c.h.b16 %v900
    %v977 = vunpack.c.l.b16 %v901
    %v978 = vunpack.c.h.b16 %v901
    %v979 = vunpack.c.l.b16 %v902
    %v980 = vunpack.c.h.b16 %v902
    %v981 = vunpack.c.l.b16 %v903
    %v982 = vunpack.c.h.b16 %v903
    %v983 = vunpack.c.l.b16 %v904
    %v984 = vunpack.c.h.b16 %v904
    %v985 = vunpack.c.l.b16 %v905
    %v986 = vunpack.c.h.b16 %v905
    %v987 = vunpack.c.l.b16 %v906
    %v988 = vunpack.c.h.b16 %v906
    %v989 = vunpack.c.l.b16 %v907
    %v990 = vunpack.c.h.b16 %v907
    %v991 = vunpack.c.l.b16 %v908
    %v992 = vunpack.c.h.b16 %v908
    %v993 = vunpack.c.l.b16 %v909
    %v994 = vunpack.c.h.b16 %v909
    %v995 = vunpack.c.l.b16 %v910
    %v996 = vunpack.c.h.b16 %v910
    %v997 = vunpack.c.l.b16 %v911
    %v998 = vunpack.c.h.b16 %v911
    %v999 = vunpack.c.l.b16 %v912
    %v1000 = vunpack.c.h.b16 %v912
    %v1001 = vunpack.c.l.b16 %v913
    %v1002 = vunpack.c.h.b16 %v913
    %v1003 = vunpack.c.l.b16 %v914
    %v1004 = vunpack.c.h.b16 %v914
    %v1005 = vpack.c.b16 %v951, %v949
    %v1006 = vpack.c.b16 %v952, %v950
    %v1007 = vpack.c.b16 %v955, %v953
    %v1008 = vpack.c.b16 %v956, %v954
    %v1009 = vpack.c.b16 %v959, %v957
    %v1010 = vpack.c.b16 %v960, %v958
    %v1011 = vpack.c.b16 %v963, %v961
    %v1012 = vpack.c.b16 %v964, %v962
    %v1013 = vpack.c.b16 %v967, %v965
    %v1014 = vpack.c.b16 %v968, %v966
    %v1015 = vpack.c.b16 %v971, %v969
    %v1016 = vpack.c.b16 %v972, %v970
    %v1017 = vpack.c.b16 %v975, %v973
    %v1018 = vpack.c.b16 %v976, %v974
    %v1019 = vpack.c.b16 %v979, %v977
    %v1020 = vpack.c.b16 %v980, %v978
    %v1021 = vpack.c.b16 %v983, %v981
    %v1022 = vpack.c.b16 %v984, %v982
    %v1023 = vpack.c.b16 %v987, %v985
    %v1024 = vpack.c.b16 %v988, %v986
    %v1025 = vpack.c.b16 %v991, %v989
    %v1026 = vpack.c.b16 %v992, %v990
    %v1027 = vpack.c.b16 %v995, %v993
    %v1028 = vpack.c.b16 %v996, %v994
    %v1029 = vpack.c.b16 %v999, %v997
    %v1030 = vpack.c.b16 %v1000, %v998
    %v1031 = vpack.c.b16 %v1003, %v1001
    %v1032 = vpack.c.b16 %v1004, %v1002
    %vm1061 = vcmask 785408
    %v1063 = vsel %vm1061, %v919, 0
    %1065 = vmatprep.subr.bf16.mxu0 %v1020
    %1066 = vmatpush1.bf16.msra.mxu0 %v1019
    %1067 = vmatprep.subr.bf16.mxu0 %v1018
    %1068 = vmatpush1.bf16.msra.mxu0 %v1017
    %1069 = vmatprep.subr.bf16.mxu0 %v1016
    %1070 = vmatpush1.bf16.msra.mxu0 %v1015
    %1071 = vmatprep.subr.bf16.mxu0 %v1014
    %1072 = vmatpush1.bf16.msra.mxu0 %v1013
    %1073 = vmatprep.subr.bf16.mxu0 %v1012
    %1074 = vmatpush1.bf16.msra.mxu0 %v1011
    %1075 = vmatprep.subr.bf16.mxu0 %v1010
    %1076 = vmatpush1.bf16.msra.mxu0 %v1009
    %1077 = vmatprep.subr.bf16.mxu0 %v1008
    %1078 = vmatpush1.bf16.msra.mxu0 %v1007
    %1079 = vmatprep.subr.bf16.mxu0 %v1006
    %1080 = vmatpush1.bf16.msra.mxu0 %v1005
    %1081 = vmatprep.subr.bf16.mxu0 0
    %1082 = vmatpush2.bf16.msra.mxu0 0
    %1083 = vmatprep.subr.bf16.mxu0 0
    %1084 = vmatpush2.bf16.msra.mxu0 0
    %1085 = vmatprep.subr.bf16.mxu0 %v1032
    %1086 = vmatpush2.bf16.msra.mxu0 %v1031
    %1087 = vmatprep.subr.bf16.mxu0 %v1030
    %1088 = vmatpush2.bf16.msra.mxu0 %v1029
    %1089 = vmatprep.subr.bf16.mxu0 %v1028
    %1090 = vmatpush2.bf16.msra.mxu0 %v1027
    %1091 = vmatprep.subr.bf16.mxu0 %v1026
    %1092 = vmatpush2.bf16.msra.mxu0 %v1025
    %1093 = vmatprep.subr.bf16.mxu0 %v1024
    %1094 = vmatpush2.bf16.msra.mxu0 %v1023
    %1095 = vmatprep.subr.bf16.mxu0 %v1022
    %1096 = vmatpush2.bf16.msra.mxu0 %v1021
    %1097 = vmatprep.mubr.bf16.mxu0 %v1063
    %1098 = vmatmul.mubr.bf16.gmra.mxu0 %v918
    %v1099 = vpop.f32.mrf.mxu0
    %v1100 = vadd.f32 0.0, %v1099
    %v1101 = vpop.f32.mrf.mxu0
    %v1102 = vadd.f32 0.0, %v1101
    %v1103 = vpop.f32.mrf.mxu0
    %v1104 = vpop.f32.mrf.mxu0
    %1105 = vdwg.mxu0
    %s1106 = scalar_lea.vmem %s3, 448
    %v1107 = vld [vmem:[%s1106] sm:$0xff]
    %v1108 = vld [vmem:[%s1106 + $0x8] sm:$0xff]
    %v1109 = vld [vmem:[%s1106 + $0x10] sm:$0xff]
    %v1110 = vld [vmem:[%s1106 + $0x18] sm:$0xff]
    %v1111 = vld [vmem:[%s1106 + $0x20] sm:$0xff]
    %v1112 = vld [vmem:[%s1106 + $0x28] sm:$0xff]
    %v1113 = vld [vmem:[%s1106 + $0x30] sm:$0xff]
    %v1114 = vld [vmem:[%s1106 + $0x38] sm:$0xff]
    %v1115 = vld [vmem:[%s1106 + $0x40] sm:$0xff]
    %v1116 = vld [vmem:[%s1106 + $0x48] sm:$0xff]
    %v1117 = vld [vmem:[%s1106 + $0x50] sm:$0xff]
    %v1118 = vld [vmem:[%s1106 + $0x58] sm:$0xff]
    %v1119 = vld [vmem:[%s1106 + $0x60] sm:$0xff]
    %v1120 = vld [vmem:[%s1106 + $0x68] sm:$0xff]
    %v1121 = vld [vmem:[%s1106 + $0x70] sm:$0xff]
    %v1122 = vld [vmem:[%s1106 + $0x78] sm:$0xff]
    %v1123 = vld [vmem:[%s1106 + $0x80] sm:$0xff]
    %v1124 = vld [vmem:[%s1106 + $0x88] sm:$0xff]
    %v1125 = vld [vmem:[%s1106 + $0x90] sm:$0xff]
    %v1126 = vld [vmem:[%s1106 + $0x98] sm:$0xff]
    %v1127 = vld [vmem:[%s1106 + $0xa0] sm:$0xff]
    %v1128 = vld [vmem:[%s1106 + $0xa8] sm:$0xff]
    %v1129 = vld [vmem:[%s1106 + $0xb0] sm:$0xff]
    %v1130 = vld [vmem:[%s1106 + $0xb8] sm:$0xff]
    %v1131 = vld [vmem:[%s1106 + $0xc0] sm:$0xff]
    %v1132 = vld [vmem:[%s1106 + $0xc8] sm:$0xff]
    %v1133 = vld [vmem:[%s1106 + $0xd0] sm:$0xff]
    %v1134 = vld [vmem:[%s1106 + $0xd8] sm:$0xff]
    %v1136 = vunpack.c.l.b16 %v856
    %v1137 = vunpack.c.h.b16 %v856
    %v1138 = vpack.c.b16 %v1136, %v1136
    %v1139 = vpack.c.b16 %v1137, %v1137
    %v1141 = vshrl.u32 %v1138, 16
    %v1143 = vshll.u32 %v1138, 16
    %v1145 = vrot.slane %v1143, 1
    %v1146 = vor.u32 %v1141, %v1145
    %v1148 = vshrl.u32 %v1139, 16
    %v1150 = vshll.u32 %v1139, 16
    %v1152 = vrot.slane %v1150, 1
    %v1153 = vor.u32 %v1148, %v1152
    %v1183 = vunpack.c.l.b16 %v1107
    %v1184 = vunpack.c.h.b16 %v1107
    %v1185 = vunpack.c.l.b16 %v1108
    %v1186 = vunpack.c.h.b16 %v1108
    %v1187 = vunpack.c.l.b16 %v1109
    %v1188 = vunpack.c.h.b16 %v1109
    %v1189 = vunpack.c.l.b16 %v1110
    %v1190 = vunpack.c.h.b16 %v1110
    %v1191 = vunpack.c.l.b16 %v1111
    %v1192 = vunpack.c.h.b16 %v1111
    %v1193 = vunpack.c.l.b16 %v1112
    %v1194 = vunpack.c.h.b16 %v1112
    %v1195 = vunpack.c.l.b16 %v1113
    %v1196 = vunpack.c.h.b16 %v1113
    %v1197 = vunpack.c.l.b16 %v1114
    %v1198 = vunpack.c.h.b16 %v1114
    %v1199 = vunpack.c.l.b16 %v1115
    %v1200 = vunpack.c.h.b16 %v1115
    %v1201 = vunpack.c.l.b16 %v1116
    %v1202 = vunpack.c.h.b16 %v1116
    %v1203 = vunpack.c.l.b16 %v1117
    %v1204 = vunpack.c.h.b16 %v1117
    %v1205 = vunpack.c.l.b16 %v1118
    %v1206 = vunpack.c.h.b16 %v1118
    %v1207 = vunpack.c.l.b16 %v1119
    %v1208 = vunpack.c.h.b16 %v1119
    %v1209 = vunpack.c.l.b16 %v1120
    %v1210 = vunpack.c.h.b16 %v1120
    %v1211 = vunpack.c.l.b16 %v1121
    %v1212 = vunpack.c.h.b16 %v1121
    %v1213 = vunpack.c.l.b16 %v1122
    %v1214 = vunpack.c.h.b16 %v1122
    %v1215 = vunpack.c.l.b16 %v1123
    %v1216 = vunpack.c.h.b16 %v1123
    %v1217 = vunpack.c.l.b16 %v1124
    %v1218 = vunpack.c.h.b16 %v1124
    %v1219 = vunpack.c.l.b16 %v1125
    %v1220 = vunpack.c.h.b16 %v1125
    %v1221 = vunpack.c.l.b16 %v1126
    %v1222 = vunpack.c.h.b16 %v1126
    %v1223 = vunpack.c.l.b16 %v1127
    %v1224 = vunpack.c.h.b16 %v1127
    %v1225 = vunpack.c.l.b16 %v1128
    %v1226 = vunpack.c.h.b16 %v1128
    %v1227 = vunpack.c.l.b16 %v1129
    %v1228 = vunpack.c.h.b16 %v1129
    %v1229 = vunpack.c.l.b16 %v1130
    %v1230 = vunpack.c.h.b16 %v1130
    %v1231 = vunpack.c.l.b16 %v1131
    %v1232 = vunpack.c.h.b16 %v1131
    %v1233 = vunpack.c.l.b16 %v1132
    %v1234 = vunpack.c.h.b16 %v1132
    %v1235 = vunpack.c.l.b16 %v1133
    %v1236 = vunpack.c.h.b16 %v1133
    %v1237 = vunpack.c.l.b16 %v1134
    %v1238 = vunpack.c.h.b16 %v1134
    %v1239 = vpack.c.b16 %v1185, %v1183
    %v1240 = vpack.c.b16 %v1186, %v1184
    %v1241 = vpack.c.b16 %v1189, %v1187
    %v1242 = vpack.c.b16 %v1190, %v1188
    %v1243 = vpack.c.b16 %v1193, %v1191
    %v1244 = vpack.c.b16 %v1194, %v1192
    %v1245 = vpack.c.b16 %v1197, %v1195
    %v1246 = vpack.c.b16 %v1198, %v1196
    %v1247 = vpack.c.b16 %v1201, %v1199
    %v1248 = vpack.c.b16 %v1202, %v1200
    %v1249 = vpack.c.b16 %v1205, %v1203
    %v1250 = vpack.c.b16 %v1206, %v1204
    %v1251 = vpack.c.b16 %v1209, %v1207
    %v1252 = vpack.c.b16 %v1210, %v1208
    %v1253 = vpack.c.b16 %v1213, %v1211
    %v1254 = vpack.c.b16 %v1214, %v1212
    %v1255 = vpack.c.b16 %v1217, %v1215
    %v1256 = vpack.c.b16 %v1218, %v1216
    %v1257 = vpack.c.b16 %v1221, %v1219
    %v1258 = vpack.c.b16 %v1222, %v1220
    %v1259 = vpack.c.b16 %v1225, %v1223
    %v1260 = vpack.c.b16 %v1226, %v1224
    %v1261 = vpack.c.b16 %v1229, %v1227
    %v1262 = vpack.c.b16 %v1230, %v1228
    %v1263 = vpack.c.b16 %v1233, %v1231
    %v1264 = vpack.c.b16 %v1234, %v1232
    %v1265 = vpack.c.b16 %v1237, %v1235
    %v1266 = vpack.c.b16 %v1238, %v1236
    %v1296 = vsel %vm1061, %v1153, 0
    %1298 = vmatprep.subr.bf16.mxu0 %v1254
    %1299 = vmatpush1.bf16.msra.mxu0 %v1253
    %1300 = vmatprep.subr.bf16.mxu0 %v1252
    %1301 = vmatpush1.bf16.msra.mxu0 %v1251
    %1302 = vmatprep.subr.bf16.mxu0 %v1250
    %1303 = vmatpush1.bf16.msra.mxu0 %v1249
    %1304 = vmatprep.subr.bf16.mxu0 %v1248
    %1305 = vmatpush1.bf16.msra.mxu0 %v1247
    %1306 = vmatprep.subr.bf16.mxu0 %v1246
    %1307 = vmatpush1.bf16.msra.mxu0 %v1245
    %1308 = vmatprep.subr.bf16.mxu0 %v1244
    %1309 = vmatpush1.bf16.msra.mxu0 %v1243
    %1310 = vmatprep.subr.bf16.mxu0 %v1242
    %1311 = vmatpush1.bf16.msra.mxu0 %v1241
    %1312 = vmatprep.subr.bf16.mxu0 %v1240
    %1313 = vmatpush1.bf16.msra.mxu0 %v1239
    %1314 = vmatprep.subr.bf16.mxu0 0
    %1315 = vmatpush2.bf16.msra.mxu0 0
    %1316 = vmatprep.subr.bf16.mxu0 0
    %1317 = vmatpush2.bf16.msra.mxu0 0
    %1318 = vmatprep.subr.bf16.mxu0 %v1266
    %1319 = vmatpush2.bf16.msra.mxu0 %v1265
    %1320 = vmatprep.subr.bf16.mxu0 %v1264
    %1321 = vmatpush2.bf16.msra.mxu0 %v1263
    %1322 = vmatprep.subr.bf16.mxu0 %v1262
    %1323 = vmatpush2.bf16.msra.mxu0 %v1261
    %1324 = vmatprep.subr.bf16.mxu0 %v1260
    %1325 = vmatpush2.bf16.msra.mxu0 %v1259
    %1326 = vmatprep.subr.bf16.mxu0 %v1258
    %1327 = vmatpush2.bf16.msra.mxu0 %v1257
    %1328 = vmatprep.subr.bf16.mxu0 %v1256
    %1329 = vmatpush2.bf16.msra.mxu0 %v1255
    %1330 = vmatprep.mubr.bf16.mxu0 %v1296
    %1331 = vmatmul.mubr.bf16.gmra.mxu0 %v1146
    %v1332 = vpop.f32.mrf.mxu0
    %v1333 = vadd.f32 0.0, %v1332
    %v1334 = vpop.f32.mrf.mxu0
    %v1335 = vadd.f32 0.0, %v1334
    %v1336 = vpop.f32.mrf.mxu0
    %v1337 = vpop.f32.mrf.mxu0
    %1338 = vdwg.mxu0
    %s1339 = scalar_lea.vmem %s3, 672
    %v1340 = vld [vmem:[%s1339] sm:$0xff]
    %v1341 = vld [vmem:[%s1339 + $0x8] sm:$0xff]
    %v1342 = vld [vmem:[%s1339 + $0x10] sm:$0xff]
    %v1343 = vld [vmem:[%s1339 + $0x18] sm:$0xff]
    %v1344 = vld [vmem:[%s1339 + $0x20] sm:$0xff]
    %v1345 = vld [vmem:[%s1339 + $0x28] sm:$0xff]
    %v1346 = vld [vmem:[%s1339 + $0x30] sm:$0xff]
    %v1347 = vld [vmem:[%s1339 + $0x38] sm:$0xff]
    %v1348 = vld [vmem:[%s1339 + $0x40] sm:$0xff]
    %v1349 = vld [vmem:[%s1339 + $0x48] sm:$0xff]
    %v1350 = vld [vmem:[%s1339 + $0x50] sm:$0xff]
    %v1351 = vld [vmem:[%s1339 + $0x58] sm:$0xff]
    %v1352 = vld [vmem:[%s1339 + $0x60] sm:$0xff]
    %v1353 = vld [vmem:[%s1339 + $0x68] sm:$0xff]
    %v1354 = vld [vmem:[%s1339 + $0x70] sm:$0xff]
    %v1355 = vld [vmem:[%s1339 + $0x78] sm:$0xff]
    %v1356 = vld [vmem:[%s1339 + $0x80] sm:$0xff]
    %v1357 = vld [vmem:[%s1339 + $0x88] sm:$0xff]
    %v1358 = vld [vmem:[%s1339 + $0x90] sm:$0xff]
    %v1359 = vld [vmem:[%s1339 + $0x98] sm:$0xff]
    %v1360 = vld [vmem:[%s1339 + $0xa0] sm:$0xff]
    %v1361 = vld [vmem:[%s1339 + $0xa8] sm:$0xff]
    %v1362 = vld [vmem:[%s1339 + $0xb0] sm:$0xff]
    %v1363 = vld [vmem:[%s1339 + $0xb8] sm:$0xff]
    %v1364 = vld [vmem:[%s1339 + $0xc0] sm:$0xff]
    %v1365 = vld [vmem:[%s1339 + $0xc8] sm:$0xff]
    %v1366 = vld [vmem:[%s1339 + $0xd0] sm:$0xff]
    %v1367 = vld [vmem:[%s1339 + $0xd8] sm:$0xff]
    %v1369 = vshrl.u32 %v918, 16
    %v1371 = vshll.u32 %v918, 16
    %v1373 = vrot.slane %v1371, 1
    %v1374 = vor.u32 %v1369, %v1373
    %v1375 = vshrl.u32 %v919, 16
    %v1377 = vshll.u32 %v919, 16
    %v1379 = vrot.slane %v1377, 1
    %v1380 = vor.u32 %v1375, %v1379
    %v1410 = vunpack.c.l.b16 %v1340
    %v1411 = vunpack.c.h.b16 %v1340
    %v1412 = vunpack.c.l.b16 %v1341
    %v1413 = vunpack.c.h.b16 %v1341
    %v1414 = vunpack.c.l.b16 %v1342
    %v1415 = vunpack.c.h.b16 %v1342
    %v1416 = vunpack.c.l.b16 %v1343
    %v1417 = vunpack.c.h.b16 %v1343
    %v1418 = vunpack.c.l.b16 %v1344
    %v1419 = vunpack.c.h.b16 %v1344
    %v1420 = vunpack.c.l.b16 %v1345
    %v1421 = vunpack.c.h.b16 %v1345
    %v1422 = vunpack.c.l.b16 %v1346
    %v1423 = vunpack.c.h.b16 %v1346
    %v1424 = vunpack.c.l.b16 %v1347
    %v1425 = vunpack.c.h.b16 %v1347
    %v1426 = vunpack.c.l.b16 %v1348
    %v1427 = vunpack.c.h.b16 %v1348
    %v1428 = vunpack.c.l.b16 %v1349
    %v1429 = vunpack.c.h.b16 %v1349
    %v1430 = vunpack.c.l.b16 %v1350
    %v1431 = vunpack.c.h.b16 %v1350
    %v1432 = vunpack.c.l.b16 %v1351
    %v1433 = vunpack.c.h.b16 %v1351
    %v1434 = vunpack.c.l.b16 %v1352
    %v1435 = vunpack.c.h.b16 %v1352
    %v1436 = vunpack.c.l.b16 %v1353
    %v1437 = vunpack.c.h.b16 %v1353
    %v1438 = vunpack.c.l.b16 %v1354
    %v1439 = vunpack.c.h.b16 %v1354
    %v1440 = vunpack.c.l.b16 %v1355
    %v1441 = vunpack.c.h.b16 %v1355
    %v1442 = vunpack.c.l.b16 %v1356
    %v1443 = vunpack.c.h.b16 %v1356
    %v1444 = vunpack.c.l.b16 %v1357
    %v1445 = vunpack.c.h.b16 %v1357
    %v1446 = vunpack.c.l.b16 %v1358
    %v1447 = vunpack.c.h.b16 %v1358
    %v1448 = vunpack.c.l.b16 %v1359
    %v1449 = vunpack.c.h.b16 %v1359
    %v1450 = vunpack.c.l.b16 %v1360
    %v1451 = vunpack.c.h.b16 %v1360
    %v1452 = vunpack.c.l.b16 %v1361
    %v1453 = vunpack.c.h.b16 %v1361
    %v1454 = vunpack.c.l.b16 %v1362
    %v1455 = vunpack.c.h.b16 %v1362
    %v1456 = vunpack.c.l.b16 %v1363
    %v1457 = vunpack.c.h.b16 %v1363
    %v1458 = vunpack.c.l.b16 %v1364
    %v1459 = vunpack.c.h.b16 %v1364
    %v1460 = vunpack.c.l.b16 %v1365
    %v1461 = vunpack.c.h.b16 %v1365
    %v1462 = vunpack.c.l.b16 %v1366
    %v1463 = vunpack.c.h.b16 %v1366
    %v1464 = vunpack.c.l.b16 %v1367
    %v1465 = vunpack.c.h.b16 %v1367
    %v1466 = vpack.c.b16 %v1412, %v1410
    %v1467 = vpack.c.b16 %v1413, %v1411
    %v1468 = vpack.c.b16 %v1416, %v1414
    %v1469 = vpack.c.b16 %v1417, %v1415
    %v1470 = vpack.c.b16 %v1420, %v1418
    %v1471 = vpack.c.b16 %v1421, %v1419
    %v1472 = vpack.c.b16 %v1424, %v1422
    %v1473 = vpack.c.b16 %v1425, %v1423
    %v1474 = vpack.c.b16 %v1428, %v1426
    %v1475 = vpack.c.b16 %v1429, %v1427
    %v1476 = vpack.c.b16 %v1432, %v1430
    %v1477 = vpack.c.b16 %v1433, %v1431
    %v1478 = vpack.c.b16 %v1436, %v1434
    %v1479 = vpack.c.b16 %v1437, %v1435
    %v1480 = vpack.c.b16 %v1440, %v1438
    %v1481 = vpack.c.b16 %v1441, %v1439
    %v1482 = vpack.c.b16 %v1444, %v1442
    %v1483 = vpack.c.b16 %v1445, %v1443
    %v1484 = vpack.c.b16 %v1448, %v1446
    %v1485 = vpack.c.b16 %v1449, %v1447
    %v1486 = vpack.c.b16 %v1452, %v1450
    %v1487 = vpack.c.b16 %v1453, %v1451
    %v1488 = vpack.c.b16 %v1456, %v1454
    %v1489 = vpack.c.b16 %v1457, %v1455
    %v1490 = vpack.c.b16 %v1460, %v1458
    %v1491 = vpack.c.b16 %v1461, %v1459
    %v1492 = vpack.c.b16 %v1464, %v1462
    %v1493 = vpack.c.b16 %v1465, %v1463
    %v1523 = vsel %vm1061, %v1380, 0
    %1525 = vmatprep.subr.bf16.mxu0 %v1481
    %1526 = vmatpush1.bf16.msra.mxu0 %v1480
    %1527 = vmatprep.subr.bf16.mxu0 %v1479
    %1528 = vmatpush1.bf16.msra.mxu0 %v1478
    %1529 = vmatprep.subr.bf16.mxu0 %v1477
    %1530 = vmatpush1.bf16.msra.mxu0 %v1476
    %1531 = vmatprep.subr.bf16.mxu0 %v1475
    %1532 = vmatpush1.bf16.msra.mxu0 %v1474
    %1533 = vmatprep.subr.bf16.mxu0 %v1473
    %1534 = vmatpush1.bf16.msra.mxu0 %v1472
    %1535 = vmatprep.subr.bf16.mxu0 %v1471
    %1536 = vmatpush1.bf16.msra.mxu0 %v1470
    %1537 = vmatprep.subr.bf16.mxu0 %v1469
    %1538 = vmatpush1.bf16.msra.mxu0 %v1468
    %1539 = vmatprep.subr.bf16.mxu0 %v1467
    %1540 = vmatpush1.bf16.msra.mxu0 %v1466
    %1541 = vmatprep.subr.bf16.mxu0 0
    %1542 = vmatpush2.bf16.msra.mxu0 0
    %1543 = vmatprep.subr.bf16.mxu0 0
    %1544 = vmatpush2.bf16.msra.mxu0 0
    %1545 = vmatprep.subr.bf16.mxu0 %v1493
    %1546 = vmatpush2.bf16.msra.mxu0 %v1492
    %1547 = vmatprep.subr.bf16.mxu0 %v1491
    %1548 = vmatpush2.bf16.msra.mxu0 %v1490
    %1549 = vmatprep.subr.bf16.mxu0 %v1489
    %1550 = vmatpush2.bf16.msra.mxu0 %v1488
    %1551 = vmatprep.subr.bf16.mxu0 %v1487
    %1552 = vmatpush2.bf16.msra.mxu0 %v1486
    %1553 = vmatprep.subr.bf16.mxu0 %v1485
    %1554 = vmatpush2.bf16.msra.mxu0 %v1484
    %1555 = vmatprep.subr.bf16.mxu0 %v1483
    %1556 = vmatpush2.bf16.msra.mxu0 %v1482
    %1557 = vmatprep.mubr.bf16.mxu0 %v1523
    %1558 = vmatmul.mubr.bf16.gmra.mxu0 %v1374
    %v1559 = vpop.f32.mrf.mxu0
    %v1560 = vadd.f32 0.0, %v1559
    %v1561 = vpop.f32.mrf.mxu0
    %v1562 = vadd.f32 0.0, %v1561
    %v1563 = vpop.f32.mrf.mxu0
    %v1564 = vpop.f32.mrf.mxu0
    %1565 = vdwg.mxu0
    %v1595 = vunpack.c.l.b16 %v857
    %v1596 = vunpack.c.h.b16 %v857
    %v1597 = vunpack.c.l.b16 %v858
    %v1598 = vunpack.c.h.b16 %v858
    %v1599 = vunpack.c.l.b16 %v859
    %v1600 = vunpack.c.h.b16 %v859
    %v1601 = vunpack.c.l.b16 %v860
    %v1602 = vunpack.c.h.b16 %v860
    %v1603 = vunpack.c.l.b16 %v861
    %v1604 = vunpack.c.h.b16 %v861
    %v1605 = vunpack.c.l.b16 %v862
    %v1606 = vunpack.c.h.b16 %v862
    %v1607 = vunpack.c.l.b16 %v863
    %v1608 = vunpack.c.h.b16 %v863
    %v1609 = vunpack.c.l.b16 %v864
    %v1610 = vunpack.c.h.b16 %v864
    %v1611 = vunpack.c.l.b16 %v865
    %v1612 = vunpack.c.h.b16 %v865
    %v1613 = vunpack.c.l.b16 %v866
    %v1614 = vunpack.c.h.b16 %v866
    %v1615 = vunpack.c.l.b16 %v867
    %v1616 = vunpack.c.h.b16 %v867
    %v1617 = vunpack.c.l.b16 %v868
    %v1618 = vunpack.c.h.b16 %v868
    %v1619 = vunpack.c.l.b16 %v869
    %v1620 = vunpack.c.h.b16 %v869
    %v1621 = vunpack.c.l.b16 %v870
    %v1622 = vunpack.c.h.b16 %v870
    %v1623 = vunpack.c.l.b16 %v871
    %v1624 = vunpack.c.h.b16 %v871
    %v1625 = vunpack.c.l.b16 %v872
    %v1626 = vunpack.c.h.b16 %v872
    %v1627 = vunpack.c.l.b16 %v873
    %v1628 = vunpack.c.h.b16 %v873
    %v1629 = vunpack.c.l.b16 %v874
    %v1630 = vunpack.c.h.b16 %v874
    %v1631 = vunpack.c.l.b16 %v875
    %v1632 = vunpack.c.h.b16 %v875
    %v1633 = vunpack.c.l.b16 %v876
    %v1634 = vunpack.c.h.b16 %v876
    %v1635 = vunpack.c.l.b16 %v877
    %v1636 = vunpack.c.h.b16 %v877
    %v1637 = vunpack.c.l.b16 %v878
    %v1638 = vunpack.c.h.b16 %v878
    %v1639 = vunpack.c.l.b16 %v879
    %v1640 = vunpack.c.h.b16 %v879
    %v1641 = vunpack.c.l.b16 %v880
    %v1642 = vunpack.c.h.b16 %v880
    %v1643 = vunpack.c.l.b16 %v881
    %v1644 = vunpack.c.h.b16 %v881
    %v1645 = vunpack.c.l.b16 %v882
    %v1646 = vunpack.c.h.b16 %v882
    %v1647 = vunpack.c.l.b16 %v883
    %v1648 = vunpack.c.h.b16 %v883
    %v1649 = vunpack.c.l.b16 %v884
    %v1650 = vunpack.c.h.b16 %v884
    %v1651 = vpack.c.b16 %v1597, %v1595
    %v1652 = vpack.c.b16 %v1598, %v1596
    %v1653 = vpack.c.b16 %v1601, %v1599
    %v1654 = vpack.c.b16 %v1602, %v1600
    %v1655 = vpack.c.b16 %v1605, %v1603
    %v1656 = vpack.c.b16 %v1606, %v1604
    %v1657 = vpack.c.b16 %v1609, %v1607
    %v1658 = vpack.c.b16 %v1610, %v1608
    %v1659 = vpack.c.b16 %v1613, %v1611
    %v1660 = vpack.c.b16 %v1614, %v1612
    %v1661 = vpack.c.b16 %v1617, %v1615
    %v1662 = vpack.c.b16 %v1618, %v1616
    %v1663 = vpack.c.b16 %v1621, %v1619
    %v1664 = vpack.c.b16 %v1622, %v1620
    %v1665 = vpack.c.b16 %v1625, %v1623
    %v1666 = vpack.c.b16 %v1626, %v1624
    %v1667 = vpack.c.b16 %v1629, %v1627
    %v1668 = vpack.c.b16 %v1630, %v1628
    %v1669 = vpack.c.b16 %v1633, %v1631
    %v1670 = vpack.c.b16 %v1634, %v1632
    %v1671 = vpack.c.b16 %v1637, %v1635
    %v1672 = vpack.c.b16 %v1638, %v1636
    %v1673 = vpack.c.b16 %v1641, %v1639
    %v1674 = vpack.c.b16 %v1642, %v1640
    %v1675 = vpack.c.b16 %v1645, %v1643
    %v1676 = vpack.c.b16 %v1646, %v1644
    %v1677 = vpack.c.b16 %v1649, %v1647
    %v1678 = vpack.c.b16 %v1650, %v1648
    %v1707 = vsel %vm1061, %v1139, 0
    %1709 = vmatprep.subr.bf16.mxu0 %v1666
    %1710 = vmatpush1.bf16.msra.mxu0 %v1665
    %1711 = vmatprep.subr.bf16.mxu0 %v1664
    %1712 = vmatpush1.bf16.msra.mxu0 %v1663
    %1713 = vmatprep.subr.bf16.mxu0 %v1662
    %1714 = vmatpush1.bf16.msra.mxu0 %v1661
    %1715 = vmatprep.subr.bf16.mxu0 %v1660
    %1716 = vmatpush1.bf16.msra.mxu0 %v1659
    %1717 = vmatprep.subr.bf16.mxu0 %v1658
    %1718 = vmatpush1.bf16.msra.mxu0 %v1657
    %1719 = vmatprep.subr.bf16.mxu0 %v1656
    %1720 = vmatpush1.bf16.msra.mxu0 %v1655
    %1721 = vmatprep.subr.bf16.mxu0 %v1654
    %1722 = vmatpush1.bf16.msra.mxu0 %v1653
    %1723 = vmatprep.subr.bf16.mxu0 %v1652
    %1724 = vmatpush1.bf16.msra.mxu0 %v1651
    %1725 = vmatprep.subr.bf16.mxu0 0
    %1726 = vmatpush2.bf16.msra.mxu0 0
    %1727 = vmatprep.subr.bf16.mxu0 0
    %1728 = vmatpush2.bf16.msra.mxu0 0
    %1729 = vmatprep.subr.bf16.mxu0 %v1678
    %1730 = vmatpush2.bf16.msra.mxu0 %v1677
    %1731 = vmatprep.subr.bf16.mxu0 %v1676
    %1732 = vmatpush2.bf16.msra.mxu0 %v1675
    %1733 = vmatprep.subr.bf16.mxu0 %v1674
    %1734 = vmatpush2.bf16.msra.mxu0 %v1673
    %1735 = vmatprep.subr.bf16.mxu0 %v1672
    %1736 = vmatpush2.bf16.msra.mxu0 %v1671
    %1737 = vmatprep.subr.bf16.mxu0 %v1670
    %1738 = vmatpush2.bf16.msra.mxu0 %v1669
    %1739 = vmatprep.subr.bf16.mxu0 %v1668
    %1740 = vmatpush2.bf16.msra.mxu0 %v1667
    %1741 = vmatprep.mubr.bf16.mxu0 %v1707
    %1742 = vmatmul.mubr.bf16.gmra.mxu0 %v1138
    %v1743 = vpop.f32.mrf.mxu0
    %v1744 = vadd.f32 %v1100, %v1743
    %v1745 = vpop.f32.mrf.mxu0
    %v1746 = vadd.f32 %v1102, %v1745
    %v1747 = vpop.f32.mrf.mxu0
    %v1748 = vpop.f32.mrf.mxu0
    %1749 = vdwg.mxu0
    %v1750 = vadd.f32 %v1744, %v1333
    %v1751 = vadd.f32 %v1746, %v1335
    %v1752 = vadd.f32 %v1750, %v1560
    %v1753 = vadd.f32 %v1751, %v1562
    %v1754 = vld [vmem:[#allocation9] sm:$0x7f]
    %v1755 = vld [vmem:[#allocation9 + $0x8] sm:$0x7f]
    %v1756 = vadd.f32 %v1752, %v1754
    %v1757 = vadd.f32 %v1753, %v1755
    %v1758 = vmax.f32 %v1756, 0.0
    %v1759 = vmax.f32 %v1757, 0.0
    %v1760 = vpack.c.bf16 %v1758, %v1758
    %v1761 = vpack.c.bf16 %v1759, %v1759
    %v1762 = vld [vmem:[%s5] sm:$0xf]
    %v1763 = vld [vmem:[%s5 + $0x4] sm:$0xf]
    %v1764 = vld [vmem:[%s5 + $0x8] sm:$0xf]
    %v1765 = vld [vmem:[%s5 + $0xc] sm:$0xf]
    %v1766 = vld [vmem:[%s5 + $0x10] sm:$0xf]
    %v1767 = vld [vmem:[%s5 + $0x14] sm:$0xf]
    %v1768 = vld [vmem:[%s5 + $0x18] sm:$0xf]
    %v1769 = vld [vmem:[%s5 + $0x1c] sm:$0xf]
    %v1770 = vld [vmem:[%s5 + $0x20] sm:$0xf]
    %v1771 = vld [vmem:[%s5 + $0x24] sm:$0xf]
    %v1772 = vld [vmem:[%s5 + $0x28] sm:$0xf]
    %v1773 = vld [vmem:[%s5 + $0x2c] sm:$0xf]
    %v1774 = vld [vmem:[%s5 + $0x30] sm:$0xf]
    %v1775 = vld [vmem:[%s5 + $0x34] sm:$0xf]
    %v1776 = vld [vmem:[%s5 + $0x38] sm:$0xf]
    %v1777 = vld [vmem:[%s5 + $0x3c] sm:$0xf]
    %v1778 = vld [vmem:[%s5 + $0x40] sm:$0xf]
    %v1779 = vld [vmem:[%s5 + $0x44] sm:$0xf]
    %v1780 = vld [vmem:[%s5 + $0x48] sm:$0xf]
    %v1781 = vld [vmem:[%s5 + $0x4c] sm:$0xf]
    %v1782 = vld [vmem:[%s5 + $0x50] sm:$0xf]
    %v1783 = vld [vmem:[%s5 + $0x54] sm:$0xf]
    %v1784 = vld [vmem:[%s5 + $0x58] sm:$0xf]
    %v1785 = vld [vmem:[%s5 + $0x5c] sm:$0xf]
    %v1786 = vld [vmem:[%s5 + $0x60] sm:$0xf]
    %v1787 = vld [vmem:[%s5 + $0x64] sm:$0xf]
    %v1788 = vld [vmem:[%s5 + $0x68] sm:$0xf]
    %v1789 = vld [vmem:[%s5 + $0x6c] sm:$0xf]
    %s1790 = scalar_lea.vmem %s5, 112
    %v1791 = vld [vmem:[%s1790] sm:$0xf]
    %v1792 = vld [vmem:[%s1790 + $0x4] sm:$0xf]
    %v1793 = vld [vmem:[%s1790 + $0x8] sm:$0xf]
    %v1794 = vld [vmem:[%s1790 + $0xc] sm:$0xf]
    %v1795 = vld [vmem:[%s1790 + $0x10] sm:$0xf]
    %v1796 = vld [vmem:[%s1790 + $0x14] sm:$0xf]
    %v1797 = vld [vmem:[%s1790 + $0x18] sm:$0xf]
    %v1798 = vld [vmem:[%s1790 + $0x1c] sm:$0xf]
    %v1799 = vld [vmem:[%s1790 + $0x20] sm:$0xf]
    %v1800 = vld [vmem:[%s1790 + $0x24] sm:$0xf]
    %v1801 = vld [vmem:[%s1790 + $0x28] sm:$0xf]
    %v1802 = vld [vmem:[%s1790 + $0x2c] sm:$0xf]
    %v1803 = vld [vmem:[%s1790 + $0x30] sm:$0xf]
    %v1804 = vld [vmem:[%s1790 + $0x34] sm:$0xf]
    %v1805 = vld [vmem:[%s1790 + $0x38] sm:$0xf]
    %v1806 = vld [vmem:[%s1790 + $0x3c] sm:$0xf]
    %v1807 = vld [vmem:[%s1790 + $0x40] sm:$0xf]
    %v1808 = vld [vmem:[%s1790 + $0x44] sm:$0xf]
    %v1809 = vld [vmem:[%s1790 + $0x48] sm:$0xf]
    %v1810 = vld [vmem:[%s1790 + $0x4c] sm:$0xf]
    %v1811 = vld [vmem:[%s1790 + $0x50] sm:$0xf]
    %v1812 = vld [vmem:[%s1790 + $0x54] sm:$0xf]
    %v1813 = vld [vmem:[%s1790 + $0x58] sm:$0xf]
    %v1814 = vld [vmem:[%s1790 + $0x5c] sm:$0xf]
    %v1815 = vld [vmem:[%s1790 + $0x60] sm:$0xf]
    %v1816 = vld [vmem:[%s1790 + $0x64] sm:$0xf]
    %v1817 = vld [vmem:[%s1790 + $0x68] sm:$0xf]
    %v1818 = vld [vmem:[%s1790 + $0x6c] sm:$0xf]
    %v1820 = vshrl.u32 %v1760, 16
    %v1823 = vshrl.u32 %v1761, 16
    %v1854 = vunpack.c.l.b16 %v1791
    %v1855 = vunpack.c.l.b16 %v1792
    %v1856 = vunpack.c.l.b16 %v1793
    %v1857 = vunpack.c.l.b16 %v1794
    %v1858 = vunpack.c.l.b16 %v1795
    %v1859 = vunpack.c.l.b16 %v1796
    %v1860 = vunpack.c.l.b16 %v1797
    %v1861 = vunpack.c.l.b16 %v1798
    %v1862 = vunpack.c.l.b16 %v1799
    %v1863 = vunpack.c.l.b16 %v1800
    %v1864 = vunpack.c.l.b16 %v1801
    %v1865 = vunpack.c.l.b16 %v1802
    %v1866 = vunpack.c.l.b16 %v1803
    %v1867 = vunpack.c.l.b16 %v1804
    %v1868 = vunpack.c.l.b16 %v1805
    %v1869 = vunpack.c.l.b16 %v1806
    %v1870 = vunpack.c.l.b16 %v1807
    %v1871 = vunpack.c.l.b16 %v1808
    %v1872 = vunpack.c.l.b16 %v1809
    %v1873 = vunpack.c.l.b16 %v1810
    %v1874 = vunpack.c.l.b16 %v1811
    %v1875 = vunpack.c.l.b16 %v1812
    %v1876 = vunpack.c.l.b16 %v1813
    %v1877 = vunpack.c.l.b16 %v1814
    %v1878 = vunpack.c.l.b16 %v1815
    %v1879 = vunpack.c.l.b16 %v1816
    %v1880 = vunpack.c.l.b16 %v1817
    %v1881 = vunpack.c.l.b16 %v1818
    %v1882 = vpack.c.b16 %v1855, %v1854
    %v1883 = vpack.c.b16 %v1857, %v1856
    %v1884 = vpack.c.b16 %v1859, %v1858
    %v1885 = vpack.c.b16 %v1861, %v1860
    %v1886 = vpack.c.b16 %v1863, %v1862
    %v1887 = vpack.c.b16 %v1865, %v1864
    %v1888 = vpack.c.b16 %v1867, %v1866
    %v1889 = vpack.c.b16 %v1869, %v1868
    %v1890 = vpack.c.b16 %v1871, %v1870
    %v1891 = vpack.c.b16 %v1873, %v1872
    %v1892 = vpack.c.b16 %v1875, %v1874
    %v1893 = vpack.c.b16 %v1877, %v1876
    %v1894 = vpack.c.b16 %v1879, %v1878
    %v1895 = vpack.c.b16 %v1881, %v1880
    %v1911 = vsel %vm1061, %v1823, 0
    %1913 = vmatprep.subr.bf16.mxu0 0
    %1914 = vmatpush1.bf16.msra.mxu0 %v1889
    %1915 = vmatprep.subr.bf16.mxu0 0
    %1916 = vmatpush1.bf16.msra.mxu0 %v1888
    %1917 = vmatprep.subr.bf16.mxu0 0
    %1918 = vmatpush1.bf16.msra.mxu0 %v1887
    %1919 = vmatprep.subr.bf16.mxu0 0
    %1920 = vmatpush1.bf16.msra.mxu0 %v1886
    %1921 = vmatprep.subr.bf16.mxu0 0
    %1922 = vmatpush1.bf16.msra.mxu0 %v1885
    %1923 = vmatprep.subr.bf16.mxu0 0
    %1924 = vmatpush1.bf16.msra.mxu0 %v1884
    %1925 = vmatprep.subr.bf16.mxu0 0
    %1926 = vmatpush1.bf16.msra.mxu0 %v1883
    %1927 = vmatprep.subr.bf16.mxu0 0
    %1928 = vmatpush1.bf16.msra.mxu0 %v1882
    %1929 = vmatprep.subr.bf16.mxu0 0
    %1930 = vmatpush2.bf16.msra.mxu0 0
    %1931 = vmatprep.subr.bf16.mxu0 0
    %1932 = vmatpush2.bf16.msra.mxu0 0
    %1933 = vmatprep.subr.bf16.mxu0 0
    %1934 = vmatpush2.bf16.msra.mxu0 %v1895
    %1935 = vmatprep.subr.bf16.mxu0 0
    %1936 = vmatpush2.bf16.msra.mxu0 %v1894
    %1937 = vmatprep.subr.bf16.mxu0 0
    %1938 = vmatpush2.bf16.msra.mxu0 %v1893
    %1939 = vmatprep.subr.bf16.mxu0 0
    %1940 = vmatpush2.bf16.msra.mxu0 %v1892
    %1941 = vmatprep.subr.bf16.mxu0 0
    %1942 = vmatpush2.bf16.msra.mxu0 %v1891
    %1943 = vmatprep.subr.bf16.mxu0 0
    %1944 = vmatpush2.bf16.msra.mxu0 %v1890
    %1945 = vmatprep.mubr.bf16.mxu0 %v1911
    %1946 = vmatmul.mubr.bf16.gmra.mxu0 %v1820
    %v1947 = vpop.f32.mrf.mxu0
    %v1948 = vadd.f32 0.0, %v1947
    %v1949 = vpop.f32.mrf.mxu0
    %v1950 = vpop.f32.mrf.mxu0
    %v1951 = vpop.f32.mrf.mxu0
    %1952 = vdwg.mxu0
    %s1953 = scalar_lea.vmem %s5, 224
    %v1954 = vld [vmem:[%s1953] sm:$0xf]
    %v1955 = vld [vmem:[%s1953 + $0x4] sm:$0xf]
    %v1956 = vld [vmem:[%s1953 + $0x8] sm:$0xf]
    %v1957 = vld [vmem:[%s1953 + $0xc] sm:$0xf]
    %v1958 = vld [vmem:[%s1953 + $0x10] sm:$0xf]
    %v1959 = vld [vmem:[%s1953 + $0x14] sm:$0xf]
    %v1960 = vld [vmem:[%s1953 + $0x18] sm:$0xf]
    %v1961 = vld [vmem:[%s1953 + $0x1c] sm:$0xf]
    %v1962 = vld [vmem:[%s1953 + $0x20] sm:$0xf]
    %v1963 = vld [vmem:[%s1953 + $0x24] sm:$0xf]
    %v1964 = vld [vmem:[%s1953 + $0x28] sm:$0xf]
    %v1965 = vld [vmem:[%s1953 + $0x2c] sm:$0xf]
    %v1966 = vld [vmem:[%s1953 + $0x30] sm:$0xf]
    %v1967 = vld [vmem:[%s1953 + $0x34] sm:$0xf]
    %v1968 = vld [vmem:[%s1953 + $0x38] sm:$0xf]
    %v1969 = vld [vmem:[%s1953 + $0x3c] sm:$0xf]
    %v1970 = vld [vmem:[%s1953 + $0x40] sm:$0xf]
    %v1971 = vld [vmem:[%s1953 + $0x44] sm:$0xf]
    %v1972 = vld [vmem:[%s1953 + $0x48] sm:$0xf]
    %v1973 = vld [vmem:[%s1953 + $0x4c] sm:$0xf]
    %v1974 = vld [vmem:[%s1953 + $0x50] sm:$0xf]
    %v1975 = vld [vmem:[%s1953 + $0x54] sm:$0xf]
    %v1976 = vld [vmem:[%s1953 + $0x58] sm:$0xf]
    %v1977 = vld [vmem:[%s1953 + $0x5c] sm:$0xf]
    %v1978 = vld [vmem:[%s1953 + $0x60] sm:$0xf]
    %v1979 = vld [vmem:[%s1953 + $0x64] sm:$0xf]
    %v1980 = vld [vmem:[%s1953 + $0x68] sm:$0xf]
    %v1981 = vld [vmem:[%s1953 + $0x6c] sm:$0xf]
    %v1984 = vrot.slane %v1760, 1
    %v1985 = vrot.slane %v1761, 1
    %v2015 = vunpack.c.l.b16 %v1954
    %v2016 = vunpack.c.l.b16 %v1955
    %v2017 = vunpack.c.l.b16 %v1956
    %v2018 = vunpack.c.l.b16 %v1957
    %v2019 = vunpack.c.l.b16 %v1958
    %v2020 = vunpack.c.l.b16 %v1959
    %v2021 = vunpack.c.l.b16 %v1960
    %v2022 = vunpack.c.l.b16 %v1961
    %v2023 = vunpack.c.l.b16 %v1962
    %v2024 = vunpack.c.l.b16 %v1963
    %v2025 = vunpack.c.l.b16 %v1964
    %v2026 = vunpack.c.l.b16 %v1965
    %v2027 = vunpack.c.l.b16 %v1966
    %v2028 = vunpack.c.l.b16 %v1967
    %v2029 = vunpack.c.l.b16 %v1968
    %v2030 = vunpack.c.l.b16 %v1969
    %v2031 = vunpack.c.l.b16 %v1970
    %v2032 = vunpack.c.l.b16 %v1971
    %v2033 = vunpack.c.l.b16 %v1972
    %v2034 = vunpack.c.l.b16 %v1973
    %v2035 = vunpack.c.l.b16 %v1974
    %v2036 = vunpack.c.l.b16 %v1975
    %v2037 = vunpack.c.l.b16 %v1976
    %v2038 = vunpack.c.l.b16 %v1977
    %v2039 = vunpack.c.l.b16 %v1978
    %v2040 = vunpack.c.l.b16 %v1979
    %v2041 = vunpack.c.l.b16 %v1980
    %v2042 = vunpack.c.l.b16 %v1981
    %v2043 = vpack.c.b16 %v2016, %v2015
    %v2044 = vpack.c.b16 %v2018, %v2017
    %v2045 = vpack.c.b16 %v2020, %v2019
    %v2046 = vpack.c.b16 %v2022, %v2021
    %v2047 = vpack.c.b16 %v2024, %v2023
    %v2048 = vpack.c.b16 %v2026, %v2025
    %v2049 = vpack.c.b16 %v2028, %v2027
    %v2050 = vpack.c.b16 %v2030, %v2029
    %v2051 = vpack.c.b16 %v2032, %v2031
    %v2052 = vpack.c.b16 %v2034, %v2033
    %v2053 = vpack.c.b16 %v2036, %v2035
    %v2054 = vpack.c.b16 %v2038, %v2037
    %v2055 = vpack.c.b16 %v2040, %v2039
    %v2056 = vpack.c.b16 %v2042, %v2041
    %v2072 = vsel %vm1061, %v1985, 0
    %2074 = vmatprep.subr.bf16.mxu0 0
    %2075 = vmatpush1.bf16.msra.mxu0 %v2050
    %2076 = vmatprep.subr.bf16.mxu0 0
    %2077 = vmatpush1.bf16.msra.mxu0 %v2049
    %2078 = vmatprep.subr.bf16.mxu0 0
    %2079 = vmatpush1.bf16.msra.mxu0 %v2048
    %2080 = vmatprep.subr.bf16.mxu0 0
    %2081 = vmatpush1.bf16.msra.mxu0 %v2047
    %2082 = vmatprep.subr.bf16.mxu0 0
    %2083 = vmatpush1.bf16.msra.mxu0 %v2046
    %2084 = vmatprep.subr.bf16.mxu0 0
    %2085 = vmatpush1.bf16.msra.mxu0 %v2045
    %2086 = vmatprep.subr.bf16.mxu0 0
    %2087 = vmatpush1.bf16.msra.mxu0 %v2044
    %2088 = vmatprep.subr.bf16.mxu0 0
    %2089 = vmatpush1.bf16.msra.mxu0 %v2043
    %2090 = vmatprep.subr.bf16.mxu0 0
    %2091 = vmatpush2.bf16.msra.mxu0 0
    %2092 = vmatprep.subr.bf16.mxu0 0
    %2093 = vmatpush2.bf16.msra.mxu0 0
    %2094 = vmatprep.subr.bf16.mxu0 0
    %2095 = vmatpush2.bf16.msra.mxu0 %v2056
    %2096 = vmatprep.subr.bf16.mxu0 0
    %2097 = vmatpush2.bf16.msra.mxu0 %v2055
    %2098 = vmatprep.subr.bf16.mxu0 0
    %2099 = vmatpush2.bf16.msra.mxu0 %v2054
    %2100 = vmatprep.subr.bf16.mxu0 0
    %2101 = vmatpush2.bf16.msra.mxu0 %v2053
    %2102 = vmatprep.subr.bf16.mxu0 0
    %2103 = vmatpush2.bf16.msra.mxu0 %v2052
    %2104 = vmatprep.subr.bf16.mxu0 0
    %2105 = vmatpush2.bf16.msra.mxu0 %v2051
    %2106 = vmatprep.mubr.bf16.mxu0 %v2072
    %2107 = vmatmul.mubr.bf16.gmra.mxu0 %v1984
    %v2108 = vpop.f32.mrf.mxu0
    %v2109 = vadd.f32 0.0, %v2108
    %v2110 = vpop.f32.mrf.mxu0
    %v2111 = vpop.f32.mrf.mxu0
    %v2112 = vpop.f32.mrf.mxu0
    %2113 = vdwg.mxu0
    %s2114 = scalar_lea.vmem %s5, 336
    %v2115 = vld [vmem:[%s2114] sm:$0xf]
    %v2116 = vld [vmem:[%s2114 + $0x4] sm:$0xf]
    %v2117 = vld [vmem:[%s2114 + $0x8] sm:$0xf]
    %v2118 = vld [vmem:[%s2114 + $0xc] sm:$0xf]
    %v2119 = vld [vmem:[%s2114 + $0x10] sm:$0xf]
    %v2120 = vld [vmem:[%s2114 + $0x14] sm:$0xf]
    %v2121 = vld [vmem:[%s2114 + $0x18] sm:$0xf]
    %v2122 = vld [vmem:[%s2114 + $0x1c] sm:$0xf]
    %v2123 = vld [vmem:[%s2114 + $0x20] sm:$0xf]
    %v2124 = vld [vmem:[%s2114 + $0x24] sm:$0xf]
    %v2125 = vld [vmem:[%s2114 + $0x28] sm:$0xf]
    %v2126 = vld [vmem:[%s2114 + $0x2c] sm:$0xf]
    %v2127 = vld [vmem:[%s2114 + $0x30] sm:$0xf]
    %v2128 = vld [vmem:[%s2114 + $0x34] sm:$0xf]
    %v2129 = vld [vmem:[%s2114 + $0x38] sm:$0xf]
    %v2130 = vld [vmem:[%s2114 + $0x3c] sm:$0xf]
    %v2131 = vld [vmem:[%s2114 + $0x40] sm:$0xf]
    %v2132 = vld [vmem:[%s2114 + $0x44] sm:$0xf]
    %v2133 = vld [vmem:[%s2114 + $0x48] sm:$0xf]
    %v2134 = vld [vmem:[%s2114 + $0x4c] sm:$0xf]
    %v2135 = vld [vmem:[%s2114 + $0x50] sm:$0xf]
    %v2136 = vld [vmem:[%s2114 + $0x54] sm:$0xf]
    %v2137 = vld [vmem:[%s2114 + $0x58] sm:$0xf]
    %v2138 = vld [vmem:[%s2114 + $0x5c] sm:$0xf]
    %v2139 = vld [vmem:[%s2114 + $0x60] sm:$0xf]
    %v2140 = vld [vmem:[%s2114 + $0x64] sm:$0xf]
    %v2141 = vld [vmem:[%s2114 + $0x68] sm:$0xf]
    %v2142 = vld [vmem:[%s2114 + $0x6c] sm:$0xf]
    %v2143 = vrot.slane %v1820, 1
    %v2144 = vrot.slane %v1823, 1
    %v2174 = vunpack.c.l.b16 %v2115
    %v2175 = vunpack.c.l.b16 %v2116
    %v2176 = vunpack.c.l.b16 %v2117
    %v2177 = vunpack.c.l.b16 %v2118
    %v2178 = vunpack.c.l.b16 %v2119
    %v2179 = vunpack.c.l.b16 %v2120
    %v2180 = vunpack.c.l.b16 %v2121
    %v2181 = vunpack.c.l.b16 %v2122
    %v2182 = vunpack.c.l.b16 %v2123
    %v2183 = vunpack.c.l.b16 %v2124
    %v2184 = vunpack.c.l.b16 %v2125
    %v2185 = vunpack.c.l.b16 %v2126
    %v2186 = vunpack.c.l.b16 %v2127
    %v2187 = vunpack.c.l.b16 %v2128
    %v2188 = vunpack.c.l.b16 %v2129
    %v2189 = vunpack.c.l.b16 %v2130
    %v2190 = vunpack.c.l.b16 %v2131
    %v2191 = vunpack.c.l.b16 %v2132
    %v2192 = vunpack.c.l.b16 %v2133
    %v2193 = vunpack.c.l.b16 %v2134
    %v2194 = vunpack.c.l.b16 %v2135
    %v2195 = vunpack.c.l.b16 %v2136
    %v2196 = vunpack.c.l.b16 %v2137
    %v2197 = vunpack.c.l.b16 %v2138
    %v2198 = vunpack.c.l.b16 %v2139
    %v2199 = vunpack.c.l.b16 %v2140
    %v2200 = vunpack.c.l.b16 %v2141
    %v2201 = vunpack.c.l.b16 %v2142
    %v2202 = vpack.c.b16 %v2175, %v2174
    %v2203 = vpack.c.b16 %v2177, %v2176
    %v2204 = vpack.c.b16 %v2179, %v2178
    %v2205 = vpack.c.b16 %v2181, %v2180
    %v2206 = vpack.c.b16 %v2183, %v2182
    %v2207 = vpack.c.b16 %v2185, %v2184
    %v2208 = vpack.c.b16 %v2187, %v2186
    %v2209 = vpack.c.b16 %v2189, %v2188
    %v2210 = vpack.c.b16 %v2191, %v2190
    %v2211 = vpack.c.b16 %v2193, %v2192
    %v2212 = vpack.c.b16 %v2195, %v2194
    %v2213 = vpack.c.b16 %v2197, %v2196
    %v2214 = vpack.c.b16 %v2199, %v2198
    %v2215 = vpack.c.b16 %v2201, %v2200
    %v2231 = vsel %vm1061, %v2144, 0
    %2233 = vmatprep.subr.bf16.mxu0 0
    %2234 = vmatpush1.bf16.msra.mxu0 %v2209
    %2235 = vmatprep.subr.bf16.mxu0 0
    %2236 = vmatpush1.bf16.msra.mxu0 %v2208
    %2237 = vmatprep.subr.bf16.mxu0 0
    %2238 = vmatpush1.bf16.msra.mxu0 %v2207
    %2239 = vmatprep.subr.bf16.mxu0 0
    %2240 = vmatpush1.bf16.msra.mxu0 %v2206
    %2241 = vmatprep.subr.bf16.mxu0 0
    %2242 = vmatpush1.bf16.msra.mxu0 %v2205
    %2243 = vmatprep.subr.bf16.mxu0 0
    %2244 = vmatpush1.bf16.msra.mxu0 %v2204
    %2245 = vmatprep.subr.bf16.mxu0 0
    %2246 = vmatpush1.bf16.msra.mxu0 %v2203
    %2247 = vmatprep.subr.bf16.mxu0 0
    %2248 = vmatpush1.bf16.msra.mxu0 %v2202
    %2249 = vmatprep.subr.bf16.mxu0 0
    %2250 = vmatpush2.bf16.msra.mxu0 0
    %2251 = vmatprep.subr.bf16.mxu0 0
    %2252 = vmatpush2.bf16.msra.mxu0 0
    %2253 = vmatprep.subr.bf16.mxu0 0
    %2254 = vmatpush2.bf16.msra.mxu0 %v2215
    %2255 = vmatprep.subr.bf16.mxu0 0
    %2256 = vmatpush2.bf16.msra.mxu0 %v2214
    %2257 = vmatprep.subr.bf16.mxu0 0
    %2258 = vmatpush2.bf16.msra.mxu0 %v2213
    %2259 = vmatprep.subr.bf16.mxu0 0
    %2260 = vmatpush2.bf16.msra.mxu0 %v2212
    %2261 = vmatprep.subr.bf16.mxu0 0
    %2262 = vmatpush2.bf16.msra.mxu0 %v2211
    %2263 = vmatprep.subr.bf16.mxu0 0
    %2264 = vmatpush2.bf16.msra.mxu0 %v2210
    %2265 = vmatprep.mubr.bf16.mxu0 %v2231
    %2266 = vmatmul.mubr.bf16.gmra.mxu0 %v2143
    %v2267 = vpop.f32.mrf.mxu0
    %v2268 = vadd.f32 0.0, %v2267
    %v2269 = vpop.f32.mrf.mxu0
    %v2270 = vpop.f32.mrf.mxu0
    %v2271 = vpop.f32.mrf.mxu0
    %2272 = vdwg.mxu0
    %s2273 = scalar_lea.vmem %s5, 448
    %v2274 = vld [vmem:[%s2273] sm:$0xf]
    %v2275 = vld [vmem:[%s2273 + $0x4] sm:$0xf]
    %v2276 = vld [vmem:[%s2273 + $0x8] sm:$0xf]
    %v2277 = vld [vmem:[%s2273 + $0xc] sm:$0xf]
    %v2278 = vld [vmem:[%s2273 + $0x10] sm:$0xf]
    %v2279 = vld [vmem:[%s2273 + $0x14] sm:$0xf]
    %v2280 = vld [vmem:[%s2273 + $0x18] sm:$0xf]
    %v2281 = vld [vmem:[%s2273 + $0x1c] sm:$0xf]
    %v2282 = vld [vmem:[%s2273 + $0x20] sm:$0xf]
    %v2283 = vld [vmem:[%s2273 + $0x24] sm:$0xf]
    %v2284 = vld [vmem:[%s2273 + $0x28] sm:$0xf]
    %v2285 = vld [vmem:[%s2273 + $0x2c] sm:$0xf]
    %v2286 = vld [vmem:[%s2273 + $0x30] sm:$0xf]
    %v2287 = vld [vmem:[%s2273 + $0x34] sm:$0xf]
    %v2288 = vld [vmem:[%s2273 + $0x38] sm:$0xf]
    %v2289 = vld [vmem:[%s2273 + $0x3c] sm:$0xf]
    %v2290 = vld [vmem:[%s2273 + $0x40] sm:$0xf]
    %v2291 = vld [vmem:[%s2273 + $0x44] sm:$0xf]
    %v2292 = vld [vmem:[%s2273 + $0x48] sm:$0xf]
    %v2293 = vld [vmem:[%s2273 + $0x4c] sm:$0xf]
    %v2294 = vld [vmem:[%s2273 + $0x50] sm:$0xf]
    %v2295 = vld [vmem:[%s2273 + $0x54] sm:$0xf]
    %v2296 = vld [vmem:[%s2273 + $0x58] sm:$0xf]
    %v2297 = vld [vmem:[%s2273 + $0x5c] sm:$0xf]
    %v2298 = vld [vmem:[%s2273 + $0x60] sm:$0xf]
    %v2299 = vld [vmem:[%s2273 + $0x64] sm:$0xf]
    %v2300 = vld [vmem:[%s2273 + $0x68] sm:$0xf]
    %v2301 = vld [vmem:[%s2273 + $0x6c] sm:$0xf]
    %v2302 = vrot.slane %v1760, 2
    %v2303 = vrot.slane %v1761, 2
    %v2333 = vunpack.c.l.b16 %v2274
    %v2334 = vunpack.c.l.b16 %v2275
    %v2335 = vunpack.c.l.b16 %v2276
    %v2336 = vunpack.c.l.b16 %v2277
    %v2337 = vunpack.c.l.b16 %v2278
    %v2338 = vunpack.c.l.b16 %v2279
    %v2339 = vunpack.c.l.b16 %v2280
    %v2340 = vunpack.c.l.b16 %v2281
    %v2341 = vunpack.c.l.b16 %v2282
    %v2342 = vunpack.c.l.b16 %v2283
    %v2343 = vunpack.c.l.b16 %v2284
    %v2344 = vunpack.c.l.b16 %v2285
    %v2345 = vunpack.c.l.b16 %v2286
    %v2346 = vunpack.c.l.b16 %v2287
    %v2347 = vunpack.c.l.b16 %v2288
    %v2348 = vunpack.c.l.b16 %v2289
    %v2349 = vunpack.c.l.b16 %v2290
    %v2350 = vunpack.c.l.b16 %v2291
    %v2351 = vunpack.c.l.b16 %v2292
    %v2352 = vunpack.c.l.b16 %v2293
    %v2353 = vunpack.c.l.b16 %v2294
    %v2354 = vunpack.c.l.b16 %v2295
    %v2355 = vunpack.c.l.b16 %v2296
    %v2356 = vunpack.c.l.b16 %v2297
    %v2357 = vunpack.c.l.b16 %v2298
    %v2358 = vunpack.c.l.b16 %v2299
    %v2359 = vunpack.c.l.b16 %v2300
    %v2360 = vunpack.c.l.b16 %v2301
    %v2361 = vpack.c.b16 %v2334, %v2333
    %v2362 = vpack.c.b16 %v2336, %v2335
    %v2363 = vpack.c.b16 %v2338, %v2337
    %v2364 = vpack.c.b16 %v2340, %v2339
    %v2365 = vpack.c.b16 %v2342, %v2341
    %v2366 = vpack.c.b16 %v2344, %v2343
    %v2367 = vpack.c.b16 %v2346, %v2345
    %v2368 = vpack.c.b16 %v2348, %v2347
    %v2369 = vpack.c.b16 %v2350, %v2349
    %v2370 = vpack.c.b16 %v2352, %v2351
    %v2371 = vpack.c.b16 %v2354, %v2353
    %v2372 = vpack.c.b16 %v2356, %v2355
    %v2373 = vpack.c.b16 %v2358, %v2357
    %v2374 = vpack.c.b16 %v2360, %v2359
    %v2390 = vsel %vm1061, %v2303, 0
    %2392 = vmatprep.subr.bf16.mxu0 0
    %2393 = vmatpush1.bf16.msra.mxu0 %v2368
    %2394 = vmatprep.subr.bf16.mxu0 0
    %2395 = vmatpush1.bf16.msra.mxu0 %v2367
    %2396 = vmatprep.subr.bf16.mxu0 0
    %2397 = vmatpush1.bf16.msra.mxu0 %v2366
    %2398 = vmatprep.subr.bf16.mxu0 0
    %2399 = vmatpush1.bf16.msra.mxu0 %v2365
    %2400 = vmatprep.subr.bf16.mxu0 0
    %2401 = vmatpush1.bf16.msra.mxu0 %v2364
    %2402 = vmatprep.subr.bf16.mxu0 0
    %2403 = vmatpush1.bf16.msra.mxu0 %v2363
    %2404 = vmatprep.subr.bf16.mxu0 0
    %2405 = vmatpush1.bf16.msra.mxu0 %v2362
    %2406 = vmatprep.subr.bf16.mxu0 0
    %2407 = vmatpush1.bf16.msra.mxu0 %v2361
    %2408 = vmatprep.subr.bf16.mxu0 0
    %2409 = vmatpush2.bf16.msra.mxu0 0
    %2410 = vmatprep.subr.bf16.mxu0 0
    %2411 = vmatpush2.bf16.msra.mxu0 0
    %2412 = vmatprep.subr.bf16.mxu0 0
    %2413 = vmatpush2.bf16.msra.mxu0 %v2374
    %2414 = vmatprep.subr.bf16.mxu0 0
    %2415 = vmatpush2.bf16.msra.mxu0 %v2373
    %2416 = vmatprep.subr.bf16.mxu0 0
    %2417 = vmatpush2.bf16.msra.mxu0 %v2372
    %2418 = vmatprep.subr.bf16.mxu0 0
    %2419 = vmatpush2.bf16.msra.mxu0 %v2371
    %2420 = vmatprep.subr.bf16.mxu0 0
    %2421 = vmatpush2.bf16.msra.mxu0 %v2370
    %2422 = vmatprep.subr.bf16.mxu0 0
    %2423 = vmatpush2.bf16.msra.mxu0 %v2369
    %2424 = vmatprep.mubr.bf16.mxu0 %v2390
    %2425 = vmatmul.mubr.bf16.gmra.mxu0 %v2302
    %v2426 = vpop.f32.mrf.mxu0
    %v2427 = vadd.f32 0.0, %v2426
    %v2428 = vpop.f32.mrf.mxu0
    %v2429 = vpop.f32.mrf.mxu0
    %v2430 = vpop.f32.mrf.mxu0
    %2431 = vdwg.mxu0
    %s2432 = scalar_lea.vmem %s5, 560
    %v2433 = vld [vmem:[%s2432] sm:$0xf]
    %v2434 = vld [vmem:[%s2432 + $0x4] sm:$0xf]
    %v2435 = vld [vmem:[%s2432 + $0x8] sm:$0xf]
    %v2436 = vld [vmem:[%s2432 + $0xc] sm:$0xf]
    %v2437 = vld [vmem:[%s2432 + $0x10] sm:$0xf]
    %v2438 = vld [vmem:[%s2432 + $0x14] sm:$0xf]
    %v2439 = vld [vmem:[%s2432 + $0x18] sm:$0xf]
    %v2440 = vld [vmem:[%s2432 + $0x1c] sm:$0xf]
    %v2441 = vld [vmem:[%s2432 + $0x20] sm:$0xf]
    %v2442 = vld [vmem:[%s2432 + $0x24] sm:$0xf]
    %v2443 = vld [vmem:[%s2432 + $0x28] sm:$0xf]
    %v2444 = vld [vmem:[%s2432 + $0x2c] sm:$0xf]
    %v2445 = vld [vmem:[%s2432 + $0x30] sm:$0xf]
    %v2446 = vld [vmem:[%s2432 + $0x34] sm:$0xf]
    %v2447 = vld [vmem:[%s2432 + $0x38] sm:$0xf]
    %v2448 = vld [vmem:[%s2432 + $0x3c] sm:$0xf]
    %v2449 = vld [vmem:[%s2432 + $0x40] sm:$0xf]
    %v2450 = vld [vmem:[%s2432 + $0x44] sm:$0xf]
    %v2451 = vld [vmem:[%s2432 + $0x48] sm:$0xf]
    %v2452 = vld [vmem:[%s2432 + $0x4c] sm:$0xf]
    %v2453 = vld [vmem:[%s2432 + $0x50] sm:$0xf]
    %v2454 = vld [vmem:[%s2432 + $0x54] sm:$0xf]
    %v2455 = vld [vmem:[%s2432 + $0x58] sm:$0xf]
    %v2456 = vld [vmem:[%s2432 + $0x5c] sm:$0xf]
    %v2457 = vld [vmem:[%s2432 + $0x60] sm:$0xf]
    %v2458 = vld [vmem:[%s2432 + $0x64] sm:$0xf]
    %v2459 = vld [vmem:[%s2432 + $0x68] sm:$0xf]
    %v2460 = vld [vmem:[%s2432 + $0x6c] sm:$0xf]
    %v2461 = vrot.slane %v1820, 2
    %v2462 = vrot.slane %v1823, 2
    %v2492 = vunpack.c.l.b16 %v2433
    %v2493 = vunpack.c.l.b16 %v2434
    %v2494 = vunpack.c.l.b16 %v2435
    %v2495 = vunpack.c.l.b16 %v2436
    %v2496 = vunpack.c.l.b16 %v2437
    %v2497 = vunpack.c.l.b16 %v2438
    %v2498 = vunpack.c.l.b16 %v2439
    %v2499 = vunpack.c.l.b16 %v2440
    %v2500 = vunpack.c.l.b16 %v2441
    %v2501 = vunpack.c.l.b16 %v2442
    %v2502 = vunpack.c.l.b16 %v2443
    %v2503 = vunpack.c.l.b16 %v2444
    %v2504 = vunpack.c.l.b16 %v2445
    %v2505 = vunpack.c.l.b16 %v2446
    %v2506 = vunpack.c.l.b16 %v2447
    %v2507 = vunpack.c.l.b16 %v2448
    %v2508 = vunpack.c.l.b16 %v2449
    %v2509 = vunpack.c.l.b16 %v2450
    %v2510 = vunpack.c.l.b16 %v2451
    %v2511 = vunpack.c.l.b16 %v2452
    %v2512 = vunpack.c.l.b16 %v2453
    %v2513 = vunpack.c.l.b16 %v2454
    %v2514 = vunpack.c.l.b16 %v2455
    %v2515 = vunpack.c.l.b16 %v2456
    %v2516 = vunpack.c.l.b16 %v2457
    %v2517 = vunpack.c.l.b16 %v2458
    %v2518 = vunpack.c.l.b16 %v2459
    %v2519 = vunpack.c.l.b16 %v2460
    %v2520 = vpack.c.b16 %v2493, %v2492
    %v2521 = vpack.c.b16 %v2495, %v2494
    %v2522 = vpack.c.b16 %v2497, %v2496
    %v2523 = vpack.c.b16 %v2499, %v2498
    %v2524 = vpack.c.b16 %v2501, %v2500
    %v2525 = vpack.c.b16 %v2503, %v2502
    %v2526 = vpack.c.b16 %v2505, %v2504
    %v2527 = vpack.c.b16 %v2507, %v2506
    %v2528 = vpack.c.b16 %v2509, %v2508
    %v2529 = vpack.c.b16 %v2511, %v2510
    %v2530 = vpack.c.b16 %v2513, %v2512
    %v2531 = vpack.c.b16 %v2515, %v2514
    %v2532 = vpack.c.b16 %v2517, %v2516
    %v2533 = vpack.c.b16 %v2519, %v2518
    %v2549 = vsel %vm1061, %v2462, 0
    %2551 = vmatprep.subr.bf16.mxu0 0
    %2552 = vmatpush1.bf16.msra.mxu0 %v2527
    %2553 = vmatprep.subr.bf16.mxu0 0
    %2554 = vmatpush1.bf16.msra.mxu0 %v2526
    %2555 = vmatprep.subr.bf16.mxu0 0
    %2556 = vmatpush1.bf16.msra.mxu0 %v2525
    %2557 = vmatprep.subr.bf16.mxu0 0
    %2558 = vmatpush1.bf16.msra.mxu0 %v2524
    %2559 = vmatprep.subr.bf16.mxu0 0
    %2560 = vmatpush1.bf16.msra.mxu0 %v2523
    %2561 = vmatprep.subr.bf16.mxu0 0
    %2562 = vmatpush1.bf16.msra.mxu0 %v2522
    %2563 = vmatprep.subr.bf16.mxu0 0
    %2564 = vmatpush1.bf16.msra.mxu0 %v2521
    %2565 = vmatprep.subr.bf16.mxu0 0
    %2566 = vmatpush1.bf16.msra.mxu0 %v2520
    %2567 = vmatprep.subr.bf16.mxu0 0
    %2568 = vmatpush2.bf16.msra.mxu0 0
    %2569 = vmatprep.subr.bf16.mxu0 0
    %2570 = vmatpush2.bf16.msra.mxu0 0
    %2571 = vmatprep.subr.bf16.mxu0 0
    %2572 = vmatpush2.bf16.msra.mxu0 %v2533
    %2573 = vmatprep.subr.bf16.mxu0 0
    %2574 = vmatpush2.bf16.msra.mxu0 %v2532
    %2575 = vmatprep.subr.bf16.mxu0 0
    %2576 = vmatpush2.bf16.msra.mxu0 %v2531
    %2577 = vmatprep.subr.bf16.mxu0 0
    %2578 = vmatpush2.bf16.msra.mxu0 %v2530
    %2579 = vmatprep.subr.bf16.mxu0 0
    %2580 = vmatpush2.bf16.msra.mxu0 %v2529
    %2581 = vmatprep.subr.bf16.mxu0 0
    %2582 = vmatpush2.bf16.msra.mxu0 %v2528
    %2583 = vmatprep.mubr.bf16.mxu0 %v2549
    %2584 = vmatmul.mubr.bf16.gmra.mxu0 %v2461
    %v2585 = vpop.f32.mrf.mxu0
    %v2586 = vadd.f32 0.0, %v2585
    %v2587 = vpop.f32.mrf.mxu0
    %v2588 = vpop.f32.mrf.mxu0
    %v2589 = vpop.f32.mrf.mxu0
    %2590 = vdwg.mxu0
    %s2591 = scalar_lea.vmem %s5, 672
    %v2592 = vld [vmem:[%s2591] sm:$0xf]
    %v2593 = vld [vmem:[%s2591 + $0x4] sm:$0xf]
    %v2594 = vld [vmem:[%s2591 + $0x8] sm:$0xf]
    %v2595 = vld [vmem:[%s2591 + $0xc] sm:$0xf]
    %v2596 = vld [vmem:[%s2591 + $0x10] sm:$0xf]
    %v2597 = vld [vmem:[%s2591 + $0x14] sm:$0xf]
    %v2598 = vld [vmem:[%s2591 + $0x18] sm:$0xf]
    %v2599 = vld [vmem:[%s2591 + $0x1c] sm:$0xf]
    %v2600 = vld [vmem:[%s2591 + $0x20] sm:$0xf]
    %v2601 = vld [vmem:[%s2591 + $0x24] sm:$0xf]
    %v2602 = vld [vmem:[%s2591 + $0x28] sm:$0xf]
    %v2603 = vld [vmem:[%s2591 + $0x2c] sm:$0xf]
    %v2604 = vld [vmem:[%s2591 + $0x30] sm:$0xf]
    %v2605 = vld [vmem:[%s2591 + $0x34] sm:$0xf]
    %v2606 = vld [vmem:[%s2591 + $0x38] sm:$0xf]
    %v2607 = vld [vmem:[%s2591 + $0x3c] sm:$0xf]
    %v2608 = vld [vmem:[%s2591 + $0x40] sm:$0xf]
    %v2609 = vld [vmem:[%s2591 + $0x44] sm:$0xf]
    %v2610 = vld [vmem:[%s2591 + $0x48] sm:$0xf]
    %v2611 = vld [vmem:[%s2591 + $0x4c] sm:$0xf]
    %v2612 = vld [vmem:[%s2591 + $0x50] sm:$0xf]
    %v2613 = vld [vmem:[%s2591 + $0x54] sm:$0xf]
    %v2614 = vld [vmem:[%s2591 + $0x58] sm:$0xf]
    %v2615 = vld [vmem:[%s2591 + $0x5c] sm:$0xf]
    %v2616 = vld [vmem:[%s2591 + $0x60] sm:$0xf]
    %v2617 = vld [vmem:[%s2591 + $0x64] sm:$0xf]
    %v2618 = vld [vmem:[%s2591 + $0x68] sm:$0xf]
    %v2619 = vld [vmem:[%s2591 + $0x6c] sm:$0xf]
    %v2620 = vrot.slane %v1760, 3
    %v2621 = vrot.slane %v1761, 3
    %v2651 = vunpack.c.l.b16 %v2592
    %v2652 = vunpack.c.l.b16 %v2593
    %v2653 = vunpack.c.l.b16 %v2594
    %v2654 = vunpack.c.l.b16 %v2595
    %v2655 = vunpack.c.l.b16 %v2596
    %v2656 = vunpack.c.l.b16 %v2597
    %v2657 = vunpack.c.l.b16 %v2598
    %v2658 = vunpack.c.l.b16 %v2599
    %v2659 = vunpack.c.l.b16 %v2600
    %v2660 = vunpack.c.l.b16 %v2601
    %v2661 = vunpack.c.l.b16 %v2602
    %v2662 = vunpack.c.l.b16 %v2603
    %v2663 = vunpack.c.l.b16 %v2604
    %v2664 = vunpack.c.l.b16 %v2605
    %v2665 = vunpack.c.l.b16 %v2606
    %v2666 = vunpack.c.l.b16 %v2607
    %v2667 = vunpack.c.l.b16 %v2608
    %v2668 = vunpack.c.l.b16 %v2609
    %v2669 = vunpack.c.l.b16 %v2610
    %v2670 = vunpack.c.l.b16 %v2611
    %v2671 = vunpack.c.l.b16 %v2612
    %v2672 = vunpack.c.l.b16 %v2613
    %v2673 = vunpack.c.l.b16 %v2614
    %v2674 = vunpack.c.l.b16 %v2615
    %v2675 = vunpack.c.l.b16 %v2616
    %v2676 = vunpack.c.l.b16 %v2617
    %v2677 = vunpack.c.l.b16 %v2618
    %v2678 = vunpack.c.l.b16 %v2619
    %v2679 = vpack.c.b16 %v2652, %v2651
    %v2680 = vpack.c.b16 %v2654, %v2653
    %v2681 = vpack.c.b16 %v2656, %v2655
    %v2682 = vpack.c.b16 %v2658, %v2657
    %v2683 = vpack.c.b16 %v2660, %v2659
    %v2684 = vpack.c.b16 %v2662, %v2661
    %v2685 = vpack.c.b16 %v2664, %v2663
    %v2686 = vpack.c.b16 %v2666, %v2665
    %v2687 = vpack.c.b16 %v2668, %v2667
    %v2688 = vpack.c.b16 %v2670, %v2669
    %v2689 = vpack.c.b16 %v2672, %v2671
    %v2690 = vpack.c.b16 %v2674, %v2673
    %v2691 = vpack.c.b16 %v2676, %v2675
    %v2692 = vpack.c.b16 %v2678, %v2677
    %v2708 = vsel %vm1061, %v2621, 0
    %2710 = vmatprep.subr.bf16.mxu0 0
    %2711 = vmatpush1.bf16.msra.mxu0 %v2686
    %2712 = vmatprep.subr.bf16.mxu0 0
    %2713 = vmatpush1.bf16.msra.mxu0 %v2685
    %2714 = vmatprep.subr.bf16.mxu0 0
    %2715 = vmatpush1.bf16.msra.mxu0 %v2684
    %2716 = vmatprep.subr.bf16.mxu0 0
    %2717 = vmatpush1.bf16.msra.mxu0 %v2683
    %2718 = vmatprep.subr.bf16.mxu0 0
    %2719 = vmatpush1.bf16.msra.mxu0 %v2682
    %2720 = vmatprep.subr.bf16.mxu0 0
    %2721 = vmatpush1.bf16.msra.mxu0 %v2681
    %2722 = vmatprep.subr.bf16.mxu0 0
    %2723 = vmatpush1.bf16.msra.mxu0 %v2680
    %2724 = vmatprep.subr.bf16.mxu0 0
    %2725 = vmatpush1.bf16.msra.mxu0 %v2679
    %2726 = vmatprep.subr.bf16.mxu0 0
    %2727 = vmatpush2.bf16.msra.mxu0 0
    %2728 = vmatprep.subr.bf16.mxu0 0
    %2729 = vmatpush2.bf16.msra.mxu0 0
    %2730 = vmatprep.subr.bf16.mxu0 0
    %2731 = vmatpush2.bf16.msra.mxu0 %v2692
    %2732 = vmatprep.subr.bf16.mxu0 0
    %2733 = vmatpush2.bf16.msra.mxu0 %v2691
    %2734 = vmatprep.subr.bf16.mxu0 0
    %2735 = vmatpush2.bf16.msra.mxu0 %v2690
    %2736 = vmatprep.subr.bf16.mxu0 0
    %2737 = vmatpush2.bf16.msra.mxu0 %v2689
    %2738 = vmatprep.subr.bf16.mxu0 0
    %2739 = vmatpush2.bf16.msra.mxu0 %v2688
    %2740 = vmatprep.subr.bf16.mxu0 0
    %2741 = vmatpush2.bf16.msra.mxu0 %v2687
    %2742 = vmatprep.mubr.bf16.mxu0 %v2708
    %2743 = vmatmul.mubr.bf16.gmra.mxu0 %v2620
    %v2744 = vpop.f32.mrf.mxu0
    %v2745 = vadd.f32 0.0, %v2744
    %v2746 = vpop.f32.mrf.mxu0
    %v2747 = vpop.f32.mrf.mxu0
    %v2748 = vpop.f32.mrf.mxu0
    %2749 = vdwg.mxu0
    %v2778 = vunpack.c.l.b16 %v1762
    %v2779 = vunpack.c.l.b16 %v1763
    %v2780 = vunpack.c.l.b16 %v1764
    %v2781 = vunpack.c.l.b16 %v1765
    %v2782 = vunpack.c.l.b16 %v1766
    %v2783 = vunpack.c.l.b16 %v1767
    %v2784 = vunpack.c.l.b16 %v1768
    %v2785 = vunpack.c.l.b16 %v1769
    %v2786 = vunpack.c.l.b16 %v1770
    %v2787 = vunpack.c.l.b16 %v1771
    %v2788 = vunpack.c.l.b16 %v1772
    %v2789 = vunpack.c.l.b16 %v1773
    %v2790 = vunpack.c.l.b16 %v1774
    %v2791 = vunpack.c.l.b16 %v1775
    %v2792 = vunpack.c.l.b16 %v1776
    %v2793 = vunpack.c.l.b16 %v1777
    %v2794 = vunpack.c.l.b16 %v1778
    %v2795 = vunpack.c.l.b16 %v1779
    %v2796 = vunpack.c.l.b16 %v1780
    %v2797 = vunpack.c.l.b16 %v1781
    %v2798 = vunpack.c.l.b16 %v1782
    %v2799 = vunpack.c.l.b16 %v1783
    %v2800 = vunpack.c.l.b16 %v1784
    %v2801 = vunpack.c.l.b16 %v1785
    %v2802 = vunpack.c.l.b16 %v1786
    %v2803 = vunpack.c.l.b16 %v1787
    %v2804 = vunpack.c.l.b16 %v1788
    %v2805 = vunpack.c.l.b16 %v1789
    %v2806 = vpack.c.b16 %v2779, %v2778
    %v2807 = vpack.c.b16 %v2781, %v2780
    %v2808 = vpack.c.b16 %v2783, %v2782
    %v2809 = vpack.c.b16 %v2785, %v2784
    %v2810 = vpack.c.b16 %v2787, %v2786
    %v2811 = vpack.c.b16 %v2789, %v2788
    %v2812 = vpack.c.b16 %v2791, %v2790
    %v2813 = vpack.c.b16 %v2793, %v2792
    %v2814 = vpack.c.b16 %v2795, %v2794
    %v2815 = vpack.c.b16 %v2797, %v2796
    %v2816 = vpack.c.b16 %v2799, %v2798
    %v2817 = vpack.c.b16 %v2801, %v2800
    %v2818 = vpack.c.b16 %v2803, %v2802
    %v2819 = vpack.c.b16 %v2805, %v2804
    %v2834 = vsel %vm1061, %v1761, 0
    %2836 = vmatprep.subr.bf16.mxu0 0
    %2837 = vmatpush1.bf16.msra.mxu0 %v2813
    %2838 = vmatprep.subr.bf16.mxu0 0
    %2839 = vmatpush1.bf16.msra.mxu0 %v2812
    %2840 = vmatprep.subr.bf16.mxu0 0
    %2841 = vmatpush1.bf16.msra.mxu0 %v2811
    %2842 = vmatprep.subr.bf16.mxu0 0
    %2843 = vmatpush1.bf16.msra.mxu0 %v2810
    %2844 = vmatprep.subr.bf16.mxu0 0
    %2845 = vmatpush1.bf16.msra.mxu0 %v2809
    %2846 = vmatprep.subr.bf16.mxu0 0
    %2847 = vmatpush1.bf16.msra.mxu0 %v2808
    %2848 = vmatprep.subr.bf16.mxu0 0
    %2849 = vmatpush1.bf16.msra.mxu0 %v2807
    %2850 = vmatprep.subr.bf16.mxu0 0
    %2851 = vmatpush1.bf16.msra.mxu0 %v2806
    %2852 = vmatprep.subr.bf16.mxu0 0
    %2853 = vmatpush2.bf16.msra.mxu0 0
    %2854 = vmatprep.subr.bf16.mxu0 0
    %2855 = vmatpush2.bf16.msra.mxu0 0
    %2856 = vmatprep.subr.bf16.mxu0 0
    %2857 = vmatpush2.bf16.msra.mxu0 %v2819
    %2858 = vmatprep.subr.bf16.mxu0 0
    %2859 = vmatpush2.bf16.msra.mxu0 %v2818
    %2860 = vmatprep.subr.bf16.mxu0 0
    %2861 = vmatpush2.bf16.msra.mxu0 %v2817
    %2862 = vmatprep.subr.bf16.mxu0 0
    %2863 = vmatpush2.bf16.msra.mxu0 %v2816
    %2864 = vmatprep.subr.bf16.mxu0 0
    %2865 = vmatpush2.bf16.msra.mxu0 %v2815
    %2866 = vmatprep.subr.bf16.mxu0 0
    %2867 = vmatpush2.bf16.msra.mxu0 %v2814
    %2868 = vmatprep.mubr.bf16.mxu0 %v2834
    %2869 = vmatmul.mubr.bf16.gmra.mxu0 %v1760
    %v2870 = vpop.f32.mrf.mxu0
    %v2871 = vadd.f32 %v1948, %v2870
    %v2872 = vpop.f32.mrf.mxu0
    %v2873 = vpop.f32.mrf.mxu0
    %v2874 = vpop.f32.mrf.mxu0
    %2875 = vdwg.mxu0
    %v2876 = vadd.f32 %v2871, %v2109
    %v2877 = vadd.f32 %v2876, %v2268
    %v2878 = vadd.f32 %v2877, %v2427
    %v2879 = vadd.f32 %v2878, %v2586
    %v2880 = vadd.f32 %v2879, %v2745
    %v2881 = vld [vmem:[#allocation10] sm:$0x1]
    %v2882 = vadd.f32 %v2880, %v2881
    %v2883 = vmax.f32 %v2882, 0.0
    %v2884 = vpack.c.bf16 %v2883, %v2883
    %v2885 = vld [vmem:[%s7] sm:$0xf]
    %v2886 = vld [vmem:[%s7 + $0x4] sm:$0xf]
    %v2887 = vld [vmem:[%s7 + $0x8] sm:$0xf]
    %v2888 = vld [vmem:[%s7 + $0xc] sm:$0xf]
    %v2889 = vld [vmem:[#allocation12] sm:$0x1]
    %v2894 = vunpack.c.l.b16 %v2885
    %v2895 = vunpack.c.l.b16 %v2886
    %v2896 = vunpack.c.l.b16 %v2887
    %v2897 = vunpack.c.l.b16 %v2888
    %v2898 = vpack.c.b16 %v2895, %v2894
    %v2899 = vpack.c.b16 %v2897, %v2896
    %v2903 = vsel %vm247, %v2884, 0
    %2905 = vmatprep.subr.bf16.mxu0 0
    %2906 = vmatpush1.bf16.msra.mxu0 0
    %2907 = vmatprep.subr.bf16.mxu0 0
    %2908 = vmatpush1.bf16.msra.mxu0 0
    %2909 = vmatprep.subr.bf16.mxu0 0
    %2910 = vmatpush1.bf16.msra.mxu0 0
    %2911 = vmatprep.subr.bf16.mxu0 0
    %2912 = vmatpush1.bf16.msra.mxu0 0
    %2913 = vmatprep.subr.bf16.mxu0 0
    %2914 = vmatpush1.bf16.msra.mxu0 0
    %2915 = vmatprep.subr.bf16.mxu0 0
    %2916 = vmatpush1.bf16.msra.mxu0 0
    %2917 = vmatprep.subr.bf16.mxu0 0
    %2918 = vmatpush1.bf16.msra.mxu0 %v2899
    %2919 = vmatprep.subr.bf16.mxu0 0
    %2920 = vmatpush1.bf16.msra.mxu0 %v2898
    %2921 = vmatprep.subr.bf16.mxu0 0
    %2922 = vmatpush2.bf16.msra.mxu0 0
    %2923 = vmatprep.subr.bf16.mxu0 0
    %2924 = vmatpush2.bf16.msra.mxu0 0
    %2925 = vmatprep.subr.bf16.mxu0 0
    %2926 = vmatpush2.bf16.msra.mxu0 0
    %2927 = vmatprep.subr.bf16.mxu0 0
    %2928 = vmatpush2.bf16.msra.mxu0 0
    %2929 = vmatprep.subr.bf16.mxu0 0
    %2930 = vmatpush2.bf16.msra.mxu0 0
    %2931 = vmatprep.subr.bf16.mxu0 0
    %2932 = vmatpush2.bf16.msra.mxu0 0
    %2933 = vmatprep.subr.bf16.mxu0 0
    %2934 = vmatpush2.bf16.msra.mxu0 0
    %2935 = vmatprep.subr.bf16.mxu0 0
    %2936 = vmatpush2.bf16.msra.mxu0 0
    %2937 = vmatprep.mubr.bf16.mxu0 0
    %2938 = vmatmul.mubr.bf16.gmra.mxu0 %v2903
    %v2939 = vpop.f32.mrf.mxu0
    %v2940 = vadd.f32 %v2889, %v2939
    %v2941 = vpop.f32.mrf.mxu0
    %v2942 = vpop.f32.mrf.mxu0
    %v2943 = vpop.f32.mrf.mxu0
    %2944 = vdwg.mxu0
    %v2945 = vpack.c.bf16 %v2940, %v2940
    %v2946 = vld [vmem:[%s9] sm:$0xf]
    %v2947 = vld [vmem:[#allocation13] sm:$0x1]
    %vm2948 = vcmask 64512
    %v2950 = vsel %vm2948, %v2945, 0
    %v2953 = vsel %vm177, %v2946, 0
    %2955 = vmatprep.subr.bf16.mxu0 0
    %2956 = vmatpush1.bf16.msra.mxu0 0
    %2957 = vmatprep.subr.bf16.mxu0 0
    %2958 = vmatpush1.bf16.msra.mxu0 0
    %2959 = vmatprep.subr.bf16.mxu0 0
    %2960 = vmatpush1.bf16.msra.mxu0 0
    %2961 = vmatprep.subr.bf16.mxu0 0
    %2962 = vmatpush1.bf16.msra.mxu0 0
    %2963 = vmatprep.subr.bf16.mxu0 0
    %2964 = vmatpush1.bf16.msra.mxu0 0
    %2965 = vmatprep.subr.bf16.mxu0 0
    %2966 = vmatpush1.bf16.msra.mxu0 0
    %2967 = vmatprep.subr.bf16.mxu0 0
    %2968 = vmatpush1.bf16.msra.mxu0 0
    %2969 = vmatprep.subr.bf16.mxu0 0
    %2970 = vmatpush1.bf16.msra.mxu0 %v2953
    %2971 = vmatprep.subr.bf16.mxu0 0
    %2972 = vmatpush2.bf16.msra.mxu0 0
    %2973 = vmatprep.subr.bf16.mxu0 0
    %2974 = vmatpush2.bf16.msra.mxu0 0
    %2975 = vmatprep.subr.bf16.mxu0 0
    %2976 = vmatpush2.bf16.msra.mxu0 0
    %2977 = vmatprep.subr.bf16.mxu0 0
    %2978 = vmatpush2.bf16.msra.mxu0 0
    %2979 = vmatprep.subr.bf16.mxu0 0
    %2980 = vmatpush2.bf16.msra.mxu0 0
    %2981 = vmatprep.subr.bf16.mxu0 0
    %2982 = vmatpush2.bf16.msra.mxu0 0
    %2983 = vmatprep.subr.bf16.mxu0 0
    %2984 = vmatpush2.bf16.msra.mxu0 0
    %2985 = vmatprep.subr.bf16.mxu0 0
    %2986 = vmatpush2.bf16.msra.mxu0 0
    %2987 = vmatprep.mubr.bf16.mxu0 0
    %2988 = vmatmul.mubr.bf16.gmra.mxu0 %v2950
    %v2989 = vpop.f32.mrf.mxu0
    %v2990 = vadd.f32 %v2947, %v2989
    %v2991 = vpop.f32.mrf.mxu0
    %v2992 = vpop.f32.mrf.mxu0
    %v2993 = vpop.f32.mrf.mxu0
    %2994 = vdwg.mxu0
    %v2995 = vmax.f32 %v2990, 0.0
    %v2996 = vpack.c.bf16 %v2995, %v2995
    %v2997 = vld [vmem:[#allocation15] sm:$0xff]
    %v2998 = vld [vmem:[#allocation15 + $0x8] sm:$0xff]
    %v2999 = vld [vmem:[#allocation15 + $0x10] sm:$0xff]
    %v3000 = vld [vmem:[#allocation15 + $0x18] sm:$0xff]
    %v3001 = vld [vmem:[#allocation16] ss:$8 sm:$0x3]
    %v3006 = vunpack.c.l.b16 %v2997
    %v3007 = vunpack.c.h.b16 %v2997
    %v3008 = vunpack.c.l.b16 %v2998
    %v3009 = vunpack.c.h.b16 %v2998
    %v3010 = vunpack.c.l.b16 %v2999
    %v3011 = vunpack.c.h.b16 %v2999
    %v3012 = vunpack.c.l.b16 %v3000
    %v3013 = vunpack.c.h.b16 %v3000
    %v3014 = vpack.c.b16 %v3008, %v3006
    %v3015 = vpack.c.b16 %v3009, %v3007
    %v3016 = vpack.c.b16 %v3012, %v3010
    %v3017 = vpack.c.b16 %v3013, %v3011
    %v3023 = vlaneseq
    %v3024 = vshrl.u32 %v3023, 7
    %v3025 = vsub.s32 0, %v3024
    %v3026 = vrot.slane %v3001, %v3025
    %v3027 = vlaneseq
    %v3028 = vshrl.u32 %v3027, 7
    %v3029 = vsub.s32 1, %v3028
    %v3030 = vrot.slane %v3001, %v3029
    %v3034 = vsel %vm247, %v2996, 0
    %3036 = vmatprep.subr.bf16.mxu0 0
    %3037 = vmatpush1.bf16.msra.mxu0 0
    %3038 = vmatprep.subr.bf16.mxu0 0
    %3039 = vmatpush1.bf16.msra.mxu0 0
    %3040 = vmatprep.subr.bf16.mxu0 0
    %3041 = vmatpush1.bf16.msra.mxu0 0
    %3042 = vmatprep.subr.bf16.mxu0 0
    %3043 = vmatpush1.bf16.msra.mxu0 0
    %3044 = vmatprep.subr.bf16.mxu0 0
    %3045 = vmatpush1.bf16.msra.mxu0 0
    %3046 = vmatprep.subr.bf16.mxu0 0
    %3047 = vmatpush1.bf16.msra.mxu0 0
    %3048 = vmatprep.subr.bf16.mxu0 %v3017
    %3049 = vmatpush1.bf16.msra.mxu0 %v3016
    %3050 = vmatprep.subr.bf16.mxu0 %v3015
    %3051 = vmatpush1.bf16.msra.mxu0 %v3014
    %3052 = vmatprep.subr.bf16.mxu0 0
    %3053 = vmatpush2.bf16.msra.mxu0 0
    %3054 = vmatprep.subr.bf16.mxu0 0
    %3055 = vmatpush2.bf16.msra.mxu0 0
    %3056 = vmatprep.subr.bf16.mxu0 0
    %3057 = vmatpush2.bf16.msra.mxu0 0
    %3058 = vmatprep.subr.bf16.mxu0 0
    %3059 = vmatpush2.bf16.msra.mxu0 0
    %3060 = vmatprep.subr.bf16.mxu0 0
    %3061 = vmatpush2.bf16.msra.mxu0 0
    %3062 = vmatprep.subr.bf16.mxu0 0
    %3063 = vmatpush2.bf16.msra.mxu0 0
    %3064 = vmatprep.subr.bf16.mxu0 0
    %3065 = vmatpush2.bf16.msra.mxu0 0
    %3066 = vmatprep.subr.bf16.mxu0 0
    %3067 = vmatpush2.bf16.msra.mxu0 0
    %3068 = vmatprep.mubr.bf16.mxu0 0
    %3069 = vmatmul.mubr.bf16.gmra.mxu0 %v3034
    %v3070 = vpop.f32.mrf.mxu0
    %v3071 = vadd.f32 %v3026, %v3070
    %v3072 = vpop.f32.mrf.mxu0
    %v3073 = vadd.f32 %v3030, %v3072
    %v3074 = vpop.f32.mrf.mxu0
    %v3075 = vpop.f32.mrf.mxu0
    %3076 = vdwg.mxu0
    %v3077 = vmax.f32 %v3071, 0.0
    %v3078 = vmax.f32 %v3073, 0.0
    %v3079 = vpack.c.bf16 %v3077, %v3077
    %v3080 = vpack.c.bf16 %v3078, %v3078
    %v3083 = vunpack.c.l.b16 %v3079
    %v3084 = vunpack.c.l.b16 %v3080
    %v3085 = vpack.c.b16 %v3084, %v3083
    %v3087 = vshll.u32 %v3085, 16
    %vm3090 = vmand %vm185, %vm848
    %vm3091 = vmand %vm188, %vm850
    %vm3092 = vmor %vm3091, %vm3090
    %v3093 = vld [vmem:[#allocation3] sm:$0x11]
    %v3094 = vsel %vm3092, %v3087, %v3093
    %3095 = vst [vmem:[#allocation3] sm:$0x11] %v3094
    %s3096 = scalar_lea.vmem [#allocation15], 32
    %v3097 = vld [vmem:[%s3096] sm:$0xff]
    %v3098 = vld [vmem:[%s3096 + $0x8] sm:$0xff]
    %v3099 = vld [vmem:[%s3096 + $0x10] sm:$0xff]
    %v3100 = vld [vmem:[%s3096 + $0x18] sm:$0xff]
    %s3101 = scalar_lea.vmem [#allocation16], 1
    %v3102 = vld [vmem:[%s3101] ss:$8 sm:$0x3]
    %v3107 = vunpack.c.l.b16 %v3097
    %v3108 = vunpack.c.h.b16 %v3097
    %v3109 = vunpack.c.l.b16 %v3098
    %v3110 = vunpack.c.h.b16 %v3098
    %v3111 = vunpack.c.l.b16 %v3099
    %v3112 = vunpack.c.h.b16 %v3099
    %v3113 = vunpack.c.l.b16 %v3100
    %v3114 = vunpack.c.h.b16 %v3100
    %v3115 = vpack.c.b16 %v3109, %v3107
    %v3116 = vpack.c.b16 %v3110, %v3108
    %v3117 = vpack.c.b16 %v3113, %v3111
    %v3118 = vpack.c.b16 %v3114, %v3112
    %v3124 = vlaneseq
    %v3125 = vshrl.u32 %v3124, 7
    %v3126 = vsub.s32 0, %v3125
    %v3127 = vrot.slane %v3102, %v3126
    %v3128 = vlaneseq
    %v3129 = vshrl.u32 %v3128, 7
    %v3130 = vsub.s32 1, %v3129
    %v3131 = vrot.slane %v3102, %v3130
    %3134 = vmatprep.subr.bf16.mxu0 0
    %3135 = vmatpush1.bf16.msra.mxu0 0
    %3136 = vmatprep.subr.bf16.mxu0 0
    %3137 = vmatpush1.bf16.msra.mxu0 0
    %3138 = vmatprep.subr.bf16.mxu0 0
    %3139 = vmatpush1.bf16.msra.mxu0 0
    %3140 = vmatprep.subr.bf16.mxu0 0
    %3141 = vmatpush1.bf16.msra.mxu0 0
    %3142 = vmatprep.subr.bf16.mxu0 0
    %3143 = vmatpush1.bf16.msra.mxu0 0
    %3144 = vmatprep.subr.bf16.mxu0 0
    %3145 = vmatpush1.bf16.msra.mxu0 0
    %3146 = vmatprep.subr.bf16.mxu0 %v3118
    %3147 = vmatpush1.bf16.msra.mxu0 %v3117
    %3148 = vmatprep.subr.bf16.mxu0 %v3116
    %3149 = vmatpush1.bf16.msra.mxu0 %v3115
    %3150 = vmatprep.subr.bf16.mxu0 0
    %3151 = vmatpush2.bf16.msra.mxu0 0
    %3152 = vmatprep.subr.bf16.mxu0 0
    %3153 = vmatpush2.bf16.msra.mxu0 0
    %3154 = vmatprep.subr.bf16.mxu0 0
    %3155 = vmatpush2.bf16.msra.mxu0 0
    %3156 = vmatprep.subr.bf16.mxu0 0
    %3157 = vmatpush2.bf16.msra.mxu0 0
    %3158 = vmatprep.subr.bf16.mxu0 0
    %3159 = vmatpush2.bf16.msra.mxu0 0
    %3160 = vmatprep.subr.bf16.mxu0 0
    %3161 = vmatpush2.bf16.msra.mxu0 0
    %3162 = vmatprep.subr.bf16.mxu0 0
    %3163 = vmatpush2.bf16.msra.mxu0 0
    %3164 = vmatprep.subr.bf16.mxu0 0
    %3165 = vmatpush2.bf16.msra.mxu0 0
    %3166 = vmatprep.mubr.bf16.mxu0 0
    %3167 = vmatmul.mubr.bf16.gmra.mxu0 %v3034
    %v3168 = vpop.f32.mrf.mxu0
    %v3169 = vadd.f32 %v3127, %v3168
    %v3170 = vpop.f32.mrf.mxu0
    %v3171 = vadd.f32 %v3131, %v3170
    %v3172 = vpop.f32.mrf.mxu0
    %v3173 = vpop.f32.mrf.mxu0
    %3174 = vdwg.mxu0
    %v3175 = vmax.f32 %v3169, 0.0
    %v3176 = vmax.f32 %v3171, 0.0
    %v3177 = vpack.c.bf16 %v3175, %v3175
    %v3178 = vpack.c.bf16 %v3176, %v3176
    %v3181 = vunpack.c.l.b16 %v3177
    %v3182 = vunpack.c.l.b16 %v3178
    %v3183 = vpack.c.b16 %v3182, %v3181
    %v3184 = vrot.slane %v3183, 7
    %vm3186 = vcmask 1041409
    %vm3187 = vsmask.f32 1280
    %vm3188 = vmand %vm3186, %vm3187
    %vm3189 = vcmask 783365
    %vm3190 = vsmask.f32 5376
    %vm3191 = vmand %vm3189, %vm3190
    %vm3192 = vmor %vm3191, %vm3188
    %v3193 = vld [vmem:[#allocation3] sm:$0x22]
    %v3194 = vsel %vm3192, %v3184, %v3193
    %3195 = vst [vmem:[#allocation3] sm:$0x22] %v3194
    %s3196 = scalar_lea.vmem [#allocation15], 64
    %v3197 = vld [vmem:[%s3196] sm:$0xff]
    %v3198 = vld [vmem:[%s3196 + $0x8] sm:$0xff]
    %v3199 = vld [vmem:[%s3196 + $0x10] sm:$0xff]
    %v3200 = vld [vmem:[%s3196 + $0x18] sm:$0xff]
    %s3201 = scalar_lea.vmem [#allocation16], 2
    %v3202 = vld [vmem:[%s3201] ss:$8 sm:$0x3]
    %v3207 = vunpack.c.l.b16 %v3197
    %v3208 = vunpack.c.h.b16 %v3197
    %v3209 = vunpack.c.l.b16 %v3198
    %v3210 = vunpack.c.h.b16 %v3198
    %v3211 = vunpack.c.l.b16 %v3199
    %v3212 = vunpack.c.h.b16 %v3199
    %v3213 = vunpack.c.l.b16 %v3200
    %v3214 = vunpack.c.h.b16 %v3200
    %v3215 = vpack.c.b16 %v3209, %v3207
    %v3216 = vpack.c.b16 %v3210, %v3208
    %v3217 = vpack.c.b16 %v3213, %v3211
    %v3218 = vpack.c.b16 %v3214, %v3212
    %v3224 = vlaneseq
    %v3225 = vshrl.u32 %v3224, 7
    %v3226 = vsub.s32 0, %v3225
    %v3227 = vrot.slane %v3202, %v3226
    %v3228 = vlaneseq
    %v3229 = vshrl.u32 %v3228, 7
    %v3230 = vsub.s32 1, %v3229
    %v3231 = vrot.slane %v3202, %v3230
    %3234 = vmatprep.subr.bf16.mxu0 0
    %3235 = vmatpush1.bf16.msra.mxu0 0
    %3236 = vmatprep.subr.bf16.mxu0 0
    %3237 = vmatpush1.bf16.msra.mxu0 0
    %3238 = vmatprep.subr.bf16.mxu0 0
    %3239 = vmatpush1.bf16.msra.mxu0 0
    %3240 = vmatprep.subr.bf16.mxu0 0
    %3241 = vmatpush1.bf16.msra.mxu0 0
    %3242 = vmatprep.subr.bf16.mxu0 0
    %3243 = vmatpush1.bf16.msra.mxu0 0
    %3244 = vmatprep.subr.bf16.mxu0 0
    %3245 = vmatpush1.bf16.msra.mxu0 0
    %3246 = vmatprep.subr.bf16.mxu0 %v3218
    %3247 = vmatpush1.bf16.msra.mxu0 %v3217
    %3248 = vmatprep.subr.bf16.mxu0 %v3216
    %3249 = vmatpush1.bf16.msra.mxu0 %v3215
    %3250 = vmatprep.subr.bf16.mxu0 0
    %3251 = vmatpush2.bf16.msra.mxu0 0
    %3252 = vmatprep.subr.bf16.mxu0 0
    %3253 = vmatpush2.bf16.msra.mxu0 0
    %3254 = vmatprep.subr.bf16.mxu0 0
    %3255 = vmatpush2.bf16.msra.mxu0 0
    %3256 = vmatprep.subr.bf16.mxu0 0
    %3257 = vmatpush2.bf16.msra.mxu0 0
    %3258 = vmatprep.subr.bf16.mxu0 0
    %3259 = vmatpush2.bf16.msra.mxu0 0
    %3260 = vmatprep.subr.bf16.mxu0 0
    %3261 = vmatpush2.bf16.msra.mxu0 0
    %3262 = vmatprep.subr.bf16.mxu0 0
    %3263 = vmatpush2.bf16.msra.mxu0 0
    %3264 = vmatprep.subr.bf16.mxu0 0
    %3265 = vmatpush2.bf16.msra.mxu0 0
    %3266 = vmatprep.mubr.bf16.mxu0 0
    %3267 = vmatmul.mubr.bf16.gmra.mxu0 %v3034
    %v3268 = vpop.f32.mrf.mxu0
    %v3269 = vadd.f32 %v3227, %v3268
    %v3270 = vpop.f32.mrf.mxu0
    %v3271 = vadd.f32 %v3231, %v3270
    %v3272 = vpop.f32.mrf.mxu0
    %v3273 = vpop.f32.mrf.mxu0
    %3274 = vdwg.mxu0
    %v3275 = vmax.f32 %v3269, 0.0
    %v3276 = vmax.f32 %v3271, 0.0
    %v3277 = vpack.c.bf16 %v3275, %v3275
    %v3278 = vpack.c.bf16 %v3276, %v3276
    %v3281 = vunpack.c.l.b16 %v3277
    %v3282 = vunpack.c.l.b16 %v3278
    %v3283 = vpack.c.b16 %v3282, %v3281
    %v3285 = vshll.u32 %v3283, 16
    %v3287 = vrot.slane %v3285, 7
    %vm3289 = vsmask.f32 7942
    %vm3290 = vmand %vm3186, %vm3289
    %vm3291 = vsmask.f32 7958
    %vm3292 = vmand %vm3189, %vm3291
    %vm3293 = vmor %vm3292, %vm3290
    %v3294 = vld [vmem:[#allocation3] sm:$0x22]
    %v3295 = vsel %vm3293, %v3287, %v3294
    %3296 = vst [vmem:[#allocation3] sm:$0x22] %v3295
    %s3297 = scalar_lea.vmem [#allocation15], 96
    %v3298 = vld [vmem:[%s3297] sm:$0xff]
    %v3299 = vld [vmem:[%s3297 + $0x8] sm:$0xff]
    %v3300 = vld [vmem:[%s3297 + $0x10] sm:$0xff]
    %v3301 = vld [vmem:[%s3297 + $0x18] sm:$0xff]
    %s3302 = scalar_lea.vmem [#allocation16], 3
    %v3303 = vld [vmem:[%s3302] ss:$8 sm:$0x3]
    %v3308 = vunpack.c.l.b16 %v3298
    %v3309 = vunpack.c.h.b16 %v3298
    %v3310 = vunpack.c.l.b16 %v3299
    %v3311 = vunpack.c.h.b16 %v3299
    %v3312 = vunpack.c.l.b16 %v3300
    %v3313 = vunpack.c.h.b16 %v3300
    %v3314 = vunpack.c.l.b16 %v3301
    %v3315 = vunpack.c.h.b16 %v3301
    %v3316 = vpack.c.b16 %v3310, %v3308
    %v3317 = vpack.c.b16 %v3311, %v3309
    %v3318 = vpack.c.b16 %v3314, %v3312
    %v3319 = vpack.c.b16 %v3315, %v3313
    %v3325 = vlaneseq
    %v3326 = vshrl.u32 %v3325, 7
    %v3327 = vsub.s32 0, %v3326
    %v3328 = vrot.slane %v3303, %v3327
    %v3329 = vlaneseq
    %v3330 = vshrl.u32 %v3329, 7
    %v3331 = vsub.s32 1, %v3330
    %v3332 = vrot.slane %v3303, %v3331
    %3335 = vmatprep.subr.bf16.mxu0 0
    %3336 = vmatpush1.bf16.msra.mxu0 0
    %3337 = vmatprep.subr.bf16.mxu0 0
    %3338 = vmatpush1.bf16.msra.mxu0 0
    %3339 = vmatprep.subr.bf16.mxu0 0
    %3340 = vmatpush1.bf16.msra.mxu0 0
    %3341 = vmatprep.subr.bf16.mxu0 0
    %3342 = vmatpush1.bf16.msra.mxu0 0
    %3343 = vmatprep.subr.bf16.mxu0 0
    %3344 = vmatpush1.bf16.msra.mxu0 0
    %3345 = vmatprep.subr.bf16.mxu0 0
    %3346 = vmatpush1.bf16.msra.mxu0 0
    %3347 = vmatprep.subr.bf16.mxu0 %v3319
    %3348 = vmatpush1.bf16.msra.mxu0 %v3318
    %3349 = vmatprep.subr.bf16.mxu0 %v3317
    %3350 = vmatpush1.bf16.msra.mxu0 %v3316
    %3351 = vmatprep.subr.bf16.mxu0 0
    %3352 = vmatpush2.bf16.msra.mxu0 0
    %3353 = vmatprep.subr.bf16.mxu0 0
    %3354 = vmatpush2.bf16.msra.mxu0 0
    %3355 = vmatprep.subr.bf16.mxu0 0
    %3356 = vmatpush2.bf16.msra.mxu0 0
    %3357 = vmatprep.subr.bf16.mxu0 0
    %3358 = vmatpush2.bf16.msra.mxu0 0
    %3359 = vmatprep.subr.bf16.mxu0 0
    %3360 = vmatpush2.bf16.msra.mxu0 0
    %3361 = vmatprep.subr.bf16.mxu0 0
    %3362 = vmatpush2.bf16.msra.mxu0 0
    %3363 = vmatprep.subr.bf16.mxu0 0
    %3364 = vmatpush2.bf16.msra.mxu0 0
    %3365 = vmatprep.subr.bf16.mxu0 0
    %3366 = vmatpush2.bf16.msra.mxu0 0
    %3367 = vmatprep.mubr.bf16.mxu0 0
    %3368 = vmatmul.mubr.bf16.gmra.mxu0 %v3034
    %v3369 = vpop.f32.mrf.mxu0
    %v3370 = vadd.f32 %v3328, %v3369
    %v3371 = vpop.f32.mrf.mxu0
    %v3372 = vadd.f32 %v3332, %v3371
    %v3373 = vpop.f32.mrf.mxu0
    %v3374 = vpop.f32.mrf.mxu0
    %3375 = vdwg.mxu0
    %v3376 = vmax.f32 %v3370, 0.0
    %v3377 = vmax.f32 %v3372, 0.0
    %v3378 = vpack.c.bf16 %v3376, %v3376
    %v3379 = vpack.c.bf16 %v3377, %v3377
    %v3382 = vunpack.c.l.b16 %v3378
    %v3383 = vunpack.c.l.b16 %v3379
    %v3384 = vpack.c.b16 %v3383, %v3382
    %v3385 = vrot.slane %v3384, 6
    %vm3387 = vcmask 1042434
    %vm3388 = vsmask.f32 2304
    %vm3389 = vmand %vm3387, %vm3388
    %vm3390 = vcmask 784390
    %vm3391 = vsmask.f32 6400
    %vm3392 = vmand %vm3390, %vm3391
    %vm3393 = vmor %vm3392, %vm3389
    %v3394 = vld [vmem:[#allocation3] sm:$0x44]
    %v3395 = vsel %vm3393, %v3385, %v3394
    %3396 = vst [vmem:[#allocation3] sm:$0x44] %v3395
    %s3397 = scalar_lea.vmem [#allocation15], 128
    %v3398 = vld [vmem:[%s3397] sm:$0xff]
    %v3399 = vld [vmem:[%s3397 + $0x8] sm:$0xff]
    %v3400 = vld [vmem:[%s3397 + $0x10] sm:$0xff]
    %v3401 = vld [vmem:[%s3397 + $0x18] sm:$0xff]
    %s3402 = scalar_lea.vmem [#allocation16], 4
    %v3403 = vld [vmem:[%s3402] ss:$8 sm:$0x3]
    %v3408 = vunpack.c.l.b16 %v3398
    %v3409 = vunpack.c.h.b16 %v3398
    %v3410 = vunpack.c.l.b16 %v3399
    %v3411 = vunpack.c.h.b16 %v3399
    %v3412 = vunpack.c.l.b16 %v3400
    %v3413 = vunpack.c.h.b16 %v3400
    %v3414 = vunpack.c.l.b16 %v3401
    %v3415 = vunpack.c.h.b16 %v3401
    %v3416 = vpack.c.b16 %v3410, %v3408
    %v3417 = vpack.c.b16 %v3411, %v3409
    %v3418 = vpack.c.b16 %v3414, %v3412
    %v3419 = vpack.c.b16 %v3415, %v3413
    %v3425 = vlaneseq
    %v3426 = vshrl.u32 %v3425, 7
    %v3427 = vsub.s32 0, %v3426
    %v3428 = vrot.slane %v3403, %v3427
    %v3429 = vlaneseq
    %v3430 = vshrl.u32 %v3429, 7
    %v3431 = vsub.s32 1, %v3430
    %v3432 = vrot.slane %v3403, %v3431
    %3435 = vmatprep.subr.bf16.mxu0 0
    %3436 = vmatpush1.bf16.msra.mxu0 0
    %3437 = vmatprep.subr.bf16.mxu0 0
    %3438 = vmatpush1.bf16.msra.mxu0 0
    %3439 = vmatprep.subr.bf16.mxu0 0
    %3440 = vmatpush1.bf16.msra.mxu0 0
    %3441 = vmatprep.subr.bf16.mxu0 0
    %3442 = vmatpush1.bf16.msra.mxu0 0
    %3443 = vmatprep.subr.bf16.mxu0 0
    %3444 = vmatpush1.bf16.msra.mxu0 0
    %3445 = vmatprep.subr.bf16.mxu0 0
    %3446 = vmatpush1.bf16.msra.mxu0 0
    %3447 = vmatprep.subr.bf16.mxu0 %v3419
    %3448 = vmatpush1.bf16.msra.mxu0 %v3418
    %3449 = vmatprep.subr.bf16.mxu0 %v3417
    %3450 = vmatpush1.bf16.msra.mxu0 %v3416
    %3451 = vmatprep.subr.bf16.mxu0 0
    %3452 = vmatpush2.bf16.msra.mxu0 0
    %3453 = vmatprep.subr.bf16.mxu0 0
    %3454 = vmatpush2.bf16.msra.mxu0 0
    %3455 = vmatprep.subr.bf16.mxu0 0
    %3456 = vmatpush2.bf16.msra.mxu0 0
    %3457 = vmatprep.subr.bf16.mxu0 0
    %3458 = vmatpush2.bf16.msra.mxu0 0
    %3459 = vmatprep.subr.bf16.mxu0 0
    %3460 = vmatpush2.bf16.msra.mxu0 0
    %3461 = vmatprep.subr.bf16.mxu0 0
    %3462 = vmatpush2.bf16.msra.mxu0 0
    %3463 = vmatprep.subr.bf16.mxu0 0
    %3464 = vmatpush2.bf16.msra.mxu0 0
    %3465 = vmatprep.subr.bf16.mxu0 0
    %3466 = vmatpush2.bf16.msra.mxu0 0
    %3467 = vmatprep.mubr.bf16.mxu0 0
    %3468 = vmatmul.mubr.bf16.gmra.mxu0 %v3034
    %v3469 = vpop.f32.mrf.mxu0
    %v3470 = vadd.f32 %v3428, %v3469
    %v3471 = vpop.f32.mrf.mxu0
    %v3472 = vadd.f32 %v3432, %v3471
    %v3473 = vpop.f32.mrf.mxu0
    %v3474 = vpop.f32.mrf.mxu0
    %3475 = vdwg.mxu0
    %v3476 = vmax.f32 %v3470, 0.0
    %v3477 = vmax.f32 %v3472, 0.0
    %v3478 = vpack.c.bf16 %v3476, %v3476
    %v3479 = vpack.c.bf16 %v3477, %v3477
    %v3482 = vunpack.c.l.b16 %v3478
    %v3483 = vunpack.c.l.b16 %v3479
    %v3484 = vpack.c.b16 %v3483, %v3482
    %v3486 = vshll.u32 %v3484, 16
    %v3488 = vrot.slane %v3486, 6
    %vm3490 = vsmask.f32 7946
    %vm3491 = vmand %vm3387, %vm3490
    %vm3492 = vsmask.f32 7962
    %vm3493 = vmand %vm3390, %vm3492
    %vm3494 = vmor %vm3493, %vm3491
    %v3495 = vld [vmem:[#allocation3] sm:$0x44]
    %v3496 = vsel %vm3494, %v3488, %v3495
    %3497 = vst [vmem:[#allocation3] sm:$0x44] %v3496
    %s3498 = scalar_lea.vmem [#allocation15], 160
    %v3499 = vld [vmem:[%s3498] sm:$0xff]
    %v3500 = vld [vmem:[%s3498 + $0x8] sm:$0xff]
    %v3501 = vld [vmem:[%s3498 + $0x10] sm:$0xff]
    %v3502 = vld [vmem:[%s3498 + $0x18] sm:$0xff]
    %s3503 = scalar_lea.vmem [#allocation16], 5
    %v3504 = vld [vmem:[%s3503] ss:$8 sm:$0x3]
    %v3509 = vunpack.c.l.b16 %v3499
    %v3510 = vunpack.c.h.b16 %v3499
    %v3511 = vunpack.c.l.b16 %v3500
    %v3512 = vunpack.c.h.b16 %v3500
    %v3513 = vunpack.c.l.b16 %v3501
    %v3514 = vunpack.c.h.b16 %v3501
    %v3515 = vunpack.c.l.b16 %v3502
    %v3516 = vunpack.c.h.b16 %v3502
    %v3517 = vpack.c.b16 %v3511, %v3509
    %v3518 = vpack.c.b16 %v3512, %v3510
    %v3519 = vpack.c.b16 %v3515, %v3513
    %v3520 = vpack.c.b16 %v3516, %v3514
    %v3526 = vlaneseq
    %v3527 = vshrl.u32 %v3526, 7
    %v3528 = vsub.s32 0, %v3527
    %v3529 = vrot.slane %v3504, %v3528
    %v3530 = vlaneseq
    %v3531 = vshrl.u32 %v3530, 7
    %v3532 = vsub.s32 1, %v3531
    %v3533 = vrot.slane %v3504, %v3532
    %3536 = vmatprep.subr.bf16.mxu0 0
    %3537 = vmatpush1.bf16.msra.mxu0 0
    %3538 = vmatprep.subr.bf16.mxu0 0
    %3539 = vmatpush1.bf16.msra.mxu0 0
    %3540 = vmatprep.subr.bf16.mxu0 0
    %3541 = vmatpush1.bf16.msra.mxu0 0
    %3542 = vmatprep.subr.bf16.mxu0 0
    %3543 = vmatpush1.bf16.msra.mxu0 0
    %3544 = vmatprep.subr.bf16.mxu0 0
    %3545 = vmatpush1.bf16.msra.mxu0 0
    %3546 = vmatprep.subr.bf16.mxu0 0
    %3547 = vmatpush1.bf16.msra.mxu0 0
    %3548 = vmatprep.subr.bf16.mxu0 %v3520
    %3549 = vmatpush1.bf16.msra.mxu0 %v3519
    %3550 = vmatprep.subr.bf16.mxu0 %v3518
    %3551 = vmatpush1.bf16.msra.mxu0 %v3517
    %3552 = vmatprep.subr.bf16.mxu0 0
    %3553 = vmatpush2.bf16.msra.mxu0 0
    %3554 = vmatprep.subr.bf16.mxu0 0
    %3555 = vmatpush2.bf16.msra.mxu0 0
    %3556 = vmatprep.subr.bf16.mxu0 0
    %3557 = vmatpush2.bf16.msra.mxu0 0
    %3558 = vmatprep.subr.bf16.mxu0 0
    %3559 = vmatpush2.bf16.msra.mxu0 0
    %3560 = vmatprep.subr.bf16.mxu0 0
    %3561 = vmatpush2.bf16.msra.mxu0 0
    %3562 = vmatprep.subr.bf16.mxu0 0
    %3563 = vmatpush2.bf16.msra.mxu0 0
    %3564 = vmatprep.subr.bf16.mxu0 0
    %3565 = vmatpush2.bf16.msra.mxu0 0
    %3566 = vmatprep.subr.bf16.mxu0 0
    %3567 = vmatpush2.bf16.msra.mxu0 0
    %3568 = vmatprep.mubr.bf16.mxu0 0
    %3569 = vmatmul.mubr.bf16.gmra.mxu0 %v3034
    %v3570 = vpop.f32.mrf.mxu0
    %v3571 = vadd.f32 %v3529, %v3570
    %v3572 = vpop.f32.mrf.mxu0
    %v3573 = vadd.f32 %v3533, %v3572
    %v3574 = vpop.f32.mrf.mxu0
    %v3575 = vpop.f32.mrf.mxu0
    %3576 = vdwg.mxu0
    %v3577 = vmax.f32 %v3571, 0.0
    %v3578 = vmax.f32 %v3573, 0.0
    %v3579 = vpack.c.bf16 %v3577, %v3577
    %v3580 = vpack.c.bf16 %v3578, %v3578
    %v3583 = vunpack.c.l.b16 %v3579
    %v3584 = vunpack.c.l.b16 %v3580
    %v3585 = vpack.c.b16 %v3584, %v3583
    %v3586 = vrot.slane %v3585, 5
    %vm3588 = vcmask 1043459
    %vm3589 = vmand %vm3588, %vm517
    %vm3590 = vcmask 785415
    %vm3591 = vmand %vm3590, %vm520
    %vm3592 = vmor %vm3591, %vm3589
    %v3593 = vld [vmem:[#allocation3] sm:$0x88]
    %v3594 = vsel %vm3592, %v3586, %v3593
    %3595 = vst [vmem:[#allocation3] sm:$0x88] %v3594
    %s3596 = scalar_lea.vmem [#allocation15], 192
    %v3597 = vld [vmem:[%s3596] sm:$0xff]
    %v3598 = vld [vmem:[%s3596 + $0x8] sm:$0xff]
    %v3599 = vld [vmem:[%s3596 + $0x10] sm:$0xff]
    %v3600 = vld [vmem:[%s3596 + $0x18] sm:$0xff]
    %s3601 = scalar_lea.vmem [#allocation16], 6
    %v3602 = vld [vmem:[%s3601] ss:$8 sm:$0x3]
    %v3607 = vunpack.c.l.b16 %v3597
    %v3608 = vunpack.c.h.b16 %v3597
    %v3609 = vunpack.c.l.b16 %v3598
    %v3610 = vunpack.c.h.b16 %v3598
    %v3611 = vunpack.c.l.b16 %v3599
    %v3612 = vunpack.c.h.b16 %v3599
    %v3613 = vunpack.c.l.b16 %v3600
    %v3614 = vunpack.c.h.b16 %v3600
    %v3615 = vpack.c.b16 %v3609, %v3607
    %v3616 = vpack.c.b16 %v3610, %v3608
    %v3617 = vpack.c.b16 %v3613, %v3611
    %v3618 = vpack.c.b16 %v3614, %v3612
    %v3624 = vlaneseq
    %v3625 = vshrl.u32 %v3624, 7
    %v3626 = vsub.s32 0, %v3625
    %v3627 = vrot.slane %v3602, %v3626
    %v3628 = vlaneseq
    %v3629 = vshrl.u32 %v3628, 7
    %v3630 = vsub.s32 1, %v3629
    %v3631 = vrot.slane %v3602, %v3630
    %3634 = vmatprep.subr.bf16.mxu0 0
    %3635 = vmatpush1.bf16.msra.mxu0 0
    %3636 = vmatprep.subr.bf16.mxu0 0
    %3637 = vmatpush1.bf16.msra.mxu0 0
    %3638 = vmatprep.subr.bf16.mxu0 0
    %3639 = vmatpush1.bf16.msra.mxu0 0
    %3640 = vmatprep.subr.bf16.mxu0 0
    %3641 = vmatpush1.bf16.msra.mxu0 0
    %3642 = vmatprep.subr.bf16.mxu0 0
    %3643 = vmatpush1.bf16.msra.mxu0 0
    %3644 = vmatprep.subr.bf16.mxu0 0
    %3645 = vmatpush1.bf16.msra.mxu0 0
    %3646 = vmatprep.subr.bf16.mxu0 %v3618
    %3647 = vmatpush1.bf16.msra.mxu0 %v3617
    %3648 = vmatprep.subr.bf16.mxu0 %v3616
    %3649 = vmatpush1.bf16.msra.mxu0 %v3615
    %3650 = vmatprep.subr.bf16.mxu0 0
    %3651 = vmatpush2.bf16.msra.mxu0 0
    %3652 = vmatprep.subr.bf16.mxu0 0
    %3653 = vmatpush2.bf16.msra.mxu0 0
    %3654 = vmatprep.subr.bf16.mxu0 0
    %3655 = vmatpush2.bf16.msra.mxu0 0
    %3656 = vmatprep.subr.bf16.mxu0 0
    %3657 = vmatpush2.bf16.msra.mxu0 0
    %3658 = vmatprep.subr.bf16.mxu0 0
    %3659 = vmatpush2.bf16.msra.mxu0 0
    %3660 = vmatprep.subr.bf16.mxu0 0
    %3661 = vmatpush2.bf16.msra.mxu0 0
    %3662 = vmatprep.subr.bf16.mxu0 0
    %3663 = vmatpush2.bf16.msra.mxu0 0
    %3664 = vmatprep.subr.bf16.mxu0 0
    %3665 = vmatpush2.bf16.msra.mxu0 0
    %3666 = vmatprep.mubr.bf16.mxu0 0
    %3667 = vmatmul.mubr.bf16.gmra.mxu0 %v3034
    %v3668 = vpop.f32.mrf.mxu0
    %v3669 = vadd.f32 %v3627, %v3668
    %v3670 = vpop.f32.mrf.mxu0
    %v3671 = vadd.f32 %v3631, %v3670
    %v3672 = vpop.f32.mrf.mxu0
    %v3673 = vpop.f32.mrf.mxu0
    %3674 = vdwg.mxu0
    %v3675 = vmax.f32 %v3669, 0.0
    %v3676 = vmax.f32 %v3671, 0.0
    %v3677 = vpack.c.bf16 %v3675, %v3675
    %v3678 = vpack.c.bf16 %v3676, %v3676
    %v3681 = vunpack.c.l.b16 %v3677
    %v3682 = vunpack.c.l.b16 %v3678
    %v3683 = vpack.c.b16 %v3682, %v3681
    %v3685 = vshll.u32 %v3683, 16
    %v3687 = vrot.slane %v3685, 5
    %vm3689 = vsmask.f32 7950
    %vm3690 = vmand %vm3588, %vm3689
    %vm3691 = vsmask.f32 7966
    %vm3692 = vmand %vm3590, %vm3691
    %vm3693 = vmor %vm3692, %vm3690
    %v3694 = vld [vmem:[#allocation3] sm:$0x88]
    %v3695 = vsel %vm3693, %v3687, %v3694
    %3696 = vst [vmem:[#allocation3] sm:$0x88] %v3695
    %v3697 = vld [vmem:[#allocation3] sm:$0xff]
    %v3698 = vld [vmem:[%s13] sm:$0xff]
    %v3699 = vld [vmem:[%s13 + $0x8] sm:$0xff]
    %v3700 = vld [vmem:[%s13 + $0x10] sm:$0xff]
    %v3701 = vld [vmem:[%s13 + $0x18] sm:$0xff]
    %v3702 = vld [vmem:[%s13 + $0x20] sm:$0xff]
    %v3703 = vld [vmem:[%s13 + $0x28] sm:$0xff]
    %v3704 = vld [vmem:[%s13 + $0x30] sm:$0xff]
    %v3705 = vld [vmem:[%s13 + $0x38] sm:$0xff]
    %v3706 = vld [vmem:[%s13 + $0x40] sm:$0xff]
    %v3707 = vld [vmem:[%s13 + $0x48] sm:$0xff]
    %v3708 = vld [vmem:[%s13 + $0x50] sm:$0xff]
    %v3709 = vld [vmem:[%s13 + $0x58] sm:$0xff]
    %v3710 = vld [vmem:[%s13 + $0x60] sm:$0xff]
    %v3711 = vld [vmem:[%s13 + $0x68] sm:$0xff]
    %v3712 = vld [vmem:[%s13 + $0x70] sm:$0xff]
    %v3713 = vld [vmem:[%s13 + $0x78] sm:$0xff]
    %v3714 = vld [vmem:[%s13 + $0x80] sm:$0xff]
    %v3715 = vld [vmem:[%s13 + $0x88] sm:$0xff]
    %v3716 = vld [vmem:[%s13 + $0x90] sm:$0xff]
    %v3717 = vld [vmem:[%s13 + $0x98] sm:$0xff]
    %v3718 = vld [vmem:[%s13 + $0xa0] sm:$0xff]
    %v3719 = vld [vmem:[%s13 + $0xa8] sm:$0xff]
    %v3720 = vld [vmem:[%s13 + $0xb0] sm:$0xff]
    %v3721 = vld [vmem:[%s13 + $0xb8] sm:$0xff]
    %v3722 = vld [vmem:[%s13 + $0xc0] sm:$0xff]
    %v3723 = vld [vmem:[%s13 + $0xc8] sm:$0xff]
    %v3724 = vld [vmem:[%s13 + $0xd0] sm:$0xff]
    %v3725 = vld [vmem:[%s13 + $0xd8] sm:$0xff]
    %s3726 = scalar_lea.vmem %s13, 224
    %v3727 = vld [vmem:[%s3726] sm:$0xff]
    %v3728 = vld [vmem:[%s3726 + $0x8] sm:$0xff]
    %v3729 = vld [vmem:[%s3726 + $0x10] sm:$0xff]
    %v3730 = vld [vmem:[%s3726 + $0x18] sm:$0xff]
    %v3731 = vld [vmem:[%s3726 + $0x20] sm:$0xff]
    %v3732 = vld [vmem:[%s3726 + $0x28] sm:$0xff]
    %v3733 = vld [vmem:[%s3726 + $0x30] sm:$0xff]
    %v3734 = vld [vmem:[%s3726 + $0x38] sm:$0xff]
    %v3735 = vld [vmem:[%s3726 + $0x40] sm:$0xff]
    %v3736 = vld [vmem:[%s3726 + $0x48] sm:$0xff]
    %v3737 = vld [vmem:[%s3726 + $0x50] sm:$0xff]
    %v3738 = vld [vmem:[%s3726 + $0x58] sm:$0xff]
    %v3739 = vld [vmem:[%s3726 + $0x60] sm:$0xff]
    %v3740 = vld [vmem:[%s3726 + $0x68] sm:$0xff]
    %v3741 = vld [vmem:[%s3726 + $0x70] sm:$0xff]
    %v3742 = vld [vmem:[%s3726 + $0x78] sm:$0xff]
    %v3743 = vld [vmem:[%s3726 + $0x80] sm:$0xff]
    %v3744 = vld [vmem:[%s3726 + $0x88] sm:$0xff]
    %v3745 = vld [vmem:[%s3726 + $0x90] sm:$0xff]
    %v3746 = vld [vmem:[%s3726 + $0x98] sm:$0xff]
    %v3747 = vld [vmem:[%s3726 + $0xa0] sm:$0xff]
    %v3748 = vld [vmem:[%s3726 + $0xa8] sm:$0xff]
    %v3749 = vld [vmem:[%s3726 + $0xb0] sm:$0xff]
    %v3750 = vld [vmem:[%s3726 + $0xb8] sm:$0xff]
    %v3751 = vld [vmem:[%s3726 + $0xc0] sm:$0xff]
    %v3752 = vld [vmem:[%s3726 + $0xc8] sm:$0xff]
    %v3753 = vld [vmem:[%s3726 + $0xd0] sm:$0xff]
    %v3754 = vld [vmem:[%s3726 + $0xd8] sm:$0xff]
    %v3756 = vunpack.c.l.b16 %v3697
    %v3757 = vunpack.c.h.b16 %v3697
    %v3758 = vpack.c.b16 %v3756, %v3756
    %v3759 = vpack.c.b16 %v3757, %v3757
    %v3761 = vshrl.u32 %v3758, 16
    %v3763 = vshll.u32 %v3758, 16
    %v3765 = vrot.slane %v3763, 1
    %v3766 = vor.u32 %v3761, %v3765
    %v3768 = vshrl.u32 %v3759, 16
    %v3770 = vshll.u32 %v3759, 16
    %v3772 = vrot.slane %v3770, 1
    %v3773 = vor.u32 %v3768, %v3772
    %v3803 = vunpack.c.l.b16 %v3727
    %v3804 = vunpack.c.h.b16 %v3727
    %v3805 = vunpack.c.l.b16 %v3728
    %v3806 = vunpack.c.h.b16 %v3728
    %v3807 = vunpack.c.l.b16 %v3729
    %v3808 = vunpack.c.h.b16 %v3729
    %v3809 = vunpack.c.l.b16 %v3730
    %v3810 = vunpack.c.h.b16 %v3730
    %v3811 = vunpack.c.l.b16 %v3731
    %v3812 = vunpack.c.h.b16 %v3731
    %v3813 = vunpack.c.l.b16 %v3732
    %v3814 = vunpack.c.h.b16 %v3732
    %v3815 = vunpack.c.l.b16 %v3733
    %v3816 = vunpack.c.h.b16 %v3733
    %v3817 = vunpack.c.l.b16 %v3734
    %v3818 = vunpack.c.h.b16 %v3734
    %v3819 = vunpack.c.l.b16 %v3735
    %v3820 = vunpack.c.h.b16 %v3735
    %v3821 = vunpack.c.l.b16 %v3736
    %v3822 = vunpack.c.h.b16 %v3736
    %v3823 = vunpack.c.l.b16 %v3737
    %v3824 = vunpack.c.h.b16 %v3737
    %v3825 = vunpack.c.l.b16 %v3738
    %v3826 = vunpack.c.h.b16 %v3738
    %v3827 = vunpack.c.l.b16 %v3739
    %v3828 = vunpack.c.h.b16 %v3739
    %v3829 = vunpack.c.l.b16 %v3740
    %v3830 = vunpack.c.h.b16 %v3740
    %v3831 = vunpack.c.l.b16 %v3741
    %v3832 = vunpack.c.h.b16 %v3741
    %v3833 = vunpack.c.l.b16 %v3742
    %v3834 = vunpack.c.h.b16 %v3742
    %v3835 = vunpack.c.l.b16 %v3743
    %v3836 = vunpack.c.h.b16 %v3743
    %v3837 = vunpack.c.l.b16 %v3744
    %v3838 = vunpack.c.h.b16 %v3744
    %v3839 = vunpack.c.l.b16 %v3745
    %v3840 = vunpack.c.h.b16 %v3745
    %v3841 = vunpack.c.l.b16 %v3746
    %v3842 = vunpack.c.h.b16 %v3746
    %v3843 = vunpack.c.l.b16 %v3747
    %v3844 = vunpack.c.h.b16 %v3747
    %v3845 = vunpack.c.l.b16 %v3748
    %v3846 = vunpack.c.h.b16 %v3748
    %v3847 = vunpack.c.l.b16 %v3749
    %v3848 = vunpack.c.h.b16 %v3749
    %v3849 = vunpack.c.l.b16 %v3750
    %v3850 = vunpack.c.h.b16 %v3750
    %v3851 = vunpack.c.l.b16 %v3751
    %v3852 = vunpack.c.h.b16 %v3751
    %v3853 = vunpack.c.l.b16 %v3752
    %v3854 = vunpack.c.h.b16 %v3752
    %v3855 = vunpack.c.l.b16 %v3753
    %v3856 = vunpack.c.h.b16 %v3753
    %v3857 = vunpack.c.l.b16 %v3754
    %v3858 = vunpack.c.h.b16 %v3754
    %v3859 = vpack.c.b16 %v3805, %v3803
    %v3860 = vpack.c.b16 %v3806, %v3804
    %v3861 = vpack.c.b16 %v3809, %v3807
    %v3862 = vpack.c.b16 %v3810, %v3808
    %v3863 = vpack.c.b16 %v3813, %v3811
    %v3864 = vpack.c.b16 %v3814, %v3812
    %v3865 = vpack.c.b16 %v3817, %v3815
    %v3866 = vpack.c.b16 %v3818, %v3816
    %v3867 = vpack.c.b16 %v3821, %v3819
    %v3868 = vpack.c.b16 %v3822, %v3820
    %v3869 = vpack.c.b16 %v3825, %v3823
    %v3870 = vpack.c.b16 %v3826, %v3824
    %v3871 = vpack.c.b16 %v3829, %v3827
    %v3872 = vpack.c.b16 %v3830, %v3828
    %v3873 = vpack.c.b16 %v3833, %v3831
    %v3874 = vpack.c.b16 %v3834, %v3832
    %v3875 = vpack.c.b16 %v3837, %v3835
    %v3876 = vpack.c.b16 %v3838, %v3836
    %v3877 = vpack.c.b16 %v3841, %v3839
    %v3878 = vpack.c.b16 %v3842, %v3840
    %v3879 = vpack.c.b16 %v3845, %v3843
    %v3880 = vpack.c.b16 %v3846, %v3844
    %v3881 = vpack.c.b16 %v3849, %v3847
    %v3882 = vpack.c.b16 %v3850, %v3848
    %v3883 = vpack.c.b16 %v3853, %v3851
    %v3884 = vpack.c.b16 %v3854, %v3852
    %v3885 = vpack.c.b16 %v3857, %v3855
    %v3886 = vpack.c.b16 %v3858, %v3856
    %v3916 = vsel %vm1061, %v3773, 0
    %3918 = vmatprep.subr.bf16.mxu0 %v3874
    %3919 = vmatpush1.bf16.msra.mxu0 %v3873
    %3920 = vmatprep.subr.bf16.mxu0 %v3872
    %3921 = vmatpush1.bf16.msra.mxu0 %v3871
    %3922 = vmatprep.subr.bf16.mxu0 %v3870
    %3923 = vmatpush1.bf16.msra.mxu0 %v3869
    %3924 = vmatprep.subr.bf16.mxu0 %v3868
    %3925 = vmatpush1.bf16.msra.mxu0 %v3867
    %3926 = vmatprep.subr.bf16.mxu0 %v3866
    %3927 = vmatpush1.bf16.msra.mxu0 %v3865
    %3928 = vmatprep.subr.bf16.mxu0 %v3864
    %3929 = vmatpush1.bf16.msra.mxu0 %v3863
    %3930 = vmatprep.subr.bf16.mxu0 %v3862
    %3931 = vmatpush1.bf16.msra.mxu0 %v3861
    %3932 = vmatprep.subr.bf16.mxu0 %v3860
    %3933 = vmatpush1.bf16.msra.mxu0 %v3859
    %3934 = vmatprep.subr.bf16.mxu0 0
    %3935 = vmatpush2.bf16.msra.mxu0 0
    %3936 = vmatprep.subr.bf16.mxu0 0
    %3937 = vmatpush2.bf16.msra.mxu0 0
    %3938 = vmatprep.subr.bf16.mxu0 %v3886
    %3939 = vmatpush2.bf16.msra.mxu0 %v3885
    %3940 = vmatprep.subr.bf16.mxu0 %v3884
    %3941 = vmatpush2.bf16.msra.mxu0 %v3883
    %3942 = vmatprep.subr.bf16.mxu0 %v3882
    %3943 = vmatpush2.bf16.msra.mxu0 %v3881
    %3944 = vmatprep.subr.bf16.mxu0 %v3880
    %3945 = vmatpush2.bf16.msra.mxu0 %v3879
    %3946 = vmatprep.subr.bf16.mxu0 %v3878
    %3947 = vmatpush2.bf16.msra.mxu0 %v3877
    %3948 = vmatprep.subr.bf16.mxu0 %v3876
    %3949 = vmatpush2.bf16.msra.mxu0 %v3875
    %3950 = vmatprep.mubr.bf16.mxu0 %v3916
    %3951 = vmatmul.mubr.bf16.gmra.mxu0 %v3766
    %v3952 = vpop.f32.mrf.mxu0
    %v3953 = vadd.f32 0.0, %v3952
    %v3954 = vpop.f32.mrf.mxu0
    %v3955 = vadd.f32 0.0, %v3954
    %v3956 = vpop.f32.mrf.mxu0
    %v3957 = vpop.f32.mrf.mxu0
    %3958 = vdwg.mxu0
    %v3988 = vunpack.c.l.b16 %v3698
    %v3989 = vunpack.c.h.b16 %v3698
    %v3990 = vunpack.c.l.b16 %v3699
    %v3991 = vunpack.c.h.b16 %v3699
    %v3992 = vunpack.c.l.b16 %v3700
    %v3993 = vunpack.c.h.b16 %v3700
    %v3994 = vunpack.c.l.b16 %v3701
    %v3995 = vunpack.c.h.b16 %v3701
    %v3996 = vunpack.c.l.b16 %v3702
    %v3997 = vunpack.c.h.b16 %v3702
    %v3998 = vunpack.c.l.b16 %v3703
    %v3999 = vunpack.c.h.b16 %v3703
    %v4000 = vunpack.c.l.b16 %v3704
    %v4001 = vunpack.c.h.b16 %v3704
    %v4002 = vunpack.c.l.b16 %v3705
    %v4003 = vunpack.c.h.b16 %v3705
    %v4004 = vunpack.c.l.b16 %v3706
    %v4005 = vunpack.c.h.b16 %v3706
    %v4006 = vunpack.c.l.b16 %v3707
    %v4007 = vunpack.c.h.b16 %v3707
    %v4008 = vunpack.c.l.b16 %v3708
    %v4009 = vunpack.c.h.b16 %v3708
    %v4010 = vunpack.c.l.b16 %v3709
    %v4011 = vunpack.c.h.b16 %v3709
    %v4012 = vunpack.c.l.b16 %v3710
    %v4013 = vunpack.c.h.b16 %v3710
    %v4014 = vunpack.c.l.b16 %v3711
    %v4015 = vunpack.c.h.b16 %v3711
    %v4016 = vunpack.c.l.b16 %v3712
    %v4017 = vunpack.c.h.b16 %v3712
    %v4018 = vunpack.c.l.b16 %v3713
    %v4019 = vunpack.c.h.b16 %v3713
    %v4020 = vunpack.c.l.b16 %v3714
    %v4021 = vunpack.c.h.b16 %v3714
    %v4022 = vunpack.c.l.b16 %v3715
    %v4023 = vunpack.c.h.b16 %v3715
    %v4024 = vunpack.c.l.b16 %v3716
    %v4025 = vunpack.c.h.b16 %v3716
    %v4026 = vunpack.c.l.b16 %v3717
    %v4027 = vunpack.c.h.b16 %v3717
    %v4028 = vunpack.c.l.b16 %v3718
    %v4029 = vunpack.c.h.b16 %v3718
    %v4030 = vunpack.c.l.b16 %v3719
    %v4031 = vunpack.c.h.b16 %v3719
    %v4032 = vunpack.c.l.b16 %v3720
    %v4033 = vunpack.c.h.b16 %v3720
    %v4034 = vunpack.c.l.b16 %v3721
    %v4035 = vunpack.c.h.b16 %v3721
    %v4036 = vunpack.c.l.b16 %v3722
    %v4037 = vunpack.c.h.b16 %v3722
    %v4038 = vunpack.c.l.b16 %v3723
    %v4039 = vunpack.c.h.b16 %v3723
    %v4040 = vunpack.c.l.b16 %v3724
    %v4041 = vunpack.c.h.b16 %v3724
    %v4042 = vunpack.c.l.b16 %v3725
    %v4043 = vunpack.c.h.b16 %v3725
    %v4044 = vpack.c.b16 %v3990, %v3988
    %v4045 = vpack.c.b16 %v3991, %v3989
    %v4046 = vpack.c.b16 %v3994, %v3992
    %v4047 = vpack.c.b16 %v3995, %v3993
    %v4048 = vpack.c.b16 %v3998, %v3996
    %v4049 = vpack.c.b16 %v3999, %v3997
    %v4050 = vpack.c.b16 %v4002, %v4000
    %v4051 = vpack.c.b16 %v4003, %v4001
    %v4052 = vpack.c.b16 %v4006, %v4004
    %v4053 = vpack.c.b16 %v4007, %v4005
    %v4054 = vpack.c.b16 %v4010, %v4008
    %v4055 = vpack.c.b16 %v4011, %v4009
    %v4056 = vpack.c.b16 %v4014, %v4012
    %v4057 = vpack.c.b16 %v4015, %v4013
    %v4058 = vpack.c.b16 %v4018, %v4016
    %v4059 = vpack.c.b16 %v4019, %v4017
    %v4060 = vpack.c.b16 %v4022, %v4020
    %v4061 = vpack.c.b16 %v4023, %v4021
    %v4062 = vpack.c.b16 %v4026, %v4024
    %v4063 = vpack.c.b16 %v4027, %v4025
    %v4064 = vpack.c.b16 %v4030, %v4028
    %v4065 = vpack.c.b16 %v4031, %v4029
    %v4066 = vpack.c.b16 %v4034, %v4032
    %v4067 = vpack.c.b16 %v4035, %v4033
    %v4068 = vpack.c.b16 %v4038, %v4036
    %v4069 = vpack.c.b16 %v4039, %v4037
    %v4070 = vpack.c.b16 %v4042, %v4040
    %v4071 = vpack.c.b16 %v4043, %v4041
    %v4100 = vsel %vm1061, %v3759, 0
    %4102 = vmatprep.subr.bf16.mxu0 %v4059
    %4103 = vmatpush1.bf16.msra.mxu0 %v4058
    %4104 = vmatprep.subr.bf16.mxu0 %v4057
    %4105 = vmatpush1.bf16.msra.mxu0 %v4056
    %4106 = vmatprep.subr.bf16.mxu0 %v4055
    %4107 = vmatpush1.bf16.msra.mxu0 %v4054
    %4108 = vmatprep.subr.bf16.mxu0 %v4053
    %4109 = vmatpush1.bf16.msra.mxu0 %v4052
    %4110 = vmatprep.subr.bf16.mxu0 %v4051
    %4111 = vmatpush1.bf16.msra.mxu0 %v4050
    %4112 = vmatprep.subr.bf16.mxu0 %v4049
    %4113 = vmatpush1.bf16.msra.mxu0 %v4048
    %4114 = vmatprep.subr.bf16.mxu0 %v4047
    %4115 = vmatpush1.bf16.msra.mxu0 %v4046
    %4116 = vmatprep.subr.bf16.mxu0 %v4045
    %4117 = vmatpush1.bf16.msra.mxu0 %v4044
    %4118 = vmatprep.subr.bf16.mxu0 0
    %4119 = vmatpush2.bf16.msra.mxu0 0
    %4120 = vmatprep.subr.bf16.mxu0 0
    %4121 = vmatpush2.bf16.msra.mxu0 0
    %4122 = vmatprep.subr.bf16.mxu0 %v4071
    %4123 = vmatpush2.bf16.msra.mxu0 %v4070
    %4124 = vmatprep.subr.bf16.mxu0 %v4069
    %4125 = vmatpush2.bf16.msra.mxu0 %v4068
    %4126 = vmatprep.subr.bf16.mxu0 %v4067
    %4127 = vmatpush2.bf16.msra.mxu0 %v4066
    %4128 = vmatprep.subr.bf16.mxu0 %v4065
    %4129 = vmatpush2.bf16.msra.mxu0 %v4064
    %4130 = vmatprep.subr.bf16.mxu0 %v4063
    %4131 = vmatpush2.bf16.msra.mxu0 %v4062
    %4132 = vmatprep.subr.bf16.mxu0 %v4061
    %4133 = vmatpush2.bf16.msra.mxu0 %v4060
    %4134 = vmatprep.mubr.bf16.mxu0 %v4100
    %4135 = vmatmul.mubr.bf16.gmra.mxu0 %v3758
    %v4136 = vpop.f32.mrf.mxu0
    %v4137 = vadd.f32 %v3953, %v4136
    %v4138 = vpop.f32.mrf.mxu0
    %v4139 = vadd.f32 %v3955, %v4138
    %v4140 = vpop.f32.mrf.mxu0
    %v4141 = vpop.f32.mrf.mxu0
    %4142 = vdwg.mxu0
    %v4143 = vld [vmem:[#allocation18] sm:$0x7f]
    %v4144 = vld [vmem:[#allocation18 + $0x8] sm:$0x7f]
    %v4145 = vadd.f32 %v4137, %v4143
    %v4146 = vadd.f32 %v4139, %v4144
    %v4147 = vmax.f32 %v4145, 0.0
    %v4148 = vmax.f32 %v4146, 0.0
    %v4149 = vpack.c.bf16 %v4147, %v4147
    %v4150 = vpack.c.bf16 %v4148, %v4148
    %v4153 = vunpack.c.l.b16 %v4149
    %v4154 = vunpack.c.l.b16 %v4150
    %v4155 = vpack.c.b16 %v4154, %v4153
    %v4157 = vshrl.u32 %v4155, 16
    %v4159 = vrot.slane %v4157, 7
    %v4160 = vshll.u32 %v4155, 16
    %v4162 = vor.u32 %v4159, %v4160
    %v4164 = vld [vmem:[#allocation4] sm:$0xff]
    %v4165 = vsel %vm852, %v4162, %v4164
    %4166 = vst [vmem:[#allocation4] sm:$0xff] %v4165
    %v4167 = vld [vmem:[#allocation3] sm:$0xff]
    %s4168 = scalar_lea.vmem %s13, 448
    %v4169 = vld [vmem:[%s4168] sm:$0xff]
    %v4170 = vld [vmem:[%s4168 + $0x8] sm:$0xff]
    %v4171 = vld [vmem:[%s4168 + $0x10] sm:$0xff]
    %v4172 = vld [vmem:[%s4168 + $0x18] sm:$0xff]
    %v4173 = vld [vmem:[%s4168 + $0x20] sm:$0xff]
    %v4174 = vld [vmem:[%s4168 + $0x28] sm:$0xff]
    %v4175 = vld [vmem:[%s4168 + $0x30] sm:$0xff]
    %v4176 = vld [vmem:[%s4168 + $0x38] sm:$0xff]
    %v4177 = vld [vmem:[%s4168 + $0x40] sm:$0xff]
    %v4178 = vld [vmem:[%s4168 + $0x48] sm:$0xff]
    %v4179 = vld [vmem:[%s4168 + $0x50] sm:$0xff]
    %v4180 = vld [vmem:[%s4168 + $0x58] sm:$0xff]
    %v4181 = vld [vmem:[%s4168 + $0x60] sm:$0xff]
    %v4182 = vld [vmem:[%s4168 + $0x68] sm:$0xff]
    %v4183 = vld [vmem:[%s4168 + $0x70] sm:$0xff]
    %v4184 = vld [vmem:[%s4168 + $0x78] sm:$0xff]
    %v4185 = vld [vmem:[%s4168 + $0x80] sm:$0xff]
    %v4186 = vld [vmem:[%s4168 + $0x88] sm:$0xff]
    %v4187 = vld [vmem:[%s4168 + $0x90] sm:$0xff]
    %v4188 = vld [vmem:[%s4168 + $0x98] sm:$0xff]
    %v4189 = vld [vmem:[%s4168 + $0xa0] sm:$0xff]
    %v4190 = vld [vmem:[%s4168 + $0xa8] sm:$0xff]
    %v4191 = vld [vmem:[%s4168 + $0xb0] sm:$0xff]
    %v4192 = vld [vmem:[%s4168 + $0xb8] sm:$0xff]
    %v4193 = vld [vmem:[%s4168 + $0xc0] sm:$0xff]
    %v4194 = vld [vmem:[%s4168 + $0xc8] sm:$0xff]
    %v4195 = vld [vmem:[%s4168 + $0xd0] sm:$0xff]
    %v4196 = vld [vmem:[%s4168 + $0xd8] sm:$0xff]
    %v4197 = vld [vmem:[#allocation3] sm:$0xee]
    %v4198 = vld [vmem:[#allocation3 + $0x8] sm:$0x11]
    %s4199 = scalar_lea.vmem %s13, 672
    %v4200 = vld [vmem:[%s4199] sm:$0xff]
    %v4201 = vld [vmem:[%s4199 + $0x8] sm:$0xff]
    %v4202 = vld [vmem:[%s4199 + $0x10] sm:$0xff]
    %v4203 = vld [vmem:[%s4199 + $0x18] sm:$0xff]
    %v4204 = vld [vmem:[%s4199 + $0x20] sm:$0xff]
    %v4205 = vld [vmem:[%s4199 + $0x28] sm:$0xff]
    %v4206 = vld [vmem:[%s4199 + $0x30] sm:$0xff]
    %v4207 = vld [vmem:[%s4199 + $0x38] sm:$0xff]
    %v4208 = vld [vmem:[%s4199 + $0x40] sm:$0xff]
    %v4209 = vld [vmem:[%s4199 + $0x48] sm:$0xff]
    %v4210 = vld [vmem:[%s4199 + $0x50] sm:$0xff]
    %v4211 = vld [vmem:[%s4199 + $0x58] sm:$0xff]
    %v4212 = vld [vmem:[%s4199 + $0x60] sm:$0xff]
    %v4213 = vld [vmem:[%s4199 + $0x68] sm:$0xff]
    %v4214 = vld [vmem:[%s4199 + $0x70] sm:$0xff]
    %v4215 = vld [vmem:[%s4199 + $0x78] sm:$0xff]
    %v4216 = vld [vmem:[%s4199 + $0x80] sm:$0xff]
    %v4217 = vld [vmem:[%s4199 + $0x88] sm:$0xff]
    %v4218 = vld [vmem:[%s4199 + $0x90] sm:$0xff]
    %v4219 = vld [vmem:[%s4199 + $0x98] sm:$0xff]
    %v4220 = vld [vmem:[%s4199 + $0xa0] sm:$0xff]
    %v4221 = vld [vmem:[%s4199 + $0xa8] sm:$0xff]
    %v4222 = vld [vmem:[%s4199 + $0xb0] sm:$0xff]
    %v4223 = vld [vmem:[%s4199 + $0xb8] sm:$0xff]
    %v4224 = vld [vmem:[%s4199 + $0xc0] sm:$0xff]
    %v4225 = vld [vmem:[%s4199 + $0xc8] sm:$0xff]
    %v4226 = vld [vmem:[%s4199 + $0xd0] sm:$0xff]
    %v4227 = vld [vmem:[%s4199 + $0xd8] sm:$0xff]
    %v4230 = vunpack.c.l.b16 %v4197
    %v4231 = vunpack.c.h.b16 %v4197
    %v4232 = vunpack.c.l.b16 %v4198
    %v4233 = vunpack.c.h.b16 %v4198
    %v4234 = vpack.c.b16 %v4232, %v4230
    %v4235 = vpack.c.b16 %v4233, %v4231
    %v4236 = vrot.slane %v4234, 1
    %v4237 = vrot.slane %v4235, 1
    %v4267 = vunpack.c.l.b16 %v4200
    %v4268 = vunpack.c.h.b16 %v4200
    %v4269 = vunpack.c.l.b16 %v4201
    %v4270 = vunpack.c.h.b16 %v4201
    %v4271 = vunpack.c.l.b16 %v4202
    %v4272 = vunpack.c.h.b16 %v4202
    %v4273 = vunpack.c.l.b16 %v4203
    %v4274 = vunpack.c.h.b16 %v4203
    %v4275 = vunpack.c.l.b16 %v4204
    %v4276 = vunpack.c.h.b16 %v4204
    %v4277 = vunpack.c.l.b16 %v4205
    %v4278 = vunpack.c.h.b16 %v4205
    %v4279 = vunpack.c.l.b16 %v4206
    %v4280 = vunpack.c.h.b16 %v4206
    %v4281 = vunpack.c.l.b16 %v4207
    %v4282 = vunpack.c.h.b16 %v4207
    %v4283 = vunpack.c.l.b16 %v4208
    %v4284 = vunpack.c.h.b16 %v4208
    %v4285 = vunpack.c.l.b16 %v4209
    %v4286 = vunpack.c.h.b16 %v4209
    %v4287 = vunpack.c.l.b16 %v4210
    %v4288 = vunpack.c.h.b16 %v4210
    %v4289 = vunpack.c.l.b16 %v4211
    %v4290 = vunpack.c.h.b16 %v4211
    %v4291 = vunpack.c.l.b16 %v4212
    %v4292 = vunpack.c.h.b16 %v4212
    %v4293 = vunpack.c.l.b16 %v4213
    %v4294 = vunpack.c.h.b16 %v4213
    %v4295 = vunpack.c.l.b16 %v4214
    %v4296 = vunpack.c.h.b16 %v4214
    %v4297 = vunpack.c.l.b16 %v4215
    %v4298 = vunpack.c.h.b16 %v4215
    %v4299 = vunpack.c.l.b16 %v4216
    %v4300 = vunpack.c.h.b16 %v4216
    %v4301 = vunpack.c.l.b16 %v4217
    %v4302 = vunpack.c.h.b16 %v4217
    %v4303 = vunpack.c.l.b16 %v4218
    %v4304 = vunpack.c.h.b16 %v4218
    %v4305 = vunpack.c.l.b16 %v4219
    %v4306 = vunpack.c.h.b16 %v4219
    %v4307 = vunpack.c.l.b16 %v4220
    %v4308 = vunpack.c.h.b16 %v4220
    %v4309 = vunpack.c.l.b16 %v4221
    %v4310 = vunpack.c.h.b16 %v4221
    %v4311 = vunpack.c.l.b16 %v4222
    %v4312 = vunpack.c.h.b16 %v4222
    %v4313 = vunpack.c.l.b16 %v4223
    %v4314 = vunpack.c.h.b16 %v4223
    %v4315 = vunpack.c.l.b16 %v4224
    %v4316 = vunpack.c.h.b16 %v4224
    %v4317 = vunpack.c.l.b16 %v4225
    %v4318 = vunpack.c.h.b16 %v4225
    %v4319 = vunpack.c.l.b16 %v4226
    %v4320 = vunpack.c.h.b16 %v4226
    %v4321 = vunpack.c.l.b16 %v4227
    %v4322 = vunpack.c.h.b16 %v4227
    %v4323 = vpack.c.b16 %v4269, %v4267
    %v4324 = vpack.c.b16 %v4270, %v4268
    %v4325 = vpack.c.b16 %v4273, %v4271
    %v4326 = vpack.c.b16 %v4274, %v4272
    %v4327 = vpack.c.b16 %v4277, %v4275
    %v4328 = vpack.c.b16 %v4278, %v4276
    %v4329 = vpack.c.b16 %v4281, %v4279
    %v4330 = vpack.c.b16 %v4282, %v4280
    %v4331 = vpack.c.b16 %v4285, %v4283
    %v4332 = vpack.c.b16 %v4286, %v4284
    %v4333 = vpack.c.b16 %v4289, %v4287
    %v4334 = vpack.c.b16 %v4290, %v4288
    %v4335 = vpack.c.b16 %v4293, %v4291
    %v4336 = vpack.c.b16 %v4294, %v4292
    %v4337 = vpack.c.b16 %v4297, %v4295
    %v4338 = vpack.c.b16 %v4298, %v4296
    %v4339 = vpack.c.b16 %v4301, %v4299
    %v4340 = vpack.c.b16 %v4302, %v4300
    %v4341 = vpack.c.b16 %v4305, %v4303
    %v4342 = vpack.c.b16 %v4306, %v4304
    %v4343 = vpack.c.b16 %v4309, %v4307
    %v4344 = vpack.c.b16 %v4310, %v4308
    %v4345 = vpack.c.b16 %v4313, %v4311
    %v4346 = vpack.c.b16 %v4314, %v4312
    %v4347 = vpack.c.b16 %v4317, %v4315
    %v4348 = vpack.c.b16 %v4318, %v4316
    %v4349 = vpack.c.b16 %v4321, %v4319
    %v4350 = vpack.c.b16 %v4322, %v4320
    %v4380 = vsel %vm1061, %v4237, 0
    %4382 = vmatprep.subr.bf16.mxu0 %v4338
    %4383 = vmatpush1.bf16.msra.mxu0 %v4337
    %4384 = vmatprep.subr.bf16.mxu0 %v4336
    %4385 = vmatpush1.bf16.msra.mxu0 %v4335
    %4386 = vmatprep.subr.bf16.mxu0 %v4334
    %4387 = vmatpush1.bf16.msra.mxu0 %v4333
    %4388 = vmatprep.subr.bf16.mxu0 %v4332
    %4389 = vmatpush1.bf16.msra.mxu0 %v4331
    %4390 = vmatprep.subr.bf16.mxu0 %v4330
    %4391 = vmatpush1.bf16.msra.mxu0 %v4329
    %4392 = vmatprep.subr.bf16.mxu0 %v4328
    %4393 = vmatpush1.bf16.msra.mxu0 %v4327
    %4394 = vmatprep.subr.bf16.mxu0 %v4326
    %4395 = vmatpush1.bf16.msra.mxu0 %v4325
    %4396 = vmatprep.subr.bf16.mxu0 %v4324
    %4397 = vmatpush1.bf16.msra.mxu0 %v4323
    %4398 = vmatprep.subr.bf16.mxu0 0
    %4399 = vmatpush2.bf16.msra.mxu0 0
    %4400 = vmatprep.subr.bf16.mxu0 0
    %4401 = vmatpush2.bf16.msra.mxu0 0
    %4402 = vmatprep.subr.bf16.mxu0 %v4350
    %4403 = vmatpush2.bf16.msra.mxu0 %v4349
    %4404 = vmatprep.subr.bf16.mxu0 %v4348
    %4405 = vmatpush2.bf16.msra.mxu0 %v4347
    %4406 = vmatprep.subr.bf16.mxu0 %v4346
    %4407 = vmatpush2.bf16.msra.mxu0 %v4345
    %4408 = vmatprep.subr.bf16.mxu0 %v4344
    %4409 = vmatpush2.bf16.msra.mxu0 %v4343
    %4410 = vmatprep.subr.bf16.mxu0 %v4342
    %4411 = vmatpush2.bf16.msra.mxu0 %v4341
    %4412 = vmatprep.subr.bf16.mxu0 %v4340
    %4413 = vmatpush2.bf16.msra.mxu0 %v4339
    %4414 = vmatprep.mubr.bf16.mxu0 %v4380
    %4415 = vmatmul.mubr.bf16.gmra.mxu0 %v4236
    %v4416 = vpop.f32.mrf.mxu0
    %v4417 = vadd.f32 0.0, %v4416
    %v4418 = vpop.f32.mrf.mxu0
    %v4419 = vadd.f32 0.0, %v4418
    %v4420 = vpop.f32.mrf.mxu0
    %v4421 = vpop.f32.mrf.mxu0
    %4422 = vdwg.mxu0
    %v4424 = vunpack.c.l.b16 %v4167
    %v4425 = vunpack.c.h.b16 %v4167
    %v4426 = vpack.c.b16 %v4424, %v4424
    %v4427 = vpack.c.b16 %v4425, %v4425
    %v4429 = vshrl.u32 %v4426, 16
    %v4431 = vshll.u32 %v4426, 16
    %v4433 = vrot.slane %v4431, 1
    %v4434 = vor.u32 %v4429, %v4433
    %v4436 = vshrl.u32 %v4427, 16
    %v4438 = vshll.u32 %v4427, 16
    %v4440 = vrot.slane %v4438, 1
    %v4441 = vor.u32 %v4436, %v4440
    %v4471 = vunpack.c.l.b16 %v4169
    %v4472 = vunpack.c.h.b16 %v4169
    %v4473 = vunpack.c.l.b16 %v4170
    %v4474 = vunpack.c.h.b16 %v4170
    %v4475 = vunpack.c.l.b16 %v4171
    %v4476 = vunpack.c.h.b16 %v4171
    %v4477 = vunpack.c.l.b16 %v4172
    %v4478 = vunpack.c.h.b16 %v4172
    %v4479 = vunpack.c.l.b16 %v4173
    %v4480 = vunpack.c.h.b16 %v4173
    %v4481 = vunpack.c.l.b16 %v4174
    %v4482 = vunpack.c.h.b16 %v4174
    %v4483 = vunpack.c.l.b16 %v4175
    %v4484 = vunpack.c.h.b16 %v4175
    %v4485 = vunpack.c.l.b16 %v4176
    %v4486 = vunpack.c.h.b16 %v4176
    %v4487 = vunpack.c.l.b16 %v4177
    %v4488 = vunpack.c.h.b16 %v4177
    %v4489 = vunpack.c.l.b16 %v4178
    %v4490 = vunpack.c.h.b16 %v4178
    %v4491 = vunpack.c.l.b16 %v4179
    %v4492 = vunpack.c.h.b16 %v4179
    %v4493 = vunpack.c.l.b16 %v4180
    %v4494 = vunpack.c.h.b16 %v4180
    %v4495 = vunpack.c.l.b16 %v4181
    %v4496 = vunpack.c.h.b16 %v4181
    %v4497 = vunpack.c.l.b16 %v4182
    %v4498 = vunpack.c.h.b16 %v4182
    %v4499 = vunpack.c.l.b16 %v4183
    %v4500 = vunpack.c.h.b16 %v4183
    %v4501 = vunpack.c.l.b16 %v4184
    %v4502 = vunpack.c.h.b16 %v4184
    %v4503 = vunpack.c.l.b16 %v4185
    %v4504 = vunpack.c.h.b16 %v4185
    %v4505 = vunpack.c.l.b16 %v4186
    %v4506 = vunpack.c.h.b16 %v4186
    %v4507 = vunpack.c.l.b16 %v4187
    %v4508 = vunpack.c.h.b16 %v4187
    %v4509 = vunpack.c.l.b16 %v4188
    %v4510 = vunpack.c.h.b16 %v4188
    %v4511 = vunpack.c.l.b16 %v4189
    %v4512 = vunpack.c.h.b16 %v4189
    %v4513 = vunpack.c.l.b16 %v4190
    %v4514 = vunpack.c.h.b16 %v4190
    %v4515 = vunpack.c.l.b16 %v4191
    %v4516 = vunpack.c.h.b16 %v4191
    %v4517 = vunpack.c.l.b16 %v4192
    %v4518 = vunpack.c.h.b16 %v4192
    %v4519 = vunpack.c.l.b16 %v4193
    %v4520 = vunpack.c.h.b16 %v4193
    %v4521 = vunpack.c.l.b16 %v4194
    %v4522 = vunpack.c.h.b16 %v4194
    %v4523 = vunpack.c.l.b16 %v4195
    %v4524 = vunpack.c.h.b16 %v4195
    %v4525 = vunpack.c.l.b16 %v4196
    %v4526 = vunpack.c.h.b16 %v4196
    %v4527 = vpack.c.b16 %v4473, %v4471
    %v4528 = vpack.c.b16 %v4474, %v4472
    %v4529 = vpack.c.b16 %v4477, %v4475
    %v4530 = vpack.c.b16 %v4478, %v4476
    %v4531 = vpack.c.b16 %v4481, %v4479
    %v4532 = vpack.c.b16 %v4482, %v4480
    %v4533 = vpack.c.b16 %v4485, %v4483
    %v4534 = vpack.c.b16 %v4486, %v4484
    %v4535 = vpack.c.b16 %v4489, %v4487
    %v4536 = vpack.c.b16 %v4490, %v4488
    %v4537 = vpack.c.b16 %v4493, %v4491
    %v4538 = vpack.c.b16 %v4494, %v4492
    %v4539 = vpack.c.b16 %v4497, %v4495
    %v4540 = vpack.c.b16 %v4498, %v4496
    %v4541 = vpack.c.b16 %v4501, %v4499
    %v4542 = vpack.c.b16 %v4502, %v4500
    %v4543 = vpack.c.b16 %v4505, %v4503
    %v4544 = vpack.c.b16 %v4506, %v4504
    %v4545 = vpack.c.b16 %v4509, %v4507
    %v4546 = vpack.c.b16 %v4510, %v4508
    %v4547 = vpack.c.b16 %v4513, %v4511
    %v4548 = vpack.c.b16 %v4514, %v4512
    %v4549 = vpack.c.b16 %v4517, %v4515
    %v4550 = vpack.c.b16 %v4518, %v4516
    %v4551 = vpack.c.b16 %v4521, %v4519
    %v4552 = vpack.c.b16 %v4522, %v4520
    %v4553 = vpack.c.b16 %v4525, %v4523
    %v4554 = vpack.c.b16 %v4526, %v4524
    %v4584 = vsel %vm1061, %v4441, 0
    %4586 = vmatprep.subr.bf16.mxu0 %v4542
    %4587 = vmatpush1.bf16.msra.mxu0 %v4541
    %4588 = vmatprep.subr.bf16.mxu0 %v4540
    %4589 = vmatpush1.bf16.msra.mxu0 %v4539
    %4590 = vmatprep.subr.bf16.mxu0 %v4538
    %4591 = vmatpush1.bf16.msra.mxu0 %v4537
    %4592 = vmatprep.subr.bf16.mxu0 %v4536
    %4593 = vmatpush1.bf16.msra.mxu0 %v4535
    %4594 = vmatprep.subr.bf16.mxu0 %v4534
    %4595 = vmatpush1.bf16.msra.mxu0 %v4533
    %4596 = vmatprep.subr.bf16.mxu0 %v4532
    %4597 = vmatpush1.bf16.msra.mxu0 %v4531
    %4598 = vmatprep.subr.bf16.mxu0 %v4530
    %4599 = vmatpush1.bf16.msra.mxu0 %v4529
    %4600 = vmatprep.subr.bf16.mxu0 %v4528
    %4601 = vmatpush1.bf16.msra.mxu0 %v4527
    %4602 = vmatprep.subr.bf16.mxu0 0
    %4603 = vmatpush2.bf16.msra.mxu0 0
    %4604 = vmatprep.subr.bf16.mxu0 0
    %4605 = vmatpush2.bf16.msra.mxu0 0
    %4606 = vmatprep.subr.bf16.mxu0 %v4554
    %4607 = vmatpush2.bf16.msra.mxu0 %v4553
    %4608 = vmatprep.subr.bf16.mxu0 %v4552
    %4609 = vmatpush2.bf16.msra.mxu0 %v4551
    %4610 = vmatprep.subr.bf16.mxu0 %v4550
    %4611 = vmatpush2.bf16.msra.mxu0 %v4549
    %4612 = vmatprep.subr.bf16.mxu0 %v4548
    %4613 = vmatpush2.bf16.msra.mxu0 %v4547
    %4614 = vmatprep.subr.bf16.mxu0 %v4546
    %4615 = vmatpush2.bf16.msra.mxu0 %v4545
    %4616 = vmatprep.subr.bf16.mxu0 %v4544
    %4617 = vmatpush2.bf16.msra.mxu0 %v4543
    %4618 = vmatprep.mubr.bf16.mxu0 %v4584
    %4619 = vmatmul.mubr.bf16.gmra.mxu0 %v4434
    %v4620 = vpop.f32.mrf.mxu0
    %v4621 = vadd.f32 %v4417, %v4620
    %v4622 = vpop.f32.mrf.mxu0
    %v4623 = vadd.f32 %v4419, %v4622
    %v4624 = vpop.f32.mrf.mxu0
    %v4625 = vpop.f32.mrf.mxu0
    %4626 = vdwg.mxu0
    %v4627 = vld [vmem:[#allocation18] sm:$0x7f]
    %v4628 = vld [vmem:[#allocation18 + $0x8] sm:$0x7f]
    %v4629 = vadd.f32 %v4621, %v4627
    %v4630 = vadd.f32 %v4623, %v4628
    %v4631 = vmax.f32 %v4629, 0.0
    %v4632 = vmax.f32 %v4630, 0.0
    %v4633 = vpack.c.bf16 %v4631, %v4631
    %v4634 = vpack.c.bf16 %v4632, %v4632
    %v4637 = vunpack.c.l.b16 %v4633
    %v4638 = vunpack.c.l.b16 %v4634
    %v4639 = vpack.c.b16 %v4638, %v4637
    %v4641 = vshrl.u32 %v4639, 16
    %v4643 = vrot.slane %v4641, 7
    %v4644 = vshll.u32 %v4639, 16
    %v4646 = vor.u32 %v4643, %v4644
    %s4648 = scalar_lea.vmem [#allocation4], 32
    %v4649 = vld [vmem:[%s4648] sm:$0xff]
    %v4650 = vsel %vm852, %v4646, %v4649
    %4651 = vst [vmem:[%s4648] sm:$0xff] %v4650
    %v4652 = vld [vmem:[#allocation4] sm:$0xff]
    %s4653 = scalar_lea.vmem %s15, 112
    %v4654 = vld [vmem:[%s4653] sm:$0xf]
    %v4655 = vld [vmem:[%s4653 + $0x4] sm:$0xf]
    %v4656 = vld [vmem:[%s4653 + $0x8] sm:$0xf]
    %v4657 = vld [vmem:[%s4653 + $0xc] sm:$0xf]
    %v4658 = vld [vmem:[%s4653 + $0x10] sm:$0xf]
    %v4659 = vld [vmem:[%s4653 + $0x14] sm:$0xf]
    %v4660 = vld [vmem:[%s4653 + $0x18] sm:$0xf]
    %v4661 = vld [vmem:[%s4653 + $0x1c] sm:$0xf]
    %v4662 = vld [vmem:[%s4653 + $0x20] sm:$0xf]
    %v4663 = vld [vmem:[%s4653 + $0x24] sm:$0xf]
    %v4664 = vld [vmem:[%s4653 + $0x28] sm:$0xf]
    %v4665 = vld [vmem:[%s4653 + $0x2c] sm:$0xf]
    %v4666 = vld [vmem:[%s4653 + $0x30] sm:$0xf]
    %v4667 = vld [vmem:[%s4653 + $0x34] sm:$0xf]
    %v4668 = vld [vmem:[%s4653 + $0x38] sm:$0xf]
    %v4669 = vld [vmem:[%s4653 + $0x3c] sm:$0xf]
    %v4670 = vld [vmem:[%s4653 + $0x40] sm:$0xf]
    %v4671 = vld [vmem:[%s4653 + $0x44] sm:$0xf]
    %v4672 = vld [vmem:[%s4653 + $0x48] sm:$0xf]
    %v4673 = vld [vmem:[%s4653 + $0x4c] sm:$0xf]
    %v4674 = vld [vmem:[%s4653 + $0x50] sm:$0xf]
    %v4675 = vld [vmem:[%s4653 + $0x54] sm:$0xf]
    %v4676 = vld [vmem:[%s4653 + $0x58] sm:$0xf]
    %v4677 = vld [vmem:[%s4653 + $0x5c] sm:$0xf]
    %v4678 = vld [vmem:[%s4653 + $0x60] sm:$0xf]
    %v4679 = vld [vmem:[%s4653 + $0x64] sm:$0xf]
    %v4680 = vld [vmem:[%s4653 + $0x68] sm:$0xf]
    %v4681 = vld [vmem:[%s4653 + $0x6c] sm:$0xf]
    %v4682 = vld [vmem:[%s4648] sm:$0xff]
    %s4683 = scalar_lea.vmem %s15, 336
    %v4684 = vld [vmem:[%s4683] sm:$0xf]
    %v4685 = vld [vmem:[%s4683 + $0x4] sm:$0xf]
    %v4686 = vld [vmem:[%s4683 + $0x8] sm:$0xf]
    %v4687 = vld [vmem:[%s4683 + $0xc] sm:$0xf]
    %v4688 = vld [vmem:[%s4683 + $0x10] sm:$0xf]
    %v4689 = vld [vmem:[%s4683 + $0x14] sm:$0xf]
    %v4690 = vld [vmem:[%s4683 + $0x18] sm:$0xf]
    %v4691 = vld [vmem:[%s4683 + $0x1c] sm:$0xf]
    %v4692 = vld [vmem:[%s4683 + $0x20] sm:$0xf]
    %v4693 = vld [vmem:[%s4683 + $0x24] sm:$0xf]
    %v4694 = vld [vmem:[%s4683 + $0x28] sm:$0xf]
    %v4695 = vld [vmem:[%s4683 + $0x2c] sm:$0xf]
    %v4696 = vld [vmem:[%s4683 + $0x30] sm:$0xf]
    %v4697 = vld [vmem:[%s4683 + $0x34] sm:$0xf]
    %v4698 = vld [vmem:[%s4683 + $0x38] sm:$0xf]
    %v4699 = vld [vmem:[%s4683 + $0x3c] sm:$0xf]
    %v4700 = vld [vmem:[%s4683 + $0x40] sm:$0xf]
    %v4701 = vld [vmem:[%s4683 + $0x44] sm:$0xf]
    %v4702 = vld [vmem:[%s4683 + $0x48] sm:$0xf]
    %v4703 = vld [vmem:[%s4683 + $0x4c] sm:$0xf]
    %v4704 = vld [vmem:[%s4683 + $0x50] sm:$0xf]
    %v4705 = vld [vmem:[%s4683 + $0x54] sm:$0xf]
    %v4706 = vld [vmem:[%s4683 + $0x58] sm:$0xf]
    %v4707 = vld [vmem:[%s4683 + $0x5c] sm:$0xf]
    %v4708 = vld [vmem:[%s4683 + $0x60] sm:$0xf]
    %v4709 = vld [vmem:[%s4683 + $0x64] sm:$0xf]
    %v4710 = vld [vmem:[%s4683 + $0x68] sm:$0xf]
    %v4711 = vld [vmem:[%s4683 + $0x6c] sm:$0xf]
    %v4713 = vunpack.c.l.b16 %v4682
    %v4714 = vunpack.c.h.b16 %v4682
    %v4715 = vpack.c.b16 %v4713, %v4713
    %v4716 = vpack.c.b16 %v4714, %v4714
    %v4746 = vunpack.c.l.b16 %v4684
    %v4747 = vunpack.c.l.b16 %v4685
    %v4748 = vunpack.c.l.b16 %v4686
    %v4749 = vunpack.c.l.b16 %v4687
    %v4750 = vunpack.c.l.b16 %v4688
    %v4751 = vunpack.c.l.b16 %v4689
    %v4752 = vunpack.c.l.b16 %v4690
    %v4753 = vunpack.c.l.b16 %v4691
    %v4754 = vunpack.c.l.b16 %v4692
    %v4755 = vunpack.c.l.b16 %v4693
    %v4756 = vunpack.c.l.b16 %v4694
    %v4757 = vunpack.c.l.b16 %v4695
    %v4758 = vunpack.c.l.b16 %v4696
    %v4759 = vunpack.c.l.b16 %v4697
    %v4760 = vunpack.c.l.b16 %v4698
    %v4761 = vunpack.c.l.b16 %v4699
    %v4762 = vunpack.c.l.b16 %v4700
    %v4763 = vunpack.c.l.b16 %v4701
    %v4764 = vunpack.c.l.b16 %v4702
    %v4765 = vunpack.c.l.b16 %v4703
    %v4766 = vunpack.c.l.b16 %v4704
    %v4767 = vunpack.c.l.b16 %v4705
    %v4768 = vunpack.c.l.b16 %v4706
    %v4769 = vunpack.c.l.b16 %v4707
    %v4770 = vunpack.c.l.b16 %v4708
    %v4771 = vunpack.c.l.b16 %v4709
    %v4772 = vunpack.c.l.b16 %v4710
    %v4773 = vunpack.c.l.b16 %v4711
    %v4774 = vpack.c.b16 %v4747, %v4746
    %v4775 = vpack.c.b16 %v4749, %v4748
    %v4776 = vpack.c.b16 %v4751, %v4750
    %v4777 = vpack.c.b16 %v4753, %v4752
    %v4778 = vpack.c.b16 %v4755, %v4754
    %v4779 = vpack.c.b16 %v4757, %v4756
    %v4780 = vpack.c.b16 %v4759, %v4758
    %v4781 = vpack.c.b16 %v4761, %v4760
    %v4782 = vpack.c.b16 %v4763, %v4762
    %v4783 = vpack.c.b16 %v4765, %v4764
    %v4784 = vpack.c.b16 %v4767, %v4766
    %v4785 = vpack.c.b16 %v4769, %v4768
    %v4786 = vpack.c.b16 %v4771, %v4770
    %v4787 = vpack.c.b16 %v4773, %v4772
    %v4803 = vsel %vm1061, %v4716, 0
    %4805 = vmatprep.subr.bf16.mxu0 0
    %4806 = vmatpush1.bf16.msra.mxu0 %v4781
    %4807 = vmatprep.subr.bf16.mxu0 0
    %4808 = vmatpush1.bf16.msra.mxu0 %v4780
    %4809 = vmatprep.subr.bf16.mxu0 0
    %4810 = vmatpush1.bf16.msra.mxu0 %v4779
    %4811 = vmatprep.subr.bf16.mxu0 0
    %4812 = vmatpush1.bf16.msra.mxu0 %v4778
    %4813 = vmatprep.subr.bf16.mxu0 0
    %4814 = vmatpush1.bf16.msra.mxu0 %v4777
    %4815 = vmatprep.subr.bf16.mxu0 0
    %4816 = vmatpush1.bf16.msra.mxu0 %v4776
    %4817 = vmatprep.subr.bf16.mxu0 0
    %4818 = vmatpush1.bf16.msra.mxu0 %v4775
    %4819 = vmatprep.subr.bf16.mxu0 0
    %4820 = vmatpush1.bf16.msra.mxu0 %v4774
    %4821 = vmatprep.subr.bf16.mxu0 0
    %4822 = vmatpush2.bf16.msra.mxu0 0
    %4823 = vmatprep.subr.bf16.mxu0 0
    %4824 = vmatpush2.bf16.msra.mxu0 0
    %4825 = vmatprep.subr.bf16.mxu0 0
    %4826 = vmatpush2.bf16.msra.mxu0 %v4787
    %4827 = vmatprep.subr.bf16.mxu0 0
    %4828 = vmatpush2.bf16.msra.mxu0 %v4786
    %4829 = vmatprep.subr.bf16.mxu0 0
    %4830 = vmatpush2.bf16.msra.mxu0 %v4785
    %4831 = vmatprep.subr.bf16.mxu0 0
    %4832 = vmatpush2.bf16.msra.mxu0 %v4784
    %4833 = vmatprep.subr.bf16.mxu0 0
    %4834 = vmatpush2.bf16.msra.mxu0 %v4783
    %4835 = vmatprep.subr.bf16.mxu0 0
    %4836 = vmatpush2.bf16.msra.mxu0 %v4782
    %4837 = vmatprep.mubr.bf16.mxu0 %v4803
    %4838 = vmatmul.mubr.bf16.gmra.mxu0 %v4715
    %v4839 = vpop.f32.mrf.mxu0
    %v4840 = vadd.f32 0.0, %v4839
    %v4841 = vpop.f32.mrf.mxu0
    %v4842 = vpop.f32.mrf.mxu0
    %v4843 = vpop.f32.mrf.mxu0
    %4844 = vdwg.mxu0
    %v4846 = vunpack.c.l.b16 %v4652
    %v4847 = vunpack.c.h.b16 %v4652
    %v4848 = vpack.c.b16 %v4846, %v4846
    %v4849 = vpack.c.b16 %v4847, %v4847
    %v4851 = vshrl.u32 %v4848, 16
    %v4853 = vshll.u32 %v4848, 16
    %v4855 = vrot.slane %v4853, 1
    %v4856 = vor.u32 %v4851, %v4855
    %v4858 = vshrl.u32 %v4849, 16
    %v4860 = vshll.u32 %v4849, 16
    %v4862 = vrot.slane %v4860, 1
    %v4863 = vor.u32 %v4858, %v4862
    %v4893 = vunpack.c.l.b16 %v4654
    %v4894 = vunpack.c.l.b16 %v4655
    %v4895 = vunpack.c.l.b16 %v4656
    %v4896 = vunpack.c.l.b16 %v4657
    %v4897 = vunpack.c.l.b16 %v4658
    %v4898 = vunpack.c.l.b16 %v4659
    %v4899 = vunpack.c.l.b16 %v4660
    %v4900 = vunpack.c.l.b16 %v4661
    %v4901 = vunpack.c.l.b16 %v4662
    %v4902 = vunpack.c.l.b16 %v4663
    %v4903 = vunpack.c.l.b16 %v4664
    %v4904 = vunpack.c.l.b16 %v4665
    %v4905 = vunpack.c.l.b16 %v4666
    %v4906 = vunpack.c.l.b16 %v4667
    %v4907 = vunpack.c.l.b16 %v4668
    %v4908 = vunpack.c.l.b16 %v4669
    %v4909 = vunpack.c.l.b16 %v4670
    %v4910 = vunpack.c.l.b16 %v4671
    %v4911 = vunpack.c.l.b16 %v4672
    %v4912 = vunpack.c.l.b16 %v4673
    %v4913 = vunpack.c.l.b16 %v4674
    %v4914 = vunpack.c.l.b16 %v4675
    %v4915 = vunpack.c.l.b16 %v4676
    %v4916 = vunpack.c.l.b16 %v4677
    %v4917 = vunpack.c.l.b16 %v4678
    %v4918 = vunpack.c.l.b16 %v4679
    %v4919 = vunpack.c.l.b16 %v4680
    %v4920 = vunpack.c.l.b16 %v4681
    %v4921 = vpack.c.b16 %v4894, %v4893
    %v4922 = vpack.c.b16 %v4896, %v4895
    %v4923 = vpack.c.b16 %v4898, %v4897
    %v4924 = vpack.c.b16 %v4900, %v4899
    %v4925 = vpack.c.b16 %v4902, %v4901
    %v4926 = vpack.c.b16 %v4904, %v4903
    %v4927 = vpack.c.b16 %v4906, %v4905
    %v4928 = vpack.c.b16 %v4908, %v4907
    %v4929 = vpack.c.b16 %v4910, %v4909
    %v4930 = vpack.c.b16 %v4912, %v4911
    %v4931 = vpack.c.b16 %v4914, %v4913
    %v4932 = vpack.c.b16 %v4916, %v4915
    %v4933 = vpack.c.b16 %v4918, %v4917
    %v4934 = vpack.c.b16 %v4920, %v4919
    %v4950 = vsel %vm1061, %v4863, 0
    %4952 = vmatprep.subr.bf16.mxu0 0
    %4953 = vmatpush1.bf16.msra.mxu0 %v4928
    %4954 = vmatprep.subr.bf16.mxu0 0
    %4955 = vmatpush1.bf16.msra.mxu0 %v4927
    %4956 = vmatprep.subr.bf16.mxu0 0
    %4957 = vmatpush1.bf16.msra.mxu0 %v4926
    %4958 = vmatprep.subr.bf16.mxu0 0
    %4959 = vmatpush1.bf16.msra.mxu0 %v4925
    %4960 = vmatprep.subr.bf16.mxu0 0
    %4961 = vmatpush1.bf16.msra.mxu0 %v4924
    %4962 = vmatprep.subr.bf16.mxu0 0
    %4963 = vmatpush1.bf16.msra.mxu0 %v4923
    %4964 = vmatprep.subr.bf16.mxu0 0
    %4965 = vmatpush1.bf16.msra.mxu0 %v4922
    %4966 = vmatprep.subr.bf16.mxu0 0
    %4967 = vmatpush1.bf16.msra.mxu0 %v4921
    %4968 = vmatprep.subr.bf16.mxu0 0
    %4969 = vmatpush2.bf16.msra.mxu0 0
    %4970 = vmatprep.subr.bf16.mxu0 0
    %4971 = vmatpush2.bf16.msra.mxu0 0
    %4972 = vmatprep.subr.bf16.mxu0 0
    %4973 = vmatpush2.bf16.msra.mxu0 %v4934
    %4974 = vmatprep.subr.bf16.mxu0 0
    %4975 = vmatpush2.bf16.msra.mxu0 %v4933
    %4976 = vmatprep.subr.bf16.mxu0 0
    %4977 = vmatpush2.bf16.msra.mxu0 %v4932
    %4978 = vmatprep.subr.bf16.mxu0 0
    %4979 = vmatpush2.bf16.msra.mxu0 %v4931
    %4980 = vmatprep.subr.bf16.mxu0 0
    %4981 = vmatpush2.bf16.msra.mxu0 %v4930
    %4982 = vmatprep.subr.bf16.mxu0 0
    %4983 = vmatpush2.bf16.msra.mxu0 %v4929
    %4984 = vmatprep.mubr.bf16.mxu0 %v4950
    %4985 = vmatmul.mubr.bf16.gmra.mxu0 %v4856
    %v4986 = vpop.f32.mrf.mxu0
    %v4987 = vadd.f32 %v4840, %v4986
    %v4988 = vpop.f32.mrf.mxu0
    %v4989 = vpop.f32.mrf.mxu0
    %v4990 = vpop.f32.mrf.mxu0
    %4991 = vdwg.mxu0
    %v4992 = vld [vmem:[#allocation19] sm:$0x7f]
    %v4993 = vadd.f32 %v4987, %v4992
    %vm4994 = vcmask 227328
    %4995 = vst.msk [vmem:[%s17] sm:$0x7f] %vm4994, %v4993
    %v4996 = vld [vmem:[#allocation4] sm:$0xff]
    %s4997 = scalar_lea.vmem %s15, 224
    %v4998 = vld [vmem:[%s4997] sm:$0xf]
    %v4999 = vld [vmem:[%s4997 + $0x4] sm:$0xf]
    %v5000 = vld [vmem:[%s4997 + $0x8] sm:$0xf]
    %v5001 = vld [vmem:[%s4997 + $0xc] sm:$0xf]
    %v5002 = vld [vmem:[%s4997 + $0x10] sm:$0xf]
    %v5003 = vld [vmem:[%s4997 + $0x14] sm:$0xf]
    %v5004 = vld [vmem:[%s4997 + $0x18] sm:$0xf]
    %v5005 = vld [vmem:[%s4997 + $0x1c] sm:$0xf]
    %v5006 = vld [vmem:[%s4997 + $0x20] sm:$0xf]
    %v5007 = vld [vmem:[%s4997 + $0x24] sm:$0xf]
    %v5008 = vld [vmem:[%s4997 + $0x28] sm:$0xf]
    %v5009 = vld [vmem:[%s4997 + $0x2c] sm:$0xf]
    %v5010 = vld [vmem:[%s4997 + $0x30] sm:$0xf]
    %v5011 = vld [vmem:[%s4997 + $0x34] sm:$0xf]
    %v5012 = vld [vmem:[%s4997 + $0x38] sm:$0xf]
    %v5013 = vld [vmem:[%s4997 + $0x3c] sm:$0xf]
    %v5014 = vld [vmem:[%s4997 + $0x40] sm:$0xf]
    %v5015 = vld [vmem:[%s4997 + $0x44] sm:$0xf]
    %v5016 = vld [vmem:[%s4997 + $0x48] sm:$0xf]
    %v5017 = vld [vmem:[%s4997 + $0x4c] sm:$0xf]
    %v5018 = vld [vmem:[%s4997 + $0x50] sm:$0xf]
    %v5019 = vld [vmem:[%s4997 + $0x54] sm:$0xf]
    %v5020 = vld [vmem:[%s4997 + $0x58] sm:$0xf]
    %v5021 = vld [vmem:[%s4997 + $0x5c] sm:$0xf]
    %v5022 = vld [vmem:[%s4997 + $0x60] sm:$0xf]
    %v5023 = vld [vmem:[%s4997 + $0x64] sm:$0xf]
    %v5024 = vld [vmem:[%s4997 + $0x68] sm:$0xf]
    %v5025 = vld [vmem:[%s4997 + $0x6c] sm:$0xf]
    %v5026 = vld [vmem:[%s4648] sm:$0xff]
    %v5027 = vld [vmem:[%s15] sm:$0xf]
    %v5028 = vld [vmem:[%s15 + $0x4] sm:$0xf]
    %v5029 = vld [vmem:[%s15 + $0x8] sm:$0xf]
    %v5030 = vld [vmem:[%s15 + $0xc] sm:$0xf]
    %v5031 = vld [vmem:[%s15 + $0x10] sm:$0xf]
    %v5032 = vld [vmem:[%s15 + $0x14] sm:$0xf]
    %v5033 = vld [vmem:[%s15 + $0x18] sm:$0xf]
    %v5034 = vld [vmem:[%s15 + $0x1c] sm:$0xf]
    %v5035 = vld [vmem:[%s15 + $0x20] sm:$0xf]
    %v5036 = vld [vmem:[%s15 + $0x24] sm:$0xf]
    %v5037 = vld [vmem:[%s15 + $0x28] sm:$0xf]
    %v5038 = vld [vmem:[%s15 + $0x2c] sm:$0xf]
    %v5039 = vld [vmem:[%s15 + $0x30] sm:$0xf]
    %v5040 = vld [vmem:[%s15 + $0x34] sm:$0xf]
    %v5041 = vld [vmem:[%s15 + $0x38] sm:$0xf]
    %v5042 = vld [vmem:[%s15 + $0x3c] sm:$0xf]
    %v5043 = vld [vmem:[%s15 + $0x40] sm:$0xf]
    %v5044 = vld [vmem:[%s15 + $0x44] sm:$0xf]
    %v5045 = vld [vmem:[%s15 + $0x48] sm:$0xf]
    %v5046 = vld [vmem:[%s15 + $0x4c] sm:$0xf]
    %v5047 = vld [vmem:[%s15 + $0x50] sm:$0xf]
    %v5048 = vld [vmem:[%s15 + $0x54] sm:$0xf]
    %v5049 = vld [vmem:[%s15 + $0x58] sm:$0xf]
    %v5050 = vld [vmem:[%s15 + $0x5c] sm:$0xf]
    %v5051 = vld [vmem:[%s15 + $0x60] sm:$0xf]
    %v5052 = vld [vmem:[%s15 + $0x64] sm:$0xf]
    %v5053 = vld [vmem:[%s15 + $0x68] sm:$0xf]
    %v5054 = vld [vmem:[%s15 + $0x6c] sm:$0xf]
    %v5056 = vunpack.c.l.b16 %v5026
    %v5057 = vunpack.c.h.b16 %v5026
    %v5058 = vpack.c.b16 %v5056, %v5056
    %v5059 = vpack.c.b16 %v5057, %v5057
    %v5061 = vshrl.u32 %v5058, 16
    %v5063 = vshll.u32 %v5058, 16
    %v5065 = vrot.slane %v5063, 1
    %v5066 = vor.u32 %v5061, %v5065
    %v5068 = vshrl.u32 %v5059, 16
    %v5070 = vshll.u32 %v5059, 16
    %v5072 = vrot.slane %v5070, 1
    %v5073 = vor.u32 %v5068, %v5072
    %v5103 = vunpack.c.l.b16 %v5027
    %v5104 = vunpack.c.l.b16 %v5028
    %v5105 = vunpack.c.l.b16 %v5029
    %v5106 = vunpack.c.l.b16 %v5030
    %v5107 = vunpack.c.l.b16 %v5031
    %v5108 = vunpack.c.l.b16 %v5032
    %v5109 = vunpack.c.l.b16 %v5033
    %v5110 = vunpack.c.l.b16 %v5034
    %v5111 = vunpack.c.l.b16 %v5035
    %v5112 = vunpack.c.l.b16 %v5036
    %v5113 = vunpack.c.l.b16 %v5037
    %v5114 = vunpack.c.l.b16 %v5038
    %v5115 = vunpack.c.l.b16 %v5039
    %v5116 = vunpack.c.l.b16 %v5040
    %v5117 = vunpack.c.l.b16 %v5041
    %v5118 = vunpack.c.l.b16 %v5042
    %v5119 = vunpack.c.l.b16 %v5043
    %v5120 = vunpack.c.l.b16 %v5044
    %v5121 = vunpack.c.l.b16 %v5045
    %v5122 = vunpack.c.l.b16 %v5046
    %v5123 = vunpack.c.l.b16 %v5047
    %v5124 = vunpack.c.l.b16 %v5048
    %v5125 = vunpack.c.l.b16 %v5049
    %v5126 = vunpack.c.l.b16 %v5050
    %v5127 = vunpack.c.l.b16 %v5051
    %v5128 = vunpack.c.l.b16 %v5052
    %v5129 = vunpack.c.l.b16 %v5053
    %v5130 = vunpack.c.l.b16 %v5054
    %v5131 = vpack.c.b16 %v5104, %v5103
    %v5132 = vpack.c.b16 %v5106, %v5105
    %v5133 = vpack.c.b16 %v5108, %v5107
    %v5134 = vpack.c.b16 %v5110, %v5109
    %v5135 = vpack.c.b16 %v5112, %v5111
    %v5136 = vpack.c.b16 %v5114, %v5113
    %v5137 = vpack.c.b16 %v5116, %v5115
    %v5138 = vpack.c.b16 %v5118, %v5117
    %v5139 = vpack.c.b16 %v5120, %v5119
    %v5140 = vpack.c.b16 %v5122, %v5121
    %v5141 = vpack.c.b16 %v5124, %v5123
    %v5142 = vpack.c.b16 %v5126, %v5125
    %v5143 = vpack.c.b16 %v5128, %v5127
    %v5144 = vpack.c.b16 %v5130, %v5129
    %v5160 = vsel %vm1061, %v5073, 0
    %5162 = vmatprep.subr.bf16.mxu0 0
    %5163 = vmatpush1.bf16.msra.mxu0 %v5138
    %5164 = vmatprep.subr.bf16.mxu0 0
    %5165 = vmatpush1.bf16.msra.mxu0 %v5137
    %5166 = vmatprep.subr.bf16.mxu0 0
    %5167 = vmatpush1.bf16.msra.mxu0 %v5136
    %5168 = vmatprep.subr.bf16.mxu0 0
    %5169 = vmatpush1.bf16.msra.mxu0 %v5135
    %5170 = vmatprep.subr.bf16.mxu0 0
    %5171 = vmatpush1.bf16.msra.mxu0 %v5134
    %5172 = vmatprep.subr.bf16.mxu0 0
    %5173 = vmatpush1.bf16.msra.mxu0 %v5133
    %5174 = vmatprep.subr.bf16.mxu0 0
    %5175 = vmatpush1.bf16.msra.mxu0 %v5132
    %5176 = vmatprep.subr.bf16.mxu0 0
    %5177 = vmatpush1.bf16.msra.mxu0 %v5131
    %5178 = vmatprep.subr.bf16.mxu0 0
    %5179 = vmatpush2.bf16.msra.mxu0 0
    %5180 = vmatprep.subr.bf16.mxu0 0
    %5181 = vmatpush2.bf16.msra.mxu0 0
    %5182 = vmatprep.subr.bf16.mxu0 0
    %5183 = vmatpush2.bf16.msra.mxu0 %v5144
    %5184 = vmatprep.subr.bf16.mxu0 0
    %5185 = vmatpush2.bf16.msra.mxu0 %v5143
    %5186 = vmatprep.subr.bf16.mxu0 0
    %5187 = vmatpush2.bf16.msra.mxu0 %v5142
    %5188 = vmatprep.subr.bf16.mxu0 0
    %5189 = vmatpush2.bf16.msra.mxu0 %v5141
    %5190 = vmatprep.subr.bf16.mxu0 0
    %5191 = vmatpush2.bf16.msra.mxu0 %v5140
    %5192 = vmatprep.subr.bf16.mxu0 0
    %5193 = vmatpush2.bf16.msra.mxu0 %v5139
    %5194 = vmatprep.mubr.bf16.mxu0 %v5160
    %5195 = vmatmul.mubr.bf16.gmra.mxu0 %v5066
    %v5196 = vpop.f32.mrf.mxu0
    %v5197 = vadd.f32 0.0, %v5196
    %v5198 = vpop.f32.mrf.mxu0
    %v5199 = vpop.f32.mrf.mxu0
    %v5200 = vpop.f32.mrf.mxu0
    %5201 = vdwg.mxu0
    %v5203 = vunpack.c.l.b16 %v4996
    %v5204 = vunpack.c.h.b16 %v4996
    %v5205 = vpack.c.b16 %v5203, %v5203
    %v5206 = vpack.c.b16 %v5204, %v5204
    %v5208 = vshrl.u32 %v5205, 16
    %v5210 = vshll.u32 %v5205, 16
    %v5212 = vrot.slane %v5210, 1
    %v5213 = vor.u32 %v5208, %v5212
    %v5215 = vshrl.u32 %v5206, 16
    %v5217 = vshll.u32 %v5206, 16
    %v5219 = vrot.slane %v5217, 1
    %v5220 = vor.u32 %v5215, %v5219
    %v5250 = vunpack.c.l.b16 %v4998
    %v5251 = vunpack.c.l.b16 %v4999
    %v5252 = vunpack.c.l.b16 %v5000
    %v5253 = vunpack.c.l.b16 %v5001
    %v5254 = vunpack.c.l.b16 %v5002
    %v5255 = vunpack.c.l.b16 %v5003
    %v5256 = vunpack.c.l.b16 %v5004
    %v5257 = vunpack.c.l.b16 %v5005
    %v5258 = vunpack.c.l.b16 %v5006
    %v5259 = vunpack.c.l.b16 %v5007
    %v5260 = vunpack.c.l.b16 %v5008
    %v5261 = vunpack.c.l.b16 %v5009
    %v5262 = vunpack.c.l.b16 %v5010
    %v5263 = vunpack.c.l.b16 %v5011
    %v5264 = vunpack.c.l.b16 %v5012
    %v5265 = vunpack.c.l.b16 %v5013
    %v5266 = vunpack.c.l.b16 %v5014
    %v5267 = vunpack.c.l.b16 %v5015
    %v5268 = vunpack.c.l.b16 %v5016
    %v5269 = vunpack.c.l.b16 %v5017
    %v5270 = vunpack.c.l.b16 %v5018
    %v5271 = vunpack.c.l.b16 %v5019
    %v5272 = vunpack.c.l.b16 %v5020
    %v5273 = vunpack.c.l.b16 %v5021
    %v5274 = vunpack.c.l.b16 %v5022
    %v5275 = vunpack.c.l.b16 %v5023
    %v5276 = vunpack.c.l.b16 %v5024
    %v5277 = vunpack.c.l.b16 %v5025
    %v5278 = vpack.c.b16 %v5251, %v5250
    %v5279 = vpack.c.b16 %v5253, %v5252
    %v5280 = vpack.c.b16 %v5255, %v5254
    %v5281 = vpack.c.b16 %v5257, %v5256
    %v5282 = vpack.c.b16 %v5259, %v5258
    %v5283 = vpack.c.b16 %v5261, %v5260
    %v5284 = vpack.c.b16 %v5263, %v5262
    %v5285 = vpack.c.b16 %v5265, %v5264
    %v5286 = vpack.c.b16 %v5267, %v5266
    %v5287 = vpack.c.b16 %v5269, %v5268
    %v5288 = vpack.c.b16 %v5271, %v5270
    %v5289 = vpack.c.b16 %v5273, %v5272
    %v5290 = vpack.c.b16 %v5275, %v5274
    %v5291 = vpack.c.b16 %v5277, %v5276
    %v5307 = vsel %vm1061, %v5220, 0
    %5309 = vmatprep.subr.bf16.mxu0 0
    %5310 = vmatpush1.bf16.msra.mxu0 %v5285
    %5311 = vmatprep.subr.bf16.mxu0 0
    %5312 = vmatpush1.bf16.msra.mxu0 %v5284
    %5313 = vmatprep.subr.bf16.mxu0 0
    %5314 = vmatpush1.bf16.msra.mxu0 %v5283
    %5315 = vmatprep.subr.bf16.mxu0 0
    %5316 = vmatpush1.bf16.msra.mxu0 %v5282
    %5317 = vmatprep.subr.bf16.mxu0 0
    %5318 = vmatpush1.bf16.msra.mxu0 %v5281
    %5319 = vmatprep.subr.bf16.mxu0 0
    %5320 = vmatpush1.bf16.msra.mxu0 %v5280
    %5321 = vmatprep.subr.bf16.mxu0 0
    %5322 = vmatpush1.bf16.msra.mxu0 %v5279
    %5323 = vmatprep.subr.bf16.mxu0 0
    %5324 = vmatpush1.bf16.msra.mxu0 %v5278
    %5325 = vmatprep.subr.bf16.mxu0 0
    %5326 = vmatpush2.bf16.msra.mxu0 0
    %5327 = vmatprep.subr.bf16.mxu0 0
    %5328 = vmatpush2.bf16.msra.mxu0 0
    %5329 = vmatprep.subr.bf16.mxu0 0
    %5330 = vmatpush2.bf16.msra.mxu0 %v5291
    %5331 = vmatprep.subr.bf16.mxu0 0
    %5332 = vmatpush2.bf16.msra.mxu0 %v5290
    %5333 = vmatprep.subr.bf16.mxu0 0
    %5334 = vmatpush2.bf16.msra.mxu0 %v5289
    %5335 = vmatprep.subr.bf16.mxu0 0
    %5336 = vmatpush2.bf16.msra.mxu0 %v5288
    %5337 = vmatprep.subr.bf16.mxu0 0
    %5338 = vmatpush2.bf16.msra.mxu0 %v5287
    %5339 = vmatprep.subr.bf16.mxu0 0
    %5340 = vmatpush2.bf16.msra.mxu0 %v5286
    %5341 = vmatprep.mubr.bf16.mxu0 %v5307
    %5342 = vmatmul.mubr.bf16.gmra.mxu0 %v5213
    %v5343 = vpop.f32.mrf.mxu0
    %v5344 = vadd.f32 %v5197, %v5343
    %v5345 = vpop.f32.mrf.mxu0
    %v5346 = vpop.f32.mrf.mxu0
    %v5347 = vpop.f32.mrf.mxu0
    %5348 = vdwg.mxu0
    %v5349 = vld [vmem:[#allocation19] sm:$0x7f]
    %v5350 = vadd.f32 %v5344, %v5349
    %s5351 = scalar_lea.vmem %s17, 8
    %5352 = vst.msk [vmem:[%s5351] sm:$0x7f] %vm4994, %v5350
    %v5353 = vld [vmem:[%s4648] sm:$0xff]
    %v5354 = vld [vmem:[%s4653] sm:$0xf]
    %v5355 = vld [vmem:[%s4653 + $0x4] sm:$0xf]
    %v5356 = vld [vmem:[%s4653 + $0x8] sm:$0xf]
    %v5357 = vld [vmem:[%s4653 + $0xc] sm:$0xf]
    %v5358 = vld [vmem:[%s4653 + $0x10] sm:$0xf]
    %v5359 = vld [vmem:[%s4653 + $0x14] sm:$0xf]
    %v5360 = vld [vmem:[%s4653 + $0x18] sm:$0xf]
    %v5361 = vld [vmem:[%s4653 + $0x1c] sm:$0xf]
    %v5362 = vld [vmem:[%s4653 + $0x20] sm:$0xf]
    %v5363 = vld [vmem:[%s4653 + $0x24] sm:$0xf]
    %v5364 = vld [vmem:[%s4653 + $0x28] sm:$0xf]
    %v5365 = vld [vmem:[%s4653 + $0x2c] sm:$0xf]
    %v5366 = vld [vmem:[%s4653 + $0x30] sm:$0xf]
    %v5367 = vld [vmem:[%s4653 + $0x34] sm:$0xf]
    %v5368 = vld [vmem:[%s4653 + $0x38] sm:$0xf]
    %v5369 = vld [vmem:[%s4653 + $0x3c] sm:$0xf]
    %v5370 = vld [vmem:[%s4653 + $0x40] sm:$0xf]
    %v5371 = vld [vmem:[%s4653 + $0x44] sm:$0xf]
    %v5372 = vld [vmem:[%s4653 + $0x48] sm:$0xf]
    %v5373 = vld [vmem:[%s4653 + $0x4c] sm:$0xf]
    %v5374 = vld [vmem:[%s4653 + $0x50] sm:$0xf]
    %v5375 = vld [vmem:[%s4653 + $0x54] sm:$0xf]
    %v5376 = vld [vmem:[%s4653 + $0x58] sm:$0xf]
    %v5377 = vld [vmem:[%s4653 + $0x5c] sm:$0xf]
    %v5378 = vld [vmem:[%s4653 + $0x60] sm:$0xf]
    %v5379 = vld [vmem:[%s4653 + $0x64] sm:$0xf]
    %v5380 = vld [vmem:[%s4653 + $0x68] sm:$0xf]
    %v5381 = vld [vmem:[%s4653 + $0x6c] sm:$0xf]
    %v5382 = vld [vmem:[#allocation4] sm:$0xff]
    %v5383 = vld [vmem:[%s4683] sm:$0xf]
    %v5384 = vld [vmem:[%s4683 + $0x4] sm:$0xf]
    %v5385 = vld [vmem:[%s4683 + $0x8] sm:$0xf]
    %v5386 = vld [vmem:[%s4683 + $0xc] sm:$0xf]
    %v5387 = vld [vmem:[%s4683 + $0x10] sm:$0xf]
    %v5388 = vld [vmem:[%s4683 + $0x14] sm:$0xf]
    %v5389 = vld [vmem:[%s4683 + $0x18] sm:$0xf]
    %v5390 = vld [vmem:[%s4683 + $0x1c] sm:$0xf]
    %v5391 = vld [vmem:[%s4683 + $0x20] sm:$0xf]
    %v5392 = vld [vmem:[%s4683 + $0x24] sm:$0xf]
    %v5393 = vld [vmem:[%s4683 + $0x28] sm:$0xf]
    %v5394 = vld [vmem:[%s4683 + $0x2c] sm:$0xf]
    %v5395 = vld [vmem:[%s4683 + $0x30] sm:$0xf]
    %v5396 = vld [vmem:[%s4683 + $0x34] sm:$0xf]
    %v5397 = vld [vmem:[%s4683 + $0x38] sm:$0xf]
    %v5398 = vld [vmem:[%s4683 + $0x3c] sm:$0xf]
    %v5399 = vld [vmem:[%s4683 + $0x40] sm:$0xf]
    %v5400 = vld [vmem:[%s4683 + $0x44] sm:$0xf]
    %v5401 = vld [vmem:[%s4683 + $0x48] sm:$0xf]
    %v5402 = vld [vmem:[%s4683 + $0x4c] sm:$0xf]
    %v5403 = vld [vmem:[%s4683 + $0x50] sm:$0xf]
    %v5404 = vld [vmem:[%s4683 + $0x54] sm:$0xf]
    %v5405 = vld [vmem:[%s4683 + $0x58] sm:$0xf]
    %v5406 = vld [vmem:[%s4683 + $0x5c] sm:$0xf]
    %v5407 = vld [vmem:[%s4683 + $0x60] sm:$0xf]
    %v5408 = vld [vmem:[%s4683 + $0x64] sm:$0xf]
    %v5409 = vld [vmem:[%s4683 + $0x68] sm:$0xf]
    %v5410 = vld [vmem:[%s4683 + $0x6c] sm:$0xf]
    %v5412 = vunpack.c.l.b16 %v5382
    %v5413 = vunpack.c.h.b16 %v5382
    %v5414 = vpack.c.b16 %v5412, %v5412
    %v5415 = vpack.c.b16 %v5413, %v5413
    %v5417 = vshrl.u32 %v5414, 16
    %v5419 = vshll.u32 %v5414, 16
    %v5421 = vrot.slane %v5419, 1
    %v5422 = vor.u32 %v5417, %v5421
    %v5424 = vshrl.u32 %v5415, 16
    %v5426 = vshll.u32 %v5415, 16
    %v5428 = vrot.slane %v5426, 1
    %v5429 = vor.u32 %v5424, %v5428
    %v5459 = vunpack.c.l.b16 %v5383
    %v5460 = vunpack.c.l.b16 %v5384
    %v5461 = vunpack.c.l.b16 %v5385
    %v5462 = vunpack.c.l.b16 %v5386
    %v5463 = vunpack.c.l.b16 %v5387
    %v5464 = vunpack.c.l.b16 %v5388
    %v5465 = vunpack.c.l.b16 %v5389
    %v5466 = vunpack.c.l.b16 %v5390
    %v5467 = vunpack.c.l.b16 %v5391
    %v5468 = vunpack.c.l.b16 %v5392
    %v5469 = vunpack.c.l.b16 %v5393
    %v5470 = vunpack.c.l.b16 %v5394
    %v5471 = vunpack.c.l.b16 %v5395
    %v5472 = vunpack.c.l.b16 %v5396
    %v5473 = vunpack.c.l.b16 %v5397
    %v5474 = vunpack.c.l.b16 %v5398
    %v5475 = vunpack.c.l.b16 %v5399
    %v5476 = vunpack.c.l.b16 %v5400
    %v5477 = vunpack.c.l.b16 %v5401
    %v5478 = vunpack.c.l.b16 %v5402
    %v5479 = vunpack.c.l.b16 %v5403
    %v5480 = vunpack.c.l.b16 %v5404
    %v5481 = vunpack.c.l.b16 %v5405
    %v5482 = vunpack.c.l.b16 %v5406
    %v5483 = vunpack.c.l.b16 %v5407
    %v5484 = vunpack.c.l.b16 %v5408
    %v5485 = vunpack.c.l.b16 %v5409
    %v5486 = vunpack.c.l.b16 %v5410
    %v5487 = vpack.c.b16 %v5460, %v5459
    %v5488 = vpack.c.b16 %v5462, %v5461
    %v5489 = vpack.c.b16 %v5464, %v5463
    %v5490 = vpack.c.b16 %v5466, %v5465
    %v5491 = vpack.c.b16 %v5468, %v5467
    %v5492 = vpack.c.b16 %v5470, %v5469
    %v5493 = vpack.c.b16 %v5472, %v5471
    %v5494 = vpack.c.b16 %v5474, %v5473
    %v5495 = vpack.c.b16 %v5476, %v5475
    %v5496 = vpack.c.b16 %v5478, %v5477
    %v5497 = vpack.c.b16 %v5480, %v5479
    %v5498 = vpack.c.b16 %v5482, %v5481
    %v5499 = vpack.c.b16 %v5484, %v5483
    %v5500 = vpack.c.b16 %v5486, %v5485
    %v5516 = vsel %vm1061, %v5429, 0
    %5518 = vmatprep.subr.bf16.mxu0 0
    %5519 = vmatpush1.bf16.msra.mxu0 %v5494
    %5520 = vmatprep.subr.bf16.mxu0 0
    %5521 = vmatpush1.bf16.msra.mxu0 %v5493
    %5522 = vmatprep.subr.bf16.mxu0 0
    %5523 = vmatpush1.bf16.msra.mxu0 %v5492
    %5524 = vmatprep.subr.bf16.mxu0 0
    %5525 = vmatpush1.bf16.msra.mxu0 %v5491
    %5526 = vmatprep.subr.bf16.mxu0 0
    %5527 = vmatpush1.bf16.msra.mxu0 %v5490
    %5528 = vmatprep.subr.bf16.mxu0 0
    %5529 = vmatpush1.bf16.msra.mxu0 %v5489
    %5530 = vmatprep.subr.bf16.mxu0 0
    %5531 = vmatpush1.bf16.msra.mxu0 %v5488
    %5532 = vmatprep.subr.bf16.mxu0 0
    %5533 = vmatpush1.bf16.msra.mxu0 %v5487
    %5534 = vmatprep.subr.bf16.mxu0 0
    %5535 = vmatpush2.bf16.msra.mxu0 0
    %5536 = vmatprep.subr.bf16.mxu0 0
    %5537 = vmatpush2.bf16.msra.mxu0 0
    %5538 = vmatprep.subr.bf16.mxu0 0
    %5539 = vmatpush2.bf16.msra.mxu0 %v5500
    %5540 = vmatprep.subr.bf16.mxu0 0
    %5541 = vmatpush2.bf16.msra.mxu0 %v5499
    %5542 = vmatprep.subr.bf16.mxu0 0
    %5543 = vmatpush2.bf16.msra.mxu0 %v5498
    %5544 = vmatprep.subr.bf16.mxu0 0
    %5545 = vmatpush2.bf16.msra.mxu0 %v5497
    %5546 = vmatprep.subr.bf16.mxu0 0
    %5547 = vmatpush2.bf16.msra.mxu0 %v5496
    %5548 = vmatprep.subr.bf16.mxu0 0
    %5549 = vmatpush2.bf16.msra.mxu0 %v5495
    %5550 = vmatprep.mubr.bf16.mxu0 %v5516
    %5551 = vmatmul.mubr.bf16.gmra.mxu0 %v5422
    %v5552 = vpop.f32.mrf.mxu0
    %v5553 = vadd.f32 0.0, %v5552
    %v5554 = vpop.f32.mrf.mxu0
    %v5555 = vpop.f32.mrf.mxu0
    %v5556 = vpop.f32.mrf.mxu0
    %5557 = vdwg.mxu0
    %v5559 = vunpack.c.l.b16 %v5353
    %v5560 = vunpack.c.h.b16 %v5353
    %v5561 = vpack.c.b16 %v5559, %v5559
    %v5562 = vpack.c.b16 %v5560, %v5560
    %v5564 = vshrl.u32 %v5561, 16
    %v5566 = vshll.u32 %v5561, 16
    %v5568 = vrot.slane %v5566, 1
    %v5569 = vor.u32 %v5564, %v5568
    %v5571 = vshrl.u32 %v5562, 16
    %v5573 = vshll.u32 %v5562, 16
    %v5575 = vrot.slane %v5573, 1
    %v5576 = vor.u32 %v5571, %v5575
    %v5606 = vunpack.c.l.b16 %v5354
    %v5607 = vunpack.c.l.b16 %v5355
    %v5608 = vunpack.c.l.b16 %v5356
    %v5609 = vunpack.c.l.b16 %v5357
    %v5610 = vunpack.c.l.b16 %v5358
    %v5611 = vunpack.c.l.b16 %v5359
    %v5612 = vunpack.c.l.b16 %v5360
    %v5613 = vunpack.c.l.b16 %v5361
    %v5614 = vunpack.c.l.b16 %v5362
    %v5615 = vunpack.c.l.b16 %v5363
    %v5616 = vunpack.c.l.b16 %v5364
    %v5617 = vunpack.c.l.b16 %v5365
    %v5618 = vunpack.c.l.b16 %v5366
    %v5619 = vunpack.c.l.b16 %v5367
    %v5620 = vunpack.c.l.b16 %v5368
    %v5621 = vunpack.c.l.b16 %v5369
    %v5622 = vunpack.c.l.b16 %v5370
    %v5623 = vunpack.c.l.b16 %v5371
    %v5624 = vunpack.c.l.b16 %v5372
    %v5625 = vunpack.c.l.b16 %v5373
    %v5626 = vunpack.c.l.b16 %v5374
    %v5627 = vunpack.c.l.b16 %v5375
    %v5628 = vunpack.c.l.b16 %v5376
    %v5629 = vunpack.c.l.b16 %v5377
    %v5630 = vunpack.c.l.b16 %v5378
    %v5631 = vunpack.c.l.b16 %v5379
    %v5632 = vunpack.c.l.b16 %v5380
    %v5633 = vunpack.c.l.b16 %v5381
    %v5634 = vpack.c.b16 %v5607, %v5606
    %v5635 = vpack.c.b16 %v5609, %v5608
    %v5636 = vpack.c.b16 %v5611, %v5610
    %v5637 = vpack.c.b16 %v5613, %v5612
    %v5638 = vpack.c.b16 %v5615, %v5614
    %v5639 = vpack.c.b16 %v5617, %v5616
    %v5640 = vpack.c.b16 %v5619, %v5618
    %v5641 = vpack.c.b16 %v5621, %v5620
    %v5642 = vpack.c.b16 %v5623, %v5622
    %v5643 = vpack.c.b16 %v5625, %v5624
    %v5644 = vpack.c.b16 %v5627, %v5626
    %v5645 = vpack.c.b16 %v5629, %v5628
    %v5646 = vpack.c.b16 %v5631, %v5630
    %v5647 = vpack.c.b16 %v5633, %v5632
    %v5663 = vsel %vm1061, %v5576, 0
    %5665 = vmatprep.subr.bf16.mxu0 0
    %5666 = vmatpush1.bf16.msra.mxu0 %v5641
    %5667 = vmatprep.subr.bf16.mxu0 0
    %5668 = vmatpush1.bf16.msra.mxu0 %v5640
    %5669 = vmatprep.subr.bf16.mxu0 0
    %5670 = vmatpush1.bf16.msra.mxu0 %v5639
    %5671 = vmatprep.subr.bf16.mxu0 0
    %5672 = vmatpush1.bf16.msra.mxu0 %v5638
    %5673 = vmatprep.subr.bf16.mxu0 0
    %5674 = vmatpush1.bf16.msra.mxu0 %v5637
    %5675 = vmatprep.subr.bf16.mxu0 0
    %5676 = vmatpush1.bf16.msra.mxu0 %v5636
    %5677 = vmatprep.subr.bf16.mxu0 0
    %5678 = vmatpush1.bf16.msra.mxu0 %v5635
    %5679 = vmatprep.subr.bf16.mxu0 0
    %5680 = vmatpush1.bf16.msra.mxu0 %v5634
    %5681 = vmatprep.subr.bf16.mxu0 0
    %5682 = vmatpush2.bf16.msra.mxu0 0
    %5683 = vmatprep.subr.bf16.mxu0 0
    %5684 = vmatpush2.bf16.msra.mxu0 0
    %5685 = vmatprep.subr.bf16.mxu0 0
    %5686 = vmatpush2.bf16.msra.mxu0 %v5647
    %5687 = vmatprep.subr.bf16.mxu0 0
    %5688 = vmatpush2.bf16.msra.mxu0 %v5646
    %5689 = vmatprep.subr.bf16.mxu0 0
    %5690 = vmatpush2.bf16.msra.mxu0 %v5645
    %5691 = vmatprep.subr.bf16.mxu0 0
    %5692 = vmatpush2.bf16.msra.mxu0 %v5644
    %5693 = vmatprep.subr.bf16.mxu0 0
    %5694 = vmatpush2.bf16.msra.mxu0 %v5643
    %5695 = vmatprep.subr.bf16.mxu0 0
    %5696 = vmatpush2.bf16.msra.mxu0 %v5642
    %5697 = vmatprep.mubr.bf16.mxu0 %v5663
    %5698 = vmatmul.mubr.bf16.gmra.mxu0 %v5569
    %v5699 = vpop.f32.mrf.mxu0
    %v5700 = vadd.f32 %v5553, %v5699
    %v5701 = vpop.f32.mrf.mxu0
    %v5702 = vpop.f32.mrf.mxu0
    %v5703 = vpop.f32.mrf.mxu0
    %5704 = vdwg.mxu0
    %v5705 = vld [vmem:[#allocation19] sm:$0x7f]
    %v5706 = vadd.f32 %v5700, %v5705
    %s5707 = scalar_lea.vmem %s17, 16
    %5708 = vst.msk [vmem:[%s5707] sm:$0x7f] %vm4994, %v5706
    %v5709 = vld [vmem:[%s4648] sm:$0xff]
    %v5710 = vld [vmem:[%s4997] sm:$0xf]
    %v5711 = vld [vmem:[%s4997 + $0x4] sm:$0xf]
    %v5712 = vld [vmem:[%s4997 + $0x8] sm:$0xf]
    %v5713 = vld [vmem:[%s4997 + $0xc] sm:$0xf]
    %v5714 = vld [vmem:[%s4997 + $0x10] sm:$0xf]
    %v5715 = vld [vmem:[%s4997 + $0x14] sm:$0xf]
    %v5716 = vld [vmem:[%s4997 + $0x18] sm:$0xf]
    %v5717 = vld [vmem:[%s4997 + $0x1c] sm:$0xf]
    %v5718 = vld [vmem:[%s4997 + $0x20] sm:$0xf]
    %v5719 = vld [vmem:[%s4997 + $0x24] sm:$0xf]
    %v5720 = vld [vmem:[%s4997 + $0x28] sm:$0xf]
    %v5721 = vld [vmem:[%s4997 + $0x2c] sm:$0xf]
    %v5722 = vld [vmem:[%s4997 + $0x30] sm:$0xf]
    %v5723 = vld [vmem:[%s4997 + $0x34] sm:$0xf]
    %v5724 = vld [vmem:[%s4997 + $0x38] sm:$0xf]
    %v5725 = vld [vmem:[%s4997 + $0x3c] sm:$0xf]
    %v5726 = vld [vmem:[%s4997 + $0x40] sm:$0xf]
    %v5727 = vld [vmem:[%s4997 + $0x44] sm:$0xf]
    %v5728 = vld [vmem:[%s4997 + $0x48] sm:$0xf]
    %v5729 = vld [vmem:[%s4997 + $0x4c] sm:$0xf]
    %v5730 = vld [vmem:[%s4997 + $0x50] sm:$0xf]
    %v5731 = vld [vmem:[%s4997 + $0x54] sm:$0xf]
    %v5732 = vld [vmem:[%s4997 + $0x58] sm:$0xf]
    %v5733 = vld [vmem:[%s4997 + $0x5c] sm:$0xf]
    %v5734 = vld [vmem:[%s4997 + $0x60] sm:$0xf]
    %v5735 = vld [vmem:[%s4997 + $0x64] sm:$0xf]
    %v5736 = vld [vmem:[%s4997 + $0x68] sm:$0xf]
    %v5737 = vld [vmem:[%s4997 + $0x6c] sm:$0xf]
    %v5738 = vld [vmem:[#allocation4] sm:$0xee]
    %v5739 = vld [vmem:[#allocation4 + $0x8] sm:$0x11]
    %v5740 = vld [vmem:[%s15] sm:$0xf]
    %v5741 = vld [vmem:[%s15 + $0x4] sm:$0xf]
    %v5742 = vld [vmem:[%s15 + $0x8] sm:$0xf]
    %v5743 = vld [vmem:[%s15 + $0xc] sm:$0xf]
    %v5744 = vld [vmem:[%s15 + $0x10] sm:$0xf]
    %v5745 = vld [vmem:[%s15 + $0x14] sm:$0xf]
    %v5746 = vld [vmem:[%s15 + $0x18] sm:$0xf]
    %v5747 = vld [vmem:[%s15 + $0x1c] sm:$0xf]
    %v5748 = vld [vmem:[%s15 + $0x20] sm:$0xf]
    %v5749 = vld [vmem:[%s15 + $0x24] sm:$0xf]
    %v5750 = vld [vmem:[%s15 + $0x28] sm:$0xf]
    %v5751 = vld [vmem:[%s15 + $0x2c] sm:$0xf]
    %v5752 = vld [vmem:[%s15 + $0x30] sm:$0xf]
    %v5753 = vld [vmem:[%s15 + $0x34] sm:$0xf]
    %v5754 = vld [vmem:[%s15 + $0x38] sm:$0xf]
    %v5755 = vld [vmem:[%s15 + $0x3c] sm:$0xf]
    %v5756 = vld [vmem:[%s15 + $0x40] sm:$0xf]
    %v5757 = vld [vmem:[%s15 + $0x44] sm:$0xf]
    %v5758 = vld [vmem:[%s15 + $0x48] sm:$0xf]
    %v5759 = vld [vmem:[%s15 + $0x4c] sm:$0xf]
    %v5760 = vld [vmem:[%s15 + $0x50] sm:$0xf]
    %v5761 = vld [vmem:[%s15 + $0x54] sm:$0xf]
    %v5762 = vld [vmem:[%s15 + $0x58] sm:$0xf]
    %v5763 = vld [vmem:[%s15 + $0x5c] sm:$0xf]
    %v5764 = vld [vmem:[%s15 + $0x60] sm:$0xf]
    %v5765 = vld [vmem:[%s15 + $0x64] sm:$0xf]
    %v5766 = vld [vmem:[%s15 + $0x68] sm:$0xf]
    %v5767 = vld [vmem:[%s15 + $0x6c] sm:$0xf]
    %v5770 = vunpack.c.l.b16 %v5738
    %v5771 = vunpack.c.h.b16 %v5738
    %v5772 = vunpack.c.l.b16 %v5739
    %v5773 = vunpack.c.h.b16 %v5739
    %v5774 = vpack.c.b16 %v5772, %v5770
    %v5775 = vpack.c.b16 %v5773, %v5771
    %v5776 = vrot.slane %v5774, 1
    %v5777 = vrot.slane %v5775, 1
    %v5807 = vunpack.c.l.b16 %v5740
    %v5808 = vunpack.c.l.b16 %v5741
    %v5809 = vunpack.c.l.b16 %v5742
    %v5810 = vunpack.c.l.b16 %v5743
    %v5811 = vunpack.c.l.b16 %v5744
    %v5812 = vunpack.c.l.b16 %v5745
    %v5813 = vunpack.c.l.b16 %v5746
    %v5814 = vunpack.c.l.b16 %v5747
    %v5815 = vunpack.c.l.b16 %v5748
    %v5816 = vunpack.c.l.b16 %v5749
    %v5817 = vunpack.c.l.b16 %v5750
    %v5818 = vunpack.c.l.b16 %v5751
    %v5819 = vunpack.c.l.b16 %v5752
    %v5820 = vunpack.c.l.b16 %v5753
    %v5821 = vunpack.c.l.b16 %v5754
    %v5822 = vunpack.c.l.b16 %v5755
    %v5823 = vunpack.c.l.b16 %v5756
    %v5824 = vunpack.c.l.b16 %v5757
    %v5825 = vunpack.c.l.b16 %v5758
    %v5826 = vunpack.c.l.b16 %v5759
    %v5827 = vunpack.c.l.b16 %v5760
    %v5828 = vunpack.c.l.b16 %v5761
    %v5829 = vunpack.c.l.b16 %v5762
    %v5830 = vunpack.c.l.b16 %v5763
    %v5831 = vunpack.c.l.b16 %v5764
    %v5832 = vunpack.c.l.b16 %v5765
    %v5833 = vunpack.c.l.b16 %v5766
    %v5834 = vunpack.c.l.b16 %v5767
    %v5835 = vpack.c.b16 %v5808, %v5807
    %v5836 = vpack.c.b16 %v5810, %v5809
    %v5837 = vpack.c.b16 %v5812, %v5811
    %v5838 = vpack.c.b16 %v5814, %v5813
    %v5839 = vpack.c.b16 %v5816, %v5815
    %v5840 = vpack.c.b16 %v5818, %v5817
    %v5841 = vpack.c.b16 %v5820, %v5819
    %v5842 = vpack.c.b16 %v5822, %v5821
    %v5843 = vpack.c.b16 %v5824, %v5823
    %v5844 = vpack.c.b16 %v5826, %v5825
    %v5845 = vpack.c.b16 %v5828, %v5827
    %v5846 = vpack.c.b16 %v5830, %v5829
    %v5847 = vpack.c.b16 %v5832, %v5831
    %v5848 = vpack.c.b16 %v5834, %v5833
    %v5864 = vsel %vm1061, %v5777, 0
    %5866 = vmatprep.subr.bf16.mxu0 0
    %5867 = vmatpush1.bf16.msra.mxu0 %v5842
    %5868 = vmatprep.subr.bf16.mxu0 0
    %5869 = vmatpush1.bf16.msra.mxu0 %v5841
    %5870 = vmatprep.subr.bf16.mxu0 0
    %5871 = vmatpush1.bf16.msra.mxu0 %v5840
    %5872 = vmatprep.subr.bf16.mxu0 0
    %5873 = vmatpush1.bf16.msra.mxu0 %v5839
    %5874 = vmatprep.subr.bf16.mxu0 0
    %5875 = vmatpush1.bf16.msra.mxu0 %v5838
    %5876 = vmatprep.subr.bf16.mxu0 0
    %5877 = vmatpush1.bf16.msra.mxu0 %v5837
    %5878 = vmatprep.subr.bf16.mxu0 0
    %5879 = vmatpush1.bf16.msra.mxu0 %v5836
    %5880 = vmatprep.subr.bf16.mxu0 0
    %5881 = vmatpush1.bf16.msra.mxu0 %v5835
    %5882 = vmatprep.subr.bf16.mxu0 0
    %5883 = vmatpush2.bf16.msra.mxu0 0
    %5884 = vmatprep.subr.bf16.mxu0 0
    %5885 = vmatpush2.bf16.msra.mxu0 0
    %5886 = vmatprep.subr.bf16.mxu0 0
    %5887 = vmatpush2.bf16.msra.mxu0 %v5848
    %5888 = vmatprep.subr.bf16.mxu0 0
    %5889 = vmatpush2.bf16.msra.mxu0 %v5847
    %5890 = vmatprep.subr.bf16.mxu0 0
    %5891 = vmatpush2.bf16.msra.mxu0 %v5846
    %5892 = vmatprep.subr.bf16.mxu0 0
    %5893 = vmatpush2.bf16.msra.mxu0 %v5845
    %5894 = vmatprep.subr.bf16.mxu0 0
    %5895 = vmatpush2.bf16.msra.mxu0 %v5844
    %5896 = vmatprep.subr.bf16.mxu0 0
    %5897 = vmatpush2.bf16.msra.mxu0 %v5843
    %5898 = vmatprep.mubr.bf16.mxu0 %v5864
    %5899 = vmatmul.mubr.bf16.gmra.mxu0 %v5776
    %v5900 = vpop.f32.mrf.mxu0
    %v5901 = vadd.f32 0.0, %v5900
    %v5902 = vpop.f32.mrf.mxu0
    %v5903 = vpop.f32.mrf.mxu0
    %v5904 = vpop.f32.mrf.mxu0
    %5905 = vdwg.mxu0
    %v5907 = vunpack.c.l.b16 %v5709
    %v5908 = vunpack.c.h.b16 %v5709
    %v5909 = vpack.c.b16 %v5907, %v5907
    %v5910 = vpack.c.b16 %v5908, %v5908
    %v5912 = vshrl.u32 %v5909, 16
    %v5914 = vshll.u32 %v5909, 16
    %v5916 = vrot.slane %v5914, 1
    %v5917 = vor.u32 %v5912, %v5916
    %v5919 = vshrl.u32 %v5910, 16
    %v5921 = vshll.u32 %v5910, 16
    %v5923 = vrot.slane %v5921, 1
    %v5924 = vor.u32 %v5919, %v5923
    %v5954 = vunpack.c.l.b16 %v5710
    %v5955 = vunpack.c.l.b16 %v5711
    %v5956 = vunpack.c.l.b16 %v5712
    %v5957 = vunpack.c.l.b16 %v5713
    %v5958 = vunpack.c.l.b16 %v5714
    %v5959 = vunpack.c.l.b16 %v5715
    %v5960 = vunpack.c.l.b16 %v5716
    %v5961 = vunpack.c.l.b16 %v5717
    %v5962 = vunpack.c.l.b16 %v5718
    %v5963 = vunpack.c.l.b16 %v5719
    %v5964 = vunpack.c.l.b16 %v5720
    %v5965 = vunpack.c.l.b16 %v5721
    %v5966 = vunpack.c.l.b16 %v5722
    %v5967 = vunpack.c.l.b16 %v5723
    %v5968 = vunpack.c.l.b16 %v5724
    %v5969 = vunpack.c.l.b16 %v5725
    %v5970 = vunpack.c.l.b16 %v5726
    %v5971 = vunpack.c.l.b16 %v5727
    %v5972 = vunpack.c.l.b16 %v5728
    %v5973 = vunpack.c.l.b16 %v5729
    %v5974 = vunpack.c.l.b16 %v5730
    %v5975 = vunpack.c.l.b16 %v5731
    %v5976 = vunpack.c.l.b16 %v5732
    %v5977 = vunpack.c.l.b16 %v5733
    %v5978 = vunpack.c.l.b16 %v5734
    %v5979 = vunpack.c.l.b16 %v5735
    %v5980 = vunpack.c.l.b16 %v5736
    %v5981 = vunpack.c.l.b16 %v5737
    %v5982 = vpack.c.b16 %v5955, %v5954
    %v5983 = vpack.c.b16 %v5957, %v5956
    %v5984 = vpack.c.b16 %v5959, %v5958
    %v5985 = vpack.c.b16 %v5961, %v5960
    %v5986 = vpack.c.b16 %v5963, %v5962
    %v5987 = vpack.c.b16 %v5965, %v5964
    %v5988 = vpack.c.b16 %v5967, %v5966
    %v5989 = vpack.c.b16 %v5969, %v5968
    %v5990 = vpack.c.b16 %v5971, %v5970
    %v5991 = vpack.c.b16 %v5973, %v5972
    %v5992 = vpack.c.b16 %v5975, %v5974
    %v5993 = vpack.c.b16 %v5977, %v5976
    %v5994 = vpack.c.b16 %v5979, %v5978
    %v5995 = vpack.c.b16 %v5981, %v5980
    %v6011 = vsel %vm1061, %v5924, 0
    %6013 = vmatprep.subr.bf16.mxu0 0
    %6014 = vmatpush1.bf16.msra.mxu0 %v5989
    %6015 = vmatprep.subr.bf16.mxu0 0
    %6016 = vmatpush1.bf16.msra.mxu0 %v5988
    %6017 = vmatprep.subr.bf16.mxu0 0
    %6018 = vmatpush1.bf16.msra.mxu0 %v5987
    %6019 = vmatprep.subr.bf16.mxu0 0
    %6020 = vmatpush1.bf16.msra.mxu0 %v5986
    %6021 = vmatprep.subr.bf16.mxu0 0
    %6022 = vmatpush1.bf16.msra.mxu0 %v5985
    %6023 = vmatprep.subr.bf16.mxu0 0
    %6024 = vmatpush1.bf16.msra.mxu0 %v5984
    %6025 = vmatprep.subr.bf16.mxu0 0
    %6026 = vmatpush1.bf16.msra.mxu0 %v5983
    %6027 = vmatprep.subr.bf16.mxu0 0
    %6028 = vmatpush1.bf16.msra.mxu0 %v5982
    %6029 = vmatprep.subr.bf16.mxu0 0
    %6030 = vmatpush2.bf16.msra.mxu0 0
    %6031 = vmatprep.subr.bf16.mxu0 0
    %6032 = vmatpush2.bf16.msra.mxu0 0
    %6033 = vmatprep.subr.bf16.mxu0 0
    %6034 = vmatpush2.bf16.msra.mxu0 %v5995
    %6035 = vmatprep.subr.bf16.mxu0 0
    %6036 = vmatpush2.bf16.msra.mxu0 %v5994
    %6037 = vmatprep.subr.bf16.mxu0 0
    %6038 = vmatpush2.bf16.msra.mxu0 %v5993
    %6039 = vmatprep.subr.bf16.mxu0 0
    %6040 = vmatpush2.bf16.msra.mxu0 %v5992
    %6041 = vmatprep.subr.bf16.mxu0 0
    %6042 = vmatpush2.bf16.msra.mxu0 %v5991
    %6043 = vmatprep.subr.bf16.mxu0 0
    %6044 = vmatpush2.bf16.msra.mxu0 %v5990
    %6045 = vmatprep.mubr.bf16.mxu0 %v6011
    %6046 = vmatmul.mubr.bf16.gmra.mxu0 %v5917
    %v6047 = vpop.f32.mrf.mxu0
    %v6048 = vadd.f32 %v5901, %v6047
    %v6049 = vpop.f32.mrf.mxu0
    %v6050 = vpop.f32.mrf.mxu0
    %v6051 = vpop.f32.mrf.mxu0
    %6052 = vdwg.mxu0
    %v6053 = vld [vmem:[#allocation19] sm:$0x7f]
    %v6054 = vadd.f32 %v6048, %v6053
    %s6055 = scalar_lea.vmem %s17, 24
    %6056 = vst.msk [vmem:[%s6055] sm:$0x7f] %vm4994, %v6054
    %s6057 = scalar_lea.vmem %s0, 4
    %v6058 = vld [vmem:[%s6057] sm:$0xf]
    %v6059 = vld [vmem:[#allocation5] sm:$0xff]
    %v6060 = vld [vmem:[#allocation5 + $0x8] sm:$0xff]
    %v6061 = vld [vmem:[#allocation5 + $0x10] sm:$0xff]
    %v6062 = vld [vmem:[#allocation5 + $0x18] sm:$0xff]
    %s6063 = scalar_lea.vmem %s0, 12
    %v6064 = vld [vmem:[%s6063] sm:$0xf]
    %v6065 = vld [vmem:[%s222] sm:$0xff]
    %v6066 = vld [vmem:[%s222 + $0x8] sm:$0xff]
    %v6067 = vld [vmem:[%s222 + $0x10] sm:$0xff]
    %v6068 = vld [vmem:[%s222 + $0x18] sm:$0xff]
    %v6073 = vunpack.c.l.b16 %v6065
    %v6074 = vunpack.c.h.b16 %v6065
    %v6075 = vunpack.c.l.b16 %v6066
    %v6076 = vunpack.c.h.b16 %v6066
    %v6077 = vunpack.c.l.b16 %v6067
    %v6078 = vunpack.c.h.b16 %v6067
    %v6079 = vunpack.c.l.b16 %v6068
    %v6080 = vunpack.c.h.b16 %v6068
    %v6081 = vpack.c.b16 %v6075, %v6073
    %v6082 = vpack.c.b16 %v6076, %v6074
    %v6083 = vpack.c.b16 %v6079, %v6077
    %v6084 = vpack.c.b16 %v6080, %v6078
    %v6090 = vsel %vm247, %v6064, 0
    %6092 = vmatprep.subr.bf16.mxu0 0
    %6093 = vmatpush1.bf16.msra.mxu0 0
    %6094 = vmatprep.subr.bf16.mxu0 0
    %6095 = vmatpush1.bf16.msra.mxu0 0
    %6096 = vmatprep.subr.bf16.mxu0 0
    %6097 = vmatpush1.bf16.msra.mxu0 0
    %6098 = vmatprep.subr.bf16.mxu0 0
    %6099 = vmatpush1.bf16.msra.mxu0 0
    %6100 = vmatprep.subr.bf16.mxu0 0
    %6101 = vmatpush1.bf16.msra.mxu0 0
    %6102 = vmatprep.subr.bf16.mxu0 0
    %6103 = vmatpush1.bf16.msra.mxu0 0
    %6104 = vmatprep.subr.bf16.mxu0 %v6084
    %6105 = vmatpush1.bf16.msra.mxu0 %v6083
    %6106 = vmatprep.subr.bf16.mxu0 %v6082
    %6107 = vmatpush1.bf16.msra.mxu0 %v6081
    %6108 = vmatprep.subr.bf16.mxu0 0
    %6109 = vmatpush2.bf16.msra.mxu0 0
    %6110 = vmatprep.subr.bf16.mxu0 0
    %6111 = vmatpush2.bf16.msra.mxu0 0
    %6112 = vmatprep.subr.bf16.mxu0 0
    %6113 = vmatpush2.bf16.msra.mxu0 0
    %6114 = vmatprep.subr.bf16.mxu0 0
    %6115 = vmatpush2.bf16.msra.mxu0 0
    %6116 = vmatprep.subr.bf16.mxu0 0
    %6117 = vmatpush2.bf16.msra.mxu0 0
    %6118 = vmatprep.subr.bf16.mxu0 0
    %6119 = vmatpush2.bf16.msra.mxu0 0
    %6120 = vmatprep.subr.bf16.mxu0 0
    %6121 = vmatpush2.bf16.msra.mxu0 0
    %6122 = vmatprep.subr.bf16.mxu0 0
    %6123 = vmatpush2.bf16.msra.mxu0 0
    %6124 = vmatprep.mubr.bf16.mxu0 0
    %6125 = vmatmul.mubr.bf16.gmra.mxu0 %v6090
    %v6126 = vpop.f32.mrf.mxu0
    %v6127 = vadd.f32 0.0, %v6126
    %v6128 = vpop.f32.mrf.mxu0
    %v6129 = vadd.f32 0.0, %v6128
    %v6130 = vpop.f32.mrf.mxu0
    %v6131 = vpop.f32.mrf.mxu0
    %6132 = vdwg.mxu0
    %s6133 = scalar_lea.vmem %s0, 20
    %v6134 = vld [vmem:[%s6133] sm:$0xf]
    %v6135 = vld [vmem:[%s294] sm:$0xff]
    %v6136 = vld [vmem:[%s294 + $0x8] sm:$0xff]
    %v6137 = vld [vmem:[%s294 + $0x10] sm:$0xff]
    %v6138 = vld [vmem:[%s294 + $0x18] sm:$0xff]
    %v6143 = vunpack.c.l.b16 %v6135
    %v6144 = vunpack.c.h.b16 %v6135
    %v6145 = vunpack.c.l.b16 %v6136
    %v6146 = vunpack.c.h.b16 %v6136
    %v6147 = vunpack.c.l.b16 %v6137
    %v6148 = vunpack.c.h.b16 %v6137
    %v6149 = vunpack.c.l.b16 %v6138
    %v6150 = vunpack.c.h.b16 %v6138
    %v6151 = vpack.c.b16 %v6145, %v6143
    %v6152 = vpack.c.b16 %v6146, %v6144
    %v6153 = vpack.c.b16 %v6149, %v6147
    %v6154 = vpack.c.b16 %v6150, %v6148
    %v6160 = vsel %vm247, %v6134, 0
    %6162 = vmatprep.subr.bf16.mxu0 0
    %6163 = vmatpush1.bf16.msra.mxu0 0
    %6164 = vmatprep.subr.bf16.mxu0 0
    %6165 = vmatpush1.bf16.msra.mxu0 0
    %6166 = vmatprep.subr.bf16.mxu0 0
    %6167 = vmatpush1.bf16.msra.mxu0 0
    %6168 = vmatprep.subr.bf16.mxu0 0
    %6169 = vmatpush1.bf16.msra.mxu0 0
    %6170 = vmatprep.subr.bf16.mxu0 0
    %6171 = vmatpush1.bf16.msra.mxu0 0
    %6172 = vmatprep.subr.bf16.mxu0 0
    %6173 = vmatpush1.bf16.msra.mxu0 0
    %6174 = vmatprep.subr.bf16.mxu0 %v6154
    %6175 = vmatpush1.bf16.msra.mxu0 %v6153
    %6176 = vmatprep.subr.bf16.mxu0 %v6152
    %6177 = vmatpush1.bf16.msra.mxu0 %v6151
    %6178 = vmatprep.subr.bf16.mxu0 0
    %6179 = vmatpush2.bf16.msra.mxu0 0
    %6180 = vmatprep.subr.bf16.mxu0 0
    %6181 = vmatpush2.bf16.msra.mxu0 0
    %6182 = vmatprep.subr.bf16.mxu0 0
    %6183 = vmatpush2.bf16.msra.mxu0 0
    %6184 = vmatprep.subr.bf16.mxu0 0
    %6185 = vmatpush2.bf16.msra.mxu0 0
    %6186 = vmatprep.subr.bf16.mxu0 0
    %6187 = vmatpush2.bf16.msra.mxu0 0
    %6188 = vmatprep.subr.bf16.mxu0 0
    %6189 = vmatpush2.bf16.msra.mxu0 0
    %6190 = vmatprep.subr.bf16.mxu0 0
    %6191 = vmatpush2.bf16.msra.mxu0 0
    %6192 = vmatprep.subr.bf16.mxu0 0
    %6193 = vmatpush2.bf16.msra.mxu0 0
    %6194 = vmatprep.mubr.bf16.mxu0 0
    %6195 = vmatmul.mubr.bf16.gmra.mxu0 %v6160
    %v6196 = vpop.f32.mrf.mxu0
    %v6197 = vadd.f32 0.0, %v6196
    %v6198 = vpop.f32.mrf.mxu0
    %v6199 = vadd.f32 0.0, %v6198
    %v6200 = vpop.f32.mrf.mxu0
    %v6201 = vpop.f32.mrf.mxu0
    %6202 = vdwg.mxu0
    %s6203 = scalar_lea.vmem %s0, 28
    %v6204 = vld [vmem:[%s6203] sm:$0xf]
    %v6205 = vld [vmem:[%s365] sm:$0xff]
    %v6206 = vld [vmem:[%s365 + $0x8] sm:$0xff]
    %v6207 = vld [vmem:[%s365 + $0x10] sm:$0xff]
    %v6208 = vld [vmem:[%s365 + $0x18] sm:$0xff]
    %v6213 = vunpack.c.l.b16 %v6205
    %v6214 = vunpack.c.h.b16 %v6205
    %v6215 = vunpack.c.l.b16 %v6206
    %v6216 = vunpack.c.h.b16 %v6206
    %v6217 = vunpack.c.l.b16 %v6207
    %v6218 = vunpack.c.h.b16 %v6207
    %v6219 = vunpack.c.l.b16 %v6208
    %v6220 = vunpack.c.h.b16 %v6208
    %v6221 = vpack.c.b16 %v6215, %v6213
    %v6222 = vpack.c.b16 %v6216, %v6214
    %v6223 = vpack.c.b16 %v6219, %v6217
    %v6224 = vpack.c.b16 %v6220, %v6218
    %v6230 = vsel %vm247, %v6204, 0
    %6232 = vmatprep.subr.bf16.mxu0 0
    %6233 = vmatpush1.bf16.msra.mxu0 0
    %6234 = vmatprep.subr.bf16.mxu0 0
    %6235 = vmatpush1.bf16.msra.mxu0 0
    %6236 = vmatprep.subr.bf16.mxu0 0
    %6237 = vmatpush1.bf16.msra.mxu0 0
    %6238 = vmatprep.subr.bf16.mxu0 0
    %6239 = vmatpush1.bf16.msra.mxu0 0
    %6240 = vmatprep.subr.bf16.mxu0 0
    %6241 = vmatpush1.bf16.msra.mxu0 0
    %6242 = vmatprep.subr.bf16.mxu0 0
    %6243 = vmatpush1.bf16.msra.mxu0 0
    %6244 = vmatprep.subr.bf16.mxu0 %v6224
    %6245 = vmatpush1.bf16.msra.mxu0 %v6223
    %6246 = vmatprep.subr.bf16.mxu0 %v6222
    %6247 = vmatpush1.bf16.msra.mxu0 %v6221
    %6248 = vmatprep.subr.bf16.mxu0 0
    %6249 = vmatpush2.bf16.msra.mxu0 0
    %6250 = vmatprep.subr.bf16.mxu0 0
    %6251 = vmatpush2.bf16.msra.mxu0 0
    %6252 = vmatprep.subr.bf16.mxu0 0
    %6253 = vmatpush2.bf16.msra.mxu0 0
    %6254 = vmatprep.subr.bf16.mxu0 0
    %6255 = vmatpush2.bf16.msra.mxu0 0
    %6256 = vmatprep.subr.bf16.mxu0 0
    %6257 = vmatpush2.bf16.msra.mxu0 0
    %6258 = vmatprep.subr.bf16.mxu0 0
    %6259 = vmatpush2.bf16.msra.mxu0 0
    %6260 = vmatprep.subr.bf16.mxu0 0
    %6261 = vmatpush2.bf16.msra.mxu0 0
    %6262 = vmatprep.subr.bf16.mxu0 0
    %6263 = vmatpush2.bf16.msra.mxu0 0
    %6264 = vmatprep.mubr.bf16.mxu0 0
    %6265 = vmatmul.mubr.bf16.gmra.mxu0 %v6230
    %v6266 = vpop.f32.mrf.mxu0
    %v6267 = vadd.f32 0.0, %v6266
    %v6268 = vpop.f32.mrf.mxu0
    %v6269 = vadd.f32 0.0, %v6268
    %v6270 = vpop.f32.mrf.mxu0
    %v6271 = vpop.f32.mrf.mxu0
    %6272 = vdwg.mxu0
    %v6277 = vunpack.c.l.b16 %v6059
    %v6278 = vunpack.c.h.b16 %v6059
    %v6279 = vunpack.c.l.b16 %v6060
    %v6280 = vunpack.c.h.b16 %v6060
    %v6281 = vunpack.c.l.b16 %v6061
    %v6282 = vunpack.c.h.b16 %v6061
    %v6283 = vunpack.c.l.b16 %v6062
    %v6284 = vunpack.c.h.b16 %v6062
    %v6285 = vpack.c.b16 %v6279, %v6277
    %v6286 = vpack.c.b16 %v6280, %v6278
    %v6287 = vpack.c.b16 %v6283, %v6281
    %v6288 = vpack.c.b16 %v6284, %v6282
    %v6294 = vsel %vm247, %v6058, 0
    %6296 = vmatprep.subr.bf16.mxu0 0
    %6297 = vmatpush1.bf16.msra.mxu0 0
    %6298 = vmatprep.subr.bf16.mxu0 0
    %6299 = vmatpush1.bf16.msra.mxu0 0
    %6300 = vmatprep.subr.bf16.mxu0 0
    %6301 = vmatpush1.bf16.msra.mxu0 0
    %6302 = vmatprep.subr.bf16.mxu0 0
    %6303 = vmatpush1.bf16.msra.mxu0 0
    %6304 = vmatprep.subr.bf16.mxu0 0
    %6305 = vmatpush1.bf16.msra.mxu0 0
    %6306 = vmatprep.subr.bf16.mxu0 0
    %6307 = vmatpush1.bf16.msra.mxu0 0
    %6308 = vmatprep.subr.bf16.mxu0 %v6288
    %6309 = vmatpush1.bf16.msra.mxu0 %v6287
    %6310 = vmatprep.subr.bf16.mxu0 %v6286
    %6311 = vmatpush1.bf16.msra.mxu0 %v6285
    %6312 = vmatprep.subr.bf16.mxu0 0
    %6313 = vmatpush2.bf16.msra.mxu0 0
    %6314 = vmatprep.subr.bf16.mxu0 0
    %6315 = vmatpush2.bf16.msra.mxu0 0
    %6316 = vmatprep.subr.bf16.mxu0 0
    %6317 = vmatpush2.bf16.msra.mxu0 0
    %6318 = vmatprep.subr.bf16.mxu0 0
    %6319 = vmatpush2.bf16.msra.mxu0 0
    %6320 = vmatprep.subr.bf16.mxu0 0
    %6321 = vmatpush2.bf16.msra.mxu0 0
    %6322 = vmatprep.subr.bf16.mxu0 0
    %6323 = vmatpush2.bf16.msra.mxu0 0
    %6324 = vmatprep.subr.bf16.mxu0 0
    %6325 = vmatpush2.bf16.msra.mxu0 0
    %6326 = vmatprep.subr.bf16.mxu0 0
    %6327 = vmatpush2.bf16.msra.mxu0 0
    %6328 = vmatprep.mubr.bf16.mxu0 0
    %6329 = vmatmul.mubr.bf16.gmra.mxu0 %v6294
    %v6330 = vpop.f32.mrf.mxu0
    %v6331 = vadd.f32 %v6127, %v6330
    %v6332 = vpop.f32.mrf.mxu0
    %v6333 = vadd.f32 %v6129, %v6332
    %v6334 = vpop.f32.mrf.mxu0
    %v6335 = vpop.f32.mrf.mxu0
    %6336 = vdwg.mxu0
    %v6337 = vadd.f32 %v6331, %v6197
    %v6338 = vadd.f32 %v6333, %v6199
    %v6339 = vadd.f32 %v6337, %v6267
    %v6340 = vadd.f32 %v6338, %v6269
    %v6341 = vld [vmem:[#allocation7] sm:$0x7f]
    %v6342 = vld [vmem:[#allocation7 + $0x8] sm:$0x7f]
    %v6343 = vadd.f32 %v6339, %v6341
    %v6344 = vadd.f32 %v6340, %v6342
    %v6345 = vmax.f32 %v6343, 0.0
    %v6346 = vmax.f32 %v6344, 0.0
    %v6347 = vpack.c.bf16 %v6345, %v6345
    %v6348 = vpack.c.bf16 %v6346, %v6346
    %v6351 = vunpack.c.l.b16 %v6347
    %v6352 = vunpack.c.l.b16 %v6348
    %v6353 = vpack.c.b16 %v6352, %v6351
    %s6355 = scalar_lea.vmem [#allocation2], 8
    %v6356 = vld [vmem:[%s6355] sm:$0xff]
    %v6357 = vsel %vm522, %v6353, %v6356
    %6358 = vst [vmem:[%s6355] sm:$0xff] %v6357
    %v6359 = vld [vmem:[%s6133] sm:$0xf]
    %v6360 = vld [vmem:[#allocation5] sm:$0xff]
    %v6361 = vld [vmem:[#allocation5 + $0x8] sm:$0xff]
    %v6362 = vld [vmem:[#allocation5 + $0x10] sm:$0xff]
    %v6363 = vld [vmem:[#allocation5 + $0x18] sm:$0xff]
    %v6364 = vld [vmem:[%s6203] sm:$0xf]
    %v6365 = vld [vmem:[%s222] sm:$0xff]
    %v6366 = vld [vmem:[%s222 + $0x8] sm:$0xff]
    %v6367 = vld [vmem:[%s222 + $0x10] sm:$0xff]
    %v6368 = vld [vmem:[%s222 + $0x18] sm:$0xff]
    %v6373 = vunpack.c.l.b16 %v6365
    %v6374 = vunpack.c.h.b16 %v6365
    %v6375 = vunpack.c.l.b16 %v6366
    %v6376 = vunpack.c.h.b16 %v6366
    %v6377 = vunpack.c.l.b16 %v6367
    %v6378 = vunpack.c.h.b16 %v6367
    %v6379 = vunpack.c.l.b16 %v6368
    %v6380 = vunpack.c.h.b16 %v6368
    %v6381 = vpack.c.b16 %v6375, %v6373
    %v6382 = vpack.c.b16 %v6376, %v6374
    %v6383 = vpack.c.b16 %v6379, %v6377
    %v6384 = vpack.c.b16 %v6380, %v6378
    %v6390 = vsel %vm247, %v6364, 0
    %6392 = vmatprep.subr.bf16.mxu0 0
    %6393 = vmatpush1.bf16.msra.mxu0 0
    %6394 = vmatprep.subr.bf16.mxu0 0
    %6395 = vmatpush1.bf16.msra.mxu0 0
    %6396 = vmatprep.subr.bf16.mxu0 0
    %6397 = vmatpush1.bf16.msra.mxu0 0
    %6398 = vmatprep.subr.bf16.mxu0 0
    %6399 = vmatpush1.bf16.msra.mxu0 0
    %6400 = vmatprep.subr.bf16.mxu0 0
    %6401 = vmatpush1.bf16.msra.mxu0 0
    %6402 = vmatprep.subr.bf16.mxu0 0
    %6403 = vmatpush1.bf16.msra.mxu0 0
    %6404 = vmatprep.subr.bf16.mxu0 %v6384
    %6405 = vmatpush1.bf16.msra.mxu0 %v6383
    %6406 = vmatprep.subr.bf16.mxu0 %v6382
    %6407 = vmatpush1.bf16.msra.mxu0 %v6381
    %6408 = vmatprep.subr.bf16.mxu0 0
    %6409 = vmatpush2.bf16.msra.mxu0 0
    %6410 = vmatprep.subr.bf16.mxu0 0
    %6411 = vmatpush2.bf16.msra.mxu0 0
    %6412 = vmatprep.subr.bf16.mxu0 0
    %6413 = vmatpush2.bf16.msra.mxu0 0
    %6414 = vmatprep.subr.bf16.mxu0 0
    %6415 = vmatpush2.bf16.msra.mxu0 0
    %6416 = vmatprep.subr.bf16.mxu0 0
    %6417 = vmatpush2.bf16.msra.mxu0 0
    %6418 = vmatprep.subr.bf16.mxu0 0
    %6419 = vmatpush2.bf16.msra.mxu0 0
    %6420 = vmatprep.subr.bf16.mxu0 0
    %6421 = vmatpush2.bf16.msra.mxu0 0
    %6422 = vmatprep.subr.bf16.mxu0 0
    %6423 = vmatpush2.bf16.msra.mxu0 0
    %6424 = vmatprep.mubr.bf16.mxu0 0
    %6425 = vmatmul.mubr.bf16.gmra.mxu0 %v6390
    %v6426 = vpop.f32.mrf.mxu0
    %v6427 = vadd.f32 0.0, %v6426
    %v6428 = vpop.f32.mrf.mxu0
    %v6429 = vadd.f32 0.0, %v6428
    %v6430 = vpop.f32.mrf.mxu0
    %v6431 = vpop.f32.mrf.mxu0
    %6432 = vdwg.mxu0
    %v6433 = vld [vmem:[%s6057] sm:$0xf]
    %v6434 = vld [vmem:[%s294] sm:$0xff]
    %v6435 = vld [vmem:[%s294 + $0x8] sm:$0xff]
    %v6436 = vld [vmem:[%s294 + $0x10] sm:$0xff]
    %v6437 = vld [vmem:[%s294 + $0x18] sm:$0xff]
    %v6439 = vunpack.c.l.b16 %v6433
    %v6440 = vpack.c.b16 %v6439, %v6439
    %v6442 = vshrl.u32 %v6440, 16
    %v6444 = vshll.u32 %v6440, 16
    %v6446 = vrot.slane %v6444, 1
    %v6447 = vor.u32 %v6442, %v6446
    %v6452 = vunpack.c.l.b16 %v6434
    %v6453 = vunpack.c.h.b16 %v6434
    %v6454 = vunpack.c.l.b16 %v6435
    %v6455 = vunpack.c.h.b16 %v6435
    %v6456 = vunpack.c.l.b16 %v6436
    %v6457 = vunpack.c.h.b16 %v6436
    %v6458 = vunpack.c.l.b16 %v6437
    %v6459 = vunpack.c.h.b16 %v6437
    %v6460 = vpack.c.b16 %v6454, %v6452
    %v6461 = vpack.c.b16 %v6455, %v6453
    %v6462 = vpack.c.b16 %v6458, %v6456
    %v6463 = vpack.c.b16 %v6459, %v6457
    %v6469 = vsel %vm247, %v6447, 0
    %6471 = vmatprep.subr.bf16.mxu0 0
    %6472 = vmatpush1.bf16.msra.mxu0 0
    %6473 = vmatprep.subr.bf16.mxu0 0
    %6474 = vmatpush1.bf16.msra.mxu0 0
    %6475 = vmatprep.subr.bf16.mxu0 0
    %6476 = vmatpush1.bf16.msra.mxu0 0
    %6477 = vmatprep.subr.bf16.mxu0 0
    %6478 = vmatpush1.bf16.msra.mxu0 0
    %6479 = vmatprep.subr.bf16.mxu0 0
    %6480 = vmatpush1.bf16.msra.mxu0 0
    %6481 = vmatprep.subr.bf16.mxu0 0
    %6482 = vmatpush1.bf16.msra.mxu0 0
    %6483 = vmatprep.subr.bf16.mxu0 %v6463
    %6484 = vmatpush1.bf16.msra.mxu0 %v6462
    %6485 = vmatprep.subr.bf16.mxu0 %v6461
    %6486 = vmatpush1.bf16.msra.mxu0 %v6460
    %6487 = vmatprep.subr.bf16.mxu0 0
    %6488 = vmatpush2.bf16.msra.mxu0 0
    %6489 = vmatprep.subr.bf16.mxu0 0
    %6490 = vmatpush2.bf16.msra.mxu0 0
    %6491 = vmatprep.subr.bf16.mxu0 0
    %6492 = vmatpush2.bf16.msra.mxu0 0
    %6493 = vmatprep.subr.bf16.mxu0 0
    %6494 = vmatpush2.bf16.msra.mxu0 0
    %6495 = vmatprep.subr.bf16.mxu0 0
    %6496 = vmatpush2.bf16.msra.mxu0 0
    %6497 = vmatprep.subr.bf16.mxu0 0
    %6498 = vmatpush2.bf16.msra.mxu0 0
    %6499 = vmatprep.subr.bf16.mxu0 0
    %6500 = vmatpush2.bf16.msra.mxu0 0
    %6501 = vmatprep.subr.bf16.mxu0 0
    %6502 = vmatpush2.bf16.msra.mxu0 0
    %6503 = vmatprep.mubr.bf16.mxu0 0
    %6504 = vmatmul.mubr.bf16.gmra.mxu0 %v6469
    %v6505 = vpop.f32.mrf.mxu0
    %v6506 = vadd.f32 0.0, %v6505
    %v6507 = vpop.f32.mrf.mxu0
    %v6508 = vadd.f32 0.0, %v6507
    %v6509 = vpop.f32.mrf.mxu0
    %v6510 = vpop.f32.mrf.mxu0
    %6511 = vdwg.mxu0
    %v6512 = vld [vmem:[%s6063] sm:$0xf]
    %v6513 = vld [vmem:[%s365] sm:$0xff]
    %v6514 = vld [vmem:[%s365 + $0x8] sm:$0xff]
    %v6515 = vld [vmem:[%s365 + $0x10] sm:$0xff]
    %v6516 = vld [vmem:[%s365 + $0x18] sm:$0xff]
    %v6518 = vunpack.c.l.b16 %v6512
    %v6519 = vpack.c.b16 %v6518, %v6518
    %v6521 = vshrl.u32 %v6519, 16
    %v6523 = vshll.u32 %v6519, 16
    %v6525 = vrot.slane %v6523, 1
    %v6526 = vor.u32 %v6521, %v6525
    %v6531 = vunpack.c.l.b16 %v6513
    %v6532 = vunpack.c.h.b16 %v6513
    %v6533 = vunpack.c.l.b16 %v6514
    %v6534 = vunpack.c.h.b16 %v6514
    %v6535 = vunpack.c.l.b16 %v6515
    %v6536 = vunpack.c.h.b16 %v6515
    %v6537 = vunpack.c.l.b16 %v6516
    %v6538 = vunpack.c.h.b16 %v6516
    %v6539 = vpack.c.b16 %v6533, %v6531
    %v6540 = vpack.c.b16 %v6534, %v6532
    %v6541 = vpack.c.b16 %v6537, %v6535
    %v6542 = vpack.c.b16 %v6538, %v6536
    %v6548 = vsel %vm247, %v6526, 0
    %6550 = vmatprep.subr.bf16.mxu0 0
    %6551 = vmatpush1.bf16.msra.mxu0 0
    %6552 = vmatprep.subr.bf16.mxu0 0
    %6553 = vmatpush1.bf16.msra.mxu0 0
    %6554 = vmatprep.subr.bf16.mxu0 0
    %6555 = vmatpush1.bf16.msra.mxu0 0
    %6556 = vmatprep.subr.bf16.mxu0 0
    %6557 = vmatpush1.bf16.msra.mxu0 0
    %6558 = vmatprep.subr.bf16.mxu0 0
    %6559 = vmatpush1.bf16.msra.mxu0 0
    %6560 = vmatprep.subr.bf16.mxu0 0
    %6561 = vmatpush1.bf16.msra.mxu0 0
    %6562 = vmatprep.subr.bf16.mxu0 %v6542
    %6563 = vmatpush1.bf16.msra.mxu0 %v6541
    %6564 = vmatprep.subr.bf16.mxu0 %v6540
    %6565 = vmatpush1.bf16.msra.mxu0 %v6539
    %6566 = vmatprep.subr.bf16.mxu0 0
    %6567 = vmatpush2.bf16.msra.mxu0 0
    %6568 = vmatprep.subr.bf16.mxu0 0
    %6569 = vmatpush2.bf16.msra.mxu0 0
    %6570 = vmatprep.subr.bf16.mxu0 0
    %6571 = vmatpush2.bf16.msra.mxu0 0
    %6572 = vmatprep.subr.bf16.mxu0 0
    %6573 = vmatpush2.bf16.msra.mxu0 0
    %6574 = vmatprep.subr.bf16.mxu0 0
    %6575 = vmatpush2.bf16.msra.mxu0 0
    %6576 = vmatprep.subr.bf16.mxu0 0
    %6577 = vmatpush2.bf16.msra.mxu0 0
    %6578 = vmatprep.subr.bf16.mxu0 0
    %6579 = vmatpush2.bf16.msra.mxu0 0
    %6580 = vmatprep.subr.bf16.mxu0 0
    %6581 = vmatpush2.bf16.msra.mxu0 0
    %6582 = vmatprep.mubr.bf16.mxu0 0
    %6583 = vmatmul.mubr.bf16.gmra.mxu0 %v6548
    %v6584 = vpop.f32.mrf.mxu0
    %v6585 = vadd.f32 0.0, %v6584
    %v6586 = vpop.f32.mrf.mxu0
    %v6587 = vadd.f32 0.0, %v6586
    %v6588 = vpop.f32.mrf.mxu0
    %v6589 = vpop.f32.mrf.mxu0
    %6590 = vdwg.mxu0
    %v6595 = vunpack.c.l.b16 %v6360
    %v6596 = vunpack.c.h.b16 %v6360
    %v6597 = vunpack.c.l.b16 %v6361
    %v6598 = vunpack.c.h.b16 %v6361
    %v6599 = vunpack.c.l.b16 %v6362
    %v6600 = vunpack.c.h.b16 %v6362
    %v6601 = vunpack.c.l.b16 %v6363
    %v6602 = vunpack.c.h.b16 %v6363
    %v6603 = vpack.c.b16 %v6597, %v6595
    %v6604 = vpack.c.b16 %v6598, %v6596
    %v6605 = vpack.c.b16 %v6601, %v6599
    %v6606 = vpack.c.b16 %v6602, %v6600
    %v6612 = vsel %vm247, %v6359, 0
    %6614 = vmatprep.subr.bf16.mxu0 0
    %6615 = vmatpush1.bf16.msra.mxu0 0
    %6616 = vmatprep.subr.bf16.mxu0 0
    %6617 = vmatpush1.bf16.msra.mxu0 0
    %6618 = vmatprep.subr.bf16.mxu0 0
    %6619 = vmatpush1.bf16.msra.mxu0 0
    %6620 = vmatprep.subr.bf16.mxu0 0
    %6621 = vmatpush1.bf16.msra.mxu0 0
    %6622 = vmatprep.subr.bf16.mxu0 0
    %6623 = vmatpush1.bf16.msra.mxu0 0
    %6624 = vmatprep.subr.bf16.mxu0 0
    %6625 = vmatpush1.bf16.msra.mxu0 0
    %6626 = vmatprep.subr.bf16.mxu0 %v6606
    %6627 = vmatpush1.bf16.msra.mxu0 %v6605
    %6628 = vmatprep.subr.bf16.mxu0 %v6604
    %6629 = vmatpush1.bf16.msra.mxu0 %v6603
    %6630 = vmatprep.subr.bf16.mxu0 0
    %6631 = vmatpush2.bf16.msra.mxu0 0
    %6632 = vmatprep.subr.bf16.mxu0 0
    %6633 = vmatpush2.bf16.msra.mxu0 0
    %6634 = vmatprep.subr.bf16.mxu0 0
    %6635 = vmatpush2.bf16.msra.mxu0 0
    %6636 = vmatprep.subr.bf16.mxu0 0
    %6637 = vmatpush2.bf16.msra.mxu0 0
    %6638 = vmatprep.subr.bf16.mxu0 0
    %6639 = vmatpush2.bf16.msra.mxu0 0
    %6640 = vmatprep.subr.bf16.mxu0 0
    %6641 = vmatpush2.bf16.msra.mxu0 0
    %6642 = vmatprep.subr.bf16.mxu0 0
    %6643 = vmatpush2.bf16.msra.mxu0 0
    %6644 = vmatprep.subr.bf16.mxu0 0
    %6645 = vmatpush2.bf16.msra.mxu0 0
    %6646 = vmatprep.mubr.bf16.mxu0 0
    %6647 = vmatmul.mubr.bf16.gmra.mxu0 %v6612
    %v6648 = vpop.f32.mrf.mxu0
    %v6649 = vadd.f32 %v6427, %v6648
    %v6650 = vpop.f32.mrf.mxu0
    %v6651 = vadd.f32 %v6429, %v6650
    %v6652 = vpop.f32.mrf.mxu0
    %v6653 = vpop.f32.mrf.mxu0
    %6654 = vdwg.mxu0
    %v6655 = vadd.f32 %v6649, %v6506
    %v6656 = vadd.f32 %v6651, %v6508
    %v6657 = vadd.f32 %v6655, %v6585
    %v6658 = vadd.f32 %v6656, %v6587
    %v6659 = vld [vmem:[#allocation7] sm:$0x7f]
    %v6660 = vld [vmem:[#allocation7 + $0x8] sm:$0x7f]
    %v6661 = vadd.f32 %v6657, %v6659
    %v6662 = vadd.f32 %v6658, %v6660
    %v6663 = vmax.f32 %v6661, 0.0
    %v6664 = vmax.f32 %v6662, 0.0
    %v6665 = vpack.c.bf16 %v6663, %v6663
    %v6666 = vpack.c.bf16 %v6664, %v6664
    %v6669 = vunpack.c.l.b16 %v6665
    %v6670 = vunpack.c.l.b16 %v6666
    %v6671 = vpack.c.b16 %v6670, %v6669
    %v6673 = vshrl.u32 %v6671, 16
    %v6675 = vrot.slane %v6673, 7
    %v6676 = vshll.u32 %v6671, 16
    %v6678 = vor.u32 %v6675, %v6676
    %s6680 = scalar_lea.vmem [#allocation2], 24
    %v6681 = vld [vmem:[%s6680] sm:$0xff]
    %v6682 = vsel %vm852, %v6678, %v6681
    %6683 = vst [vmem:[%s6680] sm:$0xff] %v6682
    %v6684 = vld [vmem:[%s6680] sm:$0xff]
    %v6685 = vld [vmem:[%s3] sm:$0xff]
    %v6686 = vld [vmem:[%s3 + $0x8] sm:$0xff]
    %v6687 = vld [vmem:[%s3 + $0x10] sm:$0xff]
    %v6688 = vld [vmem:[%s3 + $0x18] sm:$0xff]
    %v6689 = vld [vmem:[%s3 + $0x20] sm:$0xff]
    %v6690 = vld [vmem:[%s3 + $0x28] sm:$0xff]
    %v6691 = vld [vmem:[%s3 + $0x30] sm:$0xff]
    %v6692 = vld [vmem:[%s3 + $0x38] sm:$0xff]
    %v6693 = vld [vmem:[%s3 + $0x40] sm:$0xff]
    %v6694 = vld [vmem:[%s3 + $0x48] sm:$0xff]
    %v6695 = vld [vmem:[%s3 + $0x50] sm:$0xff]
    %v6696 = vld [vmem:[%s3 + $0x58] sm:$0xff]
    %v6697 = vld [vmem:[%s3 + $0x60] sm:$0xff]
    %v6698 = vld [vmem:[%s3 + $0x68] sm:$0xff]
    %v6699 = vld [vmem:[%s3 + $0x70] sm:$0xff]
    %v6700 = vld [vmem:[%s3 + $0x78] sm:$0xff]
    %v6701 = vld [vmem:[%s3 + $0x80] sm:$0xff]
    %v6702 = vld [vmem:[%s3 + $0x88] sm:$0xff]
    %v6703 = vld [vmem:[%s3 + $0x90] sm:$0xff]
    %v6704 = vld [vmem:[%s3 + $0x98] sm:$0xff]
    %v6705 = vld [vmem:[%s3 + $0xa0] sm:$0xff]
    %v6706 = vld [vmem:[%s3 + $0xa8] sm:$0xff]
    %v6707 = vld [vmem:[%s3 + $0xb0] sm:$0xff]
    %v6708 = vld [vmem:[%s3 + $0xb8] sm:$0xff]
    %v6709 = vld [vmem:[%s3 + $0xc0] sm:$0xff]
    %v6710 = vld [vmem:[%s3 + $0xc8] sm:$0xff]
    %v6711 = vld [vmem:[%s3 + $0xd0] sm:$0xff]
    %v6712 = vld [vmem:[%s3 + $0xd8] sm:$0xff]
    %v6713 = vld [vmem:[%s6355] sm:$0xff]
    %v6714 = vld [vmem:[%s886] sm:$0xff]
    %v6715 = vld [vmem:[%s886 + $0x8] sm:$0xff]
    %v6716 = vld [vmem:[%s886 + $0x10] sm:$0xff]
    %v6717 = vld [vmem:[%s886 + $0x18] sm:$0xff]
    %v6718 = vld [vmem:[%s886 + $0x20] sm:$0xff]
    %v6719 = vld [vmem:[%s886 + $0x28] sm:$0xff]
    %v6720 = vld [vmem:[%s886 + $0x30] sm:$0xff]
    %v6721 = vld [vmem:[%s886 + $0x38] sm:$0xff]
    %v6722 = vld [vmem:[%s886 + $0x40] sm:$0xff]
    %v6723 = vld [vmem:[%s886 + $0x48] sm:$0xff]
    %v6724 = vld [vmem:[%s886 + $0x50] sm:$0xff]
    %v6725 = vld [vmem:[%s886 + $0x58] sm:$0xff]
    %v6726 = vld [vmem:[%s886 + $0x60] sm:$0xff]
    %v6727 = vld [vmem:[%s886 + $0x68] sm:$0xff]
    %v6728 = vld [vmem:[%s886 + $0x70] sm:$0xff]
    %v6729 = vld [vmem:[%s886 + $0x78] sm:$0xff]
    %v6730 = vld [vmem:[%s886 + $0x80] sm:$0xff]
    %v6731 = vld [vmem:[%s886 + $0x88] sm:$0xff]
    %v6732 = vld [vmem:[%s886 + $0x90] sm:$0xff]
    %v6733 = vld [vmem:[%s886 + $0x98] sm:$0xff]
    %v6734 = vld [vmem:[%s886 + $0xa0] sm:$0xff]
    %v6735 = vld [vmem:[%s886 + $0xa8] sm:$0xff]
    %v6736 = vld [vmem:[%s886 + $0xb0] sm:$0xff]
    %v6737 = vld [vmem:[%s886 + $0xb8] sm:$0xff]
    %v6738 = vld [vmem:[%s886 + $0xc0] sm:$0xff]
    %v6739 = vld [vmem:[%s886 + $0xc8] sm:$0xff]
    %v6740 = vld [vmem:[%s886 + $0xd0] sm:$0xff]
    %v6741 = vld [vmem:[%s886 + $0xd8] sm:$0xff]
    %v6743 = vunpack.c.l.b16 %v6713
    %v6744 = vunpack.c.h.b16 %v6713
    %v6745 = vpack.c.b16 %v6743, %v6743
    %v6746 = vpack.c.b16 %v6744, %v6744
    %v6776 = vunpack.c.l.b16 %v6714
    %v6777 = vunpack.c.h.b16 %v6714
    %v6778 = vunpack.c.l.b16 %v6715
    %v6779 = vunpack.c.h.b16 %v6715
    %v6780 = vunpack.c.l.b16 %v6716
    %v6781 = vunpack.c.h.b16 %v6716
    %v6782 = vunpack.c.l.b16 %v6717
    %v6783 = vunpack.c.h.b16 %v6717
    %v6784 = vunpack.c.l.b16 %v6718
    %v6785 = vunpack.c.h.b16 %v6718
    %v6786 = vunpack.c.l.b16 %v6719
    %v6787 = vunpack.c.h.b16 %v6719
    %v6788 = vunpack.c.l.b16 %v6720
    %v6789 = vunpack.c.h.b16 %v6720
    %v6790 = vunpack.c.l.b16 %v6721
    %v6791 = vunpack.c.h.b16 %v6721
    %v6792 = vunpack.c.l.b16 %v6722
    %v6793 = vunpack.c.h.b16 %v6722
    %v6794 = vunpack.c.l.b16 %v6723
    %v6795 = vunpack.c.h.b16 %v6723
    %v6796 = vunpack.c.l.b16 %v6724
    %v6797 = vunpack.c.h.b16 %v6724
    %v6798 = vunpack.c.l.b16 %v6725
    %v6799 = vunpack.c.h.b16 %v6725
    %v6800 = vunpack.c.l.b16 %v6726
    %v6801 = vunpack.c.h.b16 %v6726
    %v6802 = vunpack.c.l.b16 %v6727
    %v6803 = vunpack.c.h.b16 %v6727
    %v6804 = vunpack.c.l.b16 %v6728
    %v6805 = vunpack.c.h.b16 %v6728
    %v6806 = vunpack.c.l.b16 %v6729
    %v6807 = vunpack.c.h.b16 %v6729
    %v6808 = vunpack.c.l.b16 %v6730
    %v6809 = vunpack.c.h.b16 %v6730
    %v6810 = vunpack.c.l.b16 %v6731
    %v6811 = vunpack.c.h.b16 %v6731
    %v6812 = vunpack.c.l.b16 %v6732
    %v6813 = vunpack.c.h.b16 %v6732
    %v6814 = vunpack.c.l.b16 %v6733
    %v6815 = vunpack.c.h.b16 %v6733
    %v6816 = vunpack.c.l.b16 %v6734
    %v6817 = vunpack.c.h.b16 %v6734
    %v6818 = vunpack.c.l.b16 %v6735
    %v6819 = vunpack.c.h.b16 %v6735
    %v6820 = vunpack.c.l.b16 %v6736
    %v6821 = vunpack.c.h.b16 %v6736
    %v6822 = vunpack.c.l.b16 %v6737
    %v6823 = vunpack.c.h.b16 %v6737
    %v6824 = vunpack.c.l.b16 %v6738
    %v6825 = vunpack.c.h.b16 %v6738
    %v6826 = vunpack.c.l.b16 %v6739
    %v6827 = vunpack.c.h.b16 %v6739
    %v6828 = vunpack.c.l.b16 %v6740
    %v6829 = vunpack.c.h.b16 %v6740
    %v6830 = vunpack.c.l.b16 %v6741
    %v6831 = vunpack.c.h.b16 %v6741
    %v6832 = vpack.c.b16 %v6778, %v6776
    %v6833 = vpack.c.b16 %v6779, %v6777
    %v6834 = vpack.c.b16 %v6782, %v6780
    %v6835 = vpack.c.b16 %v6783, %v6781
    %v6836 = vpack.c.b16 %v6786, %v6784
    %v6837 = vpack.c.b16 %v6787, %v6785
    %v6838 = vpack.c.b16 %v6790, %v6788
    %v6839 = vpack.c.b16 %v6791, %v6789
    %v6840 = vpack.c.b16 %v6794, %v6792
    %v6841 = vpack.c.b16 %v6795, %v6793
    %v6842 = vpack.c.b16 %v6798, %v6796
    %v6843 = vpack.c.b16 %v6799, %v6797
    %v6844 = vpack.c.b16 %v6802, %v6800
    %v6845 = vpack.c.b16 %v6803, %v6801
    %v6846 = vpack.c.b16 %v6806, %v6804
    %v6847 = vpack.c.b16 %v6807, %v6805
    %v6848 = vpack.c.b16 %v6810, %v6808
    %v6849 = vpack.c.b16 %v6811, %v6809
    %v6850 = vpack.c.b16 %v6814, %v6812
    %v6851 = vpack.c.b16 %v6815, %v6813
    %v6852 = vpack.c.b16 %v6818, %v6816
    %v6853 = vpack.c.b16 %v6819, %v6817
    %v6854 = vpack.c.b16 %v6822, %v6820
    %v6855 = vpack.c.b16 %v6823, %v6821
    %v6856 = vpack.c.b16 %v6826, %v6824
    %v6857 = vpack.c.b16 %v6827, %v6825
    %v6858 = vpack.c.b16 %v6830, %v6828
    %v6859 = vpack.c.b16 %v6831, %v6829
    %v6889 = vsel %vm1061, %v6746, 0
    %6891 = vmatprep.subr.bf16.mxu0 %v6847
    %6892 = vmatpush1.bf16.msra.mxu0 %v6846
    %6893 = vmatprep.subr.bf16.mxu0 %v6845
    %6894 = vmatpush1.bf16.msra.mxu0 %v6844
    %6895 = vmatprep.subr.bf16.mxu0 %v6843
    %6896 = vmatpush1.bf16.msra.mxu0 %v6842
    %6897 = vmatprep.subr.bf16.mxu0 %v6841
    %6898 = vmatpush1.bf16.msra.mxu0 %v6840
    %6899 = vmatprep.subr.bf16.mxu0 %v6839
    %6900 = vmatpush1.bf16.msra.mxu0 %v6838
    %6901 = vmatprep.subr.bf16.mxu0 %v6837
    %6902 = vmatpush1.bf16.msra.mxu0 %v6836
    %6903 = vmatprep.subr.bf16.mxu0 %v6835
    %6904 = vmatpush1.bf16.msra.mxu0 %v6834
    %6905 = vmatprep.subr.bf16.mxu0 %v6833
    %6906 = vmatpush1.bf16.msra.mxu0 %v6832
    %6907 = vmatprep.subr.bf16.mxu0 0
    %6908 = vmatpush2.bf16.msra.mxu0 0
    %6909 = vmatprep.subr.bf16.mxu0 0
    %6910 = vmatpush2.bf16.msra.mxu0 0
    %6911 = vmatprep.subr.bf16.mxu0 %v6859
    %6912 = vmatpush2.bf16.msra.mxu0 %v6858
    %6913 = vmatprep.subr.bf16.mxu0 %v6857
    %6914 = vmatpush2.bf16.msra.mxu0 %v6856
    %6915 = vmatprep.subr.bf16.mxu0 %v6855
    %6916 = vmatpush2.bf16.msra.mxu0 %v6854
    %6917 = vmatprep.subr.bf16.mxu0 %v6853
    %6918 = vmatpush2.bf16.msra.mxu0 %v6852
    %6919 = vmatprep.subr.bf16.mxu0 %v6851
    %6920 = vmatpush2.bf16.msra.mxu0 %v6850
    %6921 = vmatprep.subr.bf16.mxu0 %v6849
    %6922 = vmatpush2.bf16.msra.mxu0 %v6848
    %6923 = vmatprep.mubr.bf16.mxu0 %v6889
    %6924 = vmatmul.mubr.bf16.gmra.mxu0 %v6745
    %v6925 = vpop.f32.mrf.mxu0
    %v6926 = vadd.f32 0.0, %v6925
    %v6927 = vpop.f32.mrf.mxu0
    %v6928 = vadd.f32 0.0, %v6927
    %v6929 = vpop.f32.mrf.mxu0
    %v6930 = vpop.f32.mrf.mxu0
    %6931 = vdwg.mxu0
    %v6932 = vld [vmem:[%s1106] sm:$0xff]
    %v6933 = vld [vmem:[%s1106 + $0x8] sm:$0xff]
    %v6934 = vld [vmem:[%s1106 + $0x10] sm:$0xff]
    %v6935 = vld [vmem:[%s1106 + $0x18] sm:$0xff]
    %v6936 = vld [vmem:[%s1106 + $0x20] sm:$0xff]
    %v6937 = vld [vmem:[%s1106 + $0x28] sm:$0xff]
    %v6938 = vld [vmem:[%s1106 + $0x30] sm:$0xff]
    %v6939 = vld [vmem:[%s1106 + $0x38] sm:$0xff]
    %v6940 = vld [vmem:[%s1106 + $0x40] sm:$0xff]
    %v6941 = vld [vmem:[%s1106 + $0x48] sm:$0xff]
    %v6942 = vld [vmem:[%s1106 + $0x50] sm:$0xff]
    %v6943 = vld [vmem:[%s1106 + $0x58] sm:$0xff]
    %v6944 = vld [vmem:[%s1106 + $0x60] sm:$0xff]
    %v6945 = vld [vmem:[%s1106 + $0x68] sm:$0xff]
    %v6946 = vld [vmem:[%s1106 + $0x70] sm:$0xff]
    %v6947 = vld [vmem:[%s1106 + $0x78] sm:$0xff]
    %v6948 = vld [vmem:[%s1106 + $0x80] sm:$0xff]
    %v6949 = vld [vmem:[%s1106 + $0x88] sm:$0xff]
    %v6950 = vld [vmem:[%s1106 + $0x90] sm:$0xff]
    %v6951 = vld [vmem:[%s1106 + $0x98] sm:$0xff]
    %v6952 = vld [vmem:[%s1106 + $0xa0] sm:$0xff]
    %v6953 = vld [vmem:[%s1106 + $0xa8] sm:$0xff]
    %v6954 = vld [vmem:[%s1106 + $0xb0] sm:$0xff]
    %v6955 = vld [vmem:[%s1106 + $0xb8] sm:$0xff]
    %v6956 = vld [vmem:[%s1106 + $0xc0] sm:$0xff]
    %v6957 = vld [vmem:[%s1106 + $0xc8] sm:$0xff]
    %v6958 = vld [vmem:[%s1106 + $0xd0] sm:$0xff]
    %v6959 = vld [vmem:[%s1106 + $0xd8] sm:$0xff]
    %v6961 = vunpack.c.l.b16 %v6684
    %v6962 = vunpack.c.h.b16 %v6684
    %v6963 = vpack.c.b16 %v6961, %v6961
    %v6964 = vpack.c.b16 %v6962, %v6962
    %v6966 = vshrl.u32 %v6963, 16
    %v6968 = vshll.u32 %v6963, 16
    %v6970 = vrot.slane %v6968, 1
    %v6971 = vor.u32 %v6966, %v6970
    %v6973 = vshrl.u32 %v6964, 16
    %v6975 = vshll.u32 %v6964, 16
    %v6977 = vrot.slane %v6975, 1
    %v6978 = vor.u32 %v6973, %v6977
    %v7008 = vunpack.c.l.b16 %v6932
    %v7009 = vunpack.c.h.b16 %v6932
    %v7010 = vunpack.c.l.b16 %v6933
    %v7011 = vunpack.c.h.b16 %v6933
    %v7012 = vunpack.c.l.b16 %v6934
    %v7013 = vunpack.c.h.b16 %v6934
    %v7014 = vunpack.c.l.b16 %v6935
    %v7015 = vunpack.c.h.b16 %v6935
    %v7016 = vunpack.c.l.b16 %v6936
    %v7017 = vunpack.c.h.b16 %v6936
    %v7018 = vunpack.c.l.b16 %v6937
    %v7019 = vunpack.c.h.b16 %v6937
    %v7020 = vunpack.c.l.b16 %v6938
    %v7021 = vunpack.c.h.b16 %v6938
    %v7022 = vunpack.c.l.b16 %v6939
    %v7023 = vunpack.c.h.b16 %v6939
    %v7024 = vunpack.c.l.b16 %v6940
    %v7025 = vunpack.c.h.b16 %v6940
    %v7026 = vunpack.c.l.b16 %v6941
    %v7027 = vunpack.c.h.b16 %v6941
    %v7028 = vunpack.c.l.b16 %v6942
    %v7029 = vunpack.c.h.b16 %v6942
    %v7030 = vunpack.c.l.b16 %v6943
    %v7031 = vunpack.c.h.b16 %v6943
    %v7032 = vunpack.c.l.b16 %v6944
    %v7033 = vunpack.c.h.b16 %v6944
    %v7034 = vunpack.c.l.b16 %v6945
    %v7035 = vunpack.c.h.b16 %v6945
    %v7036 = vunpack.c.l.b16 %v6946
    %v7037 = vunpack.c.h.b16 %v6946
    %v7038 = vunpack.c.l.b16 %v6947
    %v7039 = vunpack.c.h.b16 %v6947
    %v7040 = vunpack.c.l.b16 %v6948
    %v7041 = vunpack.c.h.b16 %v6948
    %v7042 = vunpack.c.l.b16 %v6949
    %v7043 = vunpack.c.h.b16 %v6949
    %v7044 = vunpack.c.l.b16 %v6950
    %v7045 = vunpack.c.h.b16 %v6950
    %v7046 = vunpack.c.l.b16 %v6951
    %v7047 = vunpack.c.h.b16 %v6951
    %v7048 = vunpack.c.l.b16 %v6952
    %v7049 = vunpack.c.h.b16 %v6952
    %v7050 = vunpack.c.l.b16 %v6953
    %v7051 = vunpack.c.h.b16 %v6953
    %v7052 = vunpack.c.l.b16 %v6954
    %v7053 = vunpack.c.h.b16 %v6954
    %v7054 = vunpack.c.l.b16 %v6955
    %v7055 = vunpack.c.h.b16 %v6955
    %v7056 = vunpack.c.l.b16 %v6956
    %v7057 = vunpack.c.h.b16 %v6956
    %v7058 = vunpack.c.l.b16 %v6957
    %v7059 = vunpack.c.h.b16 %v6957
    %v7060 = vunpack.c.l.b16 %v6958
    %v7061 = vunpack.c.h.b16 %v6958
    %v7062 = vunpack.c.l.b16 %v6959
    %v7063 = vunpack.c.h.b16 %v6959
    %v7064 = vpack.c.b16 %v7010, %v7008
    %v7065 = vpack.c.b16 %v7011, %v7009
    %v7066 = vpack.c.b16 %v7014, %v7012
    %v7067 = vpack.c.b16 %v7015, %v7013
    %v7068 = vpack.c.b16 %v7018, %v7016
    %v7069 = vpack.c.b16 %v7019, %v7017
    %v7070 = vpack.c.b16 %v7022, %v7020
    %v7071 = vpack.c.b16 %v7023, %v7021
    %v7072 = vpack.c.b16 %v7026, %v7024
    %v7073 = vpack.c.b16 %v7027, %v7025
    %v7074 = vpack.c.b16 %v7030, %v7028
    %v7075 = vpack.c.b16 %v7031, %v7029
    %v7076 = vpack.c.b16 %v7034, %v7032
    %v7077 = vpack.c.b16 %v7035, %v7033
    %v7078 = vpack.c.b16 %v7038, %v7036
    %v7079 = vpack.c.b16 %v7039, %v7037
    %v7080 = vpack.c.b16 %v7042, %v7040
    %v7081 = vpack.c.b16 %v7043, %v7041
    %v7082 = vpack.c.b16 %v7046, %v7044
    %v7083 = vpack.c.b16 %v7047, %v7045
    %v7084 = vpack.c.b16 %v7050, %v7048
    %v7085 = vpack.c.b16 %v7051, %v7049
    %v7086 = vpack.c.b16 %v7054, %v7052
    %v7087 = vpack.c.b16 %v7055, %v7053
    %v7088 = vpack.c.b16 %v7058, %v7056
    %v7089 = vpack.c.b16 %v7059, %v7057
    %v7090 = vpack.c.b16 %v7062, %v7060
    %v7091 = vpack.c.b16 %v7063, %v7061
    %v7121 = vsel %vm1061, %v6978, 0
    %7123 = vmatprep.subr.bf16.mxu0 %v7079
    %7124 = vmatpush1.bf16.msra.mxu0 %v7078
    %7125 = vmatprep.subr.bf16.mxu0 %v7077
    %7126 = vmatpush1.bf16.msra.mxu0 %v7076
    %7127 = vmatprep.subr.bf16.mxu0 %v7075
    %7128 = vmatpush1.bf16.msra.mxu0 %v7074
    %7129 = vmatprep.subr.bf16.mxu0 %v7073
    %7130 = vmatpush1.bf16.msra.mxu0 %v7072
    %7131 = vmatprep.subr.bf16.mxu0 %v7071
    %7132 = vmatpush1.bf16.msra.mxu0 %v7070
    %7133 = vmatprep.subr.bf16.mxu0 %v7069
    %7134 = vmatpush1.bf16.msra.mxu0 %v7068
    %7135 = vmatprep.subr.bf16.mxu0 %v7067
    %7136 = vmatpush1.bf16.msra.mxu0 %v7066
    %7137 = vmatprep.subr.bf16.mxu0 %v7065
    %7138 = vmatpush1.bf16.msra.mxu0 %v7064
    %7139 = vmatprep.subr.bf16.mxu0 0
    %7140 = vmatpush2.bf16.msra.mxu0 0
    %7141 = vmatprep.subr.bf16.mxu0 0
    %7142 = vmatpush2.bf16.msra.mxu0 0
    %7143 = vmatprep.subr.bf16.mxu0 %v7091
    %7144 = vmatpush2.bf16.msra.mxu0 %v7090
    %7145 = vmatprep.subr.bf16.mxu0 %v7089
    %7146 = vmatpush2.bf16.msra.mxu0 %v7088
    %7147 = vmatprep.subr.bf16.mxu0 %v7087
    %7148 = vmatpush2.bf16.msra.mxu0 %v7086
    %7149 = vmatprep.subr.bf16.mxu0 %v7085
    %7150 = vmatpush2.bf16.msra.mxu0 %v7084
    %7151 = vmatprep.subr.bf16.mxu0 %v7083
    %7152 = vmatpush2.bf16.msra.mxu0 %v7082
    %7153 = vmatprep.subr.bf16.mxu0 %v7081
    %7154 = vmatpush2.bf16.msra.mxu0 %v7080
    %7155 = vmatprep.mubr.bf16.mxu0 %v7121
    %7156 = vmatmul.mubr.bf16.gmra.mxu0 %v6971
    %v7157 = vpop.f32.mrf.mxu0
    %v7158 = vadd.f32 0.0, %v7157
    %v7159 = vpop.f32.mrf.mxu0
    %v7160 = vadd.f32 0.0, %v7159
    %v7161 = vpop.f32.mrf.mxu0
    %v7162 = vpop.f32.mrf.mxu0
    %7163 = vdwg.mxu0
    %v7164 = vld [vmem:[%s1339] sm:$0xff]
    %v7165 = vld [vmem:[%s1339 + $0x8] sm:$0xff]
    %v7166 = vld [vmem:[%s1339 + $0x10] sm:$0xff]
    %v7167 = vld [vmem:[%s1339 + $0x18] sm:$0xff]
    %v7168 = vld [vmem:[%s1339 + $0x20] sm:$0xff]
    %v7169 = vld [vmem:[%s1339 + $0x28] sm:$0xff]
    %v7170 = vld [vmem:[%s1339 + $0x30] sm:$0xff]
    %v7171 = vld [vmem:[%s1339 + $0x38] sm:$0xff]
    %v7172 = vld [vmem:[%s1339 + $0x40] sm:$0xff]
    %v7173 = vld [vmem:[%s1339 + $0x48] sm:$0xff]
    %v7174 = vld [vmem:[%s1339 + $0x50] sm:$0xff]
    %v7175 = vld [vmem:[%s1339 + $0x58] sm:$0xff]
    %v7176 = vld [vmem:[%s1339 + $0x60] sm:$0xff]
    %v7177 = vld [vmem:[%s1339 + $0x68] sm:$0xff]
    %v7178 = vld [vmem:[%s1339 + $0x70] sm:$0xff]
    %v7179 = vld [vmem:[%s1339 + $0x78] sm:$0xff]
    %v7180 = vld [vmem:[%s1339 + $0x80] sm:$0xff]
    %v7181 = vld [vmem:[%s1339 + $0x88] sm:$0xff]
    %v7182 = vld [vmem:[%s1339 + $0x90] sm:$0xff]
    %v7183 = vld [vmem:[%s1339 + $0x98] sm:$0xff]
    %v7184 = vld [vmem:[%s1339 + $0xa0] sm:$0xff]
    %v7185 = vld [vmem:[%s1339 + $0xa8] sm:$0xff]
    %v7186 = vld [vmem:[%s1339 + $0xb0] sm:$0xff]
    %v7187 = vld [vmem:[%s1339 + $0xb8] sm:$0xff]
    %v7188 = vld [vmem:[%s1339 + $0xc0] sm:$0xff]
    %v7189 = vld [vmem:[%s1339 + $0xc8] sm:$0xff]
    %v7190 = vld [vmem:[%s1339 + $0xd0] sm:$0xff]
    %v7191 = vld [vmem:[%s1339 + $0xd8] sm:$0xff]
    %v7193 = vshrl.u32 %v6745, 16
    %v7195 = vshll.u32 %v6745, 16
    %v7197 = vrot.slane %v7195, 1
    %v7198 = vor.u32 %v7193, %v7197
    %v7199 = vshrl.u32 %v6746, 16
    %v7201 = vshll.u32 %v6746, 16
    %v7203 = vrot.slane %v7201, 1
    %v7204 = vor.u32 %v7199, %v7203
    %v7234 = vunpack.c.l.b16 %v7164
    %v7235 = vunpack.c.h.b16 %v7164
    %v7236 = vunpack.c.l.b16 %v7165
    %v7237 = vunpack.c.h.b16 %v7165
    %v7238 = vunpack.c.l.b16 %v7166
    %v7239 = vunpack.c.h.b16 %v7166
    %v7240 = vunpack.c.l.b16 %v7167
    %v7241 = vunpack.c.h.b16 %v7167
    %v7242 = vunpack.c.l.b16 %v7168
    %v7243 = vunpack.c.h.b16 %v7168
    %v7244 = vunpack.c.l.b16 %v7169
    %v7245 = vunpack.c.h.b16 %v7169
    %v7246 = vunpack.c.l.b16 %v7170
    %v7247 = vunpack.c.h.b16 %v7170
    %v7248 = vunpack.c.l.b16 %v7171
    %v7249 = vunpack.c.h.b16 %v7171
    %v7250 = vunpack.c.l.b16 %v7172
    %v7251 = vunpack.c.h.b16 %v7172
    %v7252 = vunpack.c.l.b16 %v7173
    %v7253 = vunpack.c.h.b16 %v7173
    %v7254 = vunpack.c.l.b16 %v7174
    %v7255 = vunpack.c.h.b16 %v7174
    %v7256 = vunpack.c.l.b16 %v7175
    %v7257 = vunpack.c.h.b16 %v7175
    %v7258 = vunpack.c.l.b16 %v7176
    %v7259 = vunpack.c.h.b16 %v7176
    %v7260 = vunpack.c.l.b16 %v7177
    %v7261 = vunpack.c.h.b16 %v7177
    %v7262 = vunpack.c.l.b16 %v7178
    %v7263 = vunpack.c.h.b16 %v7178
    %v7264 = vunpack.c.l.b16 %v7179
    %v7265 = vunpack.c.h.b16 %v7179
    %v7266 = vunpack.c.l.b16 %v7180
    %v7267 = vunpack.c.h.b16 %v7180
    %v7268 = vunpack.c.l.b16 %v7181
    %v7269 = vunpack.c.h.b16 %v7181
    %v7270 = vunpack.c.l.b16 %v7182
    %v7271 = vunpack.c.h.b16 %v7182
    %v7272 = vunpack.c.l.b16 %v7183
    %v7273 = vunpack.c.h.b16 %v7183
    %v7274 = vunpack.c.l.b16 %v7184
    %v7275 = vunpack.c.h.b16 %v7184
    %v7276 = vunpack.c.l.b16 %v7185
    %v7277 = vunpack.c.h.b16 %v7185
    %v7278 = vunpack.c.l.b16 %v7186
    %v7279 = vunpack.c.h.b16 %v7186
    %v7280 = vunpack.c.l.b16 %v7187
    %v7281 = vunpack.c.h.b16 %v7187
    %v7282 = vunpack.c.l.b16 %v7188
    %v7283 = vunpack.c.h.b16 %v7188
    %v7284 = vunpack.c.l.b16 %v7189
    %v7285 = vunpack.c.h.b16 %v7189
    %v7286 = vunpack.c.l.b16 %v7190
    %v7287 = vunpack.c.h.b16 %v7190
    %v7288 = vunpack.c.l.b16 %v7191
    %v7289 = vunpack.c.h.b16 %v7191
    %v7290 = vpack.c.b16 %v7236, %v7234
    %v7291 = vpack.c.b16 %v7237, %v7235
    %v7292 = vpack.c.b16 %v7240, %v7238
    %v7293 = vpack.c.b16 %v7241, %v7239
    %v7294 = vpack.c.b16 %v7244, %v7242
    %v7295 = vpack.c.b16 %v7245, %v7243
    %v7296 = vpack.c.b16 %v7248, %v7246
    %v7297 = vpack.c.b16 %v7249, %v7247
    %v7298 = vpack.c.b16 %v7252, %v7250
    %v7299 = vpack.c.b16 %v7253, %v7251
    %v7300 = vpack.c.b16 %v7256, %v7254
    %v7301 = vpack.c.b16 %v7257, %v7255
    %v7302 = vpack.c.b16 %v7260, %v7258
    %v7303 = vpack.c.b16 %v7261, %v7259
    %v7304 = vpack.c.b16 %v7264, %v7262
    %v7305 = vpack.c.b16 %v7265, %v7263
    %v7306 = vpack.c.b16 %v7268, %v7266
    %v7307 = vpack.c.b16 %v7269, %v7267
    %v7308 = vpack.c.b16 %v7272, %v7270
    %v7309 = vpack.c.b16 %v7273, %v7271
    %v7310 = vpack.c.b16 %v7276, %v7274
    %v7311 = vpack.c.b16 %v7277, %v7275
    %v7312 = vpack.c.b16 %v7280, %v7278
    %v7313 = vpack.c.b16 %v7281, %v7279
    %v7314 = vpack.c.b16 %v7284, %v7282
    %v7315 = vpack.c.b16 %v7285, %v7283
    %v7316 = vpack.c.b16 %v7288, %v7286
    %v7317 = vpack.c.b16 %v7289, %v7287
    %v7347 = vsel %vm1061, %v7204, 0
    %7349 = vmatprep.subr.bf16.mxu0 %v7305
    %7350 = vmatpush1.bf16.msra.mxu0 %v7304
    %7351 = vmatprep.subr.bf16.mxu0 %v7303
    %7352 = vmatpush1.bf16.msra.mxu0 %v7302
    %7353 = vmatprep.subr.bf16.mxu0 %v7301
    %7354 = vmatpush1.bf16.msra.mxu0 %v7300
    %7355 = vmatprep.subr.bf16.mxu0 %v7299
    %7356 = vmatpush1.bf16.msra.mxu0 %v7298
    %7357 = vmatprep.subr.bf16.mxu0 %v7297
    %7358 = vmatpush1.bf16.msra.mxu0 %v7296
    %7359 = vmatprep.subr.bf16.mxu0 %v7295
    %7360 = vmatpush1.bf16.msra.mxu0 %v7294
    %7361 = vmatprep.subr.bf16.mxu0 %v7293
    %7362 = vmatpush1.bf16.msra.mxu0 %v7292
    %7363 = vmatprep.subr.bf16.mxu0 %v7291
    %7364 = vmatpush1.bf16.msra.mxu0 %v7290
    %7365 = vmatprep.subr.bf16.mxu0 0
    %7366 = vmatpush2.bf16.msra.mxu0 0
    %7367 = vmatprep.subr.bf16.mxu0 0
    %7368 = vmatpush2.bf16.msra.mxu0 0
    %7369 = vmatprep.subr.bf16.mxu0 %v7317
    %7370 = vmatpush2.bf16.msra.mxu0 %v7316
    %7371 = vmatprep.subr.bf16.mxu0 %v7315
    %7372 = vmatpush2.bf16.msra.mxu0 %v7314
    %7373 = vmatprep.subr.bf16.mxu0 %v7313
    %7374 = vmatpush2.bf16.msra.mxu0 %v7312
    %7375 = vmatprep.subr.bf16.mxu0 %v7311
    %7376 = vmatpush2.bf16.msra.mxu0 %v7310
    %7377 = vmatprep.subr.bf16.mxu0 %v7309
    %7378 = vmatpush2.bf16.msra.mxu0 %v7308
    %7379 = vmatprep.subr.bf16.mxu0 %v7307
    %7380 = vmatpush2.bf16.msra.mxu0 %v7306
    %7381 = vmatprep.mubr.bf16.mxu0 %v7347
    %7382 = vmatmul.mubr.bf16.gmra.mxu0 %v7198
    %v7383 = vpop.f32.mrf.mxu0
    %v7384 = vadd.f32 0.0, %v7383
    %v7385 = vpop.f32.mrf.mxu0
    %v7386 = vadd.f32 0.0, %v7385
    %v7387 = vpop.f32.mrf.mxu0
    %v7388 = vpop.f32.mrf.mxu0
    %7389 = vdwg.mxu0
    %v7419 = vunpack.c.l.b16 %v6685
    %v7420 = vunpack.c.h.b16 %v6685
    %v7421 = vunpack.c.l.b16 %v6686
    %v7422 = vunpack.c.h.b16 %v6686
    %v7423 = vunpack.c.l.b16 %v6687
    %v7424 = vunpack.c.h.b16 %v6687
    %v7425 = vunpack.c.l.b16 %v6688
    %v7426 = vunpack.c.h.b16 %v6688
    %v7427 = vunpack.c.l.b16 %v6689
    %v7428 = vunpack.c.h.b16 %v6689
    %v7429 = vunpack.c.l.b16 %v6690
    %v7430 = vunpack.c.h.b16 %v6690
    %v7431 = vunpack.c.l.b16 %v6691
    %v7432 = vunpack.c.h.b16 %v6691
    %v7433 = vunpack.c.l.b16 %v6692
    %v7434 = vunpack.c.h.b16 %v6692
    %v7435 = vunpack.c.l.b16 %v6693
    %v7436 = vunpack.c.h.b16 %v6693
    %v7437 = vunpack.c.l.b16 %v6694
    %v7438 = vunpack.c.h.b16 %v6694
    %v7439 = vunpack.c.l.b16 %v6695
    %v7440 = vunpack.c.h.b16 %v6695
    %v7441 = vunpack.c.l.b16 %v6696
    %v7442 = vunpack.c.h.b16 %v6696
    %v7443 = vunpack.c.l.b16 %v6697
    %v7444 = vunpack.c.h.b16 %v6697
    %v7445 = vunpack.c.l.b16 %v6698
    %v7446 = vunpack.c.h.b16 %v6698
    %v7447 = vunpack.c.l.b16 %v6699
    %v7448 = vunpack.c.h.b16 %v6699
    %v7449 = vunpack.c.l.b16 %v6700
    %v7450 = vunpack.c.h.b16 %v6700
    %v7451 = vunpack.c.l.b16 %v6701
    %v7452 = vunpack.c.h.b16 %v6701
    %v7453 = vunpack.c.l.b16 %v6702
    %v7454 = vunpack.c.h.b16 %v6702
    %v7455 = vunpack.c.l.b16 %v6703
    %v7456 = vunpack.c.h.b16 %v6703
    %v7457 = vunpack.c.l.b16 %v6704
    %v7458 = vunpack.c.h.b16 %v6704
    %v7459 = vunpack.c.l.b16 %v6705
    %v7460 = vunpack.c.h.b16 %v6705
    %v7461 = vunpack.c.l.b16 %v6706
    %v7462 = vunpack.c.h.b16 %v6706
    %v7463 = vunpack.c.l.b16 %v6707
    %v7464 = vunpack.c.h.b16 %v6707
    %v7465 = vunpack.c.l.b16 %v6708
    %v7466 = vunpack.c.h.b16 %v6708
    %v7467 = vunpack.c.l.b16 %v6709
    %v7468 = vunpack.c.h.b16 %v6709
    %v7469 = vunpack.c.l.b16 %v6710
    %v7470 = vunpack.c.h.b16 %v6710
    %v7471 = vunpack.c.l.b16 %v6711
    %v7472 = vunpack.c.h.b16 %v6711
    %v7473 = vunpack.c.l.b16 %v6712
    %v7474 = vunpack.c.h.b16 %v6712
    %v7475 = vpack.c.b16 %v7421, %v7419
    %v7476 = vpack.c.b16 %v7422, %v7420
    %v7477 = vpack.c.b16 %v7425, %v7423
    %v7478 = vpack.c.b16 %v7426, %v7424
    %v7479 = vpack.c.b16 %v7429, %v7427
    %v7480 = vpack.c.b16 %v7430, %v7428
    %v7481 = vpack.c.b16 %v7433, %v7431
    %v7482 = vpack.c.b16 %v7434, %v7432
    %v7483 = vpack.c.b16 %v7437, %v7435
    %v7484 = vpack.c.b16 %v7438, %v7436
    %v7485 = vpack.c.b16 %v7441, %v7439
    %v7486 = vpack.c.b16 %v7442, %v7440
    %v7487 = vpack.c.b16 %v7445, %v7443
    %v7488 = vpack.c.b16 %v7446, %v7444
    %v7489 = vpack.c.b16 %v7449, %v7447
    %v7490 = vpack.c.b16 %v7450, %v7448
    %v7491 = vpack.c.b16 %v7453, %v7451
    %v7492 = vpack.c.b16 %v7454, %v7452
    %v7493 = vpack.c.b16 %v7457, %v7455
    %v7494 = vpack.c.b16 %v7458, %v7456
    %v7495 = vpack.c.b16 %v7461, %v7459
    %v7496 = vpack.c.b16 %v7462, %v7460
    %v7497 = vpack.c.b16 %v7465, %v7463
    %v7498 = vpack.c.b16 %v7466, %v7464
    %v7499 = vpack.c.b16 %v7469, %v7467
    %v7500 = vpack.c.b16 %v7470, %v7468
    %v7501 = vpack.c.b16 %v7473, %v7471
    %v7502 = vpack.c.b16 %v7474, %v7472
    %v7531 = vsel %vm1061, %v6964, 0
    %7533 = vmatprep.subr.bf16.mxu0 %v7490
    %7534 = vmatpush1.bf16.msra.mxu0 %v7489
    %7535 = vmatprep.subr.bf16.mxu0 %v7488
    %7536 = vmatpush1.bf16.msra.mxu0 %v7487
    %7537 = vmatprep.subr.bf16.mxu0 %v7486
    %7538 = vmatpush1.bf16.msra.mxu0 %v7485
    %7539 = vmatprep.subr.bf16.mxu0 %v7484
    %7540 = vmatpush1.bf16.msra.mxu0 %v7483
    %7541 = vmatprep.subr.bf16.mxu0 %v7482
    %7542 = vmatpush1.bf16.msra.mxu0 %v7481
    %7543 = vmatprep.subr.bf16.mxu0 %v7480
    %7544 = vmatpush1.bf16.msra.mxu0 %v7479
    %7545 = vmatprep.subr.bf16.mxu0 %v7478
    %7546 = vmatpush1.bf16.msra.mxu0 %v7477
    %7547 = vmatprep.subr.bf16.mxu0 %v7476
    %7548 = vmatpush1.bf16.msra.mxu0 %v7475
    %7549 = vmatprep.subr.bf16.mxu0 0
    %7550 = vmatpush2.bf16.msra.mxu0 0
    %7551 = vmatprep.subr.bf16.mxu0 0
    %7552 = vmatpush2.bf16.msra.mxu0 0
    %7553 = vmatprep.subr.bf16.mxu0 %v7502
    %7554 = vmatpush2.bf16.msra.mxu0 %v7501
    %7555 = vmatprep.subr.bf16.mxu0 %v7500
    %7556 = vmatpush2.bf16.msra.mxu0 %v7499
    %7557 = vmatprep.subr.bf16.mxu0 %v7498
    %7558 = vmatpush2.bf16.msra.mxu0 %v7497
    %7559 = vmatprep.subr.bf16.mxu0 %v7496
    %7560 = vmatpush2.bf16.msra.mxu0 %v7495
    %7561 = vmatprep.subr.bf16.mxu0 %v7494
    %7562 = vmatpush2.bf16.msra.mxu0 %v7493
    %7563 = vmatprep.subr.bf16.mxu0 %v7492
    %7564 = vmatpush2.bf16.msra.mxu0 %v7491
    %7565 = vmatprep.mubr.bf16.mxu0 %v7531
    %7566 = vmatmul.mubr.bf16.gmra.mxu0 %v6963
    %v7567 = vpop.f32.mrf.mxu0
    %v7568 = vadd.f32 %v6926, %v7567
    %v7569 = vpop.f32.mrf.mxu0
    %v7570 = vadd.f32 %v6928, %v7569
    %v7571 = vpop.f32.mrf.mxu0
    %v7572 = vpop.f32.mrf.mxu0
    %7573 = vdwg.mxu0
    %v7574 = vadd.f32 %v7568, %v7158
    %v7575 = vadd.f32 %v7570, %v7160
    %v7576 = vadd.f32 %v7574, %v7384
    %v7577 = vadd.f32 %v7575, %v7386
    %v7578 = vld [vmem:[#allocation9] sm:$0x7f]
    %v7579 = vld [vmem:[#allocation9 + $0x8] sm:$0x7f]
    %v7580 = vadd.f32 %v7576, %v7578
    %v7581 = vadd.f32 %v7577, %v7579
    %v7582 = vmax.f32 %v7580, 0.0
    %v7583 = vmax.f32 %v7581, 0.0
    %v7584 = vpack.c.bf16 %v7582, %v7582
    %v7585 = vpack.c.bf16 %v7583, %v7583
    %v7586 = vld [vmem:[%s5] sm:$0xf]
    %v7587 = vld [vmem:[%s5 + $0x4] sm:$0xf]
    %v7588 = vld [vmem:[%s5 + $0x8] sm:$0xf]
    %v7589 = vld [vmem:[%s5 + $0xc] sm:$0xf]
    %v7590 = vld [vmem:[%s5 + $0x10] sm:$0xf]
    %v7591 = vld [vmem:[%s5 + $0x14] sm:$0xf]
    %v7592 = vld [vmem:[%s5 + $0x18] sm:$0xf]
    %v7593 = vld [vmem:[%s5 + $0x1c] sm:$0xf]
    %v7594 = vld [vmem:[%s5 + $0x20] sm:$0xf]
    %v7595 = vld [vmem:[%s5 + $0x24] sm:$0xf]
    %v7596 = vld [vmem:[%s5 + $0x28] sm:$0xf]
    %v7597 = vld [vmem:[%s5 + $0x2c] sm:$0xf]
    %v7598 = vld [vmem:[%s5 + $0x30] sm:$0xf]
    %v7599 = vld [vmem:[%s5 + $0x34] sm:$0xf]
    %v7600 = vld [vmem:[%s5 + $0x38] sm:$0xf]
    %v7601 = vld [vmem:[%s5 + $0x3c] sm:$0xf]
    %v7602 = vld [vmem:[%s5 + $0x40] sm:$0xf]
    %v7603 = vld [vmem:[%s5 + $0x44] sm:$0xf]
    %v7604 = vld [vmem:[%s5 + $0x48] sm:$0xf]
    %v7605 = vld [vmem:[%s5 + $0x4c] sm:$0xf]
    %v7606 = vld [vmem:[%s5 + $0x50] sm:$0xf]
    %v7607 = vld [vmem:[%s5 + $0x54] sm:$0xf]
    %v7608 = vld [vmem:[%s5 + $0x58] sm:$0xf]
    %v7609 = vld [vmem:[%s5 + $0x5c] sm:$0xf]
    %v7610 = vld [vmem:[%s5 + $0x60] sm:$0xf]
    %v7611 = vld [vmem:[%s5 + $0x64] sm:$0xf]
    %v7612 = vld [vmem:[%s5 + $0x68] sm:$0xf]
    %v7613 = vld [vmem:[%s5 + $0x6c] sm:$0xf]
    %v7614 = vld [vmem:[%s1790] sm:$0xf]
    %v7615 = vld [vmem:[%s1790 + $0x4] sm:$0xf]
    %v7616 = vld [vmem:[%s1790 + $0x8] sm:$0xf]
    %v7617 = vld [vmem:[%s1790 + $0xc] sm:$0xf]
    %v7618 = vld [vmem:[%s1790 + $0x10] sm:$0xf]
    %v7619 = vld [vmem:[%s1790 + $0x14] sm:$0xf]
    %v7620 = vld [vmem:[%s1790 + $0x18] sm:$0xf]
    %v7621 = vld [vmem:[%s1790 + $0x1c] sm:$0xf]
    %v7622 = vld [vmem:[%s1790 + $0x20] sm:$0xf]
    %v7623 = vld [vmem:[%s1790 + $0x24] sm:$0xf]
    %v7624 = vld [vmem:[%s1790 + $0x28] sm:$0xf]
    %v7625 = vld [vmem:[%s1790 + $0x2c] sm:$0xf]
    %v7626 = vld [vmem:[%s1790 + $0x30] sm:$0xf]
    %v7627 = vld [vmem:[%s1790 + $0x34] sm:$0xf]
    %v7628 = vld [vmem:[%s1790 + $0x38] sm:$0xf]
    %v7629 = vld [vmem:[%s1790 + $0x3c] sm:$0xf]
    %v7630 = vld [vmem:[%s1790 + $0x40] sm:$0xf]
    %v7631 = vld [vmem:[%s1790 + $0x44] sm:$0xf]
    %v7632 = vld [vmem:[%s1790 + $0x48] sm:$0xf]
    %v7633 = vld [vmem:[%s1790 + $0x4c] sm:$0xf]
    %v7634 = vld [vmem:[%s1790 + $0x50] sm:$0xf]
    %v7635 = vld [vmem:[%s1790 + $0x54] sm:$0xf]
    %v7636 = vld [vmem:[%s1790 + $0x58] sm:$0xf]
    %v7637 = vld [vmem:[%s1790 + $0x5c] sm:$0xf]
    %v7638 = vld [vmem:[%s1790 + $0x60] sm:$0xf]
    %v7639 = vld [vmem:[%s1790 + $0x64] sm:$0xf]
    %v7640 = vld [vmem:[%s1790 + $0x68] sm:$0xf]
    %v7641 = vld [vmem:[%s1790 + $0x6c] sm:$0xf]
    %v7643 = vshrl.u32 %v7584, 16
    %v7646 = vshrl.u32 %v7585, 16
    %v7677 = vunpack.c.l.b16 %v7614
    %v7678 = vunpack.c.l.b16 %v7615
    %v7679 = vunpack.c.l.b16 %v7616
    %v7680 = vunpack.c.l.b16 %v7617
    %v7681 = vunpack.c.l.b16 %v7618
    %v7682 = vunpack.c.l.b16 %v7619
    %v7683 = vunpack.c.l.b16 %v7620
    %v7684 = vunpack.c.l.b16 %v7621
    %v7685 = vunpack.c.l.b16 %v7622
    %v7686 = vunpack.c.l.b16 %v7623
    %v7687 = vunpack.c.l.b16 %v7624
    %v7688 = vunpack.c.l.b16 %v7625
    %v7689 = vunpack.c.l.b16 %v7626
    %v7690 = vunpack.c.l.b16 %v7627
    %v7691 = vunpack.c.l.b16 %v7628
    %v7692 = vunpack.c.l.b16 %v7629
    %v7693 = vunpack.c.l.b16 %v7630
    %v7694 = vunpack.c.l.b16 %v7631
    %v7695 = vunpack.c.l.b16 %v7632
    %v7696 = vunpack.c.l.b16 %v7633
    %v7697 = vunpack.c.l.b16 %v7634
    %v7698 = vunpack.c.l.b16 %v7635
    %v7699 = vunpack.c.l.b16 %v7636
    %v7700 = vunpack.c.l.b16 %v7637
    %v7701 = vunpack.c.l.b16 %v7638
    %v7702 = vunpack.c.l.b16 %v7639
    %v7703 = vunpack.c.l.b16 %v7640
    %v7704 = vunpack.c.l.b16 %v7641
    %v7705 = vpack.c.b16 %v7678, %v7677
    %v7706 = vpack.c.b16 %v7680, %v7679
    %v7707 = vpack.c.b16 %v7682, %v7681
    %v7708 = vpack.c.b16 %v7684, %v7683
    %v7709 = vpack.c.b16 %v7686, %v7685
    %v7710 = vpack.c.b16 %v7688, %v7687
    %v7711 = vpack.c.b16 %v7690, %v7689
    %v7712 = vpack.c.b16 %v7692, %v7691
    %v7713 = vpack.c.b16 %v7694, %v7693
    %v7714 = vpack.c.b16 %v7696, %v7695
    %v7715 = vpack.c.b16 %v7698, %v7697
    %v7716 = vpack.c.b16 %v7700, %v7699
    %v7717 = vpack.c.b16 %v7702, %v7701
    %v7718 = vpack.c.b16 %v7704, %v7703
    %v7734 = vsel %vm1061, %v7646, 0
    %7736 = vmatprep.subr.bf16.mxu0 0
    %7737 = vmatpush1.bf16.msra.mxu0 %v7712
    %7738 = vmatprep.subr.bf16.mxu0 0
    %7739 = vmatpush1.bf16.msra.mxu0 %v7711
    %7740 = vmatprep.subr.bf16.mxu0 0
    %7741 = vmatpush1.bf16.msra.mxu0 %v7710
    %7742 = vmatprep.subr.bf16.mxu0 0
    %7743 = vmatpush1.bf16.msra.mxu0 %v7709
    %7744 = vmatprep.subr.bf16.mxu0 0
    %7745 = vmatpush1.bf16.msra.mxu0 %v7708
    %7746 = vmatprep.subr.bf16.mxu0 0
    %7747 = vmatpush1.bf16.msra.mxu0 %v7707
    %7748 = vmatprep.subr.bf16.mxu0 0
    %7749 = vmatpush1.bf16.msra.mxu0 %v7706
    %7750 = vmatprep.subr.bf16.mxu0 0
    %7751 = vmatpush1.bf16.msra.mxu0 %v7705
    %7752 = vmatprep.subr.bf16.mxu0 0
    %7753 = vmatpush2.bf16.msra.mxu0 0
    %7754 = vmatprep.subr.bf16.mxu0 0
    %7755 = vmatpush2.bf16.msra.mxu0 0
    %7756 = vmatprep.subr.bf16.mxu0 0
    %7757 = vmatpush2.bf16.msra.mxu0 %v7718
    %7758 = vmatprep.subr.bf16.mxu0 0
    %7759 = vmatpush2.bf16.msra.mxu0 %v7717
    %7760 = vmatprep.subr.bf16.mxu0 0
    %7761 = vmatpush2.bf16.msra.mxu0 %v7716
    %7762 = vmatprep.subr.bf16.mxu0 0
    %7763 = vmatpush2.bf16.msra.mxu0 %v7715
    %7764 = vmatprep.subr.bf16.mxu0 0
    %7765 = vmatpush2.bf16.msra.mxu0 %v7714
    %7766 = vmatprep.subr.bf16.mxu0 0
    %7767 = vmatpush2.bf16.msra.mxu0 %v7713
    %7768 = vmatprep.mubr.bf16.mxu0 %v7734
    %7769 = vmatmul.mubr.bf16.gmra.mxu0 %v7643
    %v7770 = vpop.f32.mrf.mxu0
    %v7771 = vadd.f32 0.0, %v7770
    %v7772 = vpop.f32.mrf.mxu0
    %v7773 = vpop.f32.mrf.mxu0
    %v7774 = vpop.f32.mrf.mxu0
    %7775 = vdwg.mxu0
    %v7776 = vld [vmem:[%s1953] sm:$0xf]
    %v7777 = vld [vmem:[%s1953 + $0x4] sm:$0xf]
    %v7778 = vld [vmem:[%s1953 + $0x8] sm:$0xf]
    %v7779 = vld [vmem:[%s1953 + $0xc] sm:$0xf]
    %v7780 = vld [vmem:[%s1953 + $0x10] sm:$0xf]
    %v7781 = vld [vmem:[%s1953 + $0x14] sm:$0xf]
    %v7782 = vld [vmem:[%s1953 + $0x18] sm:$0xf]
    %v7783 = vld [vmem:[%s1953 + $0x1c] sm:$0xf]
    %v7784 = vld [vmem:[%s1953 + $0x20] sm:$0xf]
    %v7785 = vld [vmem:[%s1953 + $0x24] sm:$0xf]
    %v7786 = vld [vmem:[%s1953 + $0x28] sm:$0xf]
    %v7787 = vld [vmem:[%s1953 + $0x2c] sm:$0xf]
    %v7788 = vld [vmem:[%s1953 + $0x30] sm:$0xf]
    %v7789 = vld [vmem:[%s1953 + $0x34] sm:$0xf]
    %v7790 = vld [vmem:[%s1953 + $0x38] sm:$0xf]
    %v7791 = vld [vmem:[%s1953 + $0x3c] sm:$0xf]
    %v7792 = vld [vmem:[%s1953 + $0x40] sm:$0xf]
    %v7793 = vld [vmem:[%s1953 + $0x44] sm:$0xf]
    %v7794 = vld [vmem:[%s1953 + $0x48] sm:$0xf]
    %v7795 = vld [vmem:[%s1953 + $0x4c] sm:$0xf]
    %v7796 = vld [vmem:[%s1953 + $0x50] sm:$0xf]
    %v7797 = vld [vmem:[%s1953 + $0x54] sm:$0xf]
    %v7798 = vld [vmem:[%s1953 + $0x58] sm:$0xf]
    %v7799 = vld [vmem:[%s1953 + $0x5c] sm:$0xf]
    %v7800 = vld [vmem:[%s1953 + $0x60] sm:$0xf]
    %v7801 = vld [vmem:[%s1953 + $0x64] sm:$0xf]
    %v7802 = vld [vmem:[%s1953 + $0x68] sm:$0xf]
    %v7803 = vld [vmem:[%s1953 + $0x6c] sm:$0xf]
    %v7806 = vrot.slane %v7584, 1
    %v7807 = vrot.slane %v7585, 1
    %v7837 = vunpack.c.l.b16 %v7776
    %v7838 = vunpack.c.l.b16 %v7777
    %v7839 = vunpack.c.l.b16 %v7778
    %v7840 = vunpack.c.l.b16 %v7779
    %v7841 = vunpack.c.l.b16 %v7780
    %v7842 = vunpack.c.l.b16 %v7781
    %v7843 = vunpack.c.l.b16 %v7782
    %v7844 = vunpack.c.l.b16 %v7783
    %v7845 = vunpack.c.l.b16 %v7784
    %v7846 = vunpack.c.l.b16 %v7785
    %v7847 = vunpack.c.l.b16 %v7786
    %v7848 = vunpack.c.l.b16 %v7787
    %v7849 = vunpack.c.l.b16 %v7788
    %v7850 = vunpack.c.l.b16 %v7789
    %v7851 = vunpack.c.l.b16 %v7790
    %v7852 = vunpack.c.l.b16 %v7791
    %v7853 = vunpack.c.l.b16 %v7792
    %v7854 = vunpack.c.l.b16 %v7793
    %v7855 = vunpack.c.l.b16 %v7794
    %v7856 = vunpack.c.l.b16 %v7795
    %v7857 = vunpack.c.l.b16 %v7796
    %v7858 = vunpack.c.l.b16 %v7797
    %v7859 = vunpack.c.l.b16 %v7798
    %v7860 = vunpack.c.l.b16 %v7799
    %v7861 = vunpack.c.l.b16 %v7800
    %v7862 = vunpack.c.l.b16 %v7801
    %v7863 = vunpack.c.l.b16 %v7802
    %v7864 = vunpack.c.l.b16 %v7803
    %v7865 = vpack.c.b16 %v7838, %v7837
    %v7866 = vpack.c.b16 %v7840, %v7839
    %v7867 = vpack.c.b16 %v7842, %v7841
    %v7868 = vpack.c.b16 %v7844, %v7843
    %v7869 = vpack.c.b16 %v7846, %v7845
    %v7870 = vpack.c.b16 %v7848, %v7847
    %v7871 = vpack.c.b16 %v7850, %v7849
    %v7872 = vpack.c.b16 %v7852, %v7851
    %v7873 = vpack.c.b16 %v7854, %v7853
    %v7874 = vpack.c.b16 %v7856, %v7855
    %v7875 = vpack.c.b16 %v7858, %v7857
    %v7876 = vpack.c.b16 %v7860, %v7859
    %v7877 = vpack.c.b16 %v7862, %v7861
    %v7878 = vpack.c.b16 %v7864, %v7863
    %v7894 = vsel %vm1061, %v7807, 0
    %7896 = vmatprep.subr.bf16.mxu0 0
    %7897 = vmatpush1.bf16.msra.mxu0 %v7872
    %7898 = vmatprep.subr.bf16.mxu0 0
    %7899 = vmatpush1.bf16.msra.mxu0 %v7871
    %7900 = vmatprep.subr.bf16.mxu0 0
    %7901 = vmatpush1.bf16.msra.mxu0 %v7870
    %7902 = vmatprep.subr.bf16.mxu0 0
    %7903 = vmatpush1.bf16.msra.mxu0 %v7869
    %7904 = vmatprep.subr.bf16.mxu0 0
    %7905 = vmatpush1.bf16.msra.mxu0 %v7868
    %7906 = vmatprep.subr.bf16.mxu0 0
    %7907 = vmatpush1.bf16.msra.mxu0 %v7867
    %7908 = vmatprep.subr.bf16.mxu0 0
    %7909 = vmatpush1.bf16.msra.mxu0 %v7866
    %7910 = vmatprep.subr.bf16.mxu0 0
    %7911 = vmatpush1.bf16.msra.mxu0 %v7865
    %7912 = vmatprep.subr.bf16.mxu0 0
    %7913 = vmatpush2.bf16.msra.mxu0 0
    %7914 = vmatprep.subr.bf16.mxu0 0
    %7915 = vmatpush2.bf16.msra.mxu0 0
    %7916 = vmatprep.subr.bf16.mxu0 0
    %7917 = vmatpush2.bf16.msra.mxu0 %v7878
    %7918 = vmatprep.subr.bf16.mxu0 0
    %7919 = vmatpush2.bf16.msra.mxu0 %v7877
    %7920 = vmatprep.subr.bf16.mxu0 0
    %7921 = vmatpush2.bf16.msra.mxu0 %v7876
    %7922 = vmatprep.subr.bf16.mxu0 0
    %7923 = vmatpush2.bf16.msra.mxu0 %v7875
    %7924 = vmatprep.subr.bf16.mxu0 0
    %7925 = vmatpush2.bf16.msra.mxu0 %v7874
    %7926 = vmatprep.subr.bf16.mxu0 0
    %7927 = vmatpush2.bf16.msra.mxu0 %v7873
    %7928 = vmatprep.mubr.bf16.mxu0 %v7894
    %7929 = vmatmul.mubr.bf16.gmra.mxu0 %v7806
    %v7930 = vpop.f32.mrf.mxu0
    %v7931 = vadd.f32 0.0, %v7930
    %v7932 = vpop.f32.mrf.mxu0
    %v7933 = vpop.f32.mrf.mxu0
    %v7934 = vpop.f32.mrf.mxu0
    %7935 = vdwg.mxu0
    %v7936 = vld [vmem:[%s2114] sm:$0xf]
    %v7937 = vld [vmem:[%s2114 + $0x4] sm:$0xf]
    %v7938 = vld [vmem:[%s2114 + $0x8] sm:$0xf]
    %v7939 = vld [vmem:[%s2114 + $0xc] sm:$0xf]
    %v7940 = vld [vmem:[%s2114 + $0x10] sm:$0xf]
    %v7941 = vld [vmem:[%s2114 + $0x14] sm:$0xf]
    %v7942 = vld [vmem:[%s2114 + $0x18] sm:$0xf]
    %v7943 = vld [vmem:[%s2114 + $0x1c] sm:$0xf]
    %v7944 = vld [vmem:[%s2114 + $0x20] sm:$0xf]
    %v7945 = vld [vmem:[%s2114 + $0x24] sm:$0xf]
    %v7946 = vld [vmem:[%s2114 + $0x28] sm:$0xf]
    %v7947 = vld [vmem:[%s2114 + $0x2c] sm:$0xf]
    %v7948 = vld [vmem:[%s2114 + $0x30] sm:$0xf]
    %v7949 = vld [vmem:[%s2114 + $0x34] sm:$0xf]
    %v7950 = vld [vmem:[%s2114 + $0x38] sm:$0xf]
    %v7951 = vld [vmem:[%s2114 + $0x3c] sm:$0xf]
    %v7952 = vld [vmem:[%s2114 + $0x40] sm:$0xf]
    %v7953 = vld [vmem:[%s2114 + $0x44] sm:$0xf]
    %v7954 = vld [vmem:[%s2114 + $0x48] sm:$0xf]
    %v7955 = vld [vmem:[%s2114 + $0x4c] sm:$0xf]
    %v7956 = vld [vmem:[%s2114 + $0x50] sm:$0xf]
    %v7957 = vld [vmem:[%s2114 + $0x54] sm:$0xf]
    %v7958 = vld [vmem:[%s2114 + $0x58] sm:$0xf]
    %v7959 = vld [vmem:[%s2114 + $0x5c] sm:$0xf]
    %v7960 = vld [vmem:[%s2114 + $0x60] sm:$0xf]
    %v7961 = vld [vmem:[%s2114 + $0x64] sm:$0xf]
    %v7962 = vld [vmem:[%s2114 + $0x68] sm:$0xf]
    %v7963 = vld [vmem:[%s2114 + $0x6c] sm:$0xf]
    %v7964 = vrot.slane %v7643, 1
    %v7965 = vrot.slane %v7646, 1
    %v7995 = vunpack.c.l.b16 %v7936
    %v7996 = vunpack.c.l.b16 %v7937
    %v7997 = vunpack.c.l.b16 %v7938
    %v7998 = vunpack.c.l.b16 %v7939
    %v7999 = vunpack.c.l.b16 %v7940
    %v8000 = vunpack.c.l.b16 %v7941
    %v8001 = vunpack.c.l.b16 %v7942
    %v8002 = vunpack.c.l.b16 %v7943
    %v8003 = vunpack.c.l.b16 %v7944
    %v8004 = vunpack.c.l.b16 %v7945
    %v8005 = vunpack.c.l.b16 %v7946
    %v8006 = vunpack.c.l.b16 %v7947
    %v8007 = vunpack.c.l.b16 %v7948
    %v8008 = vunpack.c.l.b16 %v7949
    %v8009 = vunpack.c.l.b16 %v7950
    %v8010 = vunpack.c.l.b16 %v7951
    %v8011 = vunpack.c.l.b16 %v7952
    %v8012 = vunpack.c.l.b16 %v7953
    %v8013 = vunpack.c.l.b16 %v7954
    %v8014 = vunpack.c.l.b16 %v7955
    %v8015 = vunpack.c.l.b16 %v7956
    %v8016 = vunpack.c.l.b16 %v7957
    %v8017 = vunpack.c.l.b16 %v7958
    %v8018 = vunpack.c.l.b16 %v7959
    %v8019 = vunpack.c.l.b16 %v7960
    %v8020 = vunpack.c.l.b16 %v7961
    %v8021 = vunpack.c.l.b16 %v7962
    %v8022 = vunpack.c.l.b16 %v7963
    %v8023 = vpack.c.b16 %v7996, %v7995
    %v8024 = vpack.c.b16 %v7998, %v7997
    %v8025 = vpack.c.b16 %v8000, %v7999
    %v8026 = vpack.c.b16 %v8002, %v8001
    %v8027 = vpack.c.b16 %v8004, %v8003
    %v8028 = vpack.c.b16 %v8006, %v8005
    %v8029 = vpack.c.b16 %v8008, %v8007
    %v8030 = vpack.c.b16 %v8010, %v8009
    %v8031 = vpack.c.b16 %v8012, %v8011
    %v8032 = vpack.c.b16 %v8014, %v8013
    %v8033 = vpack.c.b16 %v8016, %v8015
    %v8034 = vpack.c.b16 %v8018, %v8017
    %v8035 = vpack.c.b16 %v8020, %v8019
    %v8036 = vpack.c.b16 %v8022, %v8021
    %v8052 = vsel %vm1061, %v7965, 0
    %8054 = vmatprep.subr.bf16.mxu0 0
    %8055 = vmatpush1.bf16.msra.mxu0 %v8030
    %8056 = vmatprep.subr.bf16.mxu0 0
    %8057 = vmatpush1.bf16.msra.mxu0 %v8029
    %8058 = vmatprep.subr.bf16.mxu0 0
    %8059 = vmatpush1.bf16.msra.mxu0 %v8028
    %8060 = vmatprep.subr.bf16.mxu0 0
    %8061 = vmatpush1.bf16.msra.mxu0 %v8027
    %8062 = vmatprep.subr.bf16.mxu0 0
    %8063 = vmatpush1.bf16.msra.mxu0 %v8026
    %8064 = vmatprep.subr.bf16.mxu0 0
    %8065 = vmatpush1.bf16.msra.mxu0 %v8025
    %8066 = vmatprep.subr.bf16.mxu0 0
    %8067 = vmatpush1.bf16.msra.mxu0 %v8024
    %8068 = vmatprep.subr.bf16.mxu0 0
    %8069 = vmatpush1.bf16.msra.mxu0 %v8023
    %8070 = vmatprep.subr.bf16.mxu0 0
    %8071 = vmatpush2.bf16.msra.mxu0 0
    %8072 = vmatprep.subr.bf16.mxu0 0
    %8073 = vmatpush2.bf16.msra.mxu0 0
    %8074 = vmatprep.subr.bf16.mxu0 0
    %8075 = vmatpush2.bf16.msra.mxu0 %v8036
    %8076 = vmatprep.subr.bf16.mxu0 0
    %8077 = vmatpush2.bf16.msra.mxu0 %v8035
    %8078 = vmatprep.subr.bf16.mxu0 0
    %8079 = vmatpush2.bf16.msra.mxu0 %v8034
    %8080 = vmatprep.subr.bf16.mxu0 0
    %8081 = vmatpush2.bf16.msra.mxu0 %v8033
    %8082 = vmatprep.subr.bf16.mxu0 0
    %8083 = vmatpush2.bf16.msra.mxu0 %v8032
    %8084 = vmatprep.subr.bf16.mxu0 0
    %8085 = vmatpush2.bf16.msra.mxu0 %v8031
    %8086 = vmatprep.mubr.bf16.mxu0 %v8052
    %8087 = vmatmul.mubr.bf16.gmra.mxu0 %v7964
    %v8088 = vpop.f32.mrf.mxu0
    %v8089 = vadd.f32 0.0, %v8088
    %v8090 = vpop.f32.mrf.mxu0
    %v8091 = vpop.f32.mrf.mxu0
    %v8092 = vpop.f32.mrf.mxu0
    %8093 = vdwg.mxu0
    %v8094 = vld [vmem:[%s2273] sm:$0xf]
    %v8095 = vld [vmem:[%s2273 + $0x4] sm:$0xf]
    %v8096 = vld [vmem:[%s2273 + $0x8] sm:$0xf]
    %v8097 = vld [vmem:[%s2273 + $0xc] sm:$0xf]
    %v8098 = vld [vmem:[%s2273 + $0x10] sm:$0xf]
    %v8099 = vld [vmem:[%s2273 + $0x14] sm:$0xf]
    %v8100 = vld [vmem:[%s2273 + $0x18] sm:$0xf]
    %v8101 = vld [vmem:[%s2273 + $0x1c] sm:$0xf]
    %v8102 = vld [vmem:[%s2273 + $0x20] sm:$0xf]
    %v8103 = vld [vmem:[%s2273 + $0x24] sm:$0xf]
    %v8104 = vld [vmem:[%s2273 + $0x28] sm:$0xf]
    %v8105 = vld [vmem:[%s2273 + $0x2c] sm:$0xf]
    %v8106 = vld [vmem:[%s2273 + $0x30] sm:$0xf]
    %v8107 = vld [vmem:[%s2273 + $0x34] sm:$0xf]
    %v8108 = vld [vmem:[%s2273 + $0x38] sm:$0xf]
    %v8109 = vld [vmem:[%s2273 + $0x3c] sm:$0xf]
    %v8110 = vld [vmem:[%s2273 + $0x40] sm:$0xf]
    %v8111 = vld [vmem:[%s2273 + $0x44] sm:$0xf]
    %v8112 = vld [vmem:[%s2273 + $0x48] sm:$0xf]
    %v8113 = vld [vmem:[%s2273 + $0x4c] sm:$0xf]
    %v8114 = vld [vmem:[%s2273 + $0x50] sm:$0xf]
    %v8115 = vld [vmem:[%s2273 + $0x54] sm:$0xf]
    %v8116 = vld [vmem:[%s2273 + $0x58] sm:$0xf]
    %v8117 = vld [vmem:[%s2273 + $0x5c] sm:$0xf]
    %v8118 = vld [vmem:[%s2273 + $0x60] sm:$0xf]
    %v8119 = vld [vmem:[%s2273 + $0x64] sm:$0xf]
    %v8120 = vld [vmem:[%s2273 + $0x68] sm:$0xf]
    %v8121 = vld [vmem:[%s2273 + $0x6c] sm:$0xf]
    %v8122 = vrot.slane %v7584, 2
    %v8123 = vrot.slane %v7585, 2
    %v8153 = vunpack.c.l.b16 %v8094
    %v8154 = vunpack.c.l.b16 %v8095
    %v8155 = vunpack.c.l.b16 %v8096
    %v8156 = vunpack.c.l.b16 %v8097
    %v8157 = vunpack.c.l.b16 %v8098
    %v8158 = vunpack.c.l.b16 %v8099
    %v8159 = vunpack.c.l.b16 %v8100
    %v8160 = vunpack.c.l.b16 %v8101
    %v8161 = vunpack.c.l.b16 %v8102
    %v8162 = vunpack.c.l.b16 %v8103
    %v8163 = vunpack.c.l.b16 %v8104
    %v8164 = vunpack.c.l.b16 %v8105
    %v8165 = vunpack.c.l.b16 %v8106
    %v8166 = vunpack.c.l.b16 %v8107
    %v8167 = vunpack.c.l.b16 %v8108
    %v8168 = vunpack.c.l.b16 %v8109
    %v8169 = vunpack.c.l.b16 %v8110
    %v8170 = vunpack.c.l.b16 %v8111
    %v8171 = vunpack.c.l.b16 %v8112
    %v8172 = vunpack.c.l.b16 %v8113
    %v8173 = vunpack.c.l.b16 %v8114
    %v8174 = vunpack.c.l.b16 %v8115
    %v8175 = vunpack.c.l.b16 %v8116
    %v8176 = vunpack.c.l.b16 %v8117
    %v8177 = vunpack.c.l.b16 %v8118
    %v8178 = vunpack.c.l.b16 %v8119
    %v8179 = vunpack.c.l.b16 %v8120
    %v8180 = vunpack.c.l.b16 %v8121
    %v8181 = vpack.c.b16 %v8154, %v8153
    %v8182 = vpack.c.b16 %v8156, %v8155
    %v8183 = vpack.c.b16 %v8158, %v8157
    %v8184 = vpack.c.b16 %v8160, %v8159
    %v8185 = vpack.c.b16 %v8162, %v8161
    %v8186 = vpack.c.b16 %v8164, %v8163
    %v8187 = vpack.c.b16 %v8166, %v8165
    %v8188 = vpack.c.b16 %v8168, %v8167
    %v8189 = vpack.c.b16 %v8170, %v8169
    %v8190 = vpack.c.b16 %v8172, %v8171
    %v8191 = vpack.c.b16 %v8174, %v8173
    %v8192 = vpack.c.b16 %v8176, %v8175
    %v8193 = vpack.c.b16 %v8178, %v8177
    %v8194 = vpack.c.b16 %v8180, %v8179
    %v8210 = vsel %vm1061, %v8123, 0
    %8212 = vmatprep.subr.bf16.mxu0 0
    %8213 = vmatpush1.bf16.msra.mxu0 %v8188
    %8214 = vmatprep.subr.bf16.mxu0 0
    %8215 = vmatpush1.bf16.msra.mxu0 %v8187
    %8216 = vmatprep.subr.bf16.mxu0 0
    %8217 = vmatpush1.bf16.msra.mxu0 %v8186
    %8218 = vmatprep.subr.bf16.mxu0 0
    %8219 = vmatpush1.bf16.msra.mxu0 %v8185
    %8220 = vmatprep.subr.bf16.mxu0 0
    %8221 = vmatpush1.bf16.msra.mxu0 %v8184
    %8222 = vmatprep.subr.bf16.mxu0 0
    %8223 = vmatpush1.bf16.msra.mxu0 %v8183
    %8224 = vmatprep.subr.bf16.mxu0 0
    %8225 = vmatpush1.bf16.msra.mxu0 %v8182
    %8226 = vmatprep.subr.bf16.mxu0 0
    %8227 = vmatpush1.bf16.msra.mxu0 %v8181
    %8228 = vmatprep.subr.bf16.mxu0 0
    %8229 = vmatpush2.bf16.msra.mxu0 0
    %8230 = vmatprep.subr.bf16.mxu0 0
    %8231 = vmatpush2.bf16.msra.mxu0 0
    %8232 = vmatprep.subr.bf16.mxu0 0
    %8233 = vmatpush2.bf16.msra.mxu0 %v8194
    %8234 = vmatprep.subr.bf16.mxu0 0
    %8235 = vmatpush2.bf16.msra.mxu0 %v8193
    %8236 = vmatprep.subr.bf16.mxu0 0
    %8237 = vmatpush2.bf16.msra.mxu0 %v8192
    %8238 = vmatprep.subr.bf16.mxu0 0
    %8239 = vmatpush2.bf16.msra.mxu0 %v8191
    %8240 = vmatprep.subr.bf16.mxu0 0
    %8241 = vmatpush2.bf16.msra.mxu0 %v8190
    %8242 = vmatprep.subr.bf16.mxu0 0
    %8243 = vmatpush2.bf16.msra.mxu0 %v8189
    %8244 = vmatprep.mubr.bf16.mxu0 %v8210
    %8245 = vmatmul.mubr.bf16.gmra.mxu0 %v8122
    %v8246 = vpop.f32.mrf.mxu0
    %v8247 = vadd.f32 0.0, %v8246
    %v8248 = vpop.f32.mrf.mxu0
    %v8249 = vpop.f32.mrf.mxu0
    %v8250 = vpop.f32.mrf.mxu0
    %8251 = vdwg.mxu0
    %v8252 = vld [vmem:[%s2432] sm:$0xf]
    %v8253 = vld [vmem:[%s2432 + $0x4] sm:$0xf]
    %v8254 = vld [vmem:[%s2432 + $0x8] sm:$0xf]
    %v8255 = vld [vmem:[%s2432 + $0xc] sm:$0xf]
    %v8256 = vld [vmem:[%s2432 + $0x10] sm:$0xf]
    %v8257 = vld [vmem:[%s2432 + $0x14] sm:$0xf]
    %v8258 = vld [vmem:[%s2432 + $0x18] sm:$0xf]
    %v8259 = vld [vmem:[%s2432 + $0x1c] sm:$0xf]
    %v8260 = vld [vmem:[%s2432 + $0x20] sm:$0xf]
    %v8261 = vld [vmem:[%s2432 + $0x24] sm:$0xf]
    %v8262 = vld [vmem:[%s2432 + $0x28] sm:$0xf]
    %v8263 = vld [vmem:[%s2432 + $0x2c] sm:$0xf]
    %v8264 = vld [vmem:[%s2432 + $0x30] sm:$0xf]
    %v8265 = vld [vmem:[%s2432 + $0x34] sm:$0xf]
    %v8266 = vld [vmem:[%s2432 + $0x38] sm:$0xf]
    %v8267 = vld [vmem:[%s2432 + $0x3c] sm:$0xf]
    %v8268 = vld [vmem:[%s2432 + $0x40] sm:$0xf]
    %v8269 = vld [vmem:[%s2432 + $0x44] sm:$0xf]
    %v8270 = vld [vmem:[%s2432 + $0x48] sm:$0xf]
    %v8271 = vld [vmem:[%s2432 + $0x4c] sm:$0xf]
    %v8272 = vld [vmem:[%s2432 + $0x50] sm:$0xf]
    %v8273 = vld [vmem:[%s2432 + $0x54] sm:$0xf]
    %v8274 = vld [vmem:[%s2432 + $0x58] sm:$0xf]
    %v8275 = vld [vmem:[%s2432 + $0x5c] sm:$0xf]
    %v8276 = vld [vmem:[%s2432 + $0x60] sm:$0xf]
    %v8277 = vld [vmem:[%s2432 + $0x64] sm:$0xf]
    %v8278 = vld [vmem:[%s2432 + $0x68] sm:$0xf]
    %v8279 = vld [vmem:[%s2432 + $0x6c] sm:$0xf]
    %v8280 = vrot.slane %v7643, 2
    %v8281 = vrot.slane %v7646, 2
    %v8311 = vunpack.c.l.b16 %v8252
    %v8312 = vunpack.c.l.b16 %v8253
    %v8313 = vunpack.c.l.b16 %v8254
    %v8314 = vunpack.c.l.b16 %v8255
    %v8315 = vunpack.c.l.b16 %v8256
    %v8316 = vunpack.c.l.b16 %v8257
    %v8317 = vunpack.c.l.b16 %v8258
    %v8318 = vunpack.c.l.b16 %v8259
    %v8319 = vunpack.c.l.b16 %v8260
    %v8320 = vunpack.c.l.b16 %v8261
    %v8321 = vunpack.c.l.b16 %v8262
    %v8322 = vunpack.c.l.b16 %v8263
    %v8323 = vunpack.c.l.b16 %v8264
    %v8324 = vunpack.c.l.b16 %v8265
    %v8325 = vunpack.c.l.b16 %v8266
    %v8326 = vunpack.c.l.b16 %v8267
    %v8327 = vunpack.c.l.b16 %v8268
    %v8328 = vunpack.c.l.b16 %v8269
    %v8329 = vunpack.c.l.b16 %v8270
    %v8330 = vunpack.c.l.b16 %v8271
    %v8331 = vunpack.c.l.b16 %v8272
    %v8332 = vunpack.c.l.b16 %v8273
    %v8333 = vunpack.c.l.b16 %v8274
    %v8334 = vunpack.c.l.b16 %v8275
    %v8335 = vunpack.c.l.b16 %v8276
    %v8336 = vunpack.c.l.b16 %v8277
    %v8337 = vunpack.c.l.b16 %v8278
    %v8338 = vunpack.c.l.b16 %v8279
    %v8339 = vpack.c.b16 %v8312, %v8311
    %v8340 = vpack.c.b16 %v8314, %v8313
    %v8341 = vpack.c.b16 %v8316, %v8315
    %v8342 = vpack.c.b16 %v8318, %v8317
    %v8343 = vpack.c.b16 %v8320, %v8319
    %v8344 = vpack.c.b16 %v8322, %v8321
    %v8345 = vpack.c.b16 %v8324, %v8323
    %v8346 = vpack.c.b16 %v8326, %v8325
    %v8347 = vpack.c.b16 %v8328, %v8327
    %v8348 = vpack.c.b16 %v8330, %v8329
    %v8349 = vpack.c.b16 %v8332, %v8331
    %v8350 = vpack.c.b16 %v8334, %v8333
    %v8351 = vpack.c.b16 %v8336, %v8335
    %v8352 = vpack.c.b16 %v8338, %v8337
    %v8368 = vsel %vm1061, %v8281, 0
    %8370 = vmatprep.subr.bf16.mxu0 0
    %8371 = vmatpush1.bf16.msra.mxu0 %v8346
    %8372 = vmatprep.subr.bf16.mxu0 0
    %8373 = vmatpush1.bf16.msra.mxu0 %v8345
    %8374 = vmatprep.subr.bf16.mxu0 0
    %8375 = vmatpush1.bf16.msra.mxu0 %v8344
    %8376 = vmatprep.subr.bf16.mxu0 0
    %8377 = vmatpush1.bf16.msra.mxu0 %v8343
    %8378 = vmatprep.subr.bf16.mxu0 0
    %8379 = vmatpush1.bf16.msra.mxu0 %v8342
    %8380 = vmatprep.subr.bf16.mxu0 0
    %8381 = vmatpush1.bf16.msra.mxu0 %v8341
    %8382 = vmatprep.subr.bf16.mxu0 0
    %8383 = vmatpush1.bf16.msra.mxu0 %v8340
    %8384 = vmatprep.subr.bf16.mxu0 0
    %8385 = vmatpush1.bf16.msra.mxu0 %v8339
    %8386 = vmatprep.subr.bf16.mxu0 0
    %8387 = vmatpush2.bf16.msra.mxu0 0
    %8388 = vmatprep.subr.bf16.mxu0 0
    %8389 = vmatpush2.bf16.msra.mxu0 0
    %8390 = vmatprep.subr.bf16.mxu0 0
    %8391 = vmatpush2.bf16.msra.mxu0 %v8352
    %8392 = vmatprep.subr.bf16.mxu0 0
    %8393 = vmatpush2.bf16.msra.mxu0 %v8351
    %8394 = vmatprep.subr.bf16.mxu0 0
    %8395 = vmatpush2.bf16.msra.mxu0 %v8350
    %8396 = vmatprep.subr.bf16.mxu0 0
    %8397 = vmatpush2.bf16.msra.mxu0 %v8349
    %8398 = vmatprep.subr.bf16.mxu0 0
    %8399 = vmatpush2.bf16.msra.mxu0 %v8348
    %8400 = vmatprep.subr.bf16.mxu0 0
    %8401 = vmatpush2.bf16.msra.mxu0 %v8347
    %8402 = vmatprep.mubr.bf16.mxu0 %v8368
    %8403 = vmatmul.mubr.bf16.gmra.mxu0 %v8280
    %v8404 = vpop.f32.mrf.mxu0
    %v8405 = vadd.f32 0.0, %v8404
    %v8406 = vpop.f32.mrf.mxu0
    %v8407 = vpop.f32.mrf.mxu0
    %v8408 = vpop.f32.mrf.mxu0
    %8409 = vdwg.mxu0
    %v8410 = vld [vmem:[%s2591] sm:$0xf]
    %v8411 = vld [vmem:[%s2591 + $0x4] sm:$0xf]
    %v8412 = vld [vmem:[%s2591 + $0x8] sm:$0xf]
    %v8413 = vld [vmem:[%s2591 + $0xc] sm:$0xf]
    %v8414 = vld [vmem:[%s2591 + $0x10] sm:$0xf]
    %v8415 = vld [vmem:[%s2591 + $0x14] sm:$0xf]
    %v8416 = vld [vmem:[%s2591 + $0x18] sm:$0xf]
    %v8417 = vld [vmem:[%s2591 + $0x1c] sm:$0xf]
    %v8418 = vld [vmem:[%s2591 + $0x20] sm:$0xf]
    %v8419 = vld [vmem:[%s2591 + $0x24] sm:$0xf]
    %v8420 = vld [vmem:[%s2591 + $0x28] sm:$0xf]
    %v8421 = vld [vmem:[%s2591 + $0x2c] sm:$0xf]
    %v8422 = vld [vmem:[%s2591 + $0x30] sm:$0xf]
    %v8423 = vld [vmem:[%s2591 + $0x34] sm:$0xf]
    %v8424 = vld [vmem:[%s2591 + $0x38] sm:$0xf]
    %v8425 = vld [vmem:[%s2591 + $0x3c] sm:$0xf]
    %v8426 = vld [vmem:[%s2591 + $0x40] sm:$0xf]
    %v8427 = vld [vmem:[%s2591 + $0x44] sm:$0xf]
    %v8428 = vld [vmem:[%s2591 + $0x48] sm:$0xf]
    %v8429 = vld [vmem:[%s2591 + $0x4c] sm:$0xf]
    %v8430 = vld [vmem:[%s2591 + $0x50] sm:$0xf]
    %v8431 = vld [vmem:[%s2591 + $0x54] sm:$0xf]
    %v8432 = vld [vmem:[%s2591 + $0x58] sm:$0xf]
    %v8433 = vld [vmem:[%s2591 + $0x5c] sm:$0xf]
    %v8434 = vld [vmem:[%s2591 + $0x60] sm:$0xf]
    %v8435 = vld [vmem:[%s2591 + $0x64] sm:$0xf]
    %v8436 = vld [vmem:[%s2591 + $0x68] sm:$0xf]
    %v8437 = vld [vmem:[%s2591 + $0x6c] sm:$0xf]
    %v8438 = vrot.slane %v7584, 3
    %v8439 = vrot.slane %v7585, 3
    %v8469 = vunpack.c.l.b16 %v8410
    %v8470 = vunpack.c.l.b16 %v8411
    %v8471 = vunpack.c.l.b16 %v8412
    %v8472 = vunpack.c.l.b16 %v8413
    %v8473 = vunpack.c.l.b16 %v8414
    %v8474 = vunpack.c.l.b16 %v8415
    %v8475 = vunpack.c.l.b16 %v8416
    %v8476 = vunpack.c.l.b16 %v8417
    %v8477 = vunpack.c.l.b16 %v8418
    %v8478 = vunpack.c.l.b16 %v8419
    %v8479 = vunpack.c.l.b16 %v8420
    %v8480 = vunpack.c.l.b16 %v8421
    %v8481 = vunpack.c.l.b16 %v8422
    %v8482 = vunpack.c.l.b16 %v8423
    %v8483 = vunpack.c.l.b16 %v8424
    %v8484 = vunpack.c.l.b16 %v8425
    %v8485 = vunpack.c.l.b16 %v8426
    %v8486 = vunpack.c.l.b16 %v8427
    %v8487 = vunpack.c.l.b16 %v8428
    %v8488 = vunpack.c.l.b16 %v8429
    %v8489 = vunpack.c.l.b16 %v8430
    %v8490 = vunpack.c.l.b16 %v8431
    %v8491 = vunpack.c.l.b16 %v8432
    %v8492 = vunpack.c.l.b16 %v8433
    %v8493 = vunpack.c.l.b16 %v8434
    %v8494 = vunpack.c.l.b16 %v8435
    %v8495 = vunpack.c.l.b16 %v8436
    %v8496 = vunpack.c.l.b16 %v8437
    %v8497 = vpack.c.b16 %v8470, %v8469
    %v8498 = vpack.c.b16 %v8472, %v8471
    %v8499 = vpack.c.b16 %v8474, %v8473
    %v8500 = vpack.c.b16 %v8476, %v8475
    %v8501 = vpack.c.b16 %v8478, %v8477
    %v8502 = vpack.c.b16 %v8480, %v8479
    %v8503 = vpack.c.b16 %v8482, %v8481
    %v8504 = vpack.c.b16 %v8484, %v8483
    %v8505 = vpack.c.b16 %v8486, %v8485
    %v8506 = vpack.c.b16 %v8488, %v8487
    %v8507 = vpack.c.b16 %v8490, %v8489
    %v8508 = vpack.c.b16 %v8492, %v8491
    %v8509 = vpack.c.b16 %v8494, %v8493
    %v8510 = vpack.c.b16 %v8496, %v8495
    %v8526 = vsel %vm1061, %v8439, 0
    %8528 = vmatprep.subr.bf16.mxu0 0
    %8529 = vmatpush1.bf16.msra.mxu0 %v8504
    %8530 = vmatprep.subr.bf16.mxu0 0
    %8531 = vmatpush1.bf16.msra.mxu0 %v8503
    %8532 = vmatprep.subr.bf16.mxu0 0
    %8533 = vmatpush1.bf16.msra.mxu0 %v8502
    %8534 = vmatprep.subr.bf16.mxu0 0
    %8535 = vmatpush1.bf16.msra.mxu0 %v8501
    %8536 = vmatprep.subr.bf16.mxu0 0
    %8537 = vmatpush1.bf16.msra.mxu0 %v8500
    %8538 = vmatprep.subr.bf16.mxu0 0
    %8539 = vmatpush1.bf16.msra.mxu0 %v8499
    %8540 = vmatprep.subr.bf16.mxu0 0
    %8541 = vmatpush1.bf16.msra.mxu0 %v8498
    %8542 = vmatprep.subr.bf16.mxu0 0
    %8543 = vmatpush1.bf16.msra.mxu0 %v8497
    %8544 = vmatprep.subr.bf16.mxu0 0
    %8545 = vmatpush2.bf16.msra.mxu0 0
    %8546 = vmatprep.subr.bf16.mxu0 0
    %8547 = vmatpush2.bf16.msra.mxu0 0
    %8548 = vmatprep.subr.bf16.mxu0 0
    %8549 = vmatpush2.bf16.msra.mxu0 %v8510
    %8550 = vmatprep.subr.bf16.mxu0 0
    %8551 = vmatpush2.bf16.msra.mxu0 %v8509
    %8552 = vmatprep.subr.bf16.mxu0 0
    %8553 = vmatpush2.bf16.msra.mxu0 %v8508
    %8554 = vmatprep.subr.bf16.mxu0 0
    %8555 = vmatpush2.bf16.msra.mxu0 %v8507
    %8556 = vmatprep.subr.bf16.mxu0 0
    %8557 = vmatpush2.bf16.msra.mxu0 %v8506
    %8558 = vmatprep.subr.bf16.mxu0 0
    %8559 = vmatpush2.bf16.msra.mxu0 %v8505
    %8560 = vmatprep.mubr.bf16.mxu0 %v8526
    %8561 = vmatmul.mubr.bf16.gmra.mxu0 %v8438
    %v8562 = vpop.f32.mrf.mxu0
    %v8563 = vadd.f32 0.0, %v8562
    %v8564 = vpop.f32.mrf.mxu0
    %v8565 = vpop.f32.mrf.mxu0
    %v8566 = vpop.f32.mrf.mxu0
    %8567 = vdwg.mxu0
    %v8596 = vunpack.c.l.b16 %v7586
    %v8597 = vunpack.c.l.b16 %v7587
    %v8598 = vunpack.c.l.b16 %v7588
    %v8599 = vunpack.c.l.b16 %v7589
    %v8600 = vunpack.c.l.b16 %v7590
    %v8601 = vunpack.c.l.b16 %v7591
    %v8602 = vunpack.c.l.b16 %v7592
    %v8603 = vunpack.c.l.b16 %v7593
    %v8604 = vunpack.c.l.b16 %v7594
    %v8605 = vunpack.c.l.b16 %v7595
    %v8606 = vunpack.c.l.b16 %v7596
    %v8607 = vunpack.c.l.b16 %v7597
    %v8608 = vunpack.c.l.b16 %v7598
    %v8609 = vunpack.c.l.b16 %v7599
    %v8610 = vunpack.c.l.b16 %v7600
    %v8611 = vunpack.c.l.b16 %v7601
    %v8612 = vunpack.c.l.b16 %v7602
    %v8613 = vunpack.c.l.b16 %v7603
    %v8614 = vunpack.c.l.b16 %v7604
    %v8615 = vunpack.c.l.b16 %v7605
    %v8616 = vunpack.c.l.b16 %v7606
    %v8617 = vunpack.c.l.b16 %v7607
    %v8618 = vunpack.c.l.b16 %v7608
    %v8619 = vunpack.c.l.b16 %v7609
    %v8620 = vunpack.c.l.b16 %v7610
    %v8621 = vunpack.c.l.b16 %v7611
    %v8622 = vunpack.c.l.b16 %v7612
    %v8623 = vunpack.c.l.b16 %v7613
    %v8624 = vpack.c.b16 %v8597, %v8596
    %v8625 = vpack.c.b16 %v8599, %v8598
    %v8626 = vpack.c.b16 %v8601, %v8600
    %v8627 = vpack.c.b16 %v8603, %v8602
    %v8628 = vpack.c.b16 %v8605, %v8604
    %v8629 = vpack.c.b16 %v8607, %v8606
    %v8630 = vpack.c.b16 %v8609, %v8608
    %v8631 = vpack.c.b16 %v8611, %v8610
    %v8632 = vpack.c.b16 %v8613, %v8612
    %v8633 = vpack.c.b16 %v8615, %v8614
    %v8634 = vpack.c.b16 %v8617, %v8616
    %v8635 = vpack.c.b16 %v8619, %v8618
    %v8636 = vpack.c.b16 %v8621, %v8620
    %v8637 = vpack.c.b16 %v8623, %v8622
    %v8652 = vsel %vm1061, %v7585, 0
    %8654 = vmatprep.subr.bf16.mxu0 0
    %8655 = vmatpush1.bf16.msra.mxu0 %v8631
    %8656 = vmatprep.subr.bf16.mxu0 0
    %8657 = vmatpush1.bf16.msra.mxu0 %v8630
    %8658 = vmatprep.subr.bf16.mxu0 0
    %8659 = vmatpush1.bf16.msra.mxu0 %v8629
    %8660 = vmatprep.subr.bf16.mxu0 0
    %8661 = vmatpush1.bf16.msra.mxu0 %v8628
    %8662 = vmatprep.subr.bf16.mxu0 0
    %8663 = vmatpush1.bf16.msra.mxu0 %v8627
    %8664 = vmatprep.subr.bf16.mxu0 0
    %8665 = vmatpush1.bf16.msra.mxu0 %v8626
    %8666 = vmatprep.subr.bf16.mxu0 0
    %8667 = vmatpush1.bf16.msra.mxu0 %v8625
    %8668 = vmatprep.subr.bf16.mxu0 0
    %8669 = vmatpush1.bf16.msra.mxu0 %v8624
    %8670 = vmatprep.subr.bf16.mxu0 0
    %8671 = vmatpush2.bf16.msra.mxu0 0
    %8672 = vmatprep.subr.bf16.mxu0 0
    %8673 = vmatpush2.bf16.msra.mxu0 0
    %8674 = vmatprep.subr.bf16.mxu0 0
    %8675 = vmatpush2.bf16.msra.mxu0 %v8637
    %8676 = vmatprep.subr.bf16.mxu0 0
    %8677 = vmatpush2.bf16.msra.mxu0 %v8636
    %8678 = vmatprep.subr.bf16.mxu0 0
    %8679 = vmatpush2.bf16.msra.mxu0 %v8635
    %8680 = vmatprep.subr.bf16.mxu0 0
    %8681 = vmatpush2.bf16.msra.mxu0 %v8634
    %8682 = vmatprep.subr.bf16.mxu0 0
    %8683 = vmatpush2.bf16.msra.mxu0 %v8633
    %8684 = vmatprep.subr.bf16.mxu0 0
    %8685 = vmatpush2.bf16.msra.mxu0 %v8632
    %8686 = vmatprep.mubr.bf16.mxu0 %v8652
    %8687 = vmatmul.mubr.bf16.gmra.mxu0 %v7584
    %v8688 = vpop.f32.mrf.mxu0
    %v8689 = vadd.f32 %v7771, %v8688
    %v8690 = vpop.f32.mrf.mxu0
    %v8691 = vpop.f32.mrf.mxu0
    %v8692 = vpop.f32.mrf.mxu0
    %8693 = vdwg.mxu0
    %v8694 = vadd.f32 %v8689, %v7931
    %v8695 = vadd.f32 %v8694, %v8089
    %v8696 = vadd.f32 %v8695, %v8247
    %v8697 = vadd.f32 %v8696, %v8405
    %v8698 = vadd.f32 %v8697, %v8563
    %v8699 = vld [vmem:[#allocation10] sm:$0x1]
    %v8700 = vadd.f32 %v8698, %v8699
    %v8701 = vmax.f32 %v8700, 0.0
    %v8702 = vpack.c.bf16 %v8701, %v8701
    %v8703 = vld [vmem:[%s7] sm:$0xf]
    %v8704 = vld [vmem:[%s7 + $0x4] sm:$0xf]
    %v8705 = vld [vmem:[%s7 + $0x8] sm:$0xf]
    %v8706 = vld [vmem:[%s7 + $0xc] sm:$0xf]
    %v8707 = vld [vmem:[#allocation12] sm:$0x1]
    %v8712 = vunpack.c.l.b16 %v8703
    %v8713 = vunpack.c.l.b16 %v8704
    %v8714 = vunpack.c.l.b16 %v8705
    %v8715 = vunpack.c.l.b16 %v8706
    %v8716 = vpack.c.b16 %v8713, %v8712
    %v8717 = vpack.c.b16 %v8715, %v8714
    %v8721 = vsel %vm247, %v8702, 0
    %8723 = vmatprep.subr.bf16.mxu0 0
    %8724 = vmatpush1.bf16.msra.mxu0 0
    %8725 = vmatprep.subr.bf16.mxu0 0
    %8726 = vmatpush1.bf16.msra.mxu0 0
    %8727 = vmatprep.subr.bf16.mxu0 0
    %8728 = vmatpush1.bf16.msra.mxu0 0
    %8729 = vmatprep.subr.bf16.mxu0 0
    %8730 = vmatpush1.bf16.msra.mxu0 0
    %8731 = vmatprep.subr.bf16.mxu0 0
    %8732 = vmatpush1.bf16.msra.mxu0 0
    %8733 = vmatprep.subr.bf16.mxu0 0
    %8734 = vmatpush1.bf16.msra.mxu0 0
    %8735 = vmatprep.subr.bf16.mxu0 0
    %8736 = vmatpush1.bf16.msra.mxu0 %v8717
    %8737 = vmatprep.subr.bf16.mxu0 0
    %8738 = vmatpush1.bf16.msra.mxu0 %v8716
    %8739 = vmatprep.subr.bf16.mxu0 0
    %8740 = vmatpush2.bf16.msra.mxu0 0
    %8741 = vmatprep.subr.bf16.mxu0 0
    %8742 = vmatpush2.bf16.msra.mxu0 0
    %8743 = vmatprep.subr.bf16.mxu0 0
    %8744 = vmatpush2.bf16.msra.mxu0 0
    %8745 = vmatprep.subr.bf16.mxu0 0
    %8746 = vmatpush2.bf16.msra.mxu0 0
    %8747 = vmatprep.subr.bf16.mxu0 0
    %8748 = vmatpush2.bf16.msra.mxu0 0
    %8749 = vmatprep.subr.bf16.mxu0 0
    %8750 = vmatpush2.bf16.msra.mxu0 0
    %8751 = vmatprep.subr.bf16.mxu0 0
    %8752 = vmatpush2.bf16.msra.mxu0 0
    %8753 = vmatprep.subr.bf16.mxu0 0
    %8754 = vmatpush2.bf16.msra.mxu0 0
    %8755 = vmatprep.mubr.bf16.mxu0 0
    %8756 = vmatmul.mubr.bf16.gmra.mxu0 %v8721
    %v8757 = vpop.f32.mrf.mxu0
    %v8758 = vadd.f32 %v8707, %v8757
    %v8759 = vpop.f32.mrf.mxu0
    %v8760 = vpop.f32.mrf.mxu0
    %v8761 = vpop.f32.mrf.mxu0
    %8762 = vdwg.mxu0
    %v8763 = vpack.c.bf16 %v8758, %v8758
    %v8764 = vld [vmem:[%s9] sm:$0xf]
    %v8765 = vld [vmem:[#allocation13] sm:$0x1]
    %v8767 = vsel %vm2948, %v8763, 0
    %v8770 = vsel %vm177, %v8764, 0
    %8772 = vmatprep.subr.bf16.mxu0 0
    %8773 = vmatpush1.bf16.msra.mxu0 0
    %8774 = vmatprep.subr.bf16.mxu0 0
    %8775 = vmatpush1.bf16.msra.mxu0 0
    %8776 = vmatprep.subr.bf16.mxu0 0
    %8777 = vmatpush1.bf16.msra.mxu0 0
    %8778 = vmatprep.subr.bf16.mxu0 0
    %8779 = vmatpush1.bf16.msra.mxu0 0
    %8780 = vmatprep.subr.bf16.mxu0 0
    %8781 = vmatpush1.bf16.msra.mxu0 0
    %8782 = vmatprep.subr.bf16.mxu0 0
    %8783 = vmatpush1.bf16.msra.mxu0 0
    %8784 = vmatprep.subr.bf16.mxu0 0
    %8785 = vmatpush1.bf16.msra.mxu0 0
    %8786 = vmatprep.subr.bf16.mxu0 0
    %8787 = vmatpush1.bf16.msra.mxu0 %v8770
    %8788 = vmatprep.subr.bf16.mxu0 0
    %8789 = vmatpush2.bf16.msra.mxu0 0
    %8790 = vmatprep.subr.bf16.mxu0 0
    %8791 = vmatpush2.bf16.msra.mxu0 0
    %8792 = vmatprep.subr.bf16.mxu0 0
    %8793 = vmatpush2.bf16.msra.mxu0 0
    %8794 = vmatprep.subr.bf16.mxu0 0
    %8795 = vmatpush2.bf16.msra.mxu0 0
    %8796 = vmatprep.subr.bf16.mxu0 0
    %8797 = vmatpush2.bf16.msra.mxu0 0
    %8798 = vmatprep.subr.bf16.mxu0 0
    %8799 = vmatpush2.bf16.msra.mxu0 0
    %8800 = vmatprep.subr.bf16.mxu0 0
    %8801 = vmatpush2.bf16.msra.mxu0 0
    %8802 = vmatprep.subr.bf16.mxu0 0
    %8803 = vmatpush2.bf16.msra.mxu0 0
    %8804 = vmatprep.mubr.bf16.mxu0 0
    %8805 = vmatmul.mubr.bf16.gmra.mxu0 %v8767
    %v8806 = vpop.f32.mrf.mxu0
    %v8807 = vadd.f32 %v8765, %v8806
    %v8808 = vpop.f32.mrf.mxu0
    %v8809 = vpop.f32.mrf.mxu0
    %v8810 = vpop.f32.mrf.mxu0
    %8811 = vdwg.mxu0
    %v8812 = vmax.f32 %v8807, 0.0
    %v8813 = vpack.c.bf16 %v8812, %v8812
    %v8814 = vld [vmem:[#allocation15] sm:$0xff]
    %v8815 = vld [vmem:[#allocation15 + $0x8] sm:$0xff]
    %v8816 = vld [vmem:[#allocation15 + $0x10] sm:$0xff]
    %v8817 = vld [vmem:[#allocation15 + $0x18] sm:$0xff]
    %v8818 = vld [vmem:[#allocation16] ss:$8 sm:$0x3]
    %v8823 = vunpack.c.l.b16 %v8814
    %v8824 = vunpack.c.h.b16 %v8814
    %v8825 = vunpack.c.l.b16 %v8815
    %v8826 = vunpack.c.h.b16 %v8815
    %v8827 = vunpack.c.l.b16 %v8816
    %v8828 = vunpack.c.h.b16 %v8816
    %v8829 = vunpack.c.l.b16 %v8817
    %v8830 = vunpack.c.h.b16 %v8817
    %v8831 = vpack.c.b16 %v8825, %v8823
    %v8832 = vpack.c.b16 %v8826, %v8824
    %v8833 = vpack.c.b16 %v8829, %v8827
    %v8834 = vpack.c.b16 %v8830, %v8828
    %v8840 = vlaneseq
    %v8841 = vshrl.u32 %v8840, 7
    %v8842 = vsub.s32 0, %v8841
    %v8843 = vrot.slane %v8818, %v8842
    %v8844 = vlaneseq
    %v8845 = vshrl.u32 %v8844, 7
    %v8846 = vsub.s32 1, %v8845
    %v8847 = vrot.slane %v8818, %v8846
    %v8851 = vsel %vm247, %v8813, 0
    %8853 = vmatprep.subr.bf16.mxu0 0
    %8854 = vmatpush1.bf16.msra.mxu0 0
    %8855 = vmatprep.subr.bf16.mxu0 0
    %8856 = vmatpush1.bf16.msra.mxu0 0
    %8857 = vmatprep.subr.bf16.mxu0 0
    %8858 = vmatpush1.bf16.msra.mxu0 0
    %8859 = vmatprep.subr.bf16.mxu0 0
    %8860 = vmatpush1.bf16.msra.mxu0 0
    %8861 = vmatprep.subr.bf16.mxu0 0
    %8862 = vmatpush1.bf16.msra.mxu0 0
    %8863 = vmatprep.subr.bf16.mxu0 0
    %8864 = vmatpush1.bf16.msra.mxu0 0
    %8865 = vmatprep.subr.bf16.mxu0 %v8834
    %8866 = vmatpush1.bf16.msra.mxu0 %v8833
    %8867 = vmatprep.subr.bf16.mxu0 %v8832
    %8868 = vmatpush1.bf16.msra.mxu0 %v8831
    %8869 = vmatprep.subr.bf16.mxu0 0
    %8870 = vmatpush2.bf16.msra.mxu0 0
    %8871 = vmatprep.subr.bf16.mxu0 0
    %8872 = vmatpush2.bf16.msra.mxu0 0
    %8873 = vmatprep.subr.bf16.mxu0 0
    %8874 = vmatpush2.bf16.msra.mxu0 0
    %8875 = vmatprep.subr.bf16.mxu0 0
    %8876 = vmatpush2.bf16.msra.mxu0 0
    %8877 = vmatprep.subr.bf16.mxu0 0
    %8878 = vmatpush2.bf16.msra.mxu0 0
    %8879 = vmatprep.subr.bf16.mxu0 0
    %8880 = vmatpush2.bf16.msra.mxu0 0
    %8881 = vmatprep.subr.bf16.mxu0 0
    %8882 = vmatpush2.bf16.msra.mxu0 0
    %8883 = vmatprep.subr.bf16.mxu0 0
    %8884 = vmatpush2.bf16.msra.mxu0 0
    %8885 = vmatprep.mubr.bf16.mxu0 0
    %8886 = vmatmul.mubr.bf16.gmra.mxu0 %v8851
    %v8887 = vpop.f32.mrf.mxu0
    %v8888 = vadd.f32 %v8843, %v8887
    %v8889 = vpop.f32.mrf.mxu0
    %v8890 = vadd.f32 %v8847, %v8889
    %v8891 = vpop.f32.mrf.mxu0
    %v8892 = vpop.f32.mrf.mxu0
    %8893 = vdwg.mxu0
    %v8894 = vmax.f32 %v8888, 0.0
    %v8895 = vmax.f32 %v8890, 0.0
    %v8896 = vpack.c.bf16 %v8894, %v8894
    %v8897 = vpack.c.bf16 %v8895, %v8895
    %v8900 = vunpack.c.l.b16 %v8896
    %v8901 = vunpack.c.l.b16 %v8897
    %v8902 = vpack.c.b16 %v8901, %v8900
    %v8904 = vshll.u32 %v8902, 16
    %s8907 = scalar_lea.vmem [#allocation3], 16
    %v8908 = vld [vmem:[%s8907] sm:$0x11]
    %v8909 = vsel %vm3092, %v8904, %v8908
    %8910 = vst [vmem:[%s8907] sm:$0x11] %v8909
    %v8911 = vld [vmem:[%s3096] sm:$0xff]
    %v8912 = vld [vmem:[%s3096 + $0x8] sm:$0xff]
    %v8913 = vld [vmem:[%s3096 + $0x10] sm:$0xff]
    %v8914 = vld [vmem:[%s3096 + $0x18] sm:$0xff]
    %v8915 = vld [vmem:[%s3101] ss:$8 sm:$0x3]
    %v8920 = vunpack.c.l.b16 %v8911
    %v8921 = vunpack.c.h.b16 %v8911
    %v8922 = vunpack.c.l.b16 %v8912
    %v8923 = vunpack.c.h.b16 %v8912
    %v8924 = vunpack.c.l.b16 %v8913
    %v8925 = vunpack.c.h.b16 %v8913
    %v8926 = vunpack.c.l.b16 %v8914
    %v8927 = vunpack.c.h.b16 %v8914
    %v8928 = vpack.c.b16 %v8922, %v8920
    %v8929 = vpack.c.b16 %v8923, %v8921
    %v8930 = vpack.c.b16 %v8926, %v8924
    %v8931 = vpack.c.b16 %v8927, %v8925
    %v8937 = vlaneseq
    %v8938 = vshrl.u32 %v8937, 7
    %v8939 = vsub.s32 0, %v8938
    %v8940 = vrot.slane %v8915, %v8939
    %v8941 = vlaneseq
    %v8942 = vshrl.u32 %v8941, 7
    %v8943 = vsub.s32 1, %v8942
    %v8944 = vrot.slane %v8915, %v8943
    %8947 = vmatprep.subr.bf16.mxu0 0
    %8948 = vmatpush1.bf16.msra.mxu0 0
    %8949 = vmatprep.subr.bf16.mxu0 0
    %8950 = vmatpush1.bf16.msra.mxu0 0
    %8951 = vmatprep.subr.bf16.mxu0 0
    %8952 = vmatpush1.bf16.msra.mxu0 0
    %8953 = vmatprep.subr.bf16.mxu0 0
    %8954 = vmatpush1.bf16.msra.mxu0 0
    %8955 = vmatprep.subr.bf16.mxu0 0
    %8956 = vmatpush1.bf16.msra.mxu0 0
    %8957 = vmatprep.subr.bf16.mxu0 0
    %8958 = vmatpush1.bf16.msra.mxu0 0
    %8959 = vmatprep.subr.bf16.mxu0 %v8931
    %8960 = vmatpush1.bf16.msra.mxu0 %v8930
    %8961 = vmatprep.subr.bf16.mxu0 %v8929
    %8962 = vmatpush1.bf16.msra.mxu0 %v8928
    %8963 = vmatprep.subr.bf16.mxu0 0
    %8964 = vmatpush2.bf16.msra.mxu0 0
    %8965 = vmatprep.subr.bf16.mxu0 0
    %8966 = vmatpush2.bf16.msra.mxu0 0
    %8967 = vmatprep.subr.bf16.mxu0 0
    %8968 = vmatpush2.bf16.msra.mxu0 0
    %8969 = vmatprep.subr.bf16.mxu0 0
    %8970 = vmatpush2.bf16.msra.mxu0 0
    %8971 = vmatprep.subr.bf16.mxu0 0
    %8972 = vmatpush2.bf16.msra.mxu0 0
    %8973 = vmatprep.subr.bf16.mxu0 0
    %8974 = vmatpush2.bf16.msra.mxu0 0
    %8975 = vmatprep.subr.bf16.mxu0 0
    %8976 = vmatpush2.bf16.msra.mxu0 0
    %8977 = vmatprep.subr.bf16.mxu0 0
    %8978 = vmatpush2.bf16.msra.mxu0 0
    %8979 = vmatprep.mubr.bf16.mxu0 0
    %8980 = vmatmul.mubr.bf16.gmra.mxu0 %v8851
    %v8981 = vpop.f32.mrf.mxu0
    %v8982 = vadd.f32 %v8940, %v8981
    %v8983 = vpop.f32.mrf.mxu0
    %v8984 = vadd.f32 %v8944, %v8983
    %v8985 = vpop.f32.mrf.mxu0
    %v8986 = vpop.f32.mrf.mxu0
    %8987 = vdwg.mxu0
    %v8988 = vmax.f32 %v8982, 0.0
    %v8989 = vmax.f32 %v8984, 0.0
    %v8990 = vpack.c.bf16 %v8988, %v8988
    %v8991 = vpack.c.bf16 %v8989, %v8989
    %v8994 = vunpack.c.l.b16 %v8990
    %v8995 = vunpack.c.l.b16 %v8991
    %v8996 = vpack.c.b16 %v8995, %v8994
    %v8997 = vrot.slane %v8996, 7
    %v8999 = vld [vmem:[%s8907] sm:$0x22]
    %v9000 = vsel %vm3192, %v8997, %v8999
    %9001 = vst [vmem:[%s8907] sm:$0x22] %v9000
    %v9002 = vld [vmem:[%s3196] sm:$0xff]
    %v9003 = vld [vmem:[%s3196 + $0x8] sm:$0xff]
    %v9004 = vld [vmem:[%s3196 + $0x10] sm:$0xff]
    %v9005 = vld [vmem:[%s3196 + $0x18] sm:$0xff]
    %v9006 = vld [vmem:[%s3201] ss:$8 sm:$0x3]
    %v9011 = vunpack.c.l.b16 %v9002
    %v9012 = vunpack.c.h.b16 %v9002
    %v9013 = vunpack.c.l.b16 %v9003
    %v9014 = vunpack.c.h.b16 %v9003
    %v9015 = vunpack.c.l.b16 %v9004
    %v9016 = vunpack.c.h.b16 %v9004
    %v9017 = vunpack.c.l.b16 %v9005
    %v9018 = vunpack.c.h.b16 %v9005
    %v9019 = vpack.c.b16 %v9013, %v9011
    %v9020 = vpack.c.b16 %v9014, %v9012
    %v9021 = vpack.c.b16 %v9017, %v9015
    %v9022 = vpack.c.b16 %v9018, %v9016
    %v9028 = vlaneseq
    %v9029 = vshrl.u32 %v9028, 7
    %v9030 = vsub.s32 0, %v9029
    %v9031 = vrot.slane %v9006, %v9030
    %v9032 = vlaneseq
    %v9033 = vshrl.u32 %v9032, 7
    %v9034 = vsub.s32 1, %v9033
    %v9035 = vrot.slane %v9006, %v9034
    %9038 = vmatprep.subr.bf16.mxu0 0
    %9039 = vmatpush1.bf16.msra.mxu0 0
    %9040 = vmatprep.subr.bf16.mxu0 0
    %9041 = vmatpush1.bf16.msra.mxu0 0
    %9042 = vmatprep.subr.bf16.mxu0 0
    %9043 = vmatpush1.bf16.msra.mxu0 0
    %9044 = vmatprep.subr.bf16.mxu0 0
    %9045 = vmatpush1.bf16.msra.mxu0 0
    %9046 = vmatprep.subr.bf16.mxu0 0
    %9047 = vmatpush1.bf16.msra.mxu0 0
    %9048 = vmatprep.subr.bf16.mxu0 0
    %9049 = vmatpush1.bf16.msra.mxu0 0
    %9050 = vmatprep.subr.bf16.mxu0 %v9022
    %9051 = vmatpush1.bf16.msra.mxu0 %v9021
    %9052 = vmatprep.subr.bf16.mxu0 %v9020
    %9053 = vmatpush1.bf16.msra.mxu0 %v9019
    %9054 = vmatprep.subr.bf16.mxu0 0
    %9055 = vmatpush2.bf16.msra.mxu0 0
    %9056 = vmatprep.subr.bf16.mxu0 0
    %9057 = vmatpush2.bf16.msra.mxu0 0
    %9058 = vmatprep.subr.bf16.mxu0 0
    %9059 = vmatpush2.bf16.msra.mxu0 0
    %9060 = vmatprep.subr.bf16.mxu0 0
    %9061 = vmatpush2.bf16.msra.mxu0 0
    %9062 = vmatprep.subr.bf16.mxu0 0
    %9063 = vmatpush2.bf16.msra.mxu0 0
    %9064 = vmatprep.subr.bf16.mxu0 0
    %9065 = vmatpush2.bf16.msra.mxu0 0
    %9066 = vmatprep.subr.bf16.mxu0 0
    %9067 = vmatpush2.bf16.msra.mxu0 0
    %9068 = vmatprep.subr.bf16.mxu0 0
    %9069 = vmatpush2.bf16.msra.mxu0 0
    %9070 = vmatprep.mubr.bf16.mxu0 0
    %9071 = vmatmul.mubr.bf16.gmra.mxu0 %v8851
    %v9072 = vpop.f32.mrf.mxu0
    %v9073 = vadd.f32 %v9031, %v9072
    %v9074 = vpop.f32.mrf.mxu0
    %v9075 = vadd.f32 %v9035, %v9074
    %v9076 = vpop.f32.mrf.mxu0
    %v9077 = vpop.f32.mrf.mxu0
    %9078 = vdwg.mxu0
    %v9079 = vmax.f32 %v9073, 0.0
    %v9080 = vmax.f32 %v9075, 0.0
    %v9081 = vpack.c.bf16 %v9079, %v9079
    %v9082 = vpack.c.bf16 %v9080, %v9080
    %v9085 = vunpack.c.l.b16 %v9081
    %v9086 = vunpack.c.l.b16 %v9082
    %v9087 = vpack.c.b16 %v9086, %v9085
    %v9089 = vshll.u32 %v9087, 16
    %v9091 = vrot.slane %v9089, 7
    %v9093 = vld [vmem:[%s8907] sm:$0x22]
    %v9094 = vsel %vm3293, %v9091, %v9093
    %9095 = vst [vmem:[%s8907] sm:$0x22] %v9094
    %v9096 = vld [vmem:[%s3297] sm:$0xff]
    %v9097 = vld [vmem:[%s3297 + $0x8] sm:$0xff]
    %v9098 = vld [vmem:[%s3297 + $0x10] sm:$0xff]
    %v9099 = vld [vmem:[%s3297 + $0x18] sm:$0xff]
    %v9100 = vld [vmem:[%s3302] ss:$8 sm:$0x3]
    %v9105 = vunpack.c.l.b16 %v9096
    %v9106 = vunpack.c.h.b16 %v9096
    %v9107 = vunpack.c.l.b16 %v9097
    %v9108 = vunpack.c.h.b16 %v9097
    %v9109 = vunpack.c.l.b16 %v9098
    %v9110 = vunpack.c.h.b16 %v9098
    %v9111 = vunpack.c.l.b16 %v9099
    %v9112 = vunpack.c.h.b16 %v9099
    %v9113 = vpack.c.b16 %v9107, %v9105
    %v9114 = vpack.c.b16 %v9108, %v9106
    %v9115 = vpack.c.b16 %v9111, %v9109
    %v9116 = vpack.c.b16 %v9112, %v9110
    %v9122 = vlaneseq
    %v9123 = vshrl.u32 %v9122, 7
    %v9124 = vsub.s32 0, %v9123
    %v9125 = vrot.slane %v9100, %v9124
    %v9126 = vlaneseq
    %v9127 = vshrl.u32 %v9126, 7
    %v9128 = vsub.s32 1, %v9127
    %v9129 = vrot.slane %v9100, %v9128
    %9132 = vmatprep.subr.bf16.mxu0 0
    %9133 = vmatpush1.bf16.msra.mxu0 0
    %9134 = vmatprep.subr.bf16.mxu0 0
    %9135 = vmatpush1.bf16.msra.mxu0 0
    %9136 = vmatprep.subr.bf16.mxu0 0
    %9137 = vmatpush1.bf16.msra.mxu0 0
    %9138 = vmatprep.subr.bf16.mxu0 0
    %9139 = vmatpush1.bf16.msra.mxu0 0
    %9140 = vmatprep.subr.bf16.mxu0 0
    %9141 = vmatpush1.bf16.msra.mxu0 0
    %9142 = vmatprep.subr.bf16.mxu0 0
    %9143 = vmatpush1.bf16.msra.mxu0 0
    %9144 = vmatprep.subr.bf16.mxu0 %v9116
    %9145 = vmatpush1.bf16.msra.mxu0 %v9115
    %9146 = vmatprep.subr.bf16.mxu0 %v9114
    %9147 = vmatpush1.bf16.msra.mxu0 %v9113
    %9148 = vmatprep.subr.bf16.mxu0 0
    %9149 = vmatpush2.bf16.msra.mxu0 0
    %9150 = vmatprep.subr.bf16.mxu0 0
    %9151 = vmatpush2.bf16.msra.mxu0 0
    %9152 = vmatprep.subr.bf16.mxu0 0
    %9153 = vmatpush2.bf16.msra.mxu0 0
    %9154 = vmatprep.subr.bf16.mxu0 0
    %9155 = vmatpush2.bf16.msra.mxu0 0
    %9156 = vmatprep.subr.bf16.mxu0 0
    %9157 = vmatpush2.bf16.msra.mxu0 0
    %9158 = vmatprep.subr.bf16.mxu0 0
    %9159 = vmatpush2.bf16.msra.mxu0 0
    %9160 = vmatprep.subr.bf16.mxu0 0
    %9161 = vmatpush2.bf16.msra.mxu0 0
    %9162 = vmatprep.subr.bf16.mxu0 0
    %9163 = vmatpush2.bf16.msra.mxu0 0
    %9164 = vmatprep.mubr.bf16.mxu0 0
    %9165 = vmatmul.mubr.bf16.gmra.mxu0 %v8851
    %v9166 = vpop.f32.mrf.mxu0
    %v9167 = vadd.f32 %v9125, %v9166
    %v9168 = vpop.f32.mrf.mxu0
    %v9169 = vadd.f32 %v9129, %v9168
    %v9170 = vpop.f32.mrf.mxu0
    %v9171 = vpop.f32.mrf.mxu0
    %9172 = vdwg.mxu0
    %v9173 = vmax.f32 %v9167, 0.0
    %v9174 = vmax.f32 %v9169, 0.0
    %v9175 = vpack.c.bf16 %v9173, %v9173
    %v9176 = vpack.c.bf16 %v9174, %v9174
    %v9179 = vunpack.c.l.b16 %v9175
    %v9180 = vunpack.c.l.b16 %v9176
    %v9181 = vpack.c.b16 %v9180, %v9179
    %v9182 = vrot.slane %v9181, 6
    %v9184 = vld [vmem:[%s8907] sm:$0x44]
    %v9185 = vsel %vm3393, %v9182, %v9184
    %9186 = vst [vmem:[%s8907] sm:$0x44] %v9185
    %v9187 = vld [vmem:[%s3397] sm:$0xff]
    %v9188 = vld [vmem:[%s3397 + $0x8] sm:$0xff]
    %v9189 = vld [vmem:[%s3397 + $0x10] sm:$0xff]
    %v9190 = vld [vmem:[%s3397 + $0x18] sm:$0xff]
    %v9191 = vld [vmem:[%s3402] ss:$8 sm:$0x3]
    %v9196 = vunpack.c.l.b16 %v9187
    %v9197 = vunpack.c.h.b16 %v9187
    %v9198 = vunpack.c.l.b16 %v9188
    %v9199 = vunpack.c.h.b16 %v9188
    %v9200 = vunpack.c.l.b16 %v9189
    %v9201 = vunpack.c.h.b16 %v9189
    %v9202 = vunpack.c.l.b16 %v9190
    %v9203 = vunpack.c.h.b16 %v9190
    %v9204 = vpack.c.b16 %v9198, %v9196
    %v9205 = vpack.c.b16 %v9199, %v9197
    %v9206 = vpack.c.b16 %v9202, %v9200
    %v9207 = vpack.c.b16 %v9203, %v9201
    %v9213 = vlaneseq
    %v9214 = vshrl.u32 %v9213, 7
    %v9215 = vsub.s32 0, %v9214
    %v9216 = vrot.slane %v9191, %v9215
    %v9217 = vlaneseq
    %v9218 = vshrl.u32 %v9217, 7
    %v9219 = vsub.s32 1, %v9218
    %v9220 = vrot.slane %v9191, %v9219
    %9223 = vmatprep.subr.bf16.mxu0 0
    %9224 = vmatpush1.bf16.msra.mxu0 0
    %9225 = vmatprep.subr.bf16.mxu0 0
    %9226 = vmatpush1.bf16.msra.mxu0 0
    %9227 = vmatprep.subr.bf16.mxu0 0
    %9228 = vmatpush1.bf16.msra.mxu0 0
    %9229 = vmatprep.subr.bf16.mxu0 0
    %9230 = vmatpush1.bf16.msra.mxu0 0
    %9231 = vmatprep.subr.bf16.mxu0 0
    %9232 = vmatpush1.bf16.msra.mxu0 0
    %9233 = vmatprep.subr.bf16.mxu0 0
    %9234 = vmatpush1.bf16.msra.mxu0 0
    %9235 = vmatprep.subr.bf16.mxu0 %v9207
    %9236 = vmatpush1.bf16.msra.mxu0 %v9206
    %9237 = vmatprep.subr.bf16.mxu0 %v9205
    %9238 = vmatpush1.bf16.msra.mxu0 %v9204
    %9239 = vmatprep.subr.bf16.mxu0 0
    %9240 = vmatpush2.bf16.msra.mxu0 0
    %9241 = vmatprep.subr.bf16.mxu0 0
    %9242 = vmatpush2.bf16.msra.mxu0 0
    %9243 = vmatprep.subr.bf16.mxu0 0
    %9244 = vmatpush2.bf16.msra.mxu0 0
    %9245 = vmatprep.subr.bf16.mxu0 0
    %9246 = vmatpush2.bf16.msra.mxu0 0
    %9247 = vmatprep.subr.bf16.mxu0 0
    %9248 = vmatpush2.bf16.msra.mxu0 0
    %9249 = vmatprep.subr.bf16.mxu0 0
    %9250 = vmatpush2.bf16.msra.mxu0 0
    %9251 = vmatprep.subr.bf16.mxu0 0
    %9252 = vmatpush2.bf16.msra.mxu0 0
    %9253 = vmatprep.subr.bf16.mxu0 0
    %9254 = vmatpush2.bf16.msra.mxu0 0
    %9255 = vmatprep.mubr.bf16.mxu0 0
    %9256 = vmatmul.mubr.bf16.gmra.mxu0 %v8851
    %v9257 = vpop.f32.mrf.mxu0
    %v9258 = vadd.f32 %v9216, %v9257
    %v9259 = vpop.f32.mrf.mxu0
    %v9260 = vadd.f32 %v9220, %v9259
    %v9261 = vpop.f32.mrf.mxu0
    %v9262 = vpop.f32.mrf.mxu0
    %9263 = vdwg.mxu0
    %v9264 = vmax.f32 %v9258, 0.0
    %v9265 = vmax.f32 %v9260, 0.0
    %v9266 = vpack.c.bf16 %v9264, %v9264
    %v9267 = vpack.c.bf16 %v9265, %v9265
    %v9270 = vunpack.c.l.b16 %v9266
    %v9271 = vunpack.c.l.b16 %v9267
    %v9272 = vpack.c.b16 %v9271, %v9270
    %v9274 = vshll.u32 %v9272, 16
    %v9276 = vrot.slane %v9274, 6
    %v9278 = vld [vmem:[%s8907] sm:$0x44]
    %v9279 = vsel %vm3494, %v9276, %v9278
    %9280 = vst [vmem:[%s8907] sm:$0x44] %v9279
    %v9281 = vld [vmem:[%s3498] sm:$0xff]
    %v9282 = vld [vmem:[%s3498 + $0x8] sm:$0xff]
    %v9283 = vld [vmem:[%s3498 + $0x10] sm:$0xff]
    %v9284 = vld [vmem:[%s3498 + $0x18] sm:$0xff]
    %v9285 = vld [vmem:[%s3503] ss:$8 sm:$0x3]
    %v9290 = vunpack.c.l.b16 %v9281
    %v9291 = vunpack.c.h.b16 %v9281
    %v9292 = vunpack.c.l.b16 %v9282
    %v9293 = vunpack.c.h.b16 %v9282
    %v9294 = vunpack.c.l.b16 %v9283
    %v9295 = vunpack.c.h.b16 %v9283
    %v9296 = vunpack.c.l.b16 %v9284
    %v9297 = vunpack.c.h.b16 %v9284
    %v9298 = vpack.c.b16 %v9292, %v9290
    %v9299 = vpack.c.b16 %v9293, %v9291
    %v9300 = vpack.c.b16 %v9296, %v9294
    %v9301 = vpack.c.b16 %v9297, %v9295
    %v9307 = vlaneseq
    %v9308 = vshrl.u32 %v9307, 7
    %v9309 = vsub.s32 0, %v9308
    %v9310 = vrot.slane %v9285, %v9309
    %v9311 = vlaneseq
    %v9312 = vshrl.u32 %v9311, 7
    %v9313 = vsub.s32 1, %v9312
    %v9314 = vrot.slane %v9285, %v9313
    %9317 = vmatprep.subr.bf16.mxu0 0
    %9318 = vmatpush1.bf16.msra.mxu0 0
    %9319 = vmatprep.subr.bf16.mxu0 0
    %9320 = vmatpush1.bf16.msra.mxu0 0
    %9321 = vmatprep.subr.bf16.mxu0 0
    %9322 = vmatpush1.bf16.msra.mxu0 0
    %9323 = vmatprep.subr.bf16.mxu0 0
    %9324 = vmatpush1.bf16.msra.mxu0 0
    %9325 = vmatprep.subr.bf16.mxu0 0
    %9326 = vmatpush1.bf16.msra.mxu0 0
    %9327 = vmatprep.subr.bf16.mxu0 0
    %9328 = vmatpush1.bf16.msra.mxu0 0
    %9329 = vmatprep.subr.bf16.mxu0 %v9301
    %9330 = vmatpush1.bf16.msra.mxu0 %v9300
    %9331 = vmatprep.subr.bf16.mxu0 %v9299
    %9332 = vmatpush1.bf16.msra.mxu0 %v9298
    %9333 = vmatprep.subr.bf16.mxu0 0
    %9334 = vmatpush2.bf16.msra.mxu0 0
    %9335 = vmatprep.subr.bf16.mxu0 0
    %9336 = vmatpush2.bf16.msra.mxu0 0
    %9337 = vmatprep.subr.bf16.mxu0 0
    %9338 = vmatpush2.bf16.msra.mxu0 0
    %9339 = vmatprep.subr.bf16.mxu0 0
    %9340 = vmatpush2.bf16.msra.mxu0 0
    %9341 = vmatprep.subr.bf16.mxu0 0
    %9342 = vmatpush2.bf16.msra.mxu0 0
    %9343 = vmatprep.subr.bf16.mxu0 0
    %9344 = vmatpush2.bf16.msra.mxu0 0
    %9345 = vmatprep.subr.bf16.mxu0 0
    %9346 = vmatpush2.bf16.msra.mxu0 0
    %9347 = vmatprep.subr.bf16.mxu0 0
    %9348 = vmatpush2.bf16.msra.mxu0 0
    %9349 = vmatprep.mubr.bf16.mxu0 0
    %9350 = vmatmul.mubr.bf16.gmra.mxu0 %v8851
    %v9351 = vpop.f32.mrf.mxu0
    %v9352 = vadd.f32 %v9310, %v9351
    %v9353 = vpop.f32.mrf.mxu0
    %v9354 = vadd.f32 %v9314, %v9353
    %v9355 = vpop.f32.mrf.mxu0
    %v9356 = vpop.f32.mrf.mxu0
    %9357 = vdwg.mxu0
    %v9358 = vmax.f32 %v9352, 0.0
    %v9359 = vmax.f32 %v9354, 0.0
    %v9360 = vpack.c.bf16 %v9358, %v9358
    %v9361 = vpack.c.bf16 %v9359, %v9359
    %v9364 = vunpack.c.l.b16 %v9360
    %v9365 = vunpack.c.l.b16 %v9361
    %v9366 = vpack.c.b16 %v9365, %v9364
    %v9367 = vrot.slane %v9366, 5
    %v9369 = vld [vmem:[%s8907] sm:$0x88]
    %v9370 = vsel %vm3592, %v9367, %v9369
    %9371 = vst [vmem:[%s8907] sm:$0x88] %v9370
    %v9372 = vld [vmem:[%s3596] sm:$0xff]
    %v9373 = vld [vmem:[%s3596 + $0x8] sm:$0xff]
    %v9374 = vld [vmem:[%s3596 + $0x10] sm:$0xff]
    %v9375 = vld [vmem:[%s3596 + $0x18] sm:$0xff]
    %v9376 = vld [vmem:[%s3601] ss:$8 sm:$0x3]
    %v9381 = vunpack.c.l.b16 %v9372
    %v9382 = vunpack.c.h.b16 %v9372
    %v9383 = vunpack.c.l.b16 %v9373
    %v9384 = vunpack.c.h.b16 %v9373
    %v9385 = vunpack.c.l.b16 %v9374
    %v9386 = vunpack.c.h.b16 %v9374
    %v9387 = vunpack.c.l.b16 %v9375
    %v9388 = vunpack.c.h.b16 %v9375
    %v9389 = vpack.c.b16 %v9383, %v9381
    %v9390 = vpack.c.b16 %v9384, %v9382
    %v9391 = vpack.c.b16 %v9387, %v9385
    %v9392 = vpack.c.b16 %v9388, %v9386
    %v9398 = vlaneseq
    %v9399 = vshrl.u32 %v9398, 7
    %v9400 = vsub.s32 0, %v9399
    %v9401 = vrot.slane %v9376, %v9400
    %v9402 = vlaneseq
    %v9403 = vshrl.u32 %v9402, 7
    %v9404 = vsub.s32 1, %v9403
    %v9405 = vrot.slane %v9376, %v9404
    %9408 = vmatprep.subr.bf16.mxu0 0
    %9409 = vmatpush1.bf16.msra.mxu0 0
    %9410 = vmatprep.subr.bf16.mxu0 0
    %9411 = vmatpush1.bf16.msra.mxu0 0
    %9412 = vmatprep.subr.bf16.mxu0 0
    %9413 = vmatpush1.bf16.msra.mxu0 0
    %9414 = vmatprep.subr.bf16.mxu0 0
    %9415 = vmatpush1.bf16.msra.mxu0 0
    %9416 = vmatprep.subr.bf16.mxu0 0
    %9417 = vmatpush1.bf16.msra.mxu0 0
    %9418 = vmatprep.subr.bf16.mxu0 0
    %9419 = vmatpush1.bf16.msra.mxu0 0
    %9420 = vmatprep.subr.bf16.mxu0 %v9392
    %9421 = vmatpush1.bf16.msra.mxu0 %v9391
    %9422 = vmatprep.subr.bf16.mxu0 %v9390
    %9423 = vmatpush1.bf16.msra.mxu0 %v9389
    %9424 = vmatprep.subr.bf16.mxu0 0
    %9425 = vmatpush2.bf16.msra.mxu0 0
    %9426 = vmatprep.subr.bf16.mxu0 0
    %9427 = vmatpush2.bf16.msra.mxu0 0
    %9428 = vmatprep.subr.bf16.mxu0 0
    %9429 = vmatpush2.bf16.msra.mxu0 0
    %9430 = vmatprep.subr.bf16.mxu0 0
    %9431 = vmatpush2.bf16.msra.mxu0 0
    %9432 = vmatprep.subr.bf16.mxu0 0
    %9433 = vmatpush2.bf16.msra.mxu0 0
    %9434 = vmatprep.subr.bf16.mxu0 0
    %9435 = vmatpush2.bf16.msra.mxu0 0
    %9436 = vmatprep.subr.bf16.mxu0 0
    %9437 = vmatpush2.bf16.msra.mxu0 0
    %9438 = vmatprep.subr.bf16.mxu0 0
    %9439 = vmatpush2.bf16.msra.mxu0 0
    %9440 = vmatprep.mubr.bf16.mxu0 0
    %9441 = vmatmul.mubr.bf16.gmra.mxu0 %v8851
    %v9442 = vpop.f32.mrf.mxu0
    %v9443 = vadd.f32 %v9401, %v9442
    %v9444 = vpop.f32.mrf.mxu0
    %v9445 = vadd.f32 %v9405, %v9444
    %v9446 = vpop.f32.mrf.mxu0
    %v9447 = vpop.f32.mrf.mxu0
    %9448 = vdwg.mxu0
    %v9449 = vmax.f32 %v9443, 0.0
    %v9450 = vmax.f32 %v9445, 0.0
    %v9451 = vpack.c.bf16 %v9449, %v9449
    %v9452 = vpack.c.bf16 %v9450, %v9450
    %v9455 = vunpack.c.l.b16 %v9451
    %v9456 = vunpack.c.l.b16 %v9452
    %v9457 = vpack.c.b16 %v9456, %v9455
    %v9459 = vshll.u32 %v9457, 16
    %v9461 = vrot.slane %v9459, 5
    %v9463 = vld [vmem:[%s8907] sm:$0x88]
    %v9464 = vsel %vm3693, %v9461, %v9463
    %9465 = vst [vmem:[%s8907] sm:$0x88] %v9464
    %v9466 = vld [vmem:[%s8907] sm:$0xff]
    %v9467 = vld [vmem:[%s13] sm:$0xff]
    %v9468 = vld [vmem:[%s13 + $0x8] sm:$0xff]
    %v9469 = vld [vmem:[%s13 + $0x10] sm:$0xff]
    %v9470 = vld [vmem:[%s13 + $0x18] sm:$0xff]
    %v9471 = vld [vmem:[%s13 + $0x20] sm:$0xff]
    %v9472 = vld [vmem:[%s13 + $0x28] sm:$0xff]
    %v9473 = vld [vmem:[%s13 + $0x30] sm:$0xff]
    %v9474 = vld [vmem:[%s13 + $0x38] sm:$0xff]
    %v9475 = vld [vmem:[%s13 + $0x40] sm:$0xff]
    %v9476 = vld [vmem:[%s13 + $0x48] sm:$0xff]
    %v9477 = vld [vmem:[%s13 + $0x50] sm:$0xff]
    %v9478 = vld [vmem:[%s13 + $0x58] sm:$0xff]
    %v9479 = vld [vmem:[%s13 + $0x60] sm:$0xff]
    %v9480 = vld [vmem:[%s13 + $0x68] sm:$0xff]
    %v9481 = vld [vmem:[%s13 + $0x70] sm:$0xff]
    %v9482 = vld [vmem:[%s13 + $0x78] sm:$0xff]
    %v9483 = vld [vmem:[%s13 + $0x80] sm:$0xff]
    %v9484 = vld [vmem:[%s13 + $0x88] sm:$0xff]
    %v9485 = vld [vmem:[%s13 + $0x90] sm:$0xff]
    %v9486 = vld [vmem:[%s13 + $0x98] sm:$0xff]
    %v9487 = vld [vmem:[%s13 + $0xa0] sm:$0xff]
    %v9488 = vld [vmem:[%s13 + $0xa8] sm:$0xff]
    %v9489 = vld [vmem:[%s13 + $0xb0] sm:$0xff]
    %v9490 = vld [vmem:[%s13 + $0xb8] sm:$0xff]
    %v9491 = vld [vmem:[%s13 + $0xc0] sm:$0xff]
    %v9492 = vld [vmem:[%s13 + $0xc8] sm:$0xff]
    %v9493 = vld [vmem:[%s13 + $0xd0] sm:$0xff]
    %v9494 = vld [vmem:[%s13 + $0xd8] sm:$0xff]
    %v9495 = vld [vmem:[%s3726] sm:$0xff]
    %v9496 = vld [vmem:[%s3726 + $0x8] sm:$0xff]
    %v9497 = vld [vmem:[%s3726 + $0x10] sm:$0xff]
    %v9498 = vld [vmem:[%s3726 + $0x18] sm:$0xff]
    %v9499 = vld [vmem:[%s3726 + $0x20] sm:$0xff]
    %v9500 = vld [vmem:[%s3726 + $0x28] sm:$0xff]
    %v9501 = vld [vmem:[%s3726 + $0x30] sm:$0xff]
    %v9502 = vld [vmem:[%s3726 + $0x38] sm:$0xff]
    %v9503 = vld [vmem:[%s3726 + $0x40] sm:$0xff]
    %v9504 = vld [vmem:[%s3726 + $0x48] sm:$0xff]
    %v9505 = vld [vmem:[%s3726 + $0x50] sm:$0xff]
    %v9506 = vld [vmem:[%s3726 + $0x58] sm:$0xff]
    %v9507 = vld [vmem:[%s3726 + $0x60] sm:$0xff]
    %v9508 = vld [vmem:[%s3726 + $0x68] sm:$0xff]
    %v9509 = vld [vmem:[%s3726 + $0x70] sm:$0xff]
    %v9510 = vld [vmem:[%s3726 + $0x78] sm:$0xff]
    %v9511 = vld [vmem:[%s3726 + $0x80] sm:$0xff]
    %v9512 = vld [vmem:[%s3726 + $0x88] sm:$0xff]
    %v9513 = vld [vmem:[%s3726 + $0x90] sm:$0xff]
    %v9514 = vld [vmem:[%s3726 + $0x98] sm:$0xff]
    %v9515 = vld [vmem:[%s3726 + $0xa0] sm:$0xff]
    %v9516 = vld [vmem:[%s3726 + $0xa8] sm:$0xff]
    %v9517 = vld [vmem:[%s3726 + $0xb0] sm:$0xff]
    %v9518 = vld [vmem:[%s3726 + $0xb8] sm:$0xff]
    %v9519 = vld [vmem:[%s3726 + $0xc0] sm:$0xff]
    %v9520 = vld [vmem:[%s3726 + $0xc8] sm:$0xff]
    %v9521 = vld [vmem:[%s3726 + $0xd0] sm:$0xff]
    %v9522 = vld [vmem:[%s3726 + $0xd8] sm:$0xff]
    %v9524 = vunpack.c.l.b16 %v9466
    %v9525 = vunpack.c.h.b16 %v9466
    %v9526 = vpack.c.b16 %v9524, %v9524
    %v9527 = vpack.c.b16 %v9525, %v9525
    %v9529 = vshrl.u32 %v9526, 16
    %v9531 = vshll.u32 %v9526, 16
    %v9533 = vrot.slane %v9531, 1
    %v9534 = vor.u32 %v9529, %v9533
    %v9536 = vshrl.u32 %v9527, 16
    %v9538 = vshll.u32 %v9527, 16
    %v9540 = vrot.slane %v9538, 1
    %v9541 = vor.u32 %v9536, %v9540
    %v9571 = vunpack.c.l.b16 %v9495
    %v9572 = vunpack.c.h.b16 %v9495
    %v9573 = vunpack.c.l.b16 %v9496
    %v9574 = vunpack.c.h.b16 %v9496
    %v9575 = vunpack.c.l.b16 %v9497
    %v9576 = vunpack.c.h.b16 %v9497
    %v9577 = vunpack.c.l.b16 %v9498
    %v9578 = vunpack.c.h.b16 %v9498
    %v9579 = vunpack.c.l.b16 %v9499
    %v9580 = vunpack.c.h.b16 %v9499
    %v9581 = vunpack.c.l.b16 %v9500
    %v9582 = vunpack.c.h.b16 %v9500
    %v9583 = vunpack.c.l.b16 %v9501
    %v9584 = vunpack.c.h.b16 %v9501
    %v9585 = vunpack.c.l.b16 %v9502
    %v9586 = vunpack.c.h.b16 %v9502
    %v9587 = vunpack.c.l.b16 %v9503
    %v9588 = vunpack.c.h.b16 %v9503
    %v9589 = vunpack.c.l.b16 %v9504
    %v9590 = vunpack.c.h.b16 %v9504
    %v9591 = vunpack.c.l.b16 %v9505
    %v9592 = vunpack.c.h.b16 %v9505
    %v9593 = vunpack.c.l.b16 %v9506
    %v9594 = vunpack.c.h.b16 %v9506
    %v9595 = vunpack.c.l.b16 %v9507
    %v9596 = vunpack.c.h.b16 %v9507
    %v9597 = vunpack.c.l.b16 %v9508
    %v9598 = vunpack.c.h.b16 %v9508
    %v9599 = vunpack.c.l.b16 %v9509
    %v9600 = vunpack.c.h.b16 %v9509
    %v9601 = vunpack.c.l.b16 %v9510
    %v9602 = vunpack.c.h.b16 %v9510
    %v9603 = vunpack.c.l.b16 %v9511
    %v9604 = vunpack.c.h.b16 %v9511
    %v9605 = vunpack.c.l.b16 %v9512
    %v9606 = vunpack.c.h.b16 %v9512
    %v9607 = vunpack.c.l.b16 %v9513
    %v9608 = vunpack.c.h.b16 %v9513
    %v9609 = vunpack.c.l.b16 %v9514
    %v9610 = vunpack.c.h.b16 %v9514
    %v9611 = vunpack.c.l.b16 %v9515
    %v9612 = vunpack.c.h.b16 %v9515
    %v9613 = vunpack.c.l.b16 %v9516
    %v9614 = vunpack.c.h.b16 %v9516
    %v9615 = vunpack.c.l.b16 %v9517
    %v9616 = vunpack.c.h.b16 %v9517
    %v9617 = vunpack.c.l.b16 %v9518
    %v9618 = vunpack.c.h.b16 %v9518
    %v9619 = vunpack.c.l.b16 %v9519
    %v9620 = vunpack.c.h.b16 %v9519
    %v9621 = vunpack.c.l.b16 %v9520
    %v9622 = vunpack.c.h.b16 %v9520
    %v9623 = vunpack.c.l.b16 %v9521
    %v9624 = vunpack.c.h.b16 %v9521
    %v9625 = vunpack.c.l.b16 %v9522
    %v9626 = vunpack.c.h.b16 %v9522
    %v9627 = vpack.c.b16 %v9573, %v9571
    %v9628 = vpack.c.b16 %v9574, %v9572
    %v9629 = vpack.c.b16 %v9577, %v9575
    %v9630 = vpack.c.b16 %v9578, %v9576
    %v9631 = vpack.c.b16 %v9581, %v9579
    %v9632 = vpack.c.b16 %v9582, %v9580
    %v9633 = vpack.c.b16 %v9585, %v9583
    %v9634 = vpack.c.b16 %v9586, %v9584
    %v9635 = vpack.c.b16 %v9589, %v9587
    %v9636 = vpack.c.b16 %v9590, %v9588
    %v9637 = vpack.c.b16 %v9593, %v9591
    %v9638 = vpack.c.b16 %v9594, %v9592
    %v9639 = vpack.c.b16 %v9597, %v9595
    %v9640 = vpack.c.b16 %v9598, %v9596
    %v9641 = vpack.c.b16 %v9601, %v9599
    %v9642 = vpack.c.b16 %v9602, %v9600
    %v9643 = vpack.c.b16 %v9605, %v9603
    %v9644 = vpack.c.b16 %v9606, %v9604
    %v9645 = vpack.c.b16 %v9609, %v9607
    %v9646 = vpack.c.b16 %v9610, %v9608
    %v9647 = vpack.c.b16 %v9613, %v9611
    %v9648 = vpack.c.b16 %v9614, %v9612
    %v9649 = vpack.c.b16 %v9617, %v9615
    %v9650 = vpack.c.b16 %v9618, %v9616
    %v9651 = vpack.c.b16 %v9621, %v9619
    %v9652 = vpack.c.b16 %v9622, %v9620
    %v9653 = vpack.c.b16 %v9625, %v9623
    %v9654 = vpack.c.b16 %v9626, %v9624
    %v9684 = vsel %vm1061, %v9541, 0
    %9686 = vmatprep.subr.bf16.mxu0 %v9642
    %9687 = vmatpush1.bf16.msra.mxu0 %v9641
    %9688 = vmatprep.subr.bf16.mxu0 %v9640
    %9689 = vmatpush1.bf16.msra.mxu0 %v9639
    %9690 = vmatprep.subr.bf16.mxu0 %v9638
    %9691 = vmatpush1.bf16.msra.mxu0 %v9637
    %9692 = vmatprep.subr.bf16.mxu0 %v9636
    %9693 = vmatpush1.bf16.msra.mxu0 %v9635
    %9694 = vmatprep.subr.bf16.mxu0 %v9634
    %9695 = vmatpush1.bf16.msra.mxu0 %v9633
    %9696 = vmatprep.subr.bf16.mxu0 %v9632
    %9697 = vmatpush1.bf16.msra.mxu0 %v9631
    %9698 = vmatprep.subr.bf16.mxu0 %v9630
    %9699 = vmatpush1.bf16.msra.mxu0 %v9629
    %9700 = vmatprep.subr.bf16.mxu0 %v9628
    %9701 = vmatpush1.bf16.msra.mxu0 %v9627
    %9702 = vmatprep.subr.bf16.mxu0 0
    %9703 = vmatpush2.bf16.msra.mxu0 0
    %9704 = vmatprep.subr.bf16.mxu0 0
    %9705 = vmatpush2.bf16.msra.mxu0 0
    %9706 = vmatprep.subr.bf16.mxu0 %v9654
    %9707 = vmatpush2.bf16.msra.mxu0 %v9653
    %9708 = vmatprep.subr.bf16.mxu0 %v9652
    %9709 = vmatpush2.bf16.msra.mxu0 %v9651
    %9710 = vmatprep.subr.bf16.mxu0 %v9650
    %9711 = vmatpush2.bf16.msra.mxu0 %v9649
    %9712 = vmatprep.subr.bf16.mxu0 %v9648
    %9713 = vmatpush2.bf16.msra.mxu0 %v9647
    %9714 = vmatprep.subr.bf16.mxu0 %v9646
    %9715 = vmatpush2.bf16.msra.mxu0 %v9645
    %9716 = vmatprep.subr.bf16.mxu0 %v9644
    %9717 = vmatpush2.bf16.msra.mxu0 %v9643
    %9718 = vmatprep.mubr.bf16.mxu0 %v9684
    %9719 = vmatmul.mubr.bf16.gmra.mxu0 %v9534
    %v9720 = vpop.f32.mrf.mxu0
    %v9721 = vadd.f32 0.0, %v9720
    %v9722 = vpop.f32.mrf.mxu0
    %v9723 = vadd.f32 0.0, %v9722
    %v9724 = vpop.f32.mrf.mxu0
    %v9725 = vpop.f32.mrf.mxu0
    %9726 = vdwg.mxu0
    %v9756 = vunpack.c.l.b16 %v9467
    %v9757 = vunpack.c.h.b16 %v9467
    %v9758 = vunpack.c.l.b16 %v9468
    %v9759 = vunpack.c.h.b16 %v9468
    %v9760 = vunpack.c.l.b16 %v9469
    %v9761 = vunpack.c.h.b16 %v9469
    %v9762 = vunpack.c.l.b16 %v9470
    %v9763 = vunpack.c.h.b16 %v9470
    %v9764 = vunpack.c.l.b16 %v9471
    %v9765 = vunpack.c.h.b16 %v9471
    %v9766 = vunpack.c.l.b16 %v9472
    %v9767 = vunpack.c.h.b16 %v9472
    %v9768 = vunpack.c.l.b16 %v9473
    %v9769 = vunpack.c.h.b16 %v9473
    %v9770 = vunpack.c.l.b16 %v9474
    %v9771 = vunpack.c.h.b16 %v9474
    %v9772 = vunpack.c.l.b16 %v9475
    %v9773 = vunpack.c.h.b16 %v9475
    %v9774 = vunpack.c.l.b16 %v9476
    %v9775 = vunpack.c.h.b16 %v9476
    %v9776 = vunpack.c.l.b16 %v9477
    %v9777 = vunpack.c.h.b16 %v9477
    %v9778 = vunpack.c.l.b16 %v9478
    %v9779 = vunpack.c.h.b16 %v9478
    %v9780 = vunpack.c.l.b16 %v9479
    %v9781 = vunpack.c.h.b16 %v9479
    %v9782 = vunpack.c.l.b16 %v9480
    %v9783 = vunpack.c.h.b16 %v9480
    %v9784 = vunpack.c.l.b16 %v9481
    %v9785 = vunpack.c.h.b16 %v9481
    %v9786 = vunpack.c.l.b16 %v9482
    %v9787 = vunpack.c.h.b16 %v9482
    %v9788 = vunpack.c.l.b16 %v9483
    %v9789 = vunpack.c.h.b16 %v9483
    %v9790 = vunpack.c.l.b16 %v9484
    %v9791 = vunpack.c.h.b16 %v9484
    %v9792 = vunpack.c.l.b16 %v9485
    %v9793 = vunpack.c.h.b16 %v9485
    %v9794 = vunpack.c.l.b16 %v9486
    %v9795 = vunpack.c.h.b16 %v9486
    %v9796 = vunpack.c.l.b16 %v9487
    %v9797 = vunpack.c.h.b16 %v9487
    %v9798 = vunpack.c.l.b16 %v9488
    %v9799 = vunpack.c.h.b16 %v9488
    %v9800 = vunpack.c.l.b16 %v9489
    %v9801 = vunpack.c.h.b16 %v9489
    %v9802 = vunpack.c.l.b16 %v9490
    %v9803 = vunpack.c.h.b16 %v9490
    %v9804 = vunpack.c.l.b16 %v9491
    %v9805 = vunpack.c.h.b16 %v9491
    %v9806 = vunpack.c.l.b16 %v9492
    %v9807 = vunpack.c.h.b16 %v9492
    %v9808 = vunpack.c.l.b16 %v9493
    %v9809 = vunpack.c.h.b16 %v9493
    %v9810 = vunpack.c.l.b16 %v9494
    %v9811 = vunpack.c.h.b16 %v9494
    %v9812 = vpack.c.b16 %v9758, %v9756
    %v9813 = vpack.c.b16 %v9759, %v9757
    %v9814 = vpack.c.b16 %v9762, %v9760
    %v9815 = vpack.c.b16 %v9763, %v9761
    %v9816 = vpack.c.b16 %v9766, %v9764
    %v9817 = vpack.c.b16 %v9767, %v9765
    %v9818 = vpack.c.b16 %v9770, %v9768
    %v9819 = vpack.c.b16 %v9771, %v9769
    %v9820 = vpack.c.b16 %v9774, %v9772
    %v9821 = vpack.c.b16 %v9775, %v9773
    %v9822 = vpack.c.b16 %v9778, %v9776
    %v9823 = vpack.c.b16 %v9779, %v9777
    %v9824 = vpack.c.b16 %v9782, %v9780
    %v9825 = vpack.c.b16 %v9783, %v9781
    %v9826 = vpack.c.b16 %v9786, %v9784
    %v9827 = vpack.c.b16 %v9787, %v9785
    %v9828 = vpack.c.b16 %v9790, %v9788
    %v9829 = vpack.c.b16 %v9791, %v9789
    %v9830 = vpack.c.b16 %v9794, %v9792
    %v9831 = vpack.c.b16 %v9795, %v9793
    %v9832 = vpack.c.b16 %v9798, %v9796
    %v9833 = vpack.c.b16 %v9799, %v9797
    %v9834 = vpack.c.b16 %v9802, %v9800
    %v9835 = vpack.c.b16 %v9803, %v9801
    %v9836 = vpack.c.b16 %v9806, %v9804
    %v9837 = vpack.c.b16 %v9807, %v9805
    %v9838 = vpack.c.b16 %v9810, %v9808
    %v9839 = vpack.c.b16 %v9811, %v9809
    %v9868 = vsel %vm1061, %v9527, 0
    %9870 = vmatprep.subr.bf16.mxu0 %v9827
    %9871 = vmatpush1.bf16.msra.mxu0 %v9826
    %9872 = vmatprep.subr.bf16.mxu0 %v9825
    %9873 = vmatpush1.bf16.msra.mxu0 %v9824
    %9874 = vmatprep.subr.bf16.mxu0 %v9823
    %9875 = vmatpush1.bf16.msra.mxu0 %v9822
    %9876 = vmatprep.subr.bf16.mxu0 %v9821
    %9877 = vmatpush1.bf16.msra.mxu0 %v9820
    %9878 = vmatprep.subr.bf16.mxu0 %v9819
    %9879 = vmatpush1.bf16.msra.mxu0 %v9818
    %9880 = vmatprep.subr.bf16.mxu0 %v9817
    %9881 = vmatpush1.bf16.msra.mxu0 %v9816
    %9882 = vmatprep.subr.bf16.mxu0 %v9815
    %9883 = vmatpush1.bf16.msra.mxu0 %v9814
    %9884 = vmatprep.subr.bf16.mxu0 %v9813
    %9885 = vmatpush1.bf16.msra.mxu0 %v9812
    %9886 = vmatprep.subr.bf16.mxu0 0
    %9887 = vmatpush2.bf16.msra.mxu0 0
    %9888 = vmatprep.subr.bf16.mxu0 0
    %9889 = vmatpush2.bf16.msra.mxu0 0
    %9890 = vmatprep.subr.bf16.mxu0 %v9839
    %9891 = vmatpush2.bf16.msra.mxu0 %v9838
    %9892 = vmatprep.subr.bf16.mxu0 %v9837
    %9893 = vmatpush2.bf16.msra.mxu0 %v9836
    %9894 = vmatprep.subr.bf16.mxu0 %v9835
    %9895 = vmatpush2.bf16.msra.mxu0 %v9834
    %9896 = vmatprep.subr.bf16.mxu0 %v9833
    %9897 = vmatpush2.bf16.msra.mxu0 %v9832
    %9898 = vmatprep.subr.bf16.mxu0 %v9831
    %9899 = vmatpush2.bf16.msra.mxu0 %v9830
    %9900 = vmatprep.subr.bf16.mxu0 %v9829
    %9901 = vmatpush2.bf16.msra.mxu0 %v9828
    %9902 = vmatprep.mubr.bf16.mxu0 %v9868
    %9903 = vmatmul.mubr.bf16.gmra.mxu0 %v9526
    %v9904 = vpop.f32.mrf.mxu0
    %v9905 = vadd.f32 %v9721, %v9904
    %v9906 = vpop.f32.mrf.mxu0
    %v9907 = vadd.f32 %v9723, %v9906
    %v9908 = vpop.f32.mrf.mxu0
    %v9909 = vpop.f32.mrf.mxu0
    %9910 = vdwg.mxu0
    %v9911 = vld [vmem:[#allocation18] sm:$0x7f]
    %v9912 = vld [vmem:[#allocation18 + $0x8] sm:$0x7f]
    %v9913 = vadd.f32 %v9905, %v9911
    %v9914 = vadd.f32 %v9907, %v9912
    %v9915 = vmax.f32 %v9913, 0.0
    %v9916 = vmax.f32 %v9914, 0.0
    %v9917 = vpack.c.bf16 %v9915, %v9915
    %v9918 = vpack.c.bf16 %v9916, %v9916
    %v9921 = vunpack.c.l.b16 %v9917
    %v9922 = vunpack.c.l.b16 %v9918
    %v9923 = vpack.c.b16 %v9922, %v9921
    %v9925 = vshrl.u32 %v9923, 16
    %v9927 = vrot.slane %v9925, 7
    %v9928 = vshll.u32 %v9923, 16
    %v9930 = vor.u32 %v9927, %v9928
    %s9932 = scalar_lea.vmem [#allocation4], 16
    %v9933 = vld [vmem:[%s9932] sm:$0xff]
    %v9934 = vsel %vm852, %v9930, %v9933
    %9935 = vst [vmem:[%s9932] sm:$0xff] %v9934
    %v9936 = vld [vmem:[%s8907] sm:$0xff]
    %v9937 = vld [vmem:[%s4168] sm:$0xff]
    %v9938 = vld [vmem:[%s4168 + $0x8] sm:$0xff]
    %v9939 = vld [vmem:[%s4168 + $0x10] sm:$0xff]
    %v9940 = vld [vmem:[%s4168 + $0x18] sm:$0xff]
    %v9941 = vld [vmem:[%s4168 + $0x20] sm:$0xff]
    %v9942 = vld [vmem:[%s4168 + $0x28] sm:$0xff]
    %v9943 = vld [vmem:[%s4168 + $0x30] sm:$0xff]
    %v9944 = vld [vmem:[%s4168 + $0x38] sm:$0xff]
    %v9945 = vld [vmem:[%s4168 + $0x40] sm:$0xff]
    %v9946 = vld [vmem:[%s4168 + $0x48] sm:$0xff]
    %v9947 = vld [vmem:[%s4168 + $0x50] sm:$0xff]
    %v9948 = vld [vmem:[%s4168 + $0x58] sm:$0xff]
    %v9949 = vld [vmem:[%s4168 + $0x60] sm:$0xff]
    %v9950 = vld [vmem:[%s4168 + $0x68] sm:$0xff]
    %v9951 = vld [vmem:[%s4168 + $0x70] sm:$0xff]
    %v9952 = vld [vmem:[%s4168 + $0x78] sm:$0xff]
    %v9953 = vld [vmem:[%s4168 + $0x80] sm:$0xff]
    %v9954 = vld [vmem:[%s4168 + $0x88] sm:$0xff]
    %v9955 = vld [vmem:[%s4168 + $0x90] sm:$0xff]
    %v9956 = vld [vmem:[%s4168 + $0x98] sm:$0xff]
    %v9957 = vld [vmem:[%s4168 + $0xa0] sm:$0xff]
    %v9958 = vld [vmem:[%s4168 + $0xa8] sm:$0xff]
    %v9959 = vld [vmem:[%s4168 + $0xb0] sm:$0xff]
    %v9960 = vld [vmem:[%s4168 + $0xb8] sm:$0xff]
    %v9961 = vld [vmem:[%s4168 + $0xc0] sm:$0xff]
    %v9962 = vld [vmem:[%s4168 + $0xc8] sm:$0xff]
    %v9963 = vld [vmem:[%s4168 + $0xd0] sm:$0xff]
    %v9964 = vld [vmem:[%s4168 + $0xd8] sm:$0xff]
    %v9965 = vld [vmem:[%s8907] sm:$0xee]
    %v9966 = vld [vmem:[%s8907 + $0x8] sm:$0x11]
    %v9967 = vld [vmem:[%s4199] sm:$0xff]
    %v9968 = vld [vmem:[%s4199 + $0x8] sm:$0xff]
    %v9969 = vld [vmem:[%s4199 + $0x10] sm:$0xff]
    %v9970 = vld [vmem:[%s4199 + $0x18] sm:$0xff]
    %v9971 = vld [vmem:[%s4199 + $0x20] sm:$0xff]
    %v9972 = vld [vmem:[%s4199 + $0x28] sm:$0xff]
    %v9973 = vld [vmem:[%s4199 + $0x30] sm:$0xff]
    %v9974 = vld [vmem:[%s4199 + $0x38] sm:$0xff]
    %v9975 = vld [vmem:[%s4199 + $0x40] sm:$0xff]
    %v9976 = vld [vmem:[%s4199 + $0x48] sm:$0xff]
    %v9977 = vld [vmem:[%s4199 + $0x50] sm:$0xff]
    %v9978 = vld [vmem:[%s4199 + $0x58] sm:$0xff]
    %v9979 = vld [vmem:[%s4199 + $0x60] sm:$0xff]
    %v9980 = vld [vmem:[%s4199 + $0x68] sm:$0xff]
    %v9981 = vld [vmem:[%s4199 + $0x70] sm:$0xff]
    %v9982 = vld [vmem:[%s4199 + $0x78] sm:$0xff]
    %v9983 = vld [vmem:[%s4199 + $0x80] sm:$0xff]
    %v9984 = vld [vmem:[%s4199 + $0x88] sm:$0xff]
    %v9985 = vld [vmem:[%s4199 + $0x90] sm:$0xff]
    %v9986 = vld [vmem:[%s4199 + $0x98] sm:$0xff]
    %v9987 = vld [vmem:[%s4199 + $0xa0] sm:$0xff]
    %v9988 = vld [vmem:[%s4199 + $0xa8] sm:$0xff]
    %v9989 = vld [vmem:[%s4199 + $0xb0] sm:$0xff]
    %v9990 = vld [vmem:[%s4199 + $0xb8] sm:$0xff]
    %v9991 = vld [vmem:[%s4199 + $0xc0] sm:$0xff]
    %v9992 = vld [vmem:[%s4199 + $0xc8] sm:$0xff]
    %v9993 = vld [vmem:[%s4199 + $0xd0] sm:$0xff]
    %v9994 = vld [vmem:[%s4199 + $0xd8] sm:$0xff]
    %v9997 = vunpack.c.l.b16 %v9965
    %v9998 = vunpack.c.h.b16 %v9965
    %v9999 = vunpack.c.l.b16 %v9966
    %v10000 = vunpack.c.h.b16 %v9966
    %v10001 = vpack.c.b16 %v9999, %v9997
    %v10002 = vpack.c.b16 %v10000, %v9998
    %v10003 = vrot.slane %v10001, 1
    %v10004 = vrot.slane %v10002, 1
    %v10034 = vunpack.c.l.b16 %v9967
    %v10035 = vunpack.c.h.b16 %v9967
    %v10036 = vunpack.c.l.b16 %v9968
    %v10037 = vunpack.c.h.b16 %v9968
    %v10038 = vunpack.c.l.b16 %v9969
    %v10039 = vunpack.c.h.b16 %v9969
    %v10040 = vunpack.c.l.b16 %v9970
    %v10041 = vunpack.c.h.b16 %v9970
    %v10042 = vunpack.c.l.b16 %v9971
    %v10043 = vunpack.c.h.b16 %v9971
    %v10044 = vunpack.c.l.b16 %v9972
    %v10045 = vunpack.c.h.b16 %v9972
    %v10046 = vunpack.c.l.b16 %v9973
    %v10047 = vunpack.c.h.b16 %v9973
    %v10048 = vunpack.c.l.b16 %v9974
    %v10049 = vunpack.c.h.b16 %v9974
    %v10050 = vunpack.c.l.b16 %v9975
    %v10051 = vunpack.c.h.b16 %v9975
    %v10052 = vunpack.c.l.b16 %v9976
    %v10053 = vunpack.c.h.b16 %v9976
    %v10054 = vunpack.c.l.b16 %v9977
    %v10055 = vunpack.c.h.b16 %v9977
    %v10056 = vunpack.c.l.b16 %v9978
    %v10057 = vunpack.c.h.b16 %v9978
    %v10058 = vunpack.c.l.b16 %v9979
    %v10059 = vunpack.c.h.b16 %v9979
    %v10060 = vunpack.c.l.b16 %v9980
    %v10061 = vunpack.c.h.b16 %v9980
    %v10062 = vunpack.c.l.b16 %v9981
    %v10063 = vunpack.c.h.b16 %v9981
    %v10064 = vunpack.c.l.b16 %v9982
    %v10065 = vunpack.c.h.b16 %v9982
    %v10066 = vunpack.c.l.b16 %v9983
    %v10067 = vunpack.c.h.b16 %v9983
    %v10068 = vunpack.c.l.b16 %v9984
    %v10069 = vunpack.c.h.b16 %v9984
    %v10070 = vunpack.c.l.b16 %v9985
    %v10071 = vunpack.c.h.b16 %v9985
    %v10072 = vunpack.c.l.b16 %v9986
    %v10073 = vunpack.c.h.b16 %v9986
    %v10074 = vunpack.c.l.b16 %v9987
    %v10075 = vunpack.c.h.b16 %v9987
    %v10076 = vunpack.c.l.b16 %v9988
    %v10077 = vunpack.c.h.b16 %v9988
    %v10078 = vunpack.c.l.b16 %v9989
    %v10079 = vunpack.c.h.b16 %v9989
    %v10080 = vunpack.c.l.b16 %v9990
    %v10081 = vunpack.c.h.b16 %v9990
    %v10082 = vunpack.c.l.b16 %v9991
    %v10083 = vunpack.c.h.b16 %v9991
    %v10084 = vunpack.c.l.b16 %v9992
    %v10085 = vunpack.c.h.b16 %v9992
    %v10086 = vunpack.c.l.b16 %v9993
    %v10087 = vunpack.c.h.b16 %v9993
    %v10088 = vunpack.c.l.b16 %v9994
    %v10089 = vunpack.c.h.b16 %v9994
    %v10090 = vpack.c.b16 %v10036, %v10034
    %v10091 = vpack.c.b16 %v10037, %v10035
    %v10092 = vpack.c.b16 %v10040, %v10038
    %v10093 = vpack.c.b16 %v10041, %v10039
    %v10094 = vpack.c.b16 %v10044, %v10042
    %v10095 = vpack.c.b16 %v10045, %v10043
    %v10096 = vpack.c.b16 %v10048, %v10046
    %v10097 = vpack.c.b16 %v10049, %v10047
    %v10098 = vpack.c.b16 %v10052, %v10050
    %v10099 = vpack.c.b16 %v10053, %v10051
    %v10100 = vpack.c.b16 %v10056, %v10054
    %v10101 = vpack.c.b16 %v10057, %v10055
    %v10102 = vpack.c.b16 %v10060, %v10058
    %v10103 = vpack.c.b16 %v10061, %v10059
    %v10104 = vpack.c.b16 %v10064, %v10062
    %v10105 = vpack.c.b16 %v10065, %v10063
    %v10106 = vpack.c.b16 %v10068, %v10066
    %v10107 = vpack.c.b16 %v10069, %v10067
    %v10108 = vpack.c.b16 %v10072, %v10070
    %v10109 = vpack.c.b16 %v10073, %v10071
    %v10110 = vpack.c.b16 %v10076, %v10074
    %v10111 = vpack.c.b16 %v10077, %v10075
    %v10112 = vpack.c.b16 %v10080, %v10078
    %v10113 = vpack.c.b16 %v10081, %v10079
    %v10114 = vpack.c.b16 %v10084, %v10082
    %v10115 = vpack.c.b16 %v10085, %v10083
    %v10116 = vpack.c.b16 %v10088, %v10086
    %v10117 = vpack.c.b16 %v10089, %v10087
    %v10147 = vsel %vm1061, %v10004, 0
    %10149 = vmatprep.subr.bf16.mxu0 %v10105
    %10150 = vmatpush1.bf16.msra.mxu0 %v10104
    %10151 = vmatprep.subr.bf16.mxu0 %v10103
    %10152 = vmatpush1.bf16.msra.mxu0 %v10102
    %10153 = vmatprep.subr.bf16.mxu0 %v10101
    %10154 = vmatpush1.bf16.msra.mxu0 %v10100
    %10155 = vmatprep.subr.bf16.mxu0 %v10099
    %10156 = vmatpush1.bf16.msra.mxu0 %v10098
    %10157 = vmatprep.subr.bf16.mxu0 %v10097
    %10158 = vmatpush1.bf16.msra.mxu0 %v10096
    %10159 = vmatprep.subr.bf16.mxu0 %v10095
    %10160 = vmatpush1.bf16.msra.mxu0 %v10094
    %10161 = vmatprep.subr.bf16.mxu0 %v10093
    %10162 = vmatpush1.bf16.msra.mxu0 %v10092
    %10163 = vmatprep.subr.bf16.mxu0 %v10091
    %10164 = vmatpush1.bf16.msra.mxu0 %v10090
    %10165 = vmatprep.subr.bf16.mxu0 0
    %10166 = vmatpush2.bf16.msra.mxu0 0
    %10167 = vmatprep.subr.bf16.mxu0 0
    %10168 = vmatpush2.bf16.msra.mxu0 0
    %10169 = vmatprep.subr.bf16.mxu0 %v10117
    %10170 = vmatpush2.bf16.msra.mxu0 %v10116
    %10171 = vmatprep.subr.bf16.mxu0 %v10115
    %10172 = vmatpush2.bf16.msra.mxu0 %v10114
    %10173 = vmatprep.subr.bf16.mxu0 %v10113
    %10174 = vmatpush2.bf16.msra.mxu0 %v10112
    %10175 = vmatprep.subr.bf16.mxu0 %v10111
    %10176 = vmatpush2.bf16.msra.mxu0 %v10110
    %10177 = vmatprep.subr.bf16.mxu0 %v10109
    %10178 = vmatpush2.bf16.msra.mxu0 %v10108
    %10179 = vmatprep.subr.bf16.mxu0 %v10107
    %10180 = vmatpush2.bf16.msra.mxu0 %v10106
    %10181 = vmatprep.mubr.bf16.mxu0 %v10147
    %10182 = vmatmul.mubr.bf16.gmra.mxu0 %v10003
    %v10183 = vpop.f32.mrf.mxu0
    %v10184 = vadd.f32 0.0, %v10183
    %v10185 = vpop.f32.mrf.mxu0
    %v10186 = vadd.f32 0.0, %v10185
    %v10187 = vpop.f32.mrf.mxu0
    %v10188 = vpop.f32.mrf.mxu0
    %10189 = vdwg.mxu0
    %v10191 = vunpack.c.l.b16 %v9936
    %v10192 = vunpack.c.h.b16 %v9936
    %v10193 = vpack.c.b16 %v10191, %v10191
    %v10194 = vpack.c.b16 %v10192, %v10192
    %v10196 = vshrl.u32 %v10193, 16
    %v10198 = vshll.u32 %v10193, 16
    %v10200 = vrot.slane %v10198, 1
    %v10201 = vor.u32 %v10196, %v10200
    %v10203 = vshrl.u32 %v10194, 16
    %v10205 = vshll.u32 %v10194, 16
    %v10207 = vrot.slane %v10205, 1
    %v10208 = vor.u32 %v10203, %v10207
    %v10238 = vunpack.c.l.b16 %v9937
    %v10239 = vunpack.c.h.b16 %v9937
    %v10240 = vunpack.c.l.b16 %v9938
    %v10241 = vunpack.c.h.b16 %v9938
    %v10242 = vunpack.c.l.b16 %v9939
    %v10243 = vunpack.c.h.b16 %v9939
    %v10244 = vunpack.c.l.b16 %v9940
    %v10245 = vunpack.c.h.b16 %v9940
    %v10246 = vunpack.c.l.b16 %v9941
    %v10247 = vunpack.c.h.b16 %v9941
    %v10248 = vunpack.c.l.b16 %v9942
    %v10249 = vunpack.c.h.b16 %v9942
    %v10250 = vunpack.c.l.b16 %v9943
    %v10251 = vunpack.c.h.b16 %v9943
    %v10252 = vunpack.c.l.b16 %v9944
    %v10253 = vunpack.c.h.b16 %v9944
    %v10254 = vunpack.c.l.b16 %v9945
    %v10255 = vunpack.c.h.b16 %v9945
    %v10256 = vunpack.c.l.b16 %v9946
    %v10257 = vunpack.c.h.b16 %v9946
    %v10258 = vunpack.c.l.b16 %v9947
    %v10259 = vunpack.c.h.b16 %v9947
    %v10260 = vunpack.c.l.b16 %v9948
    %v10261 = vunpack.c.h.b16 %v9948
    %v10262 = vunpack.c.l.b16 %v9949
    %v10263 = vunpack.c.h.b16 %v9949
    %v10264 = vunpack.c.l.b16 %v9950
    %v10265 = vunpack.c.h.b16 %v9950
    %v10266 = vunpack.c.l.b16 %v9951
    %v10267 = vunpack.c.h.b16 %v9951
    %v10268 = vunpack.c.l.b16 %v9952
    %v10269 = vunpack.c.h.b16 %v9952
    %v10270 = vunpack.c.l.b16 %v9953
    %v10271 = vunpack.c.h.b16 %v9953
    %v10272 = vunpack.c.l.b16 %v9954
    %v10273 = vunpack.c.h.b16 %v9954
    %v10274 = vunpack.c.l.b16 %v9955
    %v10275 = vunpack.c.h.b16 %v9955
    %v10276 = vunpack.c.l.b16 %v9956
    %v10277 = vunpack.c.h.b16 %v9956
    %v10278 = vunpack.c.l.b16 %v9957
    %v10279 = vunpack.c.h.b16 %v9957
    %v10280 = vunpack.c.l.b16 %v9958
    %v10281 = vunpack.c.h.b16 %v9958
    %v10282 = vunpack.c.l.b16 %v9959
    %v10283 = vunpack.c.h.b16 %v9959
    %v10284 = vunpack.c.l.b16 %v9960
    %v10285 = vunpack.c.h.b16 %v9960
    %v10286 = vunpack.c.l.b16 %v9961
    %v10287 = vunpack.c.h.b16 %v9961
    %v10288 = vunpack.c.l.b16 %v9962
    %v10289 = vunpack.c.h.b16 %v9962
    %v10290 = vunpack.c.l.b16 %v9963
    %v10291 = vunpack.c.h.b16 %v9963
    %v10292 = vunpack.c.l.b16 %v9964
    %v10293 = vunpack.c.h.b16 %v9964
    %v10294 = vpack.c.b16 %v10240, %v10238
    %v10295 = vpack.c.b16 %v10241, %v10239
    %v10296 = vpack.c.b16 %v10244, %v10242
    %v10297 = vpack.c.b16 %v10245, %v10243
    %v10298 = vpack.c.b16 %v10248, %v10246
    %v10299 = vpack.c.b16 %v10249, %v10247
    %v10300 = vpack.c.b16 %v10252, %v10250
    %v10301 = vpack.c.b16 %v10253, %v10251
    %v10302 = vpack.c.b16 %v10256, %v10254
    %v10303 = vpack.c.b16 %v10257, %v10255
    %v10304 = vpack.c.b16 %v10260, %v10258
    %v10305 = vpack.c.b16 %v10261, %v10259
    %v10306 = vpack.c.b16 %v10264, %v10262
    %v10307 = vpack.c.b16 %v10265, %v10263
    %v10308 = vpack.c.b16 %v10268, %v10266
    %v10309 = vpack.c.b16 %v10269, %v10267
    %v10310 = vpack.c.b16 %v10272, %v10270
    %v10311 = vpack.c.b16 %v10273, %v10271
    %v10312 = vpack.c.b16 %v10276, %v10274
    %v10313 = vpack.c.b16 %v10277, %v10275
    %v10314 = vpack.c.b16 %v10280, %v10278
    %v10315 = vpack.c.b16 %v10281, %v10279
    %v10316 = vpack.c.b16 %v10284, %v10282
    %v10317 = vpack.c.b16 %v10285, %v10283
    %v10318 = vpack.c.b16 %v10288, %v10286
    %v10319 = vpack.c.b16 %v10289, %v10287
    %v10320 = vpack.c.b16 %v10292, %v10290
    %v10321 = vpack.c.b16 %v10293, %v10291
    %v10351 = vsel %vm1061, %v10208, 0
    %10353 = vmatprep.subr.bf16.mxu0 %v10309
    %10354 = vmatpush1.bf16.msra.mxu0 %v10308
    %10355 = vmatprep.subr.bf16.mxu0 %v10307
    %10356 = vmatpush1.bf16.msra.mxu0 %v10306
    %10357 = vmatprep.subr.bf16.mxu0 %v10305
    %10358 = vmatpush1.bf16.msra.mxu0 %v10304
    %10359 = vmatprep.subr.bf16.mxu0 %v10303
    %10360 = vmatpush1.bf16.msra.mxu0 %v10302
    %10361 = vmatprep.subr.bf16.mxu0 %v10301
    %10362 = vmatpush1.bf16.msra.mxu0 %v10300
    %10363 = vmatprep.subr.bf16.mxu0 %v10299
    %10364 = vmatpush1.bf16.msra.mxu0 %v10298
    %10365 = vmatprep.subr.bf16.mxu0 %v10297
    %10366 = vmatpush1.bf16.msra.mxu0 %v10296
    %10367 = vmatprep.subr.bf16.mxu0 %v10295
    %10368 = vmatpush1.bf16.msra.mxu0 %v10294
    %10369 = vmatprep.subr.bf16.mxu0 0
    %10370 = vmatpush2.bf16.msra.mxu0 0
    %10371 = vmatprep.subr.bf16.mxu0 0
    %10372 = vmatpush2.bf16.msra.mxu0 0
    %10373 = vmatprep.subr.bf16.mxu0 %v10321
    %10374 = vmatpush2.bf16.msra.mxu0 %v10320
    %10375 = vmatprep.subr.bf16.mxu0 %v10319
    %10376 = vmatpush2.bf16.msra.mxu0 %v10318
    %10377 = vmatprep.subr.bf16.mxu0 %v10317
    %10378 = vmatpush2.bf16.msra.mxu0 %v10316
    %10379 = vmatprep.subr.bf16.mxu0 %v10315
    %10380 = vmatpush2.bf16.msra.mxu0 %v10314
    %10381 = vmatprep.subr.bf16.mxu0 %v10313
    %10382 = vmatpush2.bf16.msra.mxu0 %v10312
    %10383 = vmatprep.subr.bf16.mxu0 %v10311
    %10384 = vmatpush2.bf16.msra.mxu0 %v10310
    %10385 = vmatprep.mubr.bf16.mxu0 %v10351
    %10386 = vmatmul.mubr.bf16.gmra.mxu0 %v10201
    %v10387 = vpop.f32.mrf.mxu0
    %v10388 = vadd.f32 %v10184, %v10387
    %v10389 = vpop.f32.mrf.mxu0
    %v10390 = vadd.f32 %v10186, %v10389
    %v10391 = vpop.f32.mrf.mxu0
    %v10392 = vpop.f32.mrf.mxu0
    %10393 = vdwg.mxu0
    %v10394 = vld [vmem:[#allocation18] sm:$0x7f]
    %v10395 = vld [vmem:[#allocation18 + $0x8] sm:$0x7f]
    %v10396 = vadd.f32 %v10388, %v10394
    %v10397 = vadd.f32 %v10390, %v10395
    %v10398 = vmax.f32 %v10396, 0.0
    %v10399 = vmax.f32 %v10397, 0.0
    %v10400 = vpack.c.bf16 %v10398, %v10398
    %v10401 = vpack.c.bf16 %v10399, %v10399
    %v10404 = vunpack.c.l.b16 %v10400
    %v10405 = vunpack.c.l.b16 %v10401
    %v10406 = vpack.c.b16 %v10405, %v10404
    %v10408 = vshrl.u32 %v10406, 16
    %v10410 = vrot.slane %v10408, 7
    %v10411 = vshll.u32 %v10406, 16
    %v10413 = vor.u32 %v10410, %v10411
    %s10415 = scalar_lea.vmem [#allocation4], 48
    %v10416 = vld [vmem:[%s10415] sm:$0xff]
    %v10417 = vsel %vm852, %v10413, %v10416
    %10418 = vst [vmem:[%s10415] sm:$0xff] %v10417
    %v10419 = vld [vmem:[%s9932] sm:$0xff]
    %v10420 = vld [vmem:[%s4653] sm:$0xf]
    %v10421 = vld [vmem:[%s4653 + $0x4] sm:$0xf]
    %v10422 = vld [vmem:[%s4653 + $0x8] sm:$0xf]
    %v10423 = vld [vmem:[%s4653 + $0xc] sm:$0xf]
    %v10424 = vld [vmem:[%s4653 + $0x10] sm:$0xf]
    %v10425 = vld [vmem:[%s4653 + $0x14] sm:$0xf]
    %v10426 = vld [vmem:[%s4653 + $0x18] sm:$0xf]
    %v10427 = vld [vmem:[%s4653 + $0x1c] sm:$0xf]
    %v10428 = vld [vmem:[%s4653 + $0x20] sm:$0xf]
    %v10429 = vld [vmem:[%s4653 + $0x24] sm:$0xf]
    %v10430 = vld [vmem:[%s4653 + $0x28] sm:$0xf]
    %v10431 = vld [vmem:[%s4653 + $0x2c] sm:$0xf]
    %v10432 = vld [vmem:[%s4653 + $0x30] sm:$0xf]
    %v10433 = vld [vmem:[%s4653 + $0x34] sm:$0xf]
    %v10434 = vld [vmem:[%s4653 + $0x38] sm:$0xf]
    %v10435 = vld [vmem:[%s4653 + $0x3c] sm:$0xf]
    %v10436 = vld [vmem:[%s4653 + $0x40] sm:$0xf]
    %v10437 = vld [vmem:[%s4653 + $0x44] sm:$0xf]
    %v10438 = vld [vmem:[%s4653 + $0x48] sm:$0xf]
    %v10439 = vld [vmem:[%s4653 + $0x4c] sm:$0xf]
    %v10440 = vld [vmem:[%s4653 + $0x50] sm:$0xf]
    %v10441 = vld [vmem:[%s4653 + $0x54] sm:$0xf]
    %v10442 = vld [vmem:[%s4653 + $0x58] sm:$0xf]
    %v10443 = vld [vmem:[%s4653 + $0x5c] sm:$0xf]
    %v10444 = vld [vmem:[%s4653 + $0x60] sm:$0xf]
    %v10445 = vld [vmem:[%s4653 + $0x64] sm:$0xf]
    %v10446 = vld [vmem:[%s4653 + $0x68] sm:$0xf]
    %v10447 = vld [vmem:[%s4653 + $0x6c] sm:$0xf]
    %v10448 = vld [vmem:[%s10415] sm:$0xff]
    %v10449 = vld [vmem:[%s4683] sm:$0xf]
    %v10450 = vld [vmem:[%s4683 + $0x4] sm:$0xf]
    %v10451 = vld [vmem:[%s4683 + $0x8] sm:$0xf]
    %v10452 = vld [vmem:[%s4683 + $0xc] sm:$0xf]
    %v10453 = vld [vmem:[%s4683 + $0x10] sm:$0xf]
    %v10454 = vld [vmem:[%s4683 + $0x14] sm:$0xf]
    %v10455 = vld [vmem:[%s4683 + $0x18] sm:$0xf]
    %v10456 = vld [vmem:[%s4683 + $0x1c] sm:$0xf]
    %v10457 = vld [vmem:[%s4683 + $0x20] sm:$0xf]
    %v10458 = vld [vmem:[%s4683 + $0x24] sm:$0xf]
    %v10459 = vld [vmem:[%s4683 + $0x28] sm:$0xf]
    %v10460 = vld [vmem:[%s4683 + $0x2c] sm:$0xf]
    %v10461 = vld [vmem:[%s4683 + $0x30] sm:$0xf]
    %v10462 = vld [vmem:[%s4683 + $0x34] sm:$0xf]
    %v10463 = vld [vmem:[%s4683 + $0x38] sm:$0xf]
    %v10464 = vld [vmem:[%s4683 + $0x3c] sm:$0xf]
    %v10465 = vld [vmem:[%s4683 + $0x40] sm:$0xf]
    %v10466 = vld [vmem:[%s4683 + $0x44] sm:$0xf]
    %v10467 = vld [vmem:[%s4683 + $0x48] sm:$0xf]
    %v10468 = vld [vmem:[%s4683 + $0x4c] sm:$0xf]
    %v10469 = vld [vmem:[%s4683 + $0x50] sm:$0xf]
    %v10470 = vld [vmem:[%s4683 + $0x54] sm:$0xf]
    %v10471 = vld [vmem:[%s4683 + $0x58] sm:$0xf]
    %v10472 = vld [vmem:[%s4683 + $0x5c] sm:$0xf]
    %v10473 = vld [vmem:[%s4683 + $0x60] sm:$0xf]
    %v10474 = vld [vmem:[%s4683 + $0x64] sm:$0xf]
    %v10475 = vld [vmem:[%s4683 + $0x68] sm:$0xf]
    %v10476 = vld [vmem:[%s4683 + $0x6c] sm:$0xf]
    %v10478 = vunpack.c.l.b16 %v10448
    %v10479 = vunpack.c.h.b16 %v10448
    %v10480 = vpack.c.b16 %v10478, %v10478
    %v10481 = vpack.c.b16 %v10479, %v10479
    %v10511 = vunpack.c.l.b16 %v10449
    %v10512 = vunpack.c.l.b16 %v10450
    %v10513 = vunpack.c.l.b16 %v10451
    %v10514 = vunpack.c.l.b16 %v10452
    %v10515 = vunpack.c.l.b16 %v10453
    %v10516 = vunpack.c.l.b16 %v10454
    %v10517 = vunpack.c.l.b16 %v10455
    %v10518 = vunpack.c.l.b16 %v10456
    %v10519 = vunpack.c.l.b16 %v10457
    %v10520 = vunpack.c.l.b16 %v10458
    %v10521 = vunpack.c.l.b16 %v10459
    %v10522 = vunpack.c.l.b16 %v10460
    %v10523 = vunpack.c.l.b16 %v10461
    %v10524 = vunpack.c.l.b16 %v10462
    %v10525 = vunpack.c.l.b16 %v10463
    %v10526 = vunpack.c.l.b16 %v10464
    %v10527 = vunpack.c.l.b16 %v10465
    %v10528 = vunpack.c.l.b16 %v10466
    %v10529 = vunpack.c.l.b16 %v10467
    %v10530 = vunpack.c.l.b16 %v10468
    %v10531 = vunpack.c.l.b16 %v10469
    %v10532 = vunpack.c.l.b16 %v10470
    %v10533 = vunpack.c.l.b16 %v10471
    %v10534 = vunpack.c.l.b16 %v10472
    %v10535 = vunpack.c.l.b16 %v10473
    %v10536 = vunpack.c.l.b16 %v10474
    %v10537 = vunpack.c.l.b16 %v10475
    %v10538 = vunpack.c.l.b16 %v10476
    %v10539 = vpack.c.b16 %v10512, %v10511
    %v10540 = vpack.c.b16 %v10514, %v10513
    %v10541 = vpack.c.b16 %v10516, %v10515
    %v10542 = vpack.c.b16 %v10518, %v10517
    %v10543 = vpack.c.b16 %v10520, %v10519
    %v10544 = vpack.c.b16 %v10522, %v10521
    %v10545 = vpack.c.b16 %v10524, %v10523
    %v10546 = vpack.c.b16 %v10526, %v10525
    %v10547 = vpack.c.b16 %v10528, %v10527
    %v10548 = vpack.c.b16 %v10530, %v10529
    %v10549 = vpack.c.b16 %v10532, %v10531
    %v10550 = vpack.c.b16 %v10534, %v10533
    %v10551 = vpack.c.b16 %v10536, %v10535
    %v10552 = vpack.c.b16 %v10538, %v10537
    %v10568 = vsel %vm1061, %v10481, 0
    %10570 = vmatprep.subr.bf16.mxu0 0
    %10571 = vmatpush1.bf16.msra.mxu0 %v10546
    %10572 = vmatprep.subr.bf16.mxu0 0
    %10573 = vmatpush1.bf16.msra.mxu0 %v10545
    %10574 = vmatprep.subr.bf16.mxu0 0
    %10575 = vmatpush1.bf16.msra.mxu0 %v10544
    %10576 = vmatprep.subr.bf16.mxu0 0
    %10577 = vmatpush1.bf16.msra.mxu0 %v10543
    %10578 = vmatprep.subr.bf16.mxu0 0
    %10579 = vmatpush1.bf16.msra.mxu0 %v10542
    %10580 = vmatprep.subr.bf16.mxu0 0
    %10581 = vmatpush1.bf16.msra.mxu0 %v10541
    %10582 = vmatprep.subr.bf16.mxu0 0
    %10583 = vmatpush1.bf16.msra.mxu0 %v10540
    %10584 = vmatprep.subr.bf16.mxu0 0
    %10585 = vmatpush1.bf16.msra.mxu0 %v10539
    %10586 = vmatprep.subr.bf16.mxu0 0
    %10587 = vmatpush2.bf16.msra.mxu0 0
    %10588 = vmatprep.subr.bf16.mxu0 0
    %10589 = vmatpush2.bf16.msra.mxu0 0
    %10590 = vmatprep.subr.bf16.mxu0 0
    %10591 = vmatpush2.bf16.msra.mxu0 %v10552
    %10592 = vmatprep.subr.bf16.mxu0 0
    %10593 = vmatpush2.bf16.msra.mxu0 %v10551
    %10594 = vmatprep.subr.bf16.mxu0 0
    %10595 = vmatpush2.bf16.msra.mxu0 %v10550
    %10596 = vmatprep.subr.bf16.mxu0 0
    %10597 = vmatpush2.bf16.msra.mxu0 %v10549
    %10598 = vmatprep.subr.bf16.mxu0 0
    %10599 = vmatpush2.bf16.msra.mxu0 %v10548
    %10600 = vmatprep.subr.bf16.mxu0 0
    %10601 = vmatpush2.bf16.msra.mxu0 %v10547
    %10602 = vmatprep.mubr.bf16.mxu0 %v10568
    %10603 = vmatmul.mubr.bf16.gmra.mxu0 %v10480
    %v10604 = vpop.f32.mrf.mxu0
    %v10605 = vadd.f32 0.0, %v10604
    %v10606 = vpop.f32.mrf.mxu0
    %v10607 = vpop.f32.mrf.mxu0
    %v10608 = vpop.f32.mrf.mxu0
    %10609 = vdwg.mxu0
    %v10611 = vunpack.c.l.b16 %v10419
    %v10612 = vunpack.c.h.b16 %v10419
    %v10613 = vpack.c.b16 %v10611, %v10611
    %v10614 = vpack.c.b16 %v10612, %v10612
    %v10616 = vshrl.u32 %v10613, 16
    %v10618 = vshll.u32 %v10613, 16
    %v10620 = vrot.slane %v10618, 1
    %v10621 = vor.u32 %v10616, %v10620
    %v10623 = vshrl.u32 %v10614, 16
    %v10625 = vshll.u32 %v10614, 16
    %v10627 = vrot.slane %v10625, 1
    %v10628 = vor.u32 %v10623, %v10627
    %v10658 = vunpack.c.l.b16 %v10420
    %v10659 = vunpack.c.l.b16 %v10421
    %v10660 = vunpack.c.l.b16 %v10422
    %v10661 = vunpack.c.l.b16 %v10423
    %v10662 = vunpack.c.l.b16 %v10424
    %v10663 = vunpack.c.l.b16 %v10425
    %v10664 = vunpack.c.l.b16 %v10426
    %v10665 = vunpack.c.l.b16 %v10427
    %v10666 = vunpack.c.l.b16 %v10428
    %v10667 = vunpack.c.l.b16 %v10429
    %v10668 = vunpack.c.l.b16 %v10430
    %v10669 = vunpack.c.l.b16 %v10431
    %v10670 = vunpack.c.l.b16 %v10432
    %v10671 = vunpack.c.l.b16 %v10433
    %v10672 = vunpack.c.l.b16 %v10434
    %v10673 = vunpack.c.l.b16 %v10435
    %v10674 = vunpack.c.l.b16 %v10436
    %v10675 = vunpack.c.l.b16 %v10437
    %v10676 = vunpack.c.l.b16 %v10438
    %v10677 = vunpack.c.l.b16 %v10439
    %v10678 = vunpack.c.l.b16 %v10440
    %v10679 = vunpack.c.l.b16 %v10441
    %v10680 = vunpack.c.l.b16 %v10442
    %v10681 = vunpack.c.l.b16 %v10443
    %v10682 = vunpack.c.l.b16 %v10444
    %v10683 = vunpack.c.l.b16 %v10445
    %v10684 = vunpack.c.l.b16 %v10446
    %v10685 = vunpack.c.l.b16 %v10447
    %v10686 = vpack.c.b16 %v10659, %v10658
    %v10687 = vpack.c.b16 %v10661, %v10660
    %v10688 = vpack.c.b16 %v10663, %v10662
    %v10689 = vpack.c.b16 %v10665, %v10664
    %v10690 = vpack.c.b16 %v10667, %v10666
    %v10691 = vpack.c.b16 %v10669, %v10668
    %v10692 = vpack.c.b16 %v10671, %v10670
    %v10693 = vpack.c.b16 %v10673, %v10672
    %v10694 = vpack.c.b16 %v10675, %v10674
    %v10695 = vpack.c.b16 %v10677, %v10676
    %v10696 = vpack.c.b16 %v10679, %v10678
    %v10697 = vpack.c.b16 %v10681, %v10680
    %v10698 = vpack.c.b16 %v10683, %v10682
    %v10699 = vpack.c.b16 %v10685, %v10684
    %v10715 = vsel %vm1061, %v10628, 0
    %10717 = vmatprep.subr.bf16.mxu0 0
    %10718 = vmatpush1.bf16.msra.mxu0 %v10693
    %10719 = vmatprep.subr.bf16.mxu0 0
    %10720 = vmatpush1.bf16.msra.mxu0 %v10692
    %10721 = vmatprep.subr.bf16.mxu0 0
    %10722 = vmatpush1.bf16.msra.mxu0 %v10691
    %10723 = vmatprep.subr.bf16.mxu0 0
    %10724 = vmatpush1.bf16.msra.mxu0 %v10690
    %10725 = vmatprep.subr.bf16.mxu0 0
    %10726 = vmatpush1.bf16.msra.mxu0 %v10689
    %10727 = vmatprep.subr.bf16.mxu0 0
    %10728 = vmatpush1.bf16.msra.mxu0 %v10688
    %10729 = vmatprep.subr.bf16.mxu0 0
    %10730 = vmatpush1.bf16.msra.mxu0 %v10687
    %10731 = vmatprep.subr.bf16.mxu0 0
    %10732 = vmatpush1.bf16.msra.mxu0 %v10686
    %10733 = vmatprep.subr.bf16.mxu0 0
    %10734 = vmatpush2.bf16.msra.mxu0 0
    %10735 = vmatprep.subr.bf16.mxu0 0
    %10736 = vmatpush2.bf16.msra.mxu0 0
    %10737 = vmatprep.subr.bf16.mxu0 0
    %10738 = vmatpush2.bf16.msra.mxu0 %v10699
    %10739 = vmatprep.subr.bf16.mxu0 0
    %10740 = vmatpush2.bf16.msra.mxu0 %v10698
    %10741 = vmatprep.subr.bf16.mxu0 0
    %10742 = vmatpush2.bf16.msra.mxu0 %v10697
    %10743 = vmatprep.subr.bf16.mxu0 0
    %10744 = vmatpush2.bf16.msra.mxu0 %v10696
    %10745 = vmatprep.subr.bf16.mxu0 0
    %10746 = vmatpush2.bf16.msra.mxu0 %v10695
    %10747 = vmatprep.subr.bf16.mxu0 0
    %10748 = vmatpush2.bf16.msra.mxu0 %v10694
    %10749 = vmatprep.mubr.bf16.mxu0 %v10715
    %10750 = vmatmul.mubr.bf16.gmra.mxu0 %v10621
    %v10751 = vpop.f32.mrf.mxu0
    %v10752 = vadd.f32 %v10605, %v10751
    %v10753 = vpop.f32.mrf.mxu0
    %v10754 = vpop.f32.mrf.mxu0
    %v10755 = vpop.f32.mrf.mxu0
    %10756 = vdwg.mxu0
    %v10757 = vld [vmem:[#allocation19] sm:$0x7f]
    %v10758 = vadd.f32 %v10752, %v10757
    %s10759 = scalar_lea.vmem %s17, 32
    %10760 = vst.msk [vmem:[%s10759] sm:$0x7f] %vm4994, %v10758
    %v10761 = vld [vmem:[%s9932] sm:$0xff]
    %v10762 = vld [vmem:[%s4997] sm:$0xf]
    %v10763 = vld [vmem:[%s4997 + $0x4] sm:$0xf]
    %v10764 = vld [vmem:[%s4997 + $0x8] sm:$0xf]
    %v10765 = vld [vmem:[%s4997 + $0xc] sm:$0xf]
    %v10766 = vld [vmem:[%s4997 + $0x10] sm:$0xf]
    %v10767 = vld [vmem:[%s4997 + $0x14] sm:$0xf]
    %v10768 = vld [vmem:[%s4997 + $0x18] sm:$0xf]
    %v10769 = vld [vmem:[%s4997 + $0x1c] sm:$0xf]
    %v10770 = vld [vmem:[%s4997 + $0x20] sm:$0xf]
    %v10771 = vld [vmem:[%s4997 + $0x24] sm:$0xf]
    %v10772 = vld [vmem:[%s4997 + $0x28] sm:$0xf]
    %v10773 = vld [vmem:[%s4997 + $0x2c] sm:$0xf]
    %v10774 = vld [vmem:[%s4997 + $0x30] sm:$0xf]
    %v10775 = vld [vmem:[%s4997 + $0x34] sm:$0xf]
    %v10776 = vld [vmem:[%s4997 + $0x38] sm:$0xf]
    %v10777 = vld [vmem:[%s4997 + $0x3c] sm:$0xf]
    %v10778 = vld [vmem:[%s4997 + $0x40] sm:$0xf]
    %v10779 = vld [vmem:[%s4997 + $0x44] sm:$0xf]
    %v10780 = vld [vmem:[%s4997 + $0x48] sm:$0xf]
    %v10781 = vld [vmem:[%s4997 + $0x4c] sm:$0xf]
    %v10782 = vld [vmem:[%s4997 + $0x50] sm:$0xf]
    %v10783 = vld [vmem:[%s4997 + $0x54] sm:$0xf]
    %v10784 = vld [vmem:[%s4997 + $0x58] sm:$0xf]
    %v10785 = vld [vmem:[%s4997 + $0x5c] sm:$0xf]
    %v10786 = vld [vmem:[%s4997 + $0x60] sm:$0xf]
    %v10787 = vld [vmem:[%s4997 + $0x64] sm:$0xf]
    %v10788 = vld [vmem:[%s4997 + $0x68] sm:$0xf]
    %v10789 = vld [vmem:[%s4997 + $0x6c] sm:$0xf]
    %v10790 = vld [vmem:[%s10415] sm:$0xff]
    %v10791 = vld [vmem:[%s15] sm:$0xf]
    %v10792 = vld [vmem:[%s15 + $0x4] sm:$0xf]
    %v10793 = vld [vmem:[%s15 + $0x8] sm:$0xf]
    %v10794 = vld [vmem:[%s15 + $0xc] sm:$0xf]
    %v10795 = vld [vmem:[%s15 + $0x10] sm:$0xf]
    %v10796 = vld [vmem:[%s15 + $0x14] sm:$0xf]
    %v10797 = vld [vmem:[%s15 + $0x18] sm:$0xf]
    %v10798 = vld [vmem:[%s15 + $0x1c] sm:$0xf]
    %v10799 = vld [vmem:[%s15 + $0x20] sm:$0xf]
    %v10800 = vld [vmem:[%s15 + $0x24] sm:$0xf]
    %v10801 = vld [vmem:[%s15 + $0x28] sm:$0xf]
    %v10802 = vld [vmem:[%s15 + $0x2c] sm:$0xf]
    %v10803 = vld [vmem:[%s15 + $0x30] sm:$0xf]
    %v10804 = vld [vmem:[%s15 + $0x34] sm:$0xf]
    %v10805 = vld [vmem:[%s15 + $0x38] sm:$0xf]
    %v10806 = vld [vmem:[%s15 + $0x3c] sm:$0xf]
    %v10807 = vld [vmem:[%s15 + $0x40] sm:$0xf]
    %v10808 = vld [vmem:[%s15 + $0x44] sm:$0xf]
    %v10809 = vld [vmem:[%s15 + $0x48] sm:$0xf]
    %v10810 = vld [vmem:[%s15 + $0x4c] sm:$0xf]
    %v10811 = vld [vmem:[%s15 + $0x50] sm:$0xf]
    %v10812 = vld [vmem:[%s15 + $0x54] sm:$0xf]
    %v10813 = vld [vmem:[%s15 + $0x58] sm:$0xf]
    %v10814 = vld [vmem:[%s15 + $0x5c] sm:$0xf]
    %v10815 = vld [vmem:[%s15 + $0x60] sm:$0xf]
    %v10816 = vld [vmem:[%s15 + $0x64] sm:$0xf]
    %v10817 = vld [vmem:[%s15 + $0x68] sm:$0xf]
    %v10818 = vld [vmem:[%s15 + $0x6c] sm:$0xf]
    %v10820 = vunpack.c.l.b16 %v10790
    %v10821 = vunpack.c.h.b16 %v10790
    %v10822 = vpack.c.b16 %v10820, %v10820
    %v10823 = vpack.c.b16 %v10821, %v10821
    %v10825 = vshrl.u32 %v10822, 16
    %v10827 = vshll.u32 %v10822, 16
    %v10829 = vrot.slane %v10827, 1
    %v10830 = vor.u32 %v10825, %v10829
    %v10832 = vshrl.u32 %v10823, 16
    %v10834 = vshll.u32 %v10823, 16
    %v10836 = vrot.slane %v10834, 1
    %v10837 = vor.u32 %v10832, %v10836
    %v10867 = vunpack.c.l.b16 %v10791
    %v10868 = vunpack.c.l.b16 %v10792
    %v10869 = vunpack.c.l.b16 %v10793
    %v10870 = vunpack.c.l.b16 %v10794
    %v10871 = vunpack.c.l.b16 %v10795
    %v10872 = vunpack.c.l.b16 %v10796
    %v10873 = vunpack.c.l.b16 %v10797
    %v10874 = vunpack.c.l.b16 %v10798
    %v10875 = vunpack.c.l.b16 %v10799
    %v10876 = vunpack.c.l.b16 %v10800
    %v10877 = vunpack.c.l.b16 %v10801
    %v10878 = vunpack.c.l.b16 %v10802
    %v10879 = vunpack.c.l.b16 %v10803
    %v10880 = vunpack.c.l.b16 %v10804
    %v10881 = vunpack.c.l.b16 %v10805
    %v10882 = vunpack.c.l.b16 %v10806
    %v10883 = vunpack.c.l.b16 %v10807
    %v10884 = vunpack.c.l.b16 %v10808
    %v10885 = vunpack.c.l.b16 %v10809
    %v10886 = vunpack.c.l.b16 %v10810
    %v10887 = vunpack.c.l.b16 %v10811
    %v10888 = vunpack.c.l.b16 %v10812
    %v10889 = vunpack.c.l.b16 %v10813
    %v10890 = vunpack.c.l.b16 %v10814
    %v10891 = vunpack.c.l.b16 %v10815
    %v10892 = vunpack.c.l.b16 %v10816
    %v10893 = vunpack.c.l.b16 %v10817
    %v10894 = vunpack.c.l.b16 %v10818
    %v10895 = vpack.c.b16 %v10868, %v10867
    %v10896 = vpack.c.b16 %v10870, %v10869
    %v10897 = vpack.c.b16 %v10872, %v10871
    %v10898 = vpack.c.b16 %v10874, %v10873
    %v10899 = vpack.c.b16 %v10876, %v10875
    %v10900 = vpack.c.b16 %v10878, %v10877
    %v10901 = vpack.c.b16 %v10880, %v10879
    %v10902 = vpack.c.b16 %v10882, %v10881
    %v10903 = vpack.c.b16 %v10884, %v10883
    %v10904 = vpack.c.b16 %v10886, %v10885
    %v10905 = vpack.c.b16 %v10888, %v10887
    %v10906 = vpack.c.b16 %v10890, %v10889
    %v10907 = vpack.c.b16 %v10892, %v10891
    %v10908 = vpack.c.b16 %v10894, %v10893
    %v10924 = vsel %vm1061, %v10837, 0
    %10926 = vmatprep.subr.bf16.mxu0 0
    %10927 = vmatpush1.bf16.msra.mxu0 %v10902
    %10928 = vmatprep.subr.bf16.mxu0 0
    %10929 = vmatpush1.bf16.msra.mxu0 %v10901
    %10930 = vmatprep.subr.bf16.mxu0 0
    %10931 = vmatpush1.bf16.msra.mxu0 %v10900
    %10932 = vmatprep.subr.bf16.mxu0 0
    %10933 = vmatpush1.bf16.msra.mxu0 %v10899
    %10934 = vmatprep.subr.bf16.mxu0 0
    %10935 = vmatpush1.bf16.msra.mxu0 %v10898
    %10936 = vmatprep.subr.bf16.mxu0 0
    %10937 = vmatpush1.bf16.msra.mxu0 %v10897
    %10938 = vmatprep.subr.bf16.mxu0 0
    %10939 = vmatpush1.bf16.msra.mxu0 %v10896
    %10940 = vmatprep.subr.bf16.mxu0 0
    %10941 = vmatpush1.bf16.msra.mxu0 %v10895
    %10942 = vmatprep.subr.bf16.mxu0 0
    %10943 = vmatpush2.bf16.msra.mxu0 0
    %10944 = vmatprep.subr.bf16.mxu0 0
    %10945 = vmatpush2.bf16.msra.mxu0 0
    %10946 = vmatprep.subr.bf16.mxu0 0
    %10947 = vmatpush2.bf16.msra.mxu0 %v10908
    %10948 = vmatprep.subr.bf16.mxu0 0
    %10949 = vmatpush2.bf16.msra.mxu0 %v10907
    %10950 = vmatprep.subr.bf16.mxu0 0
    %10951 = vmatpush2.bf16.msra.mxu0 %v10906
    %10952 = vmatprep.subr.bf16.mxu0 0
    %10953 = vmatpush2.bf16.msra.mxu0 %v10905
    %10954 = vmatprep.subr.bf16.mxu0 0
    %10955 = vmatpush2.bf16.msra.mxu0 %v10904
    %10956 = vmatprep.subr.bf16.mxu0 0
    %10957 = vmatpush2.bf16.msra.mxu0 %v10903
    %10958 = vmatprep.mubr.bf16.mxu0 %v10924
    %10959 = vmatmul.mubr.bf16.gmra.mxu0 %v10830
    %v10960 = vpop.f32.mrf.mxu0
    %v10961 = vadd.f32 0.0, %v10960
    %v10962 = vpop.f32.mrf.mxu0
    %v10963 = vpop.f32.mrf.mxu0
    %v10964 = vpop.f32.mrf.mxu0
    %10965 = vdwg.mxu0
    %v10967 = vunpack.c.l.b16 %v10761
    %v10968 = vunpack.c.h.b16 %v10761
    %v10969 = vpack.c.b16 %v10967, %v10967
    %v10970 = vpack.c.b16 %v10968, %v10968
    %v10972 = vshrl.u32 %v10969, 16
    %v10974 = vshll.u32 %v10969, 16
    %v10976 = vrot.slane %v10974, 1
    %v10977 = vor.u32 %v10972, %v10976
    %v10979 = vshrl.u32 %v10970, 16
    %v10981 = vshll.u32 %v10970, 16
    %v10983 = vrot.slane %v10981, 1
    %v10984 = vor.u32 %v10979, %v10983
    %v11014 = vunpack.c.l.b16 %v10762
    %v11015 = vunpack.c.l.b16 %v10763
    %v11016 = vunpack.c.l.b16 %v10764
    %v11017 = vunpack.c.l.b16 %v10765
    %v11018 = vunpack.c.l.b16 %v10766
    %v11019 = vunpack.c.l.b16 %v10767
    %v11020 = vunpack.c.l.b16 %v10768
    %v11021 = vunpack.c.l.b16 %v10769
    %v11022 = vunpack.c.l.b16 %v10770
    %v11023 = vunpack.c.l.b16 %v10771
    %v11024 = vunpack.c.l.b16 %v10772
    %v11025 = vunpack.c.l.b16 %v10773
    %v11026 = vunpack.c.l.b16 %v10774
    %v11027 = vunpack.c.l.b16 %v10775
    %v11028 = vunpack.c.l.b16 %v10776
    %v11029 = vunpack.c.l.b16 %v10777
    %v11030 = vunpack.c.l.b16 %v10778
    %v11031 = vunpack.c.l.b16 %v10779
    %v11032 = vunpack.c.l.b16 %v10780
    %v11033 = vunpack.c.l.b16 %v10781
    %v11034 = vunpack.c.l.b16 %v10782
    %v11035 = vunpack.c.l.b16 %v10783
    %v11036 = vunpack.c.l.b16 %v10784
    %v11037 = vunpack.c.l.b16 %v10785
    %v11038 = vunpack.c.l.b16 %v10786
    %v11039 = vunpack.c.l.b16 %v10787
    %v11040 = vunpack.c.l.b16 %v10788
    %v11041 = vunpack.c.l.b16 %v10789
    %v11042 = vpack.c.b16 %v11015, %v11014
    %v11043 = vpack.c.b16 %v11017, %v11016
    %v11044 = vpack.c.b16 %v11019, %v11018
    %v11045 = vpack.c.b16 %v11021, %v11020
    %v11046 = vpack.c.b16 %v11023, %v11022
    %v11047 = vpack.c.b16 %v11025, %v11024
    %v11048 = vpack.c.b16 %v11027, %v11026
    %v11049 = vpack.c.b16 %v11029, %v11028
    %v11050 = vpack.c.b16 %v11031, %v11030
    %v11051 = vpack.c.b16 %v11033, %v11032
    %v11052 = vpack.c.b16 %v11035, %v11034
    %v11053 = vpack.c.b16 %v11037, %v11036
    %v11054 = vpack.c.b16 %v11039, %v11038
    %v11055 = vpack.c.b16 %v11041, %v11040
    %v11071 = vsel %vm1061, %v10984, 0
    %11073 = vmatprep.subr.bf16.mxu0 0
    %11074 = vmatpush1.bf16.msra.mxu0 %v11049
    %11075 = vmatprep.subr.bf16.mxu0 0
    %11076 = vmatpush1.bf16.msra.mxu0 %v11048
    %11077 = vmatprep.subr.bf16.mxu0 0
    %11078 = vmatpush1.bf16.msra.mxu0 %v11047
    %11079 = vmatprep.subr.bf16.mxu0 0
    %11080 = vmatpush1.bf16.msra.mxu0 %v11046
    %11081 = vmatprep.subr.bf16.mxu0 0
    %11082 = vmatpush1.bf16.msra.mxu0 %v11045
    %11083 = vmatprep.subr.bf16.mxu0 0
    %11084 = vmatpush1.bf16.msra.mxu0 %v11044
    %11085 = vmatprep.subr.bf16.mxu0 0
    %11086 = vmatpush1.bf16.msra.mxu0 %v11043
    %11087 = vmatprep.subr.bf16.mxu0 0
    %11088 = vmatpush1.bf16.msra.mxu0 %v11042
    %11089 = vmatprep.subr.bf16.mxu0 0
    %11090 = vmatpush2.bf16.msra.mxu0 0
    %11091 = vmatprep.subr.bf16.mxu0 0
    %11092 = vmatpush2.bf16.msra.mxu0 0
    %11093 = vmatprep.subr.bf16.mxu0 0
    %11094 = vmatpush2.bf16.msra.mxu0 %v11055
    %11095 = vmatprep.subr.bf16.mxu0 0
    %11096 = vmatpush2.bf16.msra.mxu0 %v11054
    %11097 = vmatprep.subr.bf16.mxu0 0
    %11098 = vmatpush2.bf16.msra.mxu0 %v11053
    %11099 = vmatprep.subr.bf16.mxu0 0
    %11100 = vmatpush2.bf16.msra.mxu0 %v11052
    %11101 = vmatprep.subr.bf16.mxu0 0
    %11102 = vmatpush2.bf16.msra.mxu0 %v11051
    %11103 = vmatprep.subr.bf16.mxu0 0
    %11104 = vmatpush2.bf16.msra.mxu0 %v11050
    %11105 = vmatprep.mubr.bf16.mxu0 %v11071
    %11106 = vmatmul.mubr.bf16.gmra.mxu0 %v10977
    %v11107 = vpop.f32.mrf.mxu0
    %v11108 = vadd.f32 %v10961, %v11107
    %v11109 = vpop.f32.mrf.mxu0
    %v11110 = vpop.f32.mrf.mxu0
    %v11111 = vpop.f32.mrf.mxu0
    %11112 = vdwg.mxu0
    %v11113 = vld [vmem:[#allocation19] sm:$0x7f]
    %v11114 = vadd.f32 %v11108, %v11113
    %s11115 = scalar_lea.vmem %s17, 40
    %11116 = vst.msk [vmem:[%s11115] sm:$0x7f] %vm4994, %v11114
    %v11117 = vld [vmem:[%s10415] sm:$0xff]
    %v11118 = vld [vmem:[%s4653] sm:$0xf]
    %v11119 = vld [vmem:[%s4653 + $0x4] sm:$0xf]
    %v11120 = vld [vmem:[%s4653 + $0x8] sm:$0xf]
    %v11121 = vld [vmem:[%s4653 + $0xc] sm:$0xf]
    %v11122 = vld [vmem:[%s4653 + $0x10] sm:$0xf]
    %v11123 = vld [vmem:[%s4653 + $0x14] sm:$0xf]
    %v11124 = vld [vmem:[%s4653 + $0x18] sm:$0xf]
    %v11125 = vld [vmem:[%s4653 + $0x1c] sm:$0xf]
    %v11126 = vld [vmem:[%s4653 + $0x20] sm:$0xf]
    %v11127 = vld [vmem:[%s4653 + $0x24] sm:$0xf]
    %v11128 = vld [vmem:[%s4653 + $0x28] sm:$0xf]
    %v11129 = vld [vmem:[%s4653 + $0x2c] sm:$0xf]
    %v11130 = vld [vmem:[%s4653 + $0x30] sm:$0xf]
    %v11131 = vld [vmem:[%s4653 + $0x34] sm:$0xf]
    %v11132 = vld [vmem:[%s4653 + $0x38] sm:$0xf]
    %v11133 = vld [vmem:[%s4653 + $0x3c] sm:$0xf]
    %v11134 = vld [vmem:[%s4653 + $0x40] sm:$0xf]
    %v11135 = vld [vmem:[%s4653 + $0x44] sm:$0xf]
    %v11136 = vld [vmem:[%s4653 + $0x48] sm:$0xf]
    %v11137 = vld [vmem:[%s4653 + $0x4c] sm:$0xf]
    %v11138 = vld [vmem:[%s4653 + $0x50] sm:$0xf]
    %v11139 = vld [vmem:[%s4653 + $0x54] sm:$0xf]
    %v11140 = vld [vmem:[%s4653 + $0x58] sm:$0xf]
    %v11141 = vld [vmem:[%s4653 + $0x5c] sm:$0xf]
    %v11142 = vld [vmem:[%s4653 + $0x60] sm:$0xf]
    %v11143 = vld [vmem:[%s4653 + $0x64] sm:$0xf]
    %v11144 = vld [vmem:[%s4653 + $0x68] sm:$0xf]
    %v11145 = vld [vmem:[%s4653 + $0x6c] sm:$0xf]
    %v11146 = vld [vmem:[%s9932] sm:$0xff]
    %v11147 = vld [vmem:[%s4683] sm:$0xf]
    %v11148 = vld [vmem:[%s4683 + $0x4] sm:$0xf]
    %v11149 = vld [vmem:[%s4683 + $0x8] sm:$0xf]
    %v11150 = vld [vmem:[%s4683 + $0xc] sm:$0xf]
    %v11151 = vld [vmem:[%s4683 + $0x10] sm:$0xf]
    %v11152 = vld [vmem:[%s4683 + $0x14] sm:$0xf]
    %v11153 = vld [vmem:[%s4683 + $0x18] sm:$0xf]
    %v11154 = vld [vmem:[%s4683 + $0x1c] sm:$0xf]
    %v11155 = vld [vmem:[%s4683 + $0x20] sm:$0xf]
    %v11156 = vld [vmem:[%s4683 + $0x24] sm:$0xf]
    %v11157 = vld [vmem:[%s4683 + $0x28] sm:$0xf]
    %v11158 = vld [vmem:[%s4683 + $0x2c] sm:$0xf]
    %v11159 = vld [vmem:[%s4683 + $0x30] sm:$0xf]
    %v11160 = vld [vmem:[%s4683 + $0x34] sm:$0xf]
    %v11161 = vld [vmem:[%s4683 + $0x38] sm:$0xf]
    %v11162 = vld [vmem:[%s4683 + $0x3c] sm:$0xf]
    %v11163 = vld [vmem:[%s4683 + $0x40] sm:$0xf]
    %v11164 = vld [vmem:[%s4683 + $0x44] sm:$0xf]
    %v11165 = vld [vmem:[%s4683 + $0x48] sm:$0xf]
    %v11166 = vld [vmem:[%s4683 + $0x4c] sm:$0xf]
    %v11167 = vld [vmem:[%s4683 + $0x50] sm:$0xf]
    %v11168 = vld [vmem:[%s4683 + $0x54] sm:$0xf]
    %v11169 = vld [vmem:[%s4683 + $0x58] sm:$0xf]
    %v11170 = vld [vmem:[%s4683 + $0x5c] sm:$0xf]
    %v11171 = vld [vmem:[%s4683 + $0x60] sm:$0xf]
    %v11172 = vld [vmem:[%s4683 + $0x64] sm:$0xf]
    %v11173 = vld [vmem:[%s4683 + $0x68] sm:$0xf]
    %v11174 = vld [vmem:[%s4683 + $0x6c] sm:$0xf]
    %v11176 = vunpack.c.l.b16 %v11146
    %v11177 = vunpack.c.h.b16 %v11146
    %v11178 = vpack.c.b16 %v11176, %v11176
    %v11179 = vpack.c.b16 %v11177, %v11177
    %v11181 = vshrl.u32 %v11178, 16
    %v11183 = vshll.u32 %v11178, 16
    %v11185 = vrot.slane %v11183, 1
    %v11186 = vor.u32 %v11181, %v11185
    %v11188 = vshrl.u32 %v11179, 16
    %v11190 = vshll.u32 %v11179, 16
    %v11192 = vrot.slane %v11190, 1
    %v11193 = vor.u32 %v11188, %v11192
    %v11223 = vunpack.c.l.b16 %v11147
    %v11224 = vunpack.c.l.b16 %v11148
    %v11225 = vunpack.c.l.b16 %v11149
    %v11226 = vunpack.c.l.b16 %v11150
    %v11227 = vunpack.c.l.b16 %v11151
    %v11228 = vunpack.c.l.b16 %v11152
    %v11229 = vunpack.c.l.b16 %v11153
    %v11230 = vunpack.c.l.b16 %v11154
    %v11231 = vunpack.c.l.b16 %v11155
    %v11232 = vunpack.c.l.b16 %v11156
    %v11233 = vunpack.c.l.b16 %v11157
    %v11234 = vunpack.c.l.b16 %v11158
    %v11235 = vunpack.c.l.b16 %v11159
    %v11236 = vunpack.c.l.b16 %v11160
    %v11237 = vunpack.c.l.b16 %v11161
    %v11238 = vunpack.c.l.b16 %v11162
    %v11239 = vunpack.c.l.b16 %v11163
    %v11240 = vunpack.c.l.b16 %v11164
    %v11241 = vunpack.c.l.b16 %v11165
    %v11242 = vunpack.c.l.b16 %v11166
    %v11243 = vunpack.c.l.b16 %v11167
    %v11244 = vunpack.c.l.b16 %v11168
    %v11245 = vunpack.c.l.b16 %v11169
    %v11246 = vunpack.c.l.b16 %v11170
    %v11247 = vunpack.c.l.b16 %v11171
    %v11248 = vunpack.c.l.b16 %v11172
    %v11249 = vunpack.c.l.b16 %v11173
    %v11250 = vunpack.c.l.b16 %v11174
    %v11251 = vpack.c.b16 %v11224, %v11223
    %v11252 = vpack.c.b16 %v11226, %v11225
    %v11253 = vpack.c.b16 %v11228, %v11227
    %v11254 = vpack.c.b16 %v11230, %v11229
    %v11255 = vpack.c.b16 %v11232, %v11231
    %v11256 = vpack.c.b16 %v11234, %v11233
    %v11257 = vpack.c.b16 %v11236, %v11235
    %v11258 = vpack.c.b16 %v11238, %v11237
    %v11259 = vpack.c.b16 %v11240, %v11239
    %v11260 = vpack.c.b16 %v11242, %v11241
    %v11261 = vpack.c.b16 %v11244, %v11243
    %v11262 = vpack.c.b16 %v11246, %v11245
    %v11263 = vpack.c.b16 %v11248, %v11247
    %v11264 = vpack.c.b16 %v11250, %v11249
    %v11280 = vsel %vm1061, %v11193, 0
    %11282 = vmatprep.subr.bf16.mxu0 0
    %11283 = vmatpush1.bf16.msra.mxu0 %v11258
    %11284 = vmatprep.subr.bf16.mxu0 0
    %11285 = vmatpush1.bf16.msra.mxu0 %v11257
    %11286 = vmatprep.subr.bf16.mxu0 0
    %11287 = vmatpush1.bf16.msra.mxu0 %v11256
    %11288 = vmatprep.subr.bf16.mxu0 0
    %11289 = vmatpush1.bf16.msra.mxu0 %v11255
    %11290 = vmatprep.subr.bf16.mxu0 0
    %11291 = vmatpush1.bf16.msra.mxu0 %v11254
    %11292 = vmatprep.subr.bf16.mxu0 0
    %11293 = vmatpush1.bf16.msra.mxu0 %v11253
    %11294 = vmatprep.subr.bf16.mxu0 0
    %11295 = vmatpush1.bf16.msra.mxu0 %v11252
    %11296 = vmatprep.subr.bf16.mxu0 0
    %11297 = vmatpush1.bf16.msra.mxu0 %v11251
    %11298 = vmatprep.subr.bf16.mxu0 0
    %11299 = vmatpush2.bf16.msra.mxu0 0
    %11300 = vmatprep.subr.bf16.mxu0 0
    %11301 = vmatpush2.bf16.msra.mxu0 0
    %11302 = vmatprep.subr.bf16.mxu0 0
    %11303 = vmatpush2.bf16.msra.mxu0 %v11264
    %11304 = vmatprep.subr.bf16.mxu0 0
    %11305 = vmatpush2.bf16.msra.mxu0 %v11263
    %11306 = vmatprep.subr.bf16.mxu0 0
    %11307 = vmatpush2.bf16.msra.mxu0 %v11262
    %11308 = vmatprep.subr.bf16.mxu0 0
    %11309 = vmatpush2.bf16.msra.mxu0 %v11261
    %11310 = vmatprep.subr.bf16.mxu0 0
    %11311 = vmatpush2.bf16.msra.mxu0 %v11260
    %11312 = vmatprep.subr.bf16.mxu0 0
    %11313 = vmatpush2.bf16.msra.mxu0 %v11259
    %11314 = vmatprep.mubr.bf16.mxu0 %v11280
    %11315 = vmatmul.mubr.bf16.gmra.mxu0 %v11186
    %v11316 = vpop.f32.mrf.mxu0
    %v11317 = vadd.f32 0.0, %v11316
    %v11318 = vpop.f32.mrf.mxu0
    %v11319 = vpop.f32.mrf.mxu0
    %v11320 = vpop.f32.mrf.mxu0
    %11321 = vdwg.mxu0
    %v11323 = vunpack.c.l.b16 %v11117
    %v11324 = vunpack.c.h.b16 %v11117
    %v11325 = vpack.c.b16 %v11323, %v11323
    %v11326 = vpack.c.b16 %v11324, %v11324
    %v11328 = vshrl.u32 %v11325, 16
    %v11330 = vshll.u32 %v11325, 16
    %v11332 = vrot.slane %v11330, 1
    %v11333 = vor.u32 %v11328, %v11332
    %v11335 = vshrl.u32 %v11326, 16
    %v11337 = vshll.u32 %v11326, 16
    %v11339 = vrot.slane %v11337, 1
    %v11340 = vor.u32 %v11335, %v11339
    %v11370 = vunpack.c.l.b16 %v11118
    %v11371 = vunpack.c.l.b16 %v11119
    %v11372 = vunpack.c.l.b16 %v11120
    %v11373 = vunpack.c.l.b16 %v11121
    %v11374 = vunpack.c.l.b16 %v11122
    %v11375 = vunpack.c.l.b16 %v11123
    %v11376 = vunpack.c.l.b16 %v11124
    %v11377 = vunpack.c.l.b16 %v11125
    %v11378 = vunpack.c.l.b16 %v11126
    %v11379 = vunpack.c.l.b16 %v11127
    %v11380 = vunpack.c.l.b16 %v11128
    %v11381 = vunpack.c.l.b16 %v11129
    %v11382 = vunpack.c.l.b16 %v11130
    %v11383 = vunpack.c.l.b16 %v11131
    %v11384 = vunpack.c.l.b16 %v11132
    %v11385 = vunpack.c.l.b16 %v11133
    %v11386 = vunpack.c.l.b16 %v11134
    %v11387 = vunpack.c.l.b16 %v11135
    %v11388 = vunpack.c.l.b16 %v11136
    %v11389 = vunpack.c.l.b16 %v11137
    %v11390 = vunpack.c.l.b16 %v11138
    %v11391 = vunpack.c.l.b16 %v11139
    %v11392 = vunpack.c.l.b16 %v11140
    %v11393 = vunpack.c.l.b16 %v11141
    %v11394 = vunpack.c.l.b16 %v11142
    %v11395 = vunpack.c.l.b16 %v11143
    %v11396 = vunpack.c.l.b16 %v11144
    %v11397 = vunpack.c.l.b16 %v11145
    %v11398 = vpack.c.b16 %v11371, %v11370
    %v11399 = vpack.c.b16 %v11373, %v11372
    %v11400 = vpack.c.b16 %v11375, %v11374
    %v11401 = vpack.c.b16 %v11377, %v11376
    %v11402 = vpack.c.b16 %v11379, %v11378
    %v11403 = vpack.c.b16 %v11381, %v11380
    %v11404 = vpack.c.b16 %v11383, %v11382
    %v11405 = vpack.c.b16 %v11385, %v11384
    %v11406 = vpack.c.b16 %v11387, %v11386
    %v11407 = vpack.c.b16 %v11389, %v11388
    %v11408 = vpack.c.b16 %v11391, %v11390
    %v11409 = vpack.c.b16 %v11393, %v11392
    %v11410 = vpack.c.b16 %v11395, %v11394
    %v11411 = vpack.c.b16 %v11397, %v11396
    %v11427 = vsel %vm1061, %v11340, 0
    %11429 = vmatprep.subr.bf16.mxu0 0
    %11430 = vmatpush1.bf16.msra.mxu0 %v11405
    %11431 = vmatprep.subr.bf16.mxu0 0
    %11432 = vmatpush1.bf16.msra.mxu0 %v11404
    %11433 = vmatprep.subr.bf16.mxu0 0
    %11434 = vmatpush1.bf16.msra.mxu0 %v11403
    %11435 = vmatprep.subr.bf16.mxu0 0
    %11436 = vmatpush1.bf16.msra.mxu0 %v11402
    %11437 = vmatprep.subr.bf16.mxu0 0
    %11438 = vmatpush1.bf16.msra.mxu0 %v11401
    %11439 = vmatprep.subr.bf16.mxu0 0
    %11440 = vmatpush1.bf16.msra.mxu0 %v11400
    %11441 = vmatprep.subr.bf16.mxu0 0
    %11442 = vmatpush1.bf16.msra.mxu0 %v11399
    %11443 = vmatprep.subr.bf16.mxu0 0
    %11444 = vmatpush1.bf16.msra.mxu0 %v11398
    %11445 = vmatprep.subr.bf16.mxu0 0
    %11446 = vmatpush2.bf16.msra.mxu0 0
    %11447 = vmatprep.subr.bf16.mxu0 0
    %11448 = vmatpush2.bf16.msra.mxu0 0
    %11449 = vmatprep.subr.bf16.mxu0 0
    %11450 = vmatpush2.bf16.msra.mxu0 %v11411
    %11451 = vmatprep.subr.bf16.mxu0 0
    %11452 = vmatpush2.bf16.msra.mxu0 %v11410
    %11453 = vmatprep.subr.bf16.mxu0 0
    %11454 = vmatpush2.bf16.msra.mxu0 %v11409
    %11455 = vmatprep.subr.bf16.mxu0 0
    %11456 = vmatpush2.bf16.msra.mxu0 %v11408
    %11457 = vmatprep.subr.bf16.mxu0 0
    %11458 = vmatpush2.bf16.msra.mxu0 %v11407
    %11459 = vmatprep.subr.bf16.mxu0 0
    %11460 = vmatpush2.bf16.msra.mxu0 %v11406
    %11461 = vmatprep.mubr.bf16.mxu0 %v11427
    %11462 = vmatmul.mubr.bf16.gmra.mxu0 %v11333
    %v11463 = vpop.f32.mrf.mxu0
    %v11464 = vadd.f32 %v11317, %v11463
    %v11465 = vpop.f32.mrf.mxu0
    %v11466 = vpop.f32.mrf.mxu0
    %v11467 = vpop.f32.mrf.mxu0
    %11468 = vdwg.mxu0
    %v11469 = vld [vmem:[#allocation19] sm:$0x7f]
    %v11470 = vadd.f32 %v11464, %v11469
    %s11471 = scalar_lea.vmem %s17, 48
    %11472 = vst.msk [vmem:[%s11471] sm:$0x7f] %vm4994, %v11470
    %v11473 = vld [vmem:[%s10415] sm:$0xff]
    %v11474 = vld [vmem:[%s4997] sm:$0xf]
    %v11475 = vld [vmem:[%s4997 + $0x4] sm:$0xf]
    %v11476 = vld [vmem:[%s4997 + $0x8] sm:$0xf]
    %v11477 = vld [vmem:[%s4997 + $0xc] sm:$0xf]
    %v11478 = vld [vmem:[%s4997 + $0x10] sm:$0xf]
    %v11479 = vld [vmem:[%s4997 + $0x14] sm:$0xf]
    %v11480 = vld [vmem:[%s4997 + $0x18] sm:$0xf]
    %v11481 = vld [vmem:[%s4997 + $0x1c] sm:$0xf]
    %v11482 = vld [vmem:[%s4997 + $0x20] sm:$0xf]
    %v11483 = vld [vmem:[%s4997 + $0x24] sm:$0xf]
    %v11484 = vld [vmem:[%s4997 + $0x28] sm:$0xf]
    %v11485 = vld [vmem:[%s4997 + $0x2c] sm:$0xf]
    %v11486 = vld [vmem:[%s4997 + $0x30] sm:$0xf]
    %v11487 = vld [vmem:[%s4997 + $0x34] sm:$0xf]
    %v11488 = vld [vmem:[%s4997 + $0x38] sm:$0xf]
    %v11489 = vld [vmem:[%s4997 + $0x3c] sm:$0xf]
    %v11490 = vld [vmem:[%s4997 + $0x40] sm:$0xf]
    %v11491 = vld [vmem:[%s4997 + $0x44] sm:$0xf]
    %v11492 = vld [vmem:[%s4997 + $0x48] sm:$0xf]
    %v11493 = vld [vmem:[%s4997 + $0x4c] sm:$0xf]
    %v11494 = vld [vmem:[%s4997 + $0x50] sm:$0xf]
    %v11495 = vld [vmem:[%s4997 + $0x54] sm:$0xf]
    %v11496 = vld [vmem:[%s4997 + $0x58] sm:$0xf]
    %v11497 = vld [vmem:[%s4997 + $0x5c] sm:$0xf]
    %v11498 = vld [vmem:[%s4997 + $0x60] sm:$0xf]
    %v11499 = vld [vmem:[%s4997 + $0x64] sm:$0xf]
    %v11500 = vld [vmem:[%s4997 + $0x68] sm:$0xf]
    %v11501 = vld [vmem:[%s4997 + $0x6c] sm:$0xf]
    %v11502 = vld [vmem:[%s9932] sm:$0xee]
    %v11503 = vld [vmem:[%s9932 + $0x8] sm:$0x11]
    %v11504 = vld [vmem:[%s15] sm:$0xf]
    %v11505 = vld [vmem:[%s15 + $0x4] sm:$0xf]
    %v11506 = vld [vmem:[%s15 + $0x8] sm:$0xf]
    %v11507 = vld [vmem:[%s15 + $0xc] sm:$0xf]
    %v11508 = vld [vmem:[%s15 + $0x10] sm:$0xf]
    %v11509 = vld [vmem:[%s15 + $0x14] sm:$0xf]
    %v11510 = vld [vmem:[%s15 + $0x18] sm:$0xf]
    %v11511 = vld [vmem:[%s15 + $0x1c] sm:$0xf]
    %v11512 = vld [vmem:[%s15 + $0x20] sm:$0xf]
    %v11513 = vld [vmem:[%s15 + $0x24] sm:$0xf]
    %v11514 = vld [vmem:[%s15 + $0x28] sm:$0xf]
    %v11515 = vld [vmem:[%s15 + $0x2c] sm:$0xf]
    %v11516 = vld [vmem:[%s15 + $0x30] sm:$0xf]
    %v11517 = vld [vmem:[%s15 + $0x34] sm:$0xf]
    %v11518 = vld [vmem:[%s15 + $0x38] sm:$0xf]
    %v11519 = vld [vmem:[%s15 + $0x3c] sm:$0xf]
    %v11520 = vld [vmem:[%s15 + $0x40] sm:$0xf]
    %v11521 = vld [vmem:[%s15 + $0x44] sm:$0xf]
    %v11522 = vld [vmem:[%s15 + $0x48] sm:$0xf]
    %v11523 = vld [vmem:[%s15 + $0x4c] sm:$0xf]
    %v11524 = vld [vmem:[%s15 + $0x50] sm:$0xf]
    %v11525 = vld [vmem:[%s15 + $0x54] sm:$0xf]
    %v11526 = vld [vmem:[%s15 + $0x58] sm:$0xf]
    %v11527 = vld [vmem:[%s15 + $0x5c] sm:$0xf]
    %v11528 = vld [vmem:[%s15 + $0x60] sm:$0xf]
    %v11529 = vld [vmem:[%s15 + $0x64] sm:$0xf]
    %v11530 = vld [vmem:[%s15 + $0x68] sm:$0xf]
    %v11531 = vld [vmem:[%s15 + $0x6c] sm:$0xf]
    %v11534 = vunpack.c.l.b16 %v11502
    %v11535 = vunpack.c.h.b16 %v11502
    %v11536 = vunpack.c.l.b16 %v11503
    %v11537 = vunpack.c.h.b16 %v11503
    %v11538 = vpack.c.b16 %v11536, %v11534
    %v11539 = vpack.c.b16 %v11537, %v11535
    %v11540 = vrot.slane %v11538, 1
    %v11541 = vrot.slane %v11539, 1
    %v11571 = vunpack.c.l.b16 %v11504
    %v11572 = vunpack.c.l.b16 %v11505
    %v11573 = vunpack.c.l.b16 %v11506
    %v11574 = vunpack.c.l.b16 %v11507
    %v11575 = vunpack.c.l.b16 %v11508
    %v11576 = vunpack.c.l.b16 %v11509
    %v11577 = vunpack.c.l.b16 %v11510
    %v11578 = vunpack.c.l.b16 %v11511
    %v11579 = vunpack.c.l.b16 %v11512
    %v11580 = vunpack.c.l.b16 %v11513
    %v11581 = vunpack.c.l.b16 %v11514
    %v11582 = vunpack.c.l.b16 %v11515
    %v11583 = vunpack.c.l.b16 %v11516
    %v11584 = vunpack.c.l.b16 %v11517
    %v11585 = vunpack.c.l.b16 %v11518
    %v11586 = vunpack.c.l.b16 %v11519
    %v11587 = vunpack.c.l.b16 %v11520
    %v11588 = vunpack.c.l.b16 %v11521
    %v11589 = vunpack.c.l.b16 %v11522
    %v11590 = vunpack.c.l.b16 %v11523
    %v11591 = vunpack.c.l.b16 %v11524
    %v11592 = vunpack.c.l.b16 %v11525
    %v11593 = vunpack.c.l.b16 %v11526
    %v11594 = vunpack.c.l.b16 %v11527
    %v11595 = vunpack.c.l.b16 %v11528
    %v11596 = vunpack.c.l.b16 %v11529
    %v11597 = vunpack.c.l.b16 %v11530
    %v11598 = vunpack.c.l.b16 %v11531
    %v11599 = vpack.c.b16 %v11572, %v11571
    %v11600 = vpack.c.b16 %v11574, %v11573
    %v11601 = vpack.c.b16 %v11576, %v11575
    %v11602 = vpack.c.b16 %v11578, %v11577
    %v11603 = vpack.c.b16 %v11580, %v11579
    %v11604 = vpack.c.b16 %v11582, %v11581
    %v11605 = vpack.c.b16 %v11584, %v11583
    %v11606 = vpack.c.b16 %v11586, %v11585
    %v11607 = vpack.c.b16 %v11588, %v11587
    %v11608 = vpack.c.b16 %v11590, %v11589
    %v11609 = vpack.c.b16 %v11592, %v11591
    %v11610 = vpack.c.b16 %v11594, %v11593
    %v11611 = vpack.c.b16 %v11596, %v11595
    %v11612 = vpack.c.b16 %v11598, %v11597
    %v11628 = vsel %vm1061, %v11541, 0
    %11630 = vmatprep.subr.bf16.mxu0 0
    %11631 = vmatpush1.bf16.msra.mxu0 %v11606
    %11632 = vmatprep.subr.bf16.mxu0 0
    %11633 = vmatpush1.bf16.msra.mxu0 %v11605
    %11634 = vmatprep.subr.bf16.mxu0 0
    %11635 = vmatpush1.bf16.msra.mxu0 %v11604
    %11636 = vmatprep.subr.bf16.mxu0 0
    %11637 = vmatpush1.bf16.msra.mxu0 %v11603
    %11638 = vmatprep.subr.bf16.mxu0 0
    %11639 = vmatpush1.bf16.msra.mxu0 %v11602
    %11640 = vmatprep.subr.bf16.mxu0 0
    %11641 = vmatpush1.bf16.msra.mxu0 %v11601
    %11642 = vmatprep.subr.bf16.mxu0 0
    %11643 = vmatpush1.bf16.msra.mxu0 %v11600
    %11644 = vmatprep.subr.bf16.mxu0 0
    %11645 = vmatpush1.bf16.msra.mxu0 %v11599
    %11646 = vmatprep.subr.bf16.mxu0 0
    %11647 = vmatpush2.bf16.msra.mxu0 0
    %11648 = vmatprep.subr.bf16.mxu0 0
    %11649 = vmatpush2.bf16.msra.mxu0 0
    %11650 = vmatprep.subr.bf16.mxu0 0
    %11651 = vmatpush2.bf16.msra.mxu0 %v11612
    %11652 = vmatprep.subr.bf16.mxu0 0
    %11653 = vmatpush2.bf16.msra.mxu0 %v11611
    %11654 = vmatprep.subr.bf16.mxu0 0
    %11655 = vmatpush2.bf16.msra.mxu0 %v11610
    %11656 = vmatprep.subr.bf16.mxu0 0
    %11657 = vmatpush2.bf16.msra.mxu0 %v11609
    %11658 = vmatprep.subr.bf16.mxu0 0
    %11659 = vmatpush2.bf16.msra.mxu0 %v11608
    %11660 = vmatprep.subr.bf16.mxu0 0
    %11661 = vmatpush2.bf16.msra.mxu0 %v11607
    %11662 = vmatprep.mubr.bf16.mxu0 %v11628
    %11663 = vmatmul.mubr.bf16.gmra.mxu0 %v11540
    %v11664 = vpop.f32.mrf.mxu0
    %v11665 = vadd.f32 0.0, %v11664
    %v11666 = vpop.f32.mrf.mxu0
    %v11667 = vpop.f32.mrf.mxu0
    %v11668 = vpop.f32.mrf.mxu0
    %11669 = vdwg.mxu0
    %v11671 = vunpack.c.l.b16 %v11473
    %v11672 = vunpack.c.h.b16 %v11473
    %v11673 = vpack.c.b16 %v11671, %v11671
    %v11674 = vpack.c.b16 %v11672, %v11672
    %v11676 = vshrl.u32 %v11673, 16
    %v11678 = vshll.u32 %v11673, 16
    %v11680 = vrot.slane %v11678, 1
    %v11681 = vor.u32 %v11676, %v11680
    %v11683 = vshrl.u32 %v11674, 16
    %v11685 = vshll.u32 %v11674, 16
    %v11687 = vrot.slane %v11685, 1
    %v11688 = vor.u32 %v11683, %v11687
    %v11718 = vunpack.c.l.b16 %v11474
    %v11719 = vunpack.c.l.b16 %v11475
    %v11720 = vunpack.c.l.b16 %v11476
    %v11721 = vunpack.c.l.b16 %v11477
    %v11722 = vunpack.c.l.b16 %v11478
    %v11723 = vunpack.c.l.b16 %v11479
    %v11724 = vunpack.c.l.b16 %v11480
    %v11725 = vunpack.c.l.b16 %v11481
    %v11726 = vunpack.c.l.b16 %v11482
    %v11727 = vunpack.c.l.b16 %v11483
    %v11728 = vunpack.c.l.b16 %v11484
    %v11729 = vunpack.c.l.b16 %v11485
    %v11730 = vunpack.c.l.b16 %v11486
    %v11731 = vunpack.c.l.b16 %v11487
    %v11732 = vunpack.c.l.b16 %v11488
    %v11733 = vunpack.c.l.b16 %v11489
    %v11734 = vunpack.c.l.b16 %v11490
    %v11735 = vunpack.c.l.b16 %v11491
    %v11736 = vunpack.c.l.b16 %v11492
    %v11737 = vunpack.c.l.b16 %v11493
    %v11738 = vunpack.c.l.b16 %v11494
    %v11739 = vunpack.c.l.b16 %v11495
    %v11740 = vunpack.c.l.b16 %v11496
    %v11741 = vunpack.c.l.b16 %v11497
    %v11742 = vunpack.c.l.b16 %v11498
    %v11743 = vunpack.c.l.b16 %v11499
    %v11744 = vunpack.c.l.b16 %v11500
    %v11745 = vunpack.c.l.b16 %v11501
    %v11746 = vpack.c.b16 %v11719, %v11718
    %v11747 = vpack.c.b16 %v11721, %v11720
    %v11748 = vpack.c.b16 %v11723, %v11722
    %v11749 = vpack.c.b16 %v11725, %v11724
    %v11750 = vpack.c.b16 %v11727, %v11726
    %v11751 = vpack.c.b16 %v11729, %v11728
    %v11752 = vpack.c.b16 %v11731, %v11730
    %v11753 = vpack.c.b16 %v11733, %v11732
    %v11754 = vpack.c.b16 %v11735, %v11734
    %v11755 = vpack.c.b16 %v11737, %v11736
    %v11756 = vpack.c.b16 %v11739, %v11738
    %v11757 = vpack.c.b16 %v11741, %v11740
    %v11758 = vpack.c.b16 %v11743, %v11742
    %v11759 = vpack.c.b16 %v11745, %v11744
    %v11775 = vsel %vm1061, %v11688, 0
    %11777 = vmatprep.subr.bf16.mxu0 0
    %11778 = vmatpush1.bf16.msra.mxu0 %v11753
    %11779 = vmatprep.subr.bf16.mxu0 0
    %11780 = vmatpush1.bf16.msra.mxu0 %v11752
    %11781 = vmatprep.subr.bf16.mxu0 0
    %11782 = vmatpush1.bf16.msra.mxu0 %v11751
    %11783 = vmatprep.subr.bf16.mxu0 0
    %11784 = vmatpush1.bf16.msra.mxu0 %v11750
    %11785 = vmatprep.subr.bf16.mxu0 0
    %11786 = vmatpush1.bf16.msra.mxu0 %v11749
    %11787 = vmatprep.subr.bf16.mxu0 0
    %11788 = vmatpush1.bf16.msra.mxu0 %v11748
    %11789 = vmatprep.subr.bf16.mxu0 0
    %11790 = vmatpush1.bf16.msra.mxu0 %v11747
    %11791 = vmatprep.subr.bf16.mxu0 0
    %11792 = vmatpush1.bf16.msra.mxu0 %v11746
    %11793 = vmatprep.subr.bf16.mxu0 0
    %11794 = vmatpush2.bf16.msra.mxu0 0
    %11795 = vmatprep.subr.bf16.mxu0 0
    %11796 = vmatpush2.bf16.msra.mxu0 0
    %11797 = vmatprep.subr.bf16.mxu0 0
    %11798 = vmatpush2.bf16.msra.mxu0 %v11759
    %11799 = vmatprep.subr.bf16.mxu0 0
    %11800 = vmatpush2.bf16.msra.mxu0 %v11758
    %11801 = vmatprep.subr.bf16.mxu0 0
    %11802 = vmatpush2.bf16.msra.mxu0 %v11757
    %11803 = vmatprep.subr.bf16.mxu0 0
    %11804 = vmatpush2.bf16.msra.mxu0 %v11756
    %11805 = vmatprep.subr.bf16.mxu0 0
    %11806 = vmatpush2.bf16.msra.mxu0 %v11755
    %11807 = vmatprep.subr.bf16.mxu0 0
    %11808 = vmatpush2.bf16.msra.mxu0 %v11754
    %11809 = vmatprep.mubr.bf16.mxu0 %v11775
    %11810 = vmatmul.mubr.bf16.gmra.mxu0 %v11681
    %v11811 = vpop.f32.mrf.mxu0
    %v11812 = vadd.f32 %v11665, %v11811
    %v11813 = vpop.f32.mrf.mxu0
    %v11814 = vpop.f32.mrf.mxu0
    %v11815 = vpop.f32.mrf.mxu0
    %11816 = vdwg.mxu0
    %v11817 = vld [vmem:[#allocation19] sm:$0x7f]
    %v11818 = vadd.f32 %v11812, %v11817
    %s11819 = scalar_lea.vmem %s17, 56
    %11820 = vst.msk [vmem:[%s11819] sm:$0x7f] %vm4994, %v11818
    // Predicated region
    $region110: #{autoencoder_forward.1} parent=1 // pred_check
      _
    $region111: #{autoencoder_forward.1} parent=1 // pred_check_branch
      %11822 = sbr.rel (0) target = $region113
    $region112: #{autoencoder_forward.1} parent=1 // pred_region
      _
    $region113: #{autoencoder_forward.1} parent=1 // pred_fallthru
      _
    // Predicated region
    $region114: #{autoencoder_forward.1} parent=1 // pred_check
      _
    $region115: #{autoencoder_forward.1} parent=1 // pred_check_branch
      %11824 = sbr.rel (0) target = $region117
    $region116: #{autoencoder_forward.1} parent=1 // pred_region
      _
    $region117: #{autoencoder_forward.1} parent=1 // pred_fallthru
      _
    %11825 = vsyncpa [#allocation6], 1
    %11826 = vsyncpa [#allocation8], 1
    %11827 = vsyncpa [#allocation11], 1
    %11828 = vsyncpa [#allocation14], 1
    %11829 = vsyncpa [#allocation17], 1
    %11830 = vsyncpa [#allocation20], 1

</llo_original>
